<compile_context>
chip_gen: v7x
topology: tpu7x:2x2x1
jax: 0.10.0
libtpu: 0.0.40
codegen_flags: <defaults>
</compile_context>

<pallas_src>
import jax
import jax.numpy as jnp
from jax.experimental import pallas as pl
from jax.experimental.pallas import tpu as pltpu

B = 2
C, H, W = 768, 7, 7
D_FEAT = C * H * W                 # 37632
D_EMB = 128
D_IN = D_FEAT + 2 * D_EMB          # 37888 (classifier input width)
PAD_IN = 128                       # age(4)/gender(2) zero-padded to 128 lanes
D1 = 512                           # classifier layer-1 width
M_PAD = 8                          # batch rows padded to a full sublane group

TK = 6272                          # layer-1 K tile (49 * 128); 37632 / 6272 = 6
N_K = D_FEAT // TK                 # 6 K tiles total
N_CORES = 2                        # leading "parallel" axis: 2 TCs on v7x
K_PER_CORE = N_K // N_CORES        # 3 K tiles per core
assert TK * N_K == D_FEAT and K_PER_CORE * N_CORES == N_K

# ----------------------------------------------------------------------------
# Packed parameter slab layout (all tiny epilogue params in one f32 slab).
# Every block starts on an 8-row (sublane) boundary; columns are zero-padded
# to the 512-lane slab width.
# ----------------------------------------------------------------------------
_SLAB_LAYOUT = [
    ("wa1", PAD_IN, 64), ("ba1", 1, 64), ("wa2", 64, 128), ("ba2", 1, 128),
    ("wg1", PAD_IN, 64), ("bg1", 1, 64), ("wg2", 64, 128), ("bg2", 1, 128),
    ("w1ea", D_EMB, D1), ("w1eg", D_EMB, D1), ("b1", 1, D1), ("scale", 1, D1),
    ("w2", D1, 128), ("b2", 1, 128), ("w3", 128, 64), ("b3", 1, 64),
    ("w4", 64, 128), ("b4", 1, 128),
]


def _build_offsets():
    off, row = {}, 0
    for name, nr, nc in _SLAB_LAYOUT:
        off[name] = (row, nr, nc)
        row += ((nr + 7) // 8) * 8
    return off, row


_SLAB_OFF, SLAB_ROWS = _build_offsets()        # SLAB_ROWS = 1416


def _slab_get(slab, name):
    r0, nr, nc = _SLAB_OFF[name]
    return slab[r0:r0 + nr, :nc]


# ----------------------------------------------------------------------------
# Kernel 1: layer-1 feature matmul, K-tiled, split across cores.
#   grid = (N_CORES "parallel", K_PER_CORE "arbitrary")
#   Each core streams its half of the int8 w1 block, dequantizes to bf16
#   in-kernel (exact) and accumulates directly into its private (M_PAD, 512)
#   f32 output block (disjoint across the parallel axis, resident across k).
#   The per-channel scale is applied later, once, in the epilogue.
# ----------------------------------------------------------------------------
def layer1_kernel(feat_ref, w1q_ref, part_ref):
    k = pl.program_id(1)

    @pl.when(k == 0)
    def _():
        part_ref[...] = jnp.zeros_like(part_ref)

    w_bf16 = w1q_ref[...].astype(jnp.bfloat16)   # int8 -> bf16 is exact (|q|<=127)
    part_ref[...] += jnp.dot(feat_ref[...], w_bf16,
                             preferred_element_type=jnp.float32)


# ----------------------------------------------------------------------------
# Kernel 2: fused epilogue (single invocation, everything tiny & VMEM-resident)
#   age/gender 2-layer MLPs -> (M,128)+(M,128) embeddings,
#   h1 = sum(per-core partials) * per_channel_scale
#        + age_emb @ w1[37632:37760] + gender_emb @ w1[37760:] + b1,
#   then 512 -> 128 -> 64 -> 1.  w4/b4 are zero-padded to 128 output columns
#   for a lane-dense store; column 0 carries the real scalar output.
#   All parameters come from one packed (SLAB_ROWS, 512) f32 slab.
# ----------------------------------------------------------------------------
def epilogue_kernel(part_ref, age_ref, gen_ref, slab_ref, out_ref):
    f32 = jnp.float32

    def blk(name):
        r0, nr, nc = _SLAB_OFF[name]
        return slab_ref[r0:r0 + nr, :nc]

    def dot(a, w):
        return jnp.dot(a, w, preferred_element_type=f32)

    a = dot(age_ref[...], blk("wa1")) + blk("ba1")
    a = dot(a, blk("wa2")) + blk("ba2")
    g = dot(gen_ref[...], blk("wg1")) + blk("bg1")
    g = dot(g, blk("wg2")) + blk("bg2")

    part = part_ref[...]
    psum = part[:, 0:D1]
    for c in range(1, N_CORES):
        psum = psum + part[:, c * D1:(c + 1) * D1]

    h = (psum * blk("scale")                      # dequant scale, applied once
         + dot(a, blk("w1ea"))
         + dot(g, blk("w1eg"))
         + blk("b1"))

    h = dot(h, blk("w2")) + blk("b2")             # (M, 128)
    h = dot(h, blk("w3")) + blk("b3")             # (M, 64)
    h = dot(h, blk("w4")) + blk("b4")             # (M, 128) padded
    out_ref[...] = h.astype(out_ref.dtype)


# ----------------------------------------------------------------------------
# Parameter init (deterministic, PyTorch nn.Linear-style uniform init).
# Weights are stored (in, out) = transpose of torch's (out, in).
# ----------------------------------------------------------------------------
def _linear(key, fan_in, fan_out, pad_in=None, pad_out=None):
    kw, kb = jax.random.split(key)
    bound = 1.0 / (fan_in ** 0.5)
    w = jax.random.uniform(kw, (fan_in, fan_out), jnp.float32, -bound, bound)
    b = jax.random.uniform(kb, (1, fan_out), jnp.float32, -bound, bound)
    if pad_in is not None:   # zero-pad extra input rows (no-op given zero-padded input)
        w = jnp.zeros((pad_in, fan_out), jnp.float32).at[:fan_in, :].set(w)
    if pad_out is not None:  # zero-pad extra output cols (sliced away in glue)
        w = jnp.zeros((w.shape[0], pad_out), jnp.float32).at[:, :fan_out].set(w)
        b = jnp.zeros((1, pad_out), jnp.float32).at[:, :fan_out].set(b)
    return w, b


def _pack_slab(raw):
    slab = jnp.zeros((SLAB_ROWS, D1), jnp.float32)
    for name, nr, nc in _SLAB_LAYOUT:
        r0, _, _ = _SLAB_OFF[name]
        slab = slab.at[r0:r0 + nr, :nc].set(raw[name].reshape(nr, nc))
    return slab


def init_params(key):
    ks = jax.random.split(key, 8)
    raw = {}
    raw["wa1"], raw["ba1"] = _linear(ks[0], 4, 64, pad_in=PAD_IN)      # linear_age[0]
    raw["wa2"], raw["ba2"] = _linear(ks[1], 64, 128)                   # linear_age[1]
    raw["wg1"], raw["bg1"] = _linear(ks[2], 2, 64, pad_in=PAD_IN)      # linear_gender[0]
    raw["wg2"], raw["bg2"] = _linear(ks[3], 64, 128)                   # linear_gender[1]
    w1, b1 = _linear(ks[4], D_IN, D1)                                  # classifer[0]

    # int8 per-output-channel symmetric quantization of the streamed feature block
    w1f = w1[:D_FEAT]
    scale = jnp.maximum(jnp.max(jnp.abs(w1f), axis=0, keepdims=True) / 127.0, 1e-12)
    w1q = jnp.clip(jnp.round(w1f / scale), -127.0, 127.0).astype(jnp.int8)

    raw["w1ea"] = w1[D_FEAT:D_FEAT + D_EMB]       # age embedding rows of w1
    raw["w1eg"] = w1[D_FEAT + D_EMB:]             # gender embedding rows of w1
    raw["b1"] = b1
    raw["scale"] = scale
    raw["w2"], raw["b2"] = _linear(ks[5], 512, 128)                    # classifer[1]
    raw["w3"], raw["b3"] = _linear(ks[6], 128, 64)                     # classifer[2]
    raw["w4"], raw["b4"] = _linear(ks[7], 64, 1, pad_out=128)          # classifer[3]

    return {"w1q": w1q, "slab": _pack_slab(raw)}


# ----------------------------------------------------------------------------
# Forward wrapper (glue: reshape / pad in plain JAX, all matmuls in Pallas)
# ----------------------------------------------------------------------------
@jax.jit
def net_forward(x, age, gender, p):
    b = x.shape[0]
    feat = x.reshape(b, D_FEAT).astype(jnp.bfloat16)          # (B, 37632), torch .view order
    feat_p = jnp.zeros((M_PAD, D_FEAT), jnp.bfloat16).at[:b].set(feat)
    age = age.reshape(b, -1).astype(jnp.float32)              # (B, 4)
    gender = gender.reshape(b, 2).astype(jnp.float32)         # (B, 2)
    age_p = jnp.zeros((M_PAD, PAD_IN), jnp.float32).at[:b, :4].set(age)
    gen_p = jnp.zeros((M_PAD, PAD_IN), jnp.float32).at[:b, :2].set(gender)

    # ---- layer-1 feature matmul: per-core partial accumulators (M_PAD, 2*512) ----
    partials = pl.pallas_call(
        layer1_kernel,
        out_shape=jax.ShapeDtypeStruct((M_PAD, N_CORES * D1), jnp.float32),
        grid_spec=pltpu.PrefetchScalarGridSpec(
            num_scalar_prefetch=0,
            grid=(N_CORES, K_PER_CORE),
            in_specs=[
                pl.BlockSpec((M_PAD, TK), lambda c, k: (0, c * K_PER_CORE + k)),  # activations
                pl.BlockSpec((TK, D1), lambda c, k: (c * K_PER_CORE + k, 0)),     # w1 (int8)
            ],
            out_specs=pl.BlockSpec((M_PAD, D1), lambda c, k: (0, c)),
        ),
        compiler_params=pltpu.CompilerParams(
            dimension_semantics=("parallel", "arbitrary"),
            vmem_limit_bytes=32 * 1024 * 1024),
    )(feat_p, p["w1q"])

    # ---- fused epilogue: age/gender MLPs + dequant-scale + emb rows + tail MLP ----
    out_pad = pl.pallas_call(
        epilogue_kernel,
        out_shape=jax.ShapeDtypeStruct((M_PAD, 128), jnp.float32),
        in_specs=[pl.BlockSpec(memory_space=pltpu.MemorySpace.VMEM)] * 4,
        out_specs=pl.BlockSpec(memory_space=pltpu.MemorySpace.VMEM),
    )(partials, age_p, gen_p, p["slab"])

    return out_pad[:b, :1]                                    # (B, 1)


# ----------------------------------------------------------------------------
# Pure-JAX reference for verification.  Uses the same bf16-rounded activations
# and the same int8-quantized w1 feature block (dequantized with the same
# per-channel scales) as the kernel, f32 accumulation at HIGHEST precision.
# ----------------------------------------------------------------------------
def reference(x, age, gender, p):
    hp = jax.lax.Precision.HIGHEST
    dot = lambda a, w: jnp.dot(a, w, precision=hp, preferred_element_type=jnp.float32)
    get = lambda name: _slab_get(p["slab"], name)
    b = x.shape[0]
    feat = x.reshape(b, D_FEAT).astype(jnp.bfloat16).astype(jnp.float32)
    w1q = p["w1q"].astype(jnp.float32)
    age_p = jnp.zeros((b, PAD_IN), jnp.float32).at[:, :4].set(age.reshape(b, -1))
    gen_p = jnp.zeros((b, PAD_IN), jnp.float32).at[:, :2].set(gender.reshape(b, 2))
    a = dot(age_p, get("wa1")) + get("ba1")
    a = dot(a, get("wa2")) + get("ba2")
    g = dot(gen_p, get("wg1")) + get("bg1")
    g = dot(g, get("wg2")) + get("bg2")
    h = (dot(feat, w1q) * get("scale")
         + dot(a, get("w1ea")) + dot(g, get("w1eg")) + get("b1"))
    h = dot(h, get("w2")) + get("b2")
    h = dot(h, get("w3")) + get("b3")
    h = dot(h, get("w4")) + get("b4")
    return h[:, :1]


if __name__ == "__main__":
    key = jax.random.PRNGKey(0)
    kx, ka, kg, kp = jax.random.split(key, 4)
    x = jax.random.normal(kx, (B, C, H, W), jnp.float32)      # backbone features (see layout note)
    age = jax.random.normal(ka, (B, 4), jnp.float32)
    gender = jax.random.normal(kg, (B, 2), jnp.float32)
    params = init_params(kp)

    out = net_forward(x, age, gender, params)
    out = jax.block_until_ready(out)

    ref = reference(x, age, gender, params)
    assert out.shape == (B, 1), out.shape
    assert jnp.allclose(out, ref, rtol=2e-3, atol=2e-3), (out, ref)
    print("KERNEL_OK")
</pallas_src>

<mosaic_0001>
module attributes {stable_mosaic.version = 11 : i64} {
  func.func @layer1_kernel(%arg0: i32, %arg1: i32, %arg2: memref<8x6272xbf16, #tpu.memory_space<vmem>>, %arg3: memref<6272x512xi8, #tpu.memory_space<vmem>>, %arg4: memref<8x512xf32, #tpu.memory_space<vmem>>) attributes {dimension_semantics = [#tpu.dimension_semantics<parallel>, #tpu.dimension_semantics<arbitrary>], iteration_bounds = array<i64: 2, 3>, scalar_prefetch = 0 : i64, scratch_operands = 0 : i64, tpu.core_type = #tpu.core_type<tc>, window_params = [{transform_indices = @transform_0, window_bounds = array<i64: 8, 6272>}, {transform_indices = @transform_1, window_bounds = array<i64: 6272, 512>}, {transform_indices = @transform_2, window_bounds = array<i64: 8, 512>}]} {
    %c0_i32 = arith.constant 0 : i32
    %0 = arith.cmpi eq, %arg1, %c0_i32 : i32
    %1 = arith.extui %0 : i1 to i32
    %c0_i32_0 = arith.constant 0 : i32
    %2 = arith.cmpi ne, %1, %c0_i32_0 : i32
    scf.if %2 {
      %cst_8 = arith.constant 0.000000e+00 : f32
      %10 = vector.broadcast %cst_8 : f32 to vector<8x512xf32>
      %c0_9 = arith.constant 0 : index
      %c0_10 = arith.constant 0 : index
      %11 = vector.load %arg4[%c0_9, %c0_10] : memref<8x512xf32, #tpu.memory_space<vmem>>, vector<8x512xf32>
      tpu.vector_store %arg4[%c0_9, %c0_10], %10 {strides = array<i32>} : memref<8x512xf32, #tpu.memory_space<vmem>>, vector<8x512xf32>,
    } else {
    }
    %c0 = arith.constant 0 : index
    %c0_1 = arith.constant 0 : index
    %3 = vector.load %arg3[%c0, %c0_1] : memref<6272x512xi8, #tpu.memory_space<vmem>>, vector<6272x512xi8>
    %4 = arith.sitofp %3 : vector<6272x512xi8> to vector<6272x512xbf16>
    %c0_2 = arith.constant 0 : index
    %c0_3 = arith.constant 0 : index
    %5 = vector.load %arg4[%c0_2, %c0_3] : memref<8x512xf32, #tpu.memory_space<vmem>>, vector<8x512xf32>
    %c0_4 = arith.constant 0 : index
    %c0_5 = arith.constant 0 : index
    %6 = vector.load %arg2[%c0_4, %c0_5] : memref<8x6272xbf16, #tpu.memory_space<vmem>>, vector<8x6272xbf16>
    %cst = arith.constant dense<0.000000e+00> : vector<8x512xf32>
    %7 = tpu.matmul %6, %4, %cst {dimension_numbers = #tpu.dot_dimension_numbers<[1], [0], [0], [1], [0, 0, 1, 1], [], []>} : vector<8x6272xbf16>, vector<6272x512xbf16>, vector<8x512xf32> -> vector<8x512xf32>
    %8 = arith.addf %5, %7 : vector<8x512xf32>
    %c0_6 = arith.constant 0 : index
    %c0_7 = arith.constant 0 : index
    %9 = vector.load %arg4[%c0_6, %c0_7] : memref<8x512xf32, #tpu.memory_space<vmem>>, vector<8x512xf32>
    tpu.vector_store %arg4[%c0_6, %c0_7], %8 {strides = array<i32>} : memref<8x512xf32, #tpu.memory_space<vmem>>, vector<8x512xf32>,
    return
  }
  func.func @transform_0(%arg0: i32, %arg1: i32) -> (i32, i32) {
    %c3_i32 = arith.constant 3 : i32
    %0 = arith.muli %arg0, %c3_i32 : i32
    %1 = arith.addi %0, %arg1 : i32
    %c0_i32 = arith.constant 0 : i32
    %c0_i32_0 = arith.constant 0 : i32
    return %c0_i32, %1 : i32, i32
  }
  func.func @transform_1(%arg0: i32, %arg1: i32) -> (i32, i32) {
    %c3_i32 = arith.constant 3 : i32
    %0 = arith.muli %arg0, %c3_i32 : i32
    %1 = arith.addi %0, %arg1 : i32
    %c0_i32 = arith.constant 0 : i32
    %c0_i32_0 = arith.constant 0 : i32
    return %1, %c0_i32 : i32, i32
  }
  func.func @transform_2(%arg0: i32, %arg1: i32) -> (i32, i32) {
    %c0_i32 = arith.constant 0 : i32
    %c0_i32_0 = arith.constant 0 : i32
    return %c0_i32, %arg0 : i32, i32
  }
}

module attributes {stable_mosaic.version = 11 : i64} {
  func.func @epilogue_kernel(%arg0: memref<8x1024xf32, #tpu.memory_space<vmem>>, %arg1: memref<8x128xf32, #tpu.memory_space<vmem>>, %arg2: memref<8x128xf32, #tpu.memory_space<vmem>>, %arg3: memref<1416x512xf32, #tpu.memory_space<vmem>>, %arg4: memref<8x128xf32, #tpu.memory_space<vmem>>) attributes {dimension_semantics = [], scalar_prefetch = 0 : i64, scratch_operands = 0 : i64, tpu.core_type = #tpu.core_type<tc>} {
    %c0 = arith.constant 0 : index
    %c0_0 = arith.constant 0 : index
    %0 = vector.load %arg1[%c0, %c0_0] : memref<8x128xf32, #tpu.memory_space<vmem>>, vector<8x128xf32>
    %c0_1 = arith.constant 0 : index
    %c0_2 = arith.constant 0 : index
    %1 = vector.load %arg3[%c0_1, %c0_2] : memref<1416x512xf32, #tpu.memory_space<vmem>>, vector<128x64xf32>
    %cst = arith.constant dense<0.000000e+00> : vector<8x64xf32>
    %2 = tpu.matmul %0, %1, %cst {dimension_numbers = #tpu.dot_dimension_numbers<[1], [0], [0], [1], [0, 0, 1, 1], [], []>} : vector<8x128xf32>, vector<128x64xf32>, vector<8x64xf32> -> vector<8x64xf32>
    %c128 = arith.constant 128 : index
    %c0_3 = arith.constant 0 : index
    %3 = vector.load %arg3[%c128, %c0_3] : memref<1416x512xf32, #tpu.memory_space<vmem>>, vector<1x64xf32>
    %4 = vector.broadcast %3 : vector<1x64xf32> to vector<8x64xf32>
    %5 = arith.addf %2, %4 : vector<8x64xf32>
    %c136 = arith.constant 136 : index
    %c0_4 = arith.constant 0 : index
    %6 = vector.load %arg3[%c136, %c0_4] : memref<1416x512xf32, #tpu.memory_space<vmem>>, vector<64x128xf32>
    %cst_5 = arith.constant dense<0.000000e+00> : vector<8x128xf32>
    %7 = tpu.matmul %5, %6, %cst_5 {dimension_numbers = #tpu.dot_dimension_numbers<[1], [0], [0], [1], [0, 0, 1, 1], [], []>} : vector<8x64xf32>, vector<64x128xf32>, vector<8x128xf32> -> vector<8x128xf32>
    %c200 = arith.constant 200 : index
    %c0_6 = arith.constant 0 : index
    %8 = vector.load %arg3[%c200, %c0_6] : memref<1416x512xf32, #tpu.memory_space<vmem>>, vector<1x128xf32>
    %9 = vector.broadcast %8 : vector<1x128xf32> to vector<8x128xf32>
    %10 = arith.addf %7, %9 : vector<8x128xf32>
    %c0_7 = arith.constant 0 : index
    %c0_8 = arith.constant 0 : index
    %11 = vector.load %arg2[%c0_7, %c0_8] : memref<8x128xf32, #tpu.memory_space<vmem>>, vector<8x128xf32>
    %c208 = arith.constant 208 : index
    %c0_9 = arith.constant 0 : index
    %12 = vector.load %arg3[%c208, %c0_9] : memref<1416x512xf32, #tpu.memory_space<vmem>>, vector<128x64xf32>
    %cst_10 = arith.constant dense<0.000000e+00> : vector<8x64xf32>
    %13 = tpu.matmul %11, %12, %cst_10 {dimension_numbers = #tpu.dot_dimension_numbers<[1], [0], [0], [1], [0, 0, 1, 1], [], []>} : vector<8x128xf32>, vector<128x64xf32>, vector<8x64xf32> -> vector<8x64xf32>
    %c336 = arith.constant 336 : index
    %c0_11 = arith.constant 0 : index
    %14 = vector.load %arg3[%c336, %c0_11] : memref<1416x512xf32, #tpu.memory_space<vmem>>, vector<1x64xf32>
    %15 = vector.broadcast %14 : vector<1x64xf32> to vector<8x64xf32>
    %16 = arith.addf %13, %15 : vector<8x64xf32>
    %c344 = arith.constant 344 : index
    %c0_12 = arith.constant 0 : index
    %17 = vector.load %arg3[%c344, %c0_12] : memref<1416x512xf32, #tpu.memory_space<vmem>>, vector<64x128xf32>
    %cst_13 = arith.constant dense<0.000000e+00> : vector<8x128xf32>
    %18 = tpu.matmul %16, %17, %cst_13 {dimension_numbers = #tpu.dot_dimension_numbers<[1], [0], [0], [1], [0, 0, 1, 1], [], []>} : vector<8x64xf32>, vector<64x128xf32>, vector<8x128xf32> -> vector<8x128xf32>
    %c408 = arith.constant 408 : index
    %c0_14 = arith.constant 0 : index
    %19 = vector.load %arg3[%c408, %c0_14] : memref<1416x512xf32, #tpu.memory_space<vmem>>, vector<1x128xf32>
    %20 = vector.broadcast %19 : vector<1x128xf32> to vector<8x128xf32>
    %21 = arith.addf %18, %20 : vector<8x128xf32>
    %c0_15 = arith.constant 0 : index
    %c0_16 = arith.constant 0 : index
    %22 = vector.load %arg0[%c0_15, %c0_16] : memref<8x1024xf32, #tpu.memory_space<vmem>>, vector<8x1024xf32>
    %23 = vector.extract_strided_slice %22 {offsets = [0, 0], sizes = [8, 512], strides = [1, 1]} : vector<8x1024xf32> to vector<8x512xf32>
    %24 = vector.extract_strided_slice %22 {offsets = [0, 512], sizes = [8, 512], strides = [1, 1]} : vector<8x1024xf32> to vector<8x512xf32>
    %25 = arith.addf %23, %24 : vector<8x512xf32>
    %c680 = arith.constant 680 : index
    %c0_17 = arith.constant 0 : index
    %26 = vector.load %arg3[%c680, %c0_17] : memref<1416x512xf32, #tpu.memory_space<vmem>>, vector<1x512xf32>
    %27 = vector.broadcast %26 : vector<1x512xf32> to vector<8x512xf32>
    %28 = arith.mulf %25, %27 : vector<8x512xf32>
    %c416 = arith.constant 416 : index
    %c0_18 = arith.constant 0 : index
    %29 = vector.load %arg3[%c416, %c0_18] : memref<1416x512xf32, #tpu.memory_space<vmem>>, vector<128x512xf32>
    %cst_19 = arith.constant dense<0.000000e+00> : vector<8x512xf32>
    %30 = tpu.matmul %10, %29, %cst_19 {dimension_numbers = #tpu.dot_dimension_numbers<[1], [0], [0], [1], [0, 0, 1, 1], [], []>} : vector<8x128xf32>, vector<128x512xf32>, vector<8x512xf32> -> vector<8x512xf32>
    %31 = arith.addf %28, %30 : vector<8x512xf32>
    %c544 = arith.constant 544 : index
    %c0_20 = arith.constant 0 : index
    %32 = vector.load %arg3[%c544, %c0_20] : memref<1416x512xf32, #tpu.memory_space<vmem>>, vector<128x512xf32>
    %cst_21 = arith.constant dense<0.000000e+00> : vector<8x512xf32>
    %33 = tpu.matmul %21, %32, %cst_21 {dimension_numbers = #tpu.dot_dimension_numbers<[1], [0], [0], [1], [0, 0, 1, 1], [], []>} : vector<8x128xf32>, vector<128x512xf32>, vector<8x512xf32> -> vector<8x512xf32>
    %34 = arith.addf %31, %33 : vector<8x512xf32>
    %c672 = arith.constant 672 : index
    %c0_22 = arith.constant 0 : index
    %35 = vector.load %arg3[%c672, %c0_22] : memref<1416x512xf32, #tpu.memory_space<vmem>>, vector<1x512xf32>
    %36 = vector.broadcast %35 : vector<1x512xf32> to vector<8x512xf32>
    %37 = arith.addf %34, %36 : vector<8x512xf32>
    %c688 = arith.constant 688 : index
    %c0_23 = arith.constant 0 : index
    %38 = vector.load %arg3[%c688, %c0_23] : memref<1416x512xf32, #tpu.memory_space<vmem>>, vector<512x128xf32>
    %cst_24 = arith.constant dense<0.000000e+00> : vector<8x128xf32>
    %39 = tpu.matmul %37, %38, %cst_24 {dimension_numbers = #tpu.dot_dimension_numbers<[1], [0], [0], [1], [0, 0, 1, 1], [], []>} : vector<8x512xf32>, vector<512x128xf32>, vector<8x128xf32> -> vector<8x128xf32>
    %c1200 = arith.constant 1200 : index
    %c0_25 = arith.constant 0 : index
    %40 = vector.load %arg3[%c1200, %c0_25] : memref<1416x512xf32, #tpu.memory_space<vmem>>, vector<1x128xf32>
    %41 = vector.broadcast %40 : vector<1x128xf32> to vector<8x128xf32>
    %42 = arith.addf %39, %41 : vector<8x128xf32>
    %c1208 = arith.constant 1208 : index
    %c0_26 = arith.constant 0 : index
    %43 = vector.load %arg3[%c1208, %c0_26] : memref<1416x512xf32, #tpu.memory_space<vmem>>, vector<128x64xf32>
    %cst_27 = arith.constant dense<0.000000e+00> : vector<8x64xf32>
    %44 = tpu.matmul %42, %43, %cst_27 {dimension_numbers = #tpu.dot_dimension_numbers<[1], [0], [0], [1], [0, 0, 1, 1], [], []>} : vector<8x128xf32>, vector<128x64xf32>, vector<8x64xf32> -> vector<8x64xf32>
    %c1336 = arith.constant 1336 : index
    %c0_28 = arith.constant 0 : index
    %45 = vector.load %arg3[%c1336, %c0_28] : memref<1416x512xf32, #tpu.memory_space<vmem>>, vector<1x64xf32>
    %46 = vector.broadcast %45 : vector<1x64xf32> to vector<8x64xf32>
    %47 = arith.addf %44, %46 : vector<8x64xf32>
    %c1344 = arith.constant 1344 : index
    %c0_29 = arith.constant 0 : index
    %48 = vector.load %arg3[%c1344, %c0_29] : memref<1416x512xf32, #tpu.memory_space<vmem>>, vector<64x128xf32>
    %cst_30 = arith.constant dense<0.000000e+00> : vector<8x128xf32>
    %49 = tpu.matmul %47, %48, %cst_30 {dimension_numbers = #tpu.dot_dimension_numbers<[1], [0], [0], [1], [0, 0, 1, 1], [], []>} : vector<8x64xf32>, vector<64x128xf32>, vector<8x128xf32> -> vector<8x128xf32>
    %c1408 = arith.constant 1408 : index
    %c0_31 = arith.constant 0 : index
    %50 = vector.load %arg3[%c1408, %c0_31] : memref<1416x512xf32, #tpu.memory_space<vmem>>, vector<1x128xf32>
    %51 = vector.broadcast %50 : vector<1x128xf32> to vector<8x128xf32>
    %52 = arith.addf %49, %51 : vector<8x128xf32>
    %c0_32 = arith.constant 0 : index
    %c0_33 = arith.constant 0 : index
    %53 = vector.load %arg4[%c0_32, %c0_33] : memref<8x128xf32, #tpu.memory_space<vmem>>, vector<8x128xf32>
    tpu.vector_store %arg4[%c0_32, %c0_33], %52 {strides = array<i32>} : memref<8x128xf32, #tpu.memory_space<vmem>>, vector<8x128xf32>,
    return
  }
}

</mosaic_0001>

<llo_original>
// kernel: net_forward.3
$region0: #{net_forward.3}
  #allocation0 [shape = 'u32[]', space=smem, size = 0x4, offset = 0x4, fixed_abs, tag = 'smem constant byte address 0x4 - core index']
  #allocation1 [shape = 'u32[144,128]{1,0:T(1,128)}', space=vmem, size = 0x12000, scoped, tag = 'internal scratch']
  %s0 = inlined_call_operand.vmem [shape: f32[8,1024], index: 0, kind: input, shape index: {}]
  %s1 = inlined_call_operand.vmem [shape: f32[8,128], index: 1, kind: input, shape index: {}]
  %s2 = inlined_call_operand.vmem [shape: f32[8,128], index: 2, kind: input, shape index: {}]
  %s3 = inlined_call_operand.vmem [shape: f32[1416,512], index: 3, kind: input, shape index: {}]
  %s4 = inlined_call_operand.vmem [shape: f32[8,128], index: 4, kind: output, shape index: {}]
  %s5 = sld [smem:[#allocation0]]
  $region26: #{net_forward.3} parent=0
    _
  %s7 = ssub.s32 1, %s5
  %s8 = scalar_select 0, %s7, %s5
  // Predicated region
  $region2: #{net_forward.3} parent=0 // pred_check
    _
  $region3: #{net_forward.3} parent=0 // pred_check_branch
    %10 = sbr.rel (0) target = $region5
  $region4: #{net_forward.3} parent=0 // pred_region
    _
  $region5: #{net_forward.3} parent=0 // pred_fallthru
    _
  // Predicated region
  $region6: #{net_forward.3} parent=0 // pred_check
    _
  $region7: #{net_forward.3} parent=0 // pred_check_branch
    %12 = sbr.rel (0) target = $region9
  $region8: #{net_forward.3} parent=0 // pred_region
    _
  $region9: #{net_forward.3} parent=0 // pred_fallthru
    _
  // Predicated region
  $region10: #{net_forward.3} parent=0 // pred_check
    _
  $region11: #{net_forward.3} parent=0 // pred_check_branch
    %14 = sbr.rel (0) target = $region13
  $region12: #{net_forward.3} parent=0 // pred_region
    _
  $region13: #{net_forward.3} parent=0 // pred_fallthru
    _
  // Predicated region
  $region14: #{net_forward.3} parent=0 // pred_check
    _
  $region15: #{net_forward.3} parent=0 // pred_check_branch
    %16 = sbr.rel (0) target = $region17
  $region16: #{net_forward.3} parent=0 // pred_region
    _
  $region17: #{net_forward.3} parent=0 // pred_fallthru
    _
  %v17 = vld [vmem:[%s1] sm:$0xff]
  %v18 = vld [vmem:[%s3] sm:$0xff]
  %v19 = vld [vmem:[%s3 + $0x20] sm:$0xff]
  %v20 = vld [vmem:[%s3 + $0x40] sm:$0xff]
  %v21 = vld [vmem:[%s3 + $0x60] sm:$0xff]
  %v22 = vld [vmem:[%s3 + $0x80] sm:$0xff]
  %v23 = vld [vmem:[%s3 + $0xa0] sm:$0xff]
  %v24 = vld [vmem:[%s3 + $0xc0] sm:$0xff]
  %v25 = vld [vmem:[%s3 + $0xe0] sm:$0xff]
  %v26 = vld [vmem:[%s3 + $0x100] sm:$0xff]
  %v27 = vld [vmem:[%s3 + $0x120] sm:$0xff]
  %v28 = vld [vmem:[%s3 + $0x140] sm:$0xff]
  %v29 = vld [vmem:[%s3 + $0x160] sm:$0xff]
  %v30 = vld [vmem:[%s3 + $0x180] sm:$0xff]
  %v31 = vld [vmem:[%s3 + $0x1a0] sm:$0xff]
  %v32 = vld [vmem:[%s3 + $0x1c0] sm:$0xff]
  %v33 = vld [vmem:[%s3 + $0x1e0] sm:$0xff]
  %v34 = vld [vmem:[%s3 + $0x200] ss:$0 sm:$0xff]
  %35 = vmatprep.subr.mxu0 0.0
  %36 = vmatpush1.msra.mxu0 %v18
  %37 = vmatprep.subr.mxu0 0.0
  %38 = vmatpush1.msra.mxu0 %v19
  %39 = vmatprep.subr.mxu0 0.0
  %40 = vmatpush1.msra.mxu0 %v20
  %41 = vmatprep.subr.mxu0 0.0
  %42 = vmatpush1.msra.mxu0 %v21
  %43 = vmatprep.subr.mxu0 0.0
  %44 = vmatpush1.msra.mxu0 %v22
  %45 = vmatprep.subr.mxu0 0.0
  %46 = vmatpush1.msra.mxu0 %v23
  %47 = vmatprep.subr.mxu0 0.0
  %48 = vmatpush1.msra.mxu0 %v24
  %49 = vmatprep.subr.mxu0 0.0
  %50 = vmatpush1.msra.mxu0 %v25
  %51 = vmatprep.subr.mxu0 0.0
  %52 = vmatpush1.msra.mxu0 %v26
  %53 = vmatprep.subr.mxu0 0.0
  %54 = vmatpush1.msra.mxu0 %v27
  %55 = vmatprep.subr.mxu0 0.0
  %56 = vmatpush1.msra.mxu0 %v28
  %57 = vmatprep.subr.mxu0 0.0
  %58 = vmatpush1.msra.mxu0 %v29
  %59 = vmatprep.subr.mxu0 0.0
  %60 = vmatpush1.msra.mxu0 %v30
  %61 = vmatprep.subr.mxu0 0.0
  %62 = vmatpush1.msra.mxu0 %v31
  %63 = vmatprep.subr.mxu0 0.0
  %64 = vmatpush1.msra.mxu0 %v32
  %65 = vmatprep.subr.mxu0 0.0
  %66 = vmatpush1.msra.mxu0 %v33
  %67 = vmatprep.subr.mxu0 0.0
  %68 = vmatpush1.msra.mxu0 0.0
  %69 = vmatprep.subr.mxu0 0.0
  %70 = vmatpush1.msra.mxu0 0.0
  %71 = vmatprep.subr.mxu0 0.0
  %72 = vmatpush1.msra.mxu0 0.0
  %73 = vmatprep.subr.mxu0 0.0
  %74 = vmatpush1.msra.mxu0 0.0
  %75 = vmatprep.subr.mxu0 0.0
  %76 = vmatpush1.msra.mxu0 0.0
  %77 = vmatprep.subr.mxu0 0.0
  %78 = vmatpush1.msra.mxu0 0.0
  %79 = vmatprep.subr.mxu0 0.0
  %80 = vmatpush1.msra.mxu0 0.0
  %81 = vmatprep.subr.mxu0 0.0
  %82 = vmatpush1.msra.mxu0 0.0
  %83 = vmatprep.subr.mxu0 0.0
  %84 = vmatpush1.msra.mxu0 0.0
  %85 = vmatprep.subr.mxu0 0.0
  %86 = vmatpush1.msra.mxu0 0.0
  %87 = vmatprep.subr.mxu0 0.0
  %88 = vmatpush1.msra.mxu0 0.0
  %89 = vmatprep.subr.mxu0 0.0
  %90 = vmatpush1.msra.mxu0 0.0
  %91 = vmatprep.subr.mxu0 0.0
  %92 = vmatpush1.msra.mxu0 0.0
  %93 = vmatprep.subr.mxu0 0.0
  %94 = vmatpush1.msra.mxu0 0.0
  %95 = vmatprep.subr.mxu0 0.0
  %96 = vmatpush1.msra.mxu0 0.0
  %97 = vmatprep.subr.mxu0 0.0
  %98 = vmatpush1.msra.mxu0 0.0
  %99 = vmatprep.mubr.f32.mxu0 0.0
  %100 = vmatmul.mubr.f32.gmra.mrb[0].mxu0 %v17
  %v101 = vpop.f32.mrb[0].mxu0
  %v102 = vadd.f32 %v34, %v101
  %v103 = vpop.f32.mrb[0].mxu0
  %104 = vdwg.mxu0
  %v105 = vld [vmem:[%s3 + $0x220] sm:$0xff]
  %v106 = vld [vmem:[%s3 + $0x240] sm:$0xff]
  %v107 = vld [vmem:[%s3 + $0x260] sm:$0xff]
  %v108 = vld [vmem:[%s3 + $0x280] sm:$0xff]
  %v109 = vld [vmem:[%s3 + $0x2a0] sm:$0xff]
  %v110 = vld [vmem:[%s3 + $0x2c0] sm:$0xff]
  %v111 = vld [vmem:[%s3 + $0x2e0] sm:$0xff]
  %v112 = vld [vmem:[%s3 + $0x300] sm:$0xff]
  %v113 = vld [vmem:[%s3 + $0x320] ss:$0 sm:$0xff]
  %vm114 = vcmask 523264
  %v116 = vsel %vm114, %v102, 0
  %118 = vmatprep.subr.mxu0 0.0
  %119 = vmatpush1.msra.mxu0 %v105
  %120 = vmatprep.subr.mxu0 0.0
  %121 = vmatpush1.msra.mxu0 %v106
  %122 = vmatprep.subr.mxu0 0.0
  %123 = vmatpush1.msra.mxu0 %v107
  %124 = vmatprep.subr.mxu0 0.0
  %125 = vmatpush1.msra.mxu0 %v108
  %126 = vmatprep.subr.mxu0 0.0
  %127 = vmatpush1.msra.mxu0 %v109
  %128 = vmatprep.subr.mxu0 0.0
  %129 = vmatpush1.msra.mxu0 %v110
  %130 = vmatprep.subr.mxu0 0.0
  %131 = vmatpush1.msra.mxu0 %v111
  %132 = vmatprep.subr.mxu0 0.0
  %133 = vmatpush1.msra.mxu0 %v112
  %134 = vmatprep.subr.mxu0 0.0
  %135 = vmatpush1.msra.mxu0 0.0
  %136 = vmatprep.subr.mxu0 0.0
  %137 = vmatpush1.msra.mxu0 0.0
  %138 = vmatprep.subr.mxu0 0.0
  %139 = vmatpush1.msra.mxu0 0.0
  %140 = vmatprep.subr.mxu0 0.0
  %141 = vmatpush1.msra.mxu0 0.0
  %142 = vmatprep.subr.mxu0 0.0
  %143 = vmatpush1.msra.mxu0 0.0
  %144 = vmatprep.subr.mxu0 0.0
  %145 = vmatpush1.msra.mxu0 0.0
  %146 = vmatprep.subr.mxu0 0.0
  %147 = vmatpush1.msra.mxu0 0.0
  %148 = vmatprep.subr.mxu0 0.0
  %149 = vmatpush1.msra.mxu0 0.0
  %150 = vmatprep.subr.mxu0 0.0
  %151 = vmatpush1.msra.mxu0 0.0
  %152 = vmatprep.subr.mxu0 0.0
  %153 = vmatpush1.msra.mxu0 0.0
  %154 = vmatprep.subr.mxu0 0.0
  %155 = vmatpush1.msra.mxu0 0.0
  %156 = vmatprep.subr.mxu0 0.0
  %157 = vmatpush1.msra.mxu0 0.0
  %158 = vmatprep.subr.mxu0 0.0
  %159 = vmatpush1.msra.mxu0 0.0
  %160 = vmatprep.subr.mxu0 0.0
  %161 = vmatpush1.msra.mxu0 0.0
  %162 = vmatprep.subr.mxu0 0.0
  %163 = vmatpush1.msra.mxu0 0.0
  %164 = vmatprep.subr.mxu0 0.0
  %165 = vmatpush1.msra.mxu0 0.0
  %166 = vmatprep.subr.mxu0 0.0
  %167 = vmatpush1.msra.mxu0 0.0
  %168 = vmatprep.subr.mxu0 0.0
  %169 = vmatpush1.msra.mxu0 0.0
  %170 = vmatprep.subr.mxu0 0.0
  %171 = vmatpush1.msra.mxu0 0.0
  %172 = vmatprep.subr.mxu0 0.0
  %173 = vmatpush1.msra.mxu0 0.0
  %174 = vmatprep.subr.mxu0 0.0
  %175 = vmatpush1.msra.mxu0 0.0
  %176 = vmatprep.subr.mxu0 0.0
  %177 = vmatpush1.msra.mxu0 0.0
  %178 = vmatprep.subr.mxu0 0.0
  %179 = vmatpush1.msra.mxu0 0.0
  %180 = vmatprep.subr.mxu0 0.0
  %181 = vmatpush1.msra.mxu0 0.0
  %182 = vmatprep.mubr.f32.mxu0 0.0
  %183 = vmatmul.mubr.f32.gmra.mrb[0].mxu0 %v116
  %v184 = vpop.f32.mrb[0].mxu0
  %v185 = vadd.f32 %v113, %v184
  %v186 = vpop.f32.mrb[0].mxu0
  %187 = vdwg.mxu0
  %v188 = vld [vmem:[%s2] sm:$0xff]
  %v189 = vld [vmem:[%s3 + $0x340] sm:$0xff]
  %v190 = vld [vmem:[%s3 + $0x360] sm:$0xff]
  %v191 = vld [vmem:[%s3 + $0x380] sm:$0xff]
  %v192 = vld [vmem:[%s3 + $0x3a0] sm:$0xff]
  %v193 = vld [vmem:[%s3 + $0x3c0] sm:$0xff]
  %v194 = vld [vmem:[%s3 + $0x3e0] sm:$0xff]
  %v195 = vld [vmem:[%s3 + $0x400] sm:$0xff]
  %v196 = vld [vmem:[%s3 + $0x420] sm:$0xff]
  %v197 = vld [vmem:[%s3 + $0x440] sm:$0xff]
  %v198 = vld [vmem:[%s3 + $0x460] sm:$0xff]
  %v199 = vld [vmem:[%s3 + $0x480] sm:$0xff]
  %v200 = vld [vmem:[%s3 + $0x4a0] sm:$0xff]
  %v201 = vld [vmem:[%s3 + $0x4c0] sm:$0xff]
  %v202 = vld [vmem:[%s3 + $0x4e0] sm:$0xff]
  %v203 = vld [vmem:[%s3 + $0x500] sm:$0xff]
  %v204 = vld [vmem:[%s3 + $0x520] sm:$0xff]
  %v205 = vld [vmem:[%s3 + $0x540] ss:$0 sm:$0xff]
  %206 = vmatprep.subr.mxu0 0.0
  %207 = vmatpush1.msra.mxu0 %v189
  %208 = vmatprep.subr.mxu0 0.0
  %209 = vmatpush1.msra.mxu0 %v190
  %210 = vmatprep.subr.mxu0 0.0
  %211 = vmatpush1.msra.mxu0 %v191
  %212 = vmatprep.subr.mxu0 0.0
  %213 = vmatpush1.msra.mxu0 %v192
  %214 = vmatprep.subr.mxu0 0.0
  %215 = vmatpush1.msra.mxu0 %v193
  %216 = vmatprep.subr.mxu0 0.0
  %217 = vmatpush1.msra.mxu0 %v194
  %218 = vmatprep.subr.mxu0 0.0
  %219 = vmatpush1.msra.mxu0 %v195
  %220 = vmatprep.subr.mxu0 0.0
  %221 = vmatpush1.msra.mxu0 %v196
  %222 = vmatprep.subr.mxu0 0.0
  %223 = vmatpush1.msra.mxu0 %v197
  %224 = vmatprep.subr.mxu0 0.0
  %225 = vmatpush1.msra.mxu0 %v198
  %226 = vmatprep.subr.mxu0 0.0
  %227 = vmatpush1.msra.mxu0 %v199
  %228 = vmatprep.subr.mxu0 0.0
  %229 = vmatpush1.msra.mxu0 %v200
  %230 = vmatprep.subr.mxu0 0.0
  %231 = vmatpush1.msra.mxu0 %v201
  %232 = vmatprep.subr.mxu0 0.0
  %233 = vmatpush1.msra.mxu0 %v202
  %234 = vmatprep.subr.mxu0 0.0
  %235 = vmatpush1.msra.mxu0 %v203
  %236 = vmatprep.subr.mxu0 0.0
  %237 = vmatpush1.msra.mxu0 %v204
  %238 = vmatprep.subr.mxu0 0.0
  %239 = vmatpush1.msra.mxu0 0.0
  %240 = vmatprep.subr.mxu0 0.0
  %241 = vmatpush1.msra.mxu0 0.0
  %242 = vmatprep.subr.mxu0 0.0
  %243 = vmatpush1.msra.mxu0 0.0
  %244 = vmatprep.subr.mxu0 0.0
  %245 = vmatpush1.msra.mxu0 0.0
  %246 = vmatprep.subr.mxu0 0.0
  %247 = vmatpush1.msra.mxu0 0.0
  %248 = vmatprep.subr.mxu0 0.0
  %249 = vmatpush1.msra.mxu0 0.0
  %250 = vmatprep.subr.mxu0 0.0
  %251 = vmatpush1.msra.mxu0 0.0
  %252 = vmatprep.subr.mxu0 0.0
  %253 = vmatpush1.msra.mxu0 0.0
  %254 = vmatprep.subr.mxu0 0.0
  %255 = vmatpush1.msra.mxu0 0.0
  %256 = vmatprep.subr.mxu0 0.0
  %257 = vmatpush1.msra.mxu0 0.0
  %258 = vmatprep.subr.mxu0 0.0
  %259 = vmatpush1.msra.mxu0 0.0
  %260 = vmatprep.subr.mxu0 0.0
  %261 = vmatpush1.msra.mxu0 0.0
  %262 = vmatprep.subr.mxu0 0.0
  %263 = vmatpush1.msra.mxu0 0.0
  %264 = vmatprep.subr.mxu0 0.0
  %265 = vmatpush1.msra.mxu0 0.0
  %266 = vmatprep.subr.mxu0 0.0
  %267 = vmatpush1.msra.mxu0 0.0
  %268 = vmatprep.subr.mxu0 0.0
  %269 = vmatpush1.msra.mxu0 0.0
  %270 = vmatprep.mubr.f32.mxu0 0.0
  %271 = vmatmul.mubr.f32.gmra.mrb[0].mxu0 %v188
  %v272 = vpop.f32.mrb[0].mxu0
  %v273 = vadd.f32 %v205, %v272
  %v274 = vpop.f32.mrb[0].mxu0
  %275 = vdwg.mxu0
  %v276 = vld [vmem:[%s3 + $0x560] sm:$0xff]
  %v277 = vld [vmem:[%s3 + $0x580] sm:$0xff]
  %v278 = vld [vmem:[%s3 + $0x5a0] sm:$0xff]
  %v279 = vld [vmem:[%s3 + $0x5c0] sm:$0xff]
  %v280 = vld [vmem:[%s3 + $0x5e0] sm:$0xff]
  %v281 = vld [vmem:[%s3 + $0x600] sm:$0xff]
  %v282 = vld [vmem:[%s3 + $0x620] sm:$0xff]
  %v283 = vld [vmem:[%s3 + $0x640] sm:$0xff]
  %v284 = vld [vmem:[%s3 + $0x660] ss:$0 sm:$0xff]
  %v286 = vsel %vm114, %v273, 0
  %288 = vmatprep.subr.mxu0 0.0
  %289 = vmatpush1.msra.mxu0 %v276
  %290 = vmatprep.subr.mxu0 0.0
  %291 = vmatpush1.msra.mxu0 %v277
  %292 = vmatprep.subr.mxu0 0.0
  %293 = vmatpush1.msra.mxu0 %v278
  %294 = vmatprep.subr.mxu0 0.0
  %295 = vmatpush1.msra.mxu0 %v279
  %296 = vmatprep.subr.mxu0 0.0
  %297 = vmatpush1.msra.mxu0 %v280
  %298 = vmatprep.subr.mxu0 0.0
  %299 = vmatpush1.msra.mxu0 %v281
  %300 = vmatprep.subr.mxu0 0.0
  %301 = vmatpush1.msra.mxu0 %v282
  %302 = vmatprep.subr.mxu0 0.0
  %303 = vmatpush1.msra.mxu0 %v283
  %304 = vmatprep.subr.mxu0 0.0
  %305 = vmatpush1.msra.mxu0 0.0
  %306 = vmatprep.subr.mxu0 0.0
  %307 = vmatpush1.msra.mxu0 0.0
  %308 = vmatprep.subr.mxu0 0.0
  %309 = vmatpush1.msra.mxu0 0.0
  %310 = vmatprep.subr.mxu0 0.0
  %311 = vmatpush1.msra.mxu0 0.0
  %312 = vmatprep.subr.mxu0 0.0
  %313 = vmatpush1.msra.mxu0 0.0
  %314 = vmatprep.subr.mxu0 0.0
  %315 = vmatpush1.msra.mxu0 0.0
  %316 = vmatprep.subr.mxu0 0.0
  %317 = vmatpush1.msra.mxu0 0.0
  %318 = vmatprep.subr.mxu0 0.0
  %319 = vmatpush1.msra.mxu0 0.0
  %320 = vmatprep.subr.mxu0 0.0
  %321 = vmatpush1.msra.mxu0 0.0
  %322 = vmatprep.subr.mxu0 0.0
  %323 = vmatpush1.msra.mxu0 0.0
  %324 = vmatprep.subr.mxu0 0.0
  %325 = vmatpush1.msra.mxu0 0.0
  %326 = vmatprep.subr.mxu0 0.0
  %327 = vmatpush1.msra.mxu0 0.0
  %328 = vmatprep.subr.mxu0 0.0
  %329 = vmatpush1.msra.mxu0 0.0
  %330 = vmatprep.subr.mxu0 0.0
  %331 = vmatpush1.msra.mxu0 0.0
  %332 = vmatprep.subr.mxu0 0.0
  %333 = vmatpush1.msra.mxu0 0.0
  %334 = vmatprep.subr.mxu0 0.0
  %335 = vmatpush1.msra.mxu0 0.0
  %336 = vmatprep.subr.mxu0 0.0
  %337 = vmatpush1.msra.mxu0 0.0
  %338 = vmatprep.subr.mxu0 0.0
  %339 = vmatpush1.msra.mxu0 0.0
  %340 = vmatprep.subr.mxu0 0.0
  %341 = vmatpush1.msra.mxu0 0.0
  %342 = vmatprep.subr.mxu0 0.0
  %343 = vmatpush1.msra.mxu0 0.0
  %344 = vmatprep.subr.mxu0 0.0
  %345 = vmatpush1.msra.mxu0 0.0
  %346 = vmatprep.subr.mxu0 0.0
  %347 = vmatpush1.msra.mxu0 0.0
  %348 = vmatprep.subr.mxu0 0.0
  %349 = vmatpush1.msra.mxu0 0.0
  %350 = vmatprep.subr.mxu0 0.0
  %351 = vmatpush1.msra.mxu0 0.0
  %352 = vmatprep.mubr.f32.mxu0 0.0
  %353 = vmatmul.mubr.f32.gmra.mrb[0].mxu0 %v286
  %v354 = vpop.f32.mrb[0].mxu0
  %v355 = vadd.f32 %v284, %v354
  %v356 = vpop.f32.mrb[0].mxu0
  %357 = vdwg.mxu0
  %v358 = vld [vmem:[%s0] sm:$0xff]
  %v359 = vld [vmem:[%s0 + $0x8] sm:$0xff]
  %v360 = vld [vmem:[%s0 + $0x10] sm:$0xff]
  %v361 = vld [vmem:[%s0 + $0x18] sm:$0xff]
  %v362 = vld [vmem:[%s0 + $0x20] sm:$0xff]
  %v363 = vld [vmem:[%s0 + $0x28] sm:$0xff]
  %v364 = vld [vmem:[%s0 + $0x30] sm:$0xff]
  %v365 = vld [vmem:[%s0 + $0x38] sm:$0xff]
  %v366 = vadd.f32 %v358, %v362
  %v367 = vadd.f32 %v359, %v363
  %v368 = vadd.f32 %v360, %v364
  %v369 = vadd.f32 %v361, %v365
  %s370 = scalar_lea.vmem %s3, 2720
  %v371 = vld [vmem:[%s370] ss:$8 sm:$0xf]
  %v373 = vlaneseq
  %v374 = vshrl.u32 %v373, 7
  %v375 = vsub.s32 0, %v374
  %v376 = vrot.slane %v371, %v375
  %v377 = vlaneseq
  %v378 = vshrl.u32 %v377, 7
  %v379 = vsub.s32 1, %v378
  %v380 = vrot.slane %v371, %v379
  %v381 = vlaneseq
  %v382 = vshrl.u32 %v381, 7
  %v383 = vsub.s32 2, %v382
  %v384 = vrot.slane %v371, %v383
  %v385 = vlaneseq
  %v386 = vshrl.u32 %v385, 7
  %v387 = vsub.s32 3, %v386
  %v388 = vrot.slane %v371, %v387
  %v393 = vmul.f32 %v366, %v376
  %v394 = vmul.f32 %v367, %v380
  %v395 = vmul.f32 %v368, %v384
  %v396 = vmul.f32 %v369, %v388
  %v397 = vld [vmem:[%s3 + $0x680] sm:$0xff]
  %v398 = vld [vmem:[%s3 + $0x688] sm:$0xff]
  %v399 = vld [vmem:[%s3 + $0x690] sm:$0xff]
  %v400 = vld [vmem:[%s3 + $0x698] sm:$0xff]
  %v401 = vld [vmem:[%s3 + $0x6a0] sm:$0xff]
  %v402 = vld [vmem:[%s3 + $0x6a8] sm:$0xff]
  %v403 = vld [vmem:[%s3 + $0x6b0] sm:$0xff]
  %v404 = vld [vmem:[%s3 + $0x6b8] sm:$0xff]
  %v405 = vld [vmem:[%s3 + $0x6c0] sm:$0xff]
  %v406 = vld [vmem:[%s3 + $0x6c8] sm:$0xff]
  %v407 = vld [vmem:[%s3 + $0x6d0] sm:$0xff]
  %v408 = vld [vmem:[%s3 + $0x6d8] sm:$0xff]
  %v409 = vld [vmem:[%s3 + $0x6e0] sm:$0xff]
  %v410 = vld [vmem:[%s3 + $0x6e8] sm:$0xff]
  %v411 = vld [vmem:[%s3 + $0x6f0] sm:$0xff]
  %v412 = vld [vmem:[%s3 + $0x6f8] sm:$0xff]
  %v413 = vld [vmem:[%s3 + $0x700] sm:$0xff]
  %v414 = vld [vmem:[%s3 + $0x708] sm:$0xff]
  %v415 = vld [vmem:[%s3 + $0x710] sm:$0xff]
  %v416 = vld [vmem:[%s3 + $0x718] sm:$0xff]
  %v417 = vld [vmem:[%s3 + $0x720] sm:$0xff]
  %v418 = vld [vmem:[%s3 + $0x728] sm:$0xff]
  %v419 = vld [vmem:[%s3 + $0x730] sm:$0xff]
  %v420 = vld [vmem:[%s3 + $0x738] sm:$0xff]
  %v421 = vld [vmem:[%s3 + $0x740] sm:$0xff]
  %v422 = vld [vmem:[%s3 + $0x748] sm:$0xff]
  %v423 = vld [vmem:[%s3 + $0x750] sm:$0xff]
  %v424 = vld [vmem:[%s3 + $0x758] sm:$0xff]
  %v425 = vld [vmem:[%s3 + $0x760] sm:$0xff]
  %v426 = vld [vmem:[%s3 + $0x768] sm:$0xff]
  %v427 = vld [vmem:[%s3 + $0x770] sm:$0xff]
  %v428 = vld [vmem:[%s3 + $0x778] sm:$0xff]
  %v429 = vld [vmem:[%s3 + $0x780] sm:$0xff]
  %v430 = vld [vmem:[%s3 + $0x788] sm:$0xff]
  %v431 = vld [vmem:[%s3 + $0x790] sm:$0xff]
  %v432 = vld [vmem:[%s3 + $0x798] sm:$0xff]
  %v433 = vld [vmem:[%s3 + $0x7a0] sm:$0xff]
  %v434 = vld [vmem:[%s3 + $0x7a8] sm:$0xff]
  %v435 = vld [vmem:[%s3 + $0x7b0] sm:$0xff]
  %v436 = vld [vmem:[%s3 + $0x7b8] sm:$0xff]
  %v437 = vld [vmem:[%s3 + $0x7c0] sm:$0xff]
  %v438 = vld [vmem:[%s3 + $0x7c8] sm:$0xff]
  %v439 = vld [vmem:[%s3 + $0x7d0] sm:$0xff]
  %v440 = vld [vmem:[%s3 + $0x7d8] sm:$0xff]
  %v441 = vld [vmem:[%s3 + $0x7e0] sm:$0xff]
  %v442 = vld [vmem:[%s3 + $0x7e8] sm:$0xff]
  %v443 = vld [vmem:[%s3 + $0x7f0] sm:$0xff]
  %v444 = vld [vmem:[%s3 + $0x7f8] sm:$0xff]
  %v445 = vld [vmem:[%s3 + $0x800] sm:$0xff]
  %v446 = vld [vmem:[%s3 + $0x808] sm:$0xff]
  %v447 = vld [vmem:[%s3 + $0x810] sm:$0xff]
  %v448 = vld [vmem:[%s3 + $0x818] sm:$0xff]
  %v449 = vld [vmem:[%s3 + $0x820] sm:$0xff]
  %v450 = vld [vmem:[%s3 + $0x828] sm:$0xff]
  %v451 = vld [vmem:[%s3 + $0x830] sm:$0xff]
  %v452 = vld [vmem:[%s3 + $0x838] sm:$0xff]
  %v453 = vld [vmem:[%s3 + $0x840] sm:$0xff]
  %v454 = vld [vmem:[%s3 + $0x848] sm:$0xff]
  %v455 = vld [vmem:[%s3 + $0x850] sm:$0xff]
  %v456 = vld [vmem:[%s3 + $0x858] sm:$0xff]
  %v457 = vld [vmem:[%s3 + $0x860] sm:$0xff]
  %v458 = vld [vmem:[%s3 + $0x868] sm:$0xff]
  %v459 = vld [vmem:[%s3 + $0x870] sm:$0xff]
  %v460 = vld [vmem:[%s3 + $0x878] sm:$0xff]
  %461 = vmatprep.subr.mxu0 %v398
  %462 = vmatpush1.msra.mxu0 %v397
  %463 = vmatprep.subr.mxu0 %v402
  %464 = vmatpush1.msra.mxu0 %v401
  %465 = vmatprep.subr.mxu0 %v406
  %466 = vmatpush1.msra.mxu0 %v405
  %467 = vmatprep.subr.mxu0 %v410
  %468 = vmatpush1.msra.mxu0 %v409
  %469 = vmatprep.subr.mxu0 %v414
  %470 = vmatpush1.msra.mxu0 %v413
  %471 = vmatprep.subr.mxu0 %v418
  %472 = vmatpush1.msra.mxu0 %v417
  %473 = vmatprep.subr.mxu0 %v422
  %474 = vmatpush1.msra.mxu0 %v421
  %475 = vmatprep.subr.mxu0 %v426
  %476 = vmatpush1.msra.mxu0 %v425
  %477 = vmatprep.subr.mxu0 %v430
  %478 = vmatpush1.msra.mxu0 %v429
  %479 = vmatprep.subr.mxu0 %v434
  %480 = vmatpush1.msra.mxu0 %v433
  %481 = vmatprep.subr.mxu0 %v438
  %482 = vmatpush1.msra.mxu0 %v437
  %483 = vmatprep.subr.mxu0 %v442
  %484 = vmatpush1.msra.mxu0 %v441
  %485 = vmatprep.subr.mxu0 %v446
  %486 = vmatpush1.msra.mxu0 %v445
  %487 = vmatprep.subr.mxu0 %v450
  %488 = vmatpush1.msra.mxu0 %v449
  %489 = vmatprep.subr.mxu0 %v454
  %490 = vmatpush1.msra.mxu0 %v453
  %491 = vmatprep.subr.mxu0 %v458
  %492 = vmatpush1.msra.mxu0 %v457
  %493 = vmatprep.subr.mxu0 0.0
  %494 = vmatpush1.msra.mxu0 0.0
  %495 = vmatprep.subr.mxu0 0.0
  %496 = vmatpush1.msra.mxu0 0.0
  %497 = vmatprep.subr.mxu0 0.0
  %498 = vmatpush1.msra.mxu0 0.0
  %499 = vmatprep.subr.mxu0 0.0
  %500 = vmatpush1.msra.mxu0 0.0
  %501 = vmatprep.subr.mxu0 0.0
  %502 = vmatpush1.msra.mxu0 0.0
  %503 = vmatprep.subr.mxu0 0.0
  %504 = vmatpush1.msra.mxu0 0.0
  %505 = vmatprep.subr.mxu0 0.0
  %506 = vmatpush1.msra.mxu0 0.0
  %507 = vmatprep.subr.mxu0 0.0
  %508 = vmatpush1.msra.mxu0 0.0
  %509 = vmatprep.subr.mxu0 0.0
  %510 = vmatpush1.msra.mxu0 0.0
  %511 = vmatprep.subr.mxu0 0.0
  %512 = vmatpush1.msra.mxu0 0.0
  %513 = vmatprep.subr.mxu0 0.0
  %514 = vmatpush1.msra.mxu0 0.0
  %515 = vmatprep.subr.mxu0 0.0
  %516 = vmatpush1.msra.mxu0 0.0
  %517 = vmatprep.subr.mxu0 0.0
  %518 = vmatpush1.msra.mxu0 0.0
  %519 = vmatprep.subr.mxu0 0.0
  %520 = vmatpush1.msra.mxu0 0.0
  %521 = vmatprep.subr.mxu0 0.0
  %522 = vmatpush1.msra.mxu0 0.0
  %523 = vmatprep.subr.mxu0 0.0
  %524 = vmatpush1.msra.mxu0 0.0
  %525 = vmatprep.mubr.f32.mxu0 0.0
  %526 = vmatmul.mubr.f32.gmra.mrb[0].mxu0 %v185
  %v527 = vpop.f32.mrb[0].mxu0
  %v528 = vadd.f32 0.0, %v527
  %v529 = vpop.f32.mrb[0].mxu0
  %v530 = vadd.f32 0.0, %v529
  %531 = vdwg.mxu0
  %532 = vmatprep.subr.mxu0 %v400
  %533 = vmatpush1.msra.mxu0 %v399
  %534 = vmatprep.subr.mxu0 %v404
  %535 = vmatpush1.msra.mxu0 %v403
  %536 = vmatprep.subr.mxu0 %v408
  %537 = vmatpush1.msra.mxu0 %v407
  %538 = vmatprep.subr.mxu0 %v412
  %539 = vmatpush1.msra.mxu0 %v411
  %540 = vmatprep.subr.mxu0 %v416
  %541 = vmatpush1.msra.mxu0 %v415
  %542 = vmatprep.subr.mxu0 %v420
  %543 = vmatpush1.msra.mxu0 %v419
  %544 = vmatprep.subr.mxu0 %v424
  %545 = vmatpush1.msra.mxu0 %v423
  %546 = vmatprep.subr.mxu0 %v428
  %547 = vmatpush1.msra.mxu0 %v427
  %548 = vmatprep.subr.mxu0 %v432
  %549 = vmatpush1.msra.mxu0 %v431
  %550 = vmatprep.subr.mxu0 %v436
  %551 = vmatpush1.msra.mxu0 %v435
  %552 = vmatprep.subr.mxu0 %v440
  %553 = vmatpush1.msra.mxu0 %v439
  %554 = vmatprep.subr.mxu0 %v444
  %555 = vmatpush1.msra.mxu0 %v443
  %556 = vmatprep.subr.mxu0 %v448
  %557 = vmatpush1.msra.mxu0 %v447
  %558 = vmatprep.subr.mxu0 %v452
  %559 = vmatpush1.msra.mxu0 %v451
  %560 = vmatprep.subr.mxu0 %v456
  %561 = vmatpush1.msra.mxu0 %v455
  %562 = vmatprep.subr.mxu0 %v460
  %563 = vmatpush1.msra.mxu0 %v459
  %564 = vmatprep.subr.mxu0 0.0
  %565 = vmatpush1.msra.mxu0 0.0
  %566 = vmatprep.subr.mxu0 0.0
  %567 = vmatpush1.msra.mxu0 0.0
  %568 = vmatprep.subr.mxu0 0.0
  %569 = vmatpush1.msra.mxu0 0.0
  %570 = vmatprep.subr.mxu0 0.0
  %571 = vmatpush1.msra.mxu0 0.0
  %572 = vmatprep.subr.mxu0 0.0
  %573 = vmatpush1.msra.mxu0 0.0
  %574 = vmatprep.subr.mxu0 0.0
  %575 = vmatpush1.msra.mxu0 0.0
  %576 = vmatprep.subr.mxu0 0.0
  %577 = vmatpush1.msra.mxu0 0.0
  %578 = vmatprep.subr.mxu0 0.0
  %579 = vmatpush1.msra.mxu0 0.0
  %580 = vmatprep.subr.mxu0 0.0
  %581 = vmatpush1.msra.mxu0 0.0
  %582 = vmatprep.subr.mxu0 0.0
  %583 = vmatpush1.msra.mxu0 0.0
  %584 = vmatprep.subr.mxu0 0.0
  %585 = vmatpush1.msra.mxu0 0.0
  %586 = vmatprep.subr.mxu0 0.0
  %587 = vmatpush1.msra.mxu0 0.0
  %588 = vmatprep.subr.mxu0 0.0
  %589 = vmatpush1.msra.mxu0 0.0
  %590 = vmatprep.subr.mxu0 0.0
  %591 = vmatpush1.msra.mxu0 0.0
  %592 = vmatprep.subr.mxu0 0.0
  %593 = vmatpush1.msra.mxu0 0.0
  %594 = vmatprep.subr.mxu0 0.0
  %595 = vmatpush1.msra.mxu0 0.0
  %596 = vmatprep.mubr.f32.mxu0 0.0
  %597 = vmatmul.mubr.f32.gmra.mrb[0].mxu0 %v185
  %v598 = vpop.f32.mrb[0].mxu0
  %v599 = vadd.f32 0.0, %v598
  %v600 = vpop.f32.mrb[0].mxu0
  %v601 = vadd.f32 0.0, %v600
  %602 = vdwg.mxu0
  %v603 = vadd.f32 %v393, %v528
  %v604 = vadd.f32 %v394, %v530
  %v605 = vadd.f32 %v395, %v599
  %v606 = vadd.f32 %v396, %v601
  %v607 = vld [vmem:[%s3 + $0x880] sm:$0xff]
  %v608 = vld [vmem:[%s3 + $0x888] sm:$0xff]
  %v609 = vld [vmem:[%s3 + $0x890] sm:$0xff]
  %v610 = vld [vmem:[%s3 + $0x898] sm:$0xff]
  %v611 = vld [vmem:[%s3 + $0x8a0] sm:$0xff]
  %v612 = vld [vmem:[%s3 + $0x8a8] sm:$0xff]
  %v613 = vld [vmem:[%s3 + $0x8b0] sm:$0xff]
  %v614 = vld [vmem:[%s3 + $0x8b8] sm:$0xff]
  %v615 = vld [vmem:[%s3 + $0x8c0] sm:$0xff]
  %v616 = vld [vmem:[%s3 + $0x8c8] sm:$0xff]
  %v617 = vld [vmem:[%s3 + $0x8d0] sm:$0xff]
  %v618 = vld [vmem:[%s3 + $0x8d8] sm:$0xff]
  %v619 = vld [vmem:[%s3 + $0x8e0] sm:$0xff]
  %v620 = vld [vmem:[%s3 + $0x8e8] sm:$0xff]
  %v621 = vld [vmem:[%s3 + $0x8f0] sm:$0xff]
  %v622 = vld [vmem:[%s3 + $0x8f8] sm:$0xff]
  %v623 = vld [vmem:[%s3 + $0x900] sm:$0xff]
  %v624 = vld [vmem:[%s3 + $0x908] sm:$0xff]
  %v625 = vld [vmem:[%s3 + $0x910] sm:$0xff]
  %v626 = vld [vmem:[%s3 + $0x918] sm:$0xff]
  %v627 = vld [vmem:[%s3 + $0x920] sm:$0xff]
  %v628 = vld [vmem:[%s3 + $0x928] sm:$0xff]
  %v629 = vld [vmem:[%s3 + $0x930] sm:$0xff]
  %v630 = vld [vmem:[%s3 + $0x938] sm:$0xff]
  %v631 = vld [vmem:[%s3 + $0x940] sm:$0xff]
  %v632 = vld [vmem:[%s3 + $0x948] sm:$0xff]
  %v633 = vld [vmem:[%s3 + $0x950] sm:$0xff]
  %v634 = vld [vmem:[%s3 + $0x958] sm:$0xff]
  %v635 = vld [vmem:[%s3 + $0x960] sm:$0xff]
  %v636 = vld [vmem:[%s3 + $0x968] sm:$0xff]
  %v637 = vld [vmem:[%s3 + $0x970] sm:$0xff]
  %v638 = vld [vmem:[%s3 + $0x978] sm:$0xff]
  %v639 = vld [vmem:[%s3 + $0x980] sm:$0xff]
  %v640 = vld [vmem:[%s3 + $0x988] sm:$0xff]
  %v641 = vld [vmem:[%s3 + $0x990] sm:$0xff]
  %v642 = vld [vmem:[%s3 + $0x998] sm:$0xff]
  %v643 = vld [vmem:[%s3 + $0x9a0] sm:$0xff]
  %v644 = vld [vmem:[%s3 + $0x9a8] sm:$0xff]
  %v645 = vld [vmem:[%s3 + $0x9b0] sm:$0xff]
  %v646 = vld [vmem:[%s3 + $0x9b8] sm:$0xff]
  %v647 = vld [vmem:[%s3 + $0x9c0] sm:$0xff]
  %v648 = vld [vmem:[%s3 + $0x9c8] sm:$0xff]
  %v649 = vld [vmem:[%s3 + $0x9d0] sm:$0xff]
  %v650 = vld [vmem:[%s3 + $0x9d8] sm:$0xff]
  %v651 = vld [vmem:[%s3 + $0x9e0] sm:$0xff]
  %v652 = vld [vmem:[%s3 + $0x9e8] sm:$0xff]
  %v653 = vld [vmem:[%s3 + $0x9f0] sm:$0xff]
  %v654 = vld [vmem:[%s3 + $0x9f8] sm:$0xff]
  %v655 = vld [vmem:[%s3 + $0xa00] sm:$0xff]
  %v656 = vld [vmem:[%s3 + $0xa08] sm:$0xff]
  %v657 = vld [vmem:[%s3 + $0xa10] sm:$0xff]
  %v658 = vld [vmem:[%s3 + $0xa18] sm:$0xff]
  %v659 = vld [vmem:[%s3 + $0xa20] sm:$0xff]
  %v660 = vld [vmem:[%s3 + $0xa28] sm:$0xff]
  %v661 = vld [vmem:[%s3 + $0xa30] sm:$0xff]
  %v662 = vld [vmem:[%s3 + $0xa38] sm:$0xff]
  %v663 = vld [vmem:[%s3 + $0xa40] sm:$0xff]
  %v664 = vld [vmem:[%s3 + $0xa48] sm:$0xff]
  %v665 = vld [vmem:[%s3 + $0xa50] sm:$0xff]
  %v666 = vld [vmem:[%s3 + $0xa58] sm:$0xff]
  %v667 = vld [vmem:[%s3 + $0xa60] sm:$0xff]
  %v668 = vld [vmem:[%s3 + $0xa68] sm:$0xff]
  %v669 = vld [vmem:[%s3 + $0xa70] sm:$0xff]
  %v670 = vld [vmem:[%s3 + $0xa78] sm:$0xff]
  %671 = vmatprep.subr.mxu0 %v608
  %672 = vmatpush1.msra.mxu0 %v607
  %673 = vmatprep.subr.mxu0 %v612
  %674 = vmatpush1.msra.mxu0 %v611
  %675 = vmatprep.subr.mxu0 %v616
  %676 = vmatpush1.msra.mxu0 %v615
  %677 = vmatprep.subr.mxu0 %v620
  %678 = vmatpush1.msra.mxu0 %v619
  %679 = vmatprep.subr.mxu0 %v624
  %680 = vmatpush1.msra.mxu0 %v623
  %681 = vmatprep.subr.mxu0 %v628
  %682 = vmatpush1.msra.mxu0 %v627
  %683 = vmatprep.subr.mxu0 %v632
  %684 = vmatpush1.msra.mxu0 %v631
  %685 = vmatprep.subr.mxu0 %v636
  %686 = vmatpush1.msra.mxu0 %v635
  %687 = vmatprep.subr.mxu0 %v640
  %688 = vmatpush1.msra.mxu0 %v639
  %689 = vmatprep.subr.mxu0 %v644
  %690 = vmatpush1.msra.mxu0 %v643
  %691 = vmatprep.subr.mxu0 %v648
  %692 = vmatpush1.msra.mxu0 %v647
  %693 = vmatprep.subr.mxu0 %v652
  %694 = vmatpush1.msra.mxu0 %v651
  %695 = vmatprep.subr.mxu0 %v656
  %696 = vmatpush1.msra.mxu0 %v655
  %697 = vmatprep.subr.mxu0 %v660
  %698 = vmatpush1.msra.mxu0 %v659
  %699 = vmatprep.subr.mxu0 %v664
  %700 = vmatpush1.msra.mxu0 %v663
  %701 = vmatprep.subr.mxu0 %v668
  %702 = vmatpush1.msra.mxu0 %v667
  %703 = vmatprep.subr.mxu0 0.0
  %704 = vmatpush1.msra.mxu0 0.0
  %705 = vmatprep.subr.mxu0 0.0
  %706 = vmatpush1.msra.mxu0 0.0
  %707 = vmatprep.subr.mxu0 0.0
  %708 = vmatpush1.msra.mxu0 0.0
  %709 = vmatprep.subr.mxu0 0.0
  %710 = vmatpush1.msra.mxu0 0.0
  %711 = vmatprep.subr.mxu0 0.0
  %712 = vmatpush1.msra.mxu0 0.0
  %713 = vmatprep.subr.mxu0 0.0
  %714 = vmatpush1.msra.mxu0 0.0
  %715 = vmatprep.subr.mxu0 0.0
  %716 = vmatpush1.msra.mxu0 0.0
  %717 = vmatprep.subr.mxu0 0.0
  %718 = vmatpush1.msra.mxu0 0.0
  %719 = vmatprep.subr.mxu0 0.0
  %720 = vmatpush1.msra.mxu0 0.0
  %721 = vmatprep.subr.mxu0 0.0
  %722 = vmatpush1.msra.mxu0 0.0
  %723 = vmatprep.subr.mxu0 0.0
  %724 = vmatpush1.msra.mxu0 0.0
  %725 = vmatprep.subr.mxu0 0.0
  %726 = vmatpush1.msra.mxu0 0.0
  %727 = vmatprep.subr.mxu0 0.0
  %728 = vmatpush1.msra.mxu0 0.0
  %729 = vmatprep.subr.mxu0 0.0
  %730 = vmatpush1.msra.mxu0 0.0
  %731 = vmatprep.subr.mxu0 0.0
  %732 = vmatpush1.msra.mxu0 0.0
  %733 = vmatprep.subr.mxu0 0.0
  %734 = vmatpush1.msra.mxu0 0.0
  %735 = vmatprep.mubr.f32.mxu0 0.0
  %736 = vmatmul.mubr.f32.gmra.mrb[0].mxu0 %v355
  %v737 = vpop.f32.mrb[0].mxu0
  %v738 = vadd.f32 0.0, %v737
  %v739 = vpop.f32.mrb[0].mxu0
  %v740 = vadd.f32 0.0, %v739
  %741 = vdwg.mxu0
  %742 = vmatprep.subr.mxu0 %v610
  %743 = vmatpush1.msra.mxu0 %v609
  %744 = vmatprep.subr.mxu0 %v614
  %745 = vmatpush1.msra.mxu0 %v613
  %746 = vmatprep.subr.mxu0 %v618
  %747 = vmatpush1.msra.mxu0 %v617
  %748 = vmatprep.subr.mxu0 %v622
  %749 = vmatpush1.msra.mxu0 %v621
  %750 = vmatprep.subr.mxu0 %v626
  %751 = vmatpush1.msra.mxu0 %v625
  %752 = vmatprep.subr.mxu0 %v630
  %753 = vmatpush1.msra.mxu0 %v629
  %754 = vmatprep.subr.mxu0 %v634
  %755 = vmatpush1.msra.mxu0 %v633
  %756 = vmatprep.subr.mxu0 %v638
  %757 = vmatpush1.msra.mxu0 %v637
  %758 = vmatprep.subr.mxu0 %v642
  %759 = vmatpush1.msra.mxu0 %v641
  %760 = vmatprep.subr.mxu0 %v646
  %761 = vmatpush1.msra.mxu0 %v645
  %762 = vmatprep.subr.mxu0 %v650
  %763 = vmatpush1.msra.mxu0 %v649
  %764 = vmatprep.subr.mxu0 %v654
  %765 = vmatpush1.msra.mxu0 %v653
  %766 = vmatprep.subr.mxu0 %v658
  %767 = vmatpush1.msra.mxu0 %v657
  %768 = vmatprep.subr.mxu0 %v662
  %769 = vmatpush1.msra.mxu0 %v661
  %770 = vmatprep.subr.mxu0 %v666
  %771 = vmatpush1.msra.mxu0 %v665
  %772 = vmatprep.subr.mxu0 %v670
  %773 = vmatpush1.msra.mxu0 %v669
  %774 = vmatprep.subr.mxu0 0.0
  %775 = vmatpush1.msra.mxu0 0.0
  %776 = vmatprep.subr.mxu0 0.0
  %777 = vmatpush1.msra.mxu0 0.0
  %778 = vmatprep.subr.mxu0 0.0
  %779 = vmatpush1.msra.mxu0 0.0
  %780 = vmatprep.subr.mxu0 0.0
  %781 = vmatpush1.msra.mxu0 0.0
  %782 = vmatprep.subr.mxu0 0.0
  %783 = vmatpush1.msra.mxu0 0.0
  %784 = vmatprep.subr.mxu0 0.0
  %785 = vmatpush1.msra.mxu0 0.0
  %786 = vmatprep.subr.mxu0 0.0
  %787 = vmatpush1.msra.mxu0 0.0
  %788 = vmatprep.subr.mxu0 0.0
  %789 = vmatpush1.msra.mxu0 0.0
  %790 = vmatprep.subr.mxu0 0.0
  %791 = vmatpush1.msra.mxu0 0.0
  %792 = vmatprep.subr.mxu0 0.0
  %793 = vmatpush1.msra.mxu0 0.0
  %794 = vmatprep.subr.mxu0 0.0
  %795 = vmatpush1.msra.mxu0 0.0
  %796 = vmatprep.subr.mxu0 0.0
  %797 = vmatpush1.msra.mxu0 0.0
  %798 = vmatprep.subr.mxu0 0.0
  %799 = vmatpush1.msra.mxu0 0.0
  %800 = vmatprep.subr.mxu0 0.0
  %801 = vmatpush1.msra.mxu0 0.0
  %802 = vmatprep.subr.mxu0 0.0
  %803 = vmatpush1.msra.mxu0 0.0
  %804 = vmatprep.subr.mxu0 0.0
  %805 = vmatpush1.msra.mxu0 0.0
  %806 = vmatprep.mubr.f32.mxu0 0.0
  %807 = vmatmul.mubr.f32.gmra.mrb[0].mxu0 %v355
  %v808 = vpop.f32.mrb[0].mxu0
  %v809 = vadd.f32 0.0, %v808
  %v810 = vpop.f32.mrb[0].mxu0
  %v811 = vadd.f32 0.0, %v810
  %812 = vdwg.mxu0
  %v813 = vadd.f32 %v603, %v738
  %v814 = vadd.f32 %v604, %v740
  %v815 = vadd.f32 %v605, %v809
  %v816 = vadd.f32 %v606, %v811
  %s817 = scalar_lea.vmem %s3, 2688
  %v818 = vld [vmem:[%s817] ss:$8 sm:$0xf]
  %v820 = vlaneseq
  %v821 = vshrl.u32 %v820, 7
  %v822 = vsub.s32 0, %v821
  %v823 = vrot.slane %v818, %v822
  %v824 = vlaneseq
  %v825 = vshrl.u32 %v824, 7
  %v826 = vsub.s32 1, %v825
  %v827 = vrot.slane %v818, %v826
  %v828 = vlaneseq
  %v829 = vshrl.u32 %v828, 7
  %v830 = vsub.s32 2, %v829
  %v831 = vrot.slane %v818, %v830
  %v832 = vlaneseq
  %v833 = vshrl.u32 %v832, 7
  %v834 = vsub.s32 3, %v833
  %v835 = vrot.slane %v818, %v834
  %v840 = vadd.f32 %v813, %v823
  %v841 = vadd.f32 %v814, %v827
  %v842 = vadd.f32 %v815, %v831
  %v843 = vadd.f32 %v816, %v835
  %v844 = vld [vmem:[%s3 + $0xac0] sm:$0xff]
  %v845 = vld [vmem:[%s3 + $0xae0] sm:$0xff]
  %v846 = vld [vmem:[%s3 + $0xb00] sm:$0xff]
  %v847 = vld [vmem:[%s3 + $0xb20] sm:$0xff]
  %v848 = vld [vmem:[%s3 + $0xb40] sm:$0xff]
  %v849 = vld [vmem:[%s3 + $0xb60] sm:$0xff]
  %v850 = vld [vmem:[%s3 + $0xb80] sm:$0xff]
  %v851 = vld [vmem:[%s3 + $0xba0] sm:$0xff]
  %v852 = vld [vmem:[%s3 + $0xbc0] sm:$0xff]
  %v853 = vld [vmem:[%s3 + $0xbe0] sm:$0xff]
  %v854 = vld [vmem:[%s3 + $0xc00] sm:$0xff]
  %v855 = vld [vmem:[%s3 + $0xc20] sm:$0xff]
  %v856 = vld [vmem:[%s3 + $0xc40] sm:$0xff]
  %v857 = vld [vmem:[%s3 + $0xc60] sm:$0xff]
  %v858 = vld [vmem:[%s3 + $0xc80] sm:$0xff]
  %v859 = vld [vmem:[%s3 + $0xca0] sm:$0xff]
  %v860 = vld [vmem:[%s3 + $0xcc0] sm:$0xff]
  %v861 = vld [vmem:[%s3 + $0xce0] sm:$0xff]
  %v862 = vld [vmem:[%s3 + $0xd00] sm:$0xff]
  %v863 = vld [vmem:[%s3 + $0xd20] sm:$0xff]
  %v864 = vld [vmem:[%s3 + $0xd40] sm:$0xff]
  %v865 = vld [vmem:[%s3 + $0xd60] sm:$0xff]
  %v866 = vld [vmem:[%s3 + $0xd80] sm:$0xff]
  %v867 = vld [vmem:[%s3 + $0xda0] sm:$0xff]
  %v868 = vld [vmem:[%s3 + $0xdc0] sm:$0xff]
  %v869 = vld [vmem:[%s3 + $0xde0] sm:$0xff]
  %v870 = vld [vmem:[%s3 + $0xe00] sm:$0xff]
  %v871 = vld [vmem:[%s3 + $0xe20] sm:$0xff]
  %v872 = vld [vmem:[%s3 + $0xe40] sm:$0xff]
  %v873 = vld [vmem:[%s3 + $0xe60] sm:$0xff]
  %v874 = vld [vmem:[%s3 + $0xe80] sm:$0xff]
  %v875 = vld [vmem:[%s3 + $0xea0] sm:$0xff]
  %v876 = vld [vmem:[%s3 + $0xec0] sm:$0xff]
  %v877 = vld [vmem:[%s3 + $0xee0] sm:$0xff]
  %v878 = vld [vmem:[%s3 + $0xf00] sm:$0xff]
  %v879 = vld [vmem:[%s3 + $0xf20] sm:$0xff]
  %v880 = vld [vmem:[%s3 + $0xf40] sm:$0xff]
  %v881 = vld [vmem:[%s3 + $0xf60] sm:$0xff]
  %v882 = vld [vmem:[%s3 + $0xf80] sm:$0xff]
  %v883 = vld [vmem:[%s3 + $0xfa0] sm:$0xff]
  %v884 = vld [vmem:[%s3 + $0xfc0] sm:$0xff]
  %v885 = vld [vmem:[%s3 + $0xfe0] sm:$0xff]
  %v886 = vld [vmem:[%s3 + $0x1000] sm:$0xff]
  %v887 = vld [vmem:[%s3 + $0x1020] sm:$0xff]
  %v888 = vld [vmem:[%s3 + $0x1040] sm:$0xff]
  %v889 = vld [vmem:[%s3 + $0x1060] sm:$0xff]
  %v890 = vld [vmem:[%s3 + $0x1080] sm:$0xff]
  %v891 = vld [vmem:[%s3 + $0x10a0] sm:$0xff]
  %v892 = vld [vmem:[%s3 + $0x10c0] sm:$0xff]
  %v893 = vld [vmem:[%s3 + $0x10e0] sm:$0xff]
  %v894 = vld [vmem:[%s3 + $0x1100] sm:$0xff]
  %v895 = vld [vmem:[%s3 + $0x1120] sm:$0xff]
  %v896 = vld [vmem:[%s3 + $0x1140] sm:$0xff]
  %v897 = vld [vmem:[%s3 + $0x1160] sm:$0xff]
  %v898 = vld [vmem:[%s3 + $0x1180] sm:$0xff]
  %v899 = vld [vmem:[%s3 + $0x11a0] sm:$0xff]
  %v900 = vld [vmem:[%s3 + $0x11c0] sm:$0xff]
  %v901 = vld [vmem:[%s3 + $0x11e0] sm:$0xff]
  %v902 = vld [vmem:[%s3 + $0x1200] sm:$0xff]
  %v903 = vld [vmem:[%s3 + $0x1220] sm:$0xff]
  %v904 = vld [vmem:[%s3 + $0x1240] sm:$0xff]
  %v905 = vld [vmem:[%s3 + $0x1260] sm:$0xff]
  %v906 = vld [vmem:[%s3 + $0x1280] sm:$0xff]
  %v907 = vld [vmem:[%s3 + $0x12a0] sm:$0xff]
  %v908 = vld [vmem:[%s3 + $0x12c0] ss:$0 sm:$0xff]
  %909 = vmatprep.subr.mxu0 0.0
  %910 = vmatpush1.msra.mxu0 %v844
  %911 = vmatprep.subr.mxu0 0.0
  %912 = vmatpush1.msra.mxu0 %v845
  %913 = vmatprep.subr.mxu0 0.0
  %914 = vmatpush1.msra.mxu0 %v846
  %915 = vmatprep.subr.mxu0 0.0
  %916 = vmatpush1.msra.mxu0 %v847
  %917 = vmatprep.subr.mxu0 0.0
  %918 = vmatpush1.msra.mxu0 %v848
  %919 = vmatprep.subr.mxu0 0.0
  %920 = vmatpush1.msra.mxu0 %v849
  %921 = vmatprep.subr.mxu0 0.0
  %922 = vmatpush1.msra.mxu0 %v850
  %923 = vmatprep.subr.mxu0 0.0
  %924 = vmatpush1.msra.mxu0 %v851
  %925 = vmatprep.subr.mxu0 0.0
  %926 = vmatpush1.msra.mxu0 %v852
  %927 = vmatprep.subr.mxu0 0.0
  %928 = vmatpush1.msra.mxu0 %v853
  %929 = vmatprep.subr.mxu0 0.0
  %930 = vmatpush1.msra.mxu0 %v854
  %931 = vmatprep.subr.mxu0 0.0
  %932 = vmatpush1.msra.mxu0 %v855
  %933 = vmatprep.subr.mxu0 0.0
  %934 = vmatpush1.msra.mxu0 %v856
  %935 = vmatprep.subr.mxu0 0.0
  %936 = vmatpush1.msra.mxu0 %v857
  %937 = vmatprep.subr.mxu0 0.0
  %938 = vmatpush1.msra.mxu0 %v858
  %939 = vmatprep.subr.mxu0 0.0
  %940 = vmatpush1.msra.mxu0 %v859
  %941 = vmatprep.subr.mxu0 0.0
  %942 = vmatpush1.msra.mxu0 %v860
  %943 = vmatprep.subr.mxu0 0.0
  %944 = vmatpush1.msra.mxu0 %v861
  %945 = vmatprep.subr.mxu0 0.0
  %946 = vmatpush1.msra.mxu0 %v862
  %947 = vmatprep.subr.mxu0 0.0
  %948 = vmatpush1.msra.mxu0 %v863
  %949 = vmatprep.subr.mxu0 0.0
  %950 = vmatpush1.msra.mxu0 %v864
  %951 = vmatprep.subr.mxu0 0.0
  %952 = vmatpush1.msra.mxu0 %v865
  %953 = vmatprep.subr.mxu0 0.0
  %954 = vmatpush1.msra.mxu0 %v866
  %955 = vmatprep.subr.mxu0 0.0
  %956 = vmatpush1.msra.mxu0 %v867
  %957 = vmatprep.subr.mxu0 0.0
  %958 = vmatpush1.msra.mxu0 %v868
  %959 = vmatprep.subr.mxu0 0.0
  %960 = vmatpush1.msra.mxu0 %v869
  %961 = vmatprep.subr.mxu0 0.0
  %962 = vmatpush1.msra.mxu0 %v870
  %963 = vmatprep.subr.mxu0 0.0
  %964 = vmatpush1.msra.mxu0 %v871
  %965 = vmatprep.subr.mxu0 0.0
  %966 = vmatpush1.msra.mxu0 %v872
  %967 = vmatprep.subr.mxu0 0.0
  %968 = vmatpush1.msra.mxu0 %v873
  %969 = vmatprep.subr.mxu0 0.0
  %970 = vmatpush1.msra.mxu0 %v874
  %971 = vmatprep.subr.mxu0 0.0
  %972 = vmatpush1.msra.mxu0 %v875
  %973 = vmatprep.mubr.f32.mxu0 %v841
  %974 = vmatmul.mubr.f32.gmra.mrb[0].mxu0 %v840
  %v975 = vpop.f32.mrb[0].mxu0
  %v976 = vadd.f32 %v908, %v975
  %v977 = vpop.f32.mrb[0].mxu0
  %978 = vdwg.mxu0
  %979 = vmatprep.subr.mxu0 0.0
  %980 = vmatpush1.msra.mxu0 %v876
  %981 = vmatprep.subr.mxu0 0.0
  %982 = vmatpush1.msra.mxu0 %v877
  %983 = vmatprep.subr.mxu0 0.0
  %984 = vmatpush1.msra.mxu0 %v878
  %985 = vmatprep.subr.mxu0 0.0
  %986 = vmatpush1.msra.mxu0 %v879
  %987 = vmatprep.subr.mxu0 0.0
  %988 = vmatpush1.msra.mxu0 %v880
  %989 = vmatprep.subr.mxu0 0.0
  %990 = vmatpush1.msra.mxu0 %v881
  %991 = vmatprep.subr.mxu0 0.0
  %992 = vmatpush1.msra.mxu0 %v882
  %993 = vmatprep.subr.mxu0 0.0
  %994 = vmatpush1.msra.mxu0 %v883
  %995 = vmatprep.subr.mxu0 0.0
  %996 = vmatpush1.msra.mxu0 %v884
  %997 = vmatprep.subr.mxu0 0.0
  %998 = vmatpush1.msra.mxu0 %v885
  %999 = vmatprep.subr.mxu0 0.0
  %1000 = vmatpush1.msra.mxu0 %v886
  %1001 = vmatprep.subr.mxu0 0.0
  %1002 = vmatpush1.msra.mxu0 %v887
  %1003 = vmatprep.subr.mxu0 0.0
  %1004 = vmatpush1.msra.mxu0 %v888
  %1005 = vmatprep.subr.mxu0 0.0
  %1006 = vmatpush1.msra.mxu0 %v889
  %1007 = vmatprep.subr.mxu0 0.0
  %1008 = vmatpush1.msra.mxu0 %v890
  %1009 = vmatprep.subr.mxu0 0.0
  %1010 = vmatpush1.msra.mxu0 %v891
  %1011 = vmatprep.subr.mxu0 0.0
  %1012 = vmatpush1.msra.mxu0 %v892
  %1013 = vmatprep.subr.mxu0 0.0
  %1014 = vmatpush1.msra.mxu0 %v893
  %1015 = vmatprep.subr.mxu0 0.0
  %1016 = vmatpush1.msra.mxu0 %v894
  %1017 = vmatprep.subr.mxu0 0.0
  %1018 = vmatpush1.msra.mxu0 %v895
  %1019 = vmatprep.subr.mxu0 0.0
  %1020 = vmatpush1.msra.mxu0 %v896
  %1021 = vmatprep.subr.mxu0 0.0
  %1022 = vmatpush1.msra.mxu0 %v897
  %1023 = vmatprep.subr.mxu0 0.0
  %1024 = vmatpush1.msra.mxu0 %v898
  %1025 = vmatprep.subr.mxu0 0.0
  %1026 = vmatpush1.msra.mxu0 %v899
  %1027 = vmatprep.subr.mxu0 0.0
  %1028 = vmatpush1.msra.mxu0 %v900
  %1029 = vmatprep.subr.mxu0 0.0
  %1030 = vmatpush1.msra.mxu0 %v901
  %1031 = vmatprep.subr.mxu0 0.0
  %1032 = vmatpush1.msra.mxu0 %v902
  %1033 = vmatprep.subr.mxu0 0.0
  %1034 = vmatpush1.msra.mxu0 %v903
  %1035 = vmatprep.subr.mxu0 0.0
  %1036 = vmatpush1.msra.mxu0 %v904
  %1037 = vmatprep.subr.mxu0 0.0
  %1038 = vmatpush1.msra.mxu0 %v905
  %1039 = vmatprep.subr.mxu0 0.0
  %1040 = vmatpush1.msra.mxu0 %v906
  %1041 = vmatprep.subr.mxu0 0.0
  %1042 = vmatpush1.msra.mxu0 %v907
  %1043 = vmatprep.mubr.f32.mxu0 %v843
  %1044 = vmatmul.mubr.f32.gmra.mrb[0].mxu0 %v842
  %v1045 = vpop.f32.mrb[0].mxu0
  %v1046 = vadd.f32 %v976, %v1045
  %v1047 = vpop.f32.mrb[0].mxu0
  %1048 = vdwg.mxu0
  %v1049 = vld [vmem:[%s3 + $0x12e0] sm:$0xff]
  %v1050 = vld [vmem:[%s3 + $0x1300] sm:$0xff]
  %v1051 = vld [vmem:[%s3 + $0x1320] sm:$0xff]
  %v1052 = vld [vmem:[%s3 + $0x1340] sm:$0xff]
  %v1053 = vld [vmem:[%s3 + $0x1360] sm:$0xff]
  %v1054 = vld [vmem:[%s3 + $0x1380] sm:$0xff]
  %v1055 = vld [vmem:[%s3 + $0x13a0] sm:$0xff]
  %v1056 = vld [vmem:[%s3 + $0x13c0] sm:$0xff]
  %v1057 = vld [vmem:[%s3 + $0x13e0] sm:$0xff]
  %v1058 = vld [vmem:[%s3 + $0x1400] sm:$0xff]
  %v1059 = vld [vmem:[%s3 + $0x1420] sm:$0xff]
  %v1060 = vld [vmem:[%s3 + $0x1440] sm:$0xff]
  %v1061 = vld [vmem:[%s3 + $0x1460] sm:$0xff]
  %v1062 = vld [vmem:[%s3 + $0x1480] sm:$0xff]
  %v1063 = vld [vmem:[%s3 + $0x14a0] sm:$0xff]
  %v1064 = vld [vmem:[%s3 + $0x14c0] sm:$0xff]
  %v1065 = vld [vmem:[%s3 + $0x14e0] ss:$0 sm:$0xff]
  %1066 = vmatprep.subr.mxu0 0.0
  %1067 = vmatpush1.msra.mxu0 %v1049
  %1068 = vmatprep.subr.mxu0 0.0
  %1069 = vmatpush1.msra.mxu0 %v1050
  %1070 = vmatprep.subr.mxu0 0.0
  %1071 = vmatpush1.msra.mxu0 %v1051
  %1072 = vmatprep.subr.mxu0 0.0
  %1073 = vmatpush1.msra.mxu0 %v1052
  %1074 = vmatprep.subr.mxu0 0.0
  %1075 = vmatpush1.msra.mxu0 %v1053
  %1076 = vmatprep.subr.mxu0 0.0
  %1077 = vmatpush1.msra.mxu0 %v1054
  %1078 = vmatprep.subr.mxu0 0.0
  %1079 = vmatpush1.msra.mxu0 %v1055
  %1080 = vmatprep.subr.mxu0 0.0
  %1081 = vmatpush1.msra.mxu0 %v1056
  %1082 = vmatprep.subr.mxu0 0.0
  %1083 = vmatpush1.msra.mxu0 %v1057
  %1084 = vmatprep.subr.mxu0 0.0
  %1085 = vmatpush1.msra.mxu0 %v1058
  %1086 = vmatprep.subr.mxu0 0.0
  %1087 = vmatpush1.msra.mxu0 %v1059
  %1088 = vmatprep.subr.mxu0 0.0
  %1089 = vmatpush1.msra.mxu0 %v1060
  %1090 = vmatprep.subr.mxu0 0.0
  %1091 = vmatpush1.msra.mxu0 %v1061
  %1092 = vmatprep.subr.mxu0 0.0
  %1093 = vmatpush1.msra.mxu0 %v1062
  %1094 = vmatprep.subr.mxu0 0.0
  %1095 = vmatpush1.msra.mxu0 %v1063
  %1096 = vmatprep.subr.mxu0 0.0
  %1097 = vmatpush1.msra.mxu0 %v1064
  %1098 = vmatprep.subr.mxu0 0.0
  %1099 = vmatpush1.msra.mxu0 0.0
  %1100 = vmatprep.subr.mxu0 0.0
  %1101 = vmatpush1.msra.mxu0 0.0
  %1102 = vmatprep.subr.mxu0 0.0
  %1103 = vmatpush1.msra.mxu0 0.0
  %1104 = vmatprep.subr.mxu0 0.0
  %1105 = vmatpush1.msra.mxu0 0.0
  %1106 = vmatprep.subr.mxu0 0.0
  %1107 = vmatpush1.msra.mxu0 0.0
  %1108 = vmatprep.subr.mxu0 0.0
  %1109 = vmatpush1.msra.mxu0 0.0
  %1110 = vmatprep.subr.mxu0 0.0
  %1111 = vmatpush1.msra.mxu0 0.0
  %1112 = vmatprep.subr.mxu0 0.0
  %1113 = vmatpush1.msra.mxu0 0.0
  %1114 = vmatprep.subr.mxu0 0.0
  %1115 = vmatpush1.msra.mxu0 0.0
  %1116 = vmatprep.subr.mxu0 0.0
  %1117 = vmatpush1.msra.mxu0 0.0
  %1118 = vmatprep.subr.mxu0 0.0
  %1119 = vmatpush1.msra.mxu0 0.0
  %1120 = vmatprep.subr.mxu0 0.0
  %1121 = vmatpush1.msra.mxu0 0.0
  %1122 = vmatprep.subr.mxu0 0.0
  %1123 = vmatpush1.msra.mxu0 0.0
  %1124 = vmatprep.subr.mxu0 0.0
  %1125 = vmatpush1.msra.mxu0 0.0
  %1126 = vmatprep.subr.mxu0 0.0
  %1127 = vmatpush1.msra.mxu0 0.0
  %1128 = vmatprep.subr.mxu0 0.0
  %1129 = vmatpush1.msra.mxu0 0.0
  %1130 = vmatprep.mubr.f32.mxu0 0.0
  %1131 = vmatmul.mubr.f32.gmra.mrb[0].mxu0 %v1046
  %v1132 = vpop.f32.mrb[0].mxu0
  %v1133 = vadd.f32 %v1065, %v1132
  %v1134 = vpop.f32.mrb[0].mxu0
  %1135 = vdwg.mxu0
  %v1136 = vld [vmem:[%s3 + $0x1500] sm:$0xff]
  %v1137 = vld [vmem:[%s3 + $0x1520] sm:$0xff]
  %v1138 = vld [vmem:[%s3 + $0x1540] sm:$0xff]
  %v1139 = vld [vmem:[%s3 + $0x1560] sm:$0xff]
  %v1140 = vld [vmem:[%s3 + $0x1580] sm:$0xff]
  %v1141 = vld [vmem:[%s3 + $0x15a0] sm:$0xff]
  %v1142 = vld [vmem:[%s3 + $0x15c0] sm:$0xff]
  %v1143 = vld [vmem:[%s3 + $0x15e0] sm:$0xff]
  %v1144 = vld [vmem:[%s3 + $0x1600] ss:$0 sm:$0xff]
  %v1146 = vsel %vm114, %v1133, 0
  %1148 = vmatprep.subr.mxu0 0.0
  %1149 = vmatpush1.msra.mxu0 %v1136
  %1150 = vmatprep.subr.mxu0 0.0
  %1151 = vmatpush1.msra.mxu0 %v1137
  %1152 = vmatprep.subr.mxu0 0.0
  %1153 = vmatpush1.msra.mxu0 %v1138
  %1154 = vmatprep.subr.mxu0 0.0
  %1155 = vmatpush1.msra.mxu0 %v1139
  %1156 = vmatprep.subr.mxu0 0.0
  %1157 = vmatpush1.msra.mxu0 %v1140
  %1158 = vmatprep.subr.mxu0 0.0
  %1159 = vmatpush1.msra.mxu0 %v1141
  %1160 = vmatprep.subr.mxu0 0.0
  %1161 = vmatpush1.msra.mxu0 %v1142
  %1162 = vmatprep.subr.mxu0 0.0
  %1163 = vmatpush1.msra.mxu0 %v1143
  %1164 = vmatprep.subr.mxu0 0.0
  %1165 = vmatpush1.msra.mxu0 0.0
  %1166 = vmatprep.subr.mxu0 0.0
  %1167 = vmatpush1.msra.mxu0 0.0
  %1168 = vmatprep.subr.mxu0 0.0
  %1169 = vmatpush1.msra.mxu0 0.0
  %1170 = vmatprep.subr.mxu0 0.0
  %1171 = vmatpush1.msra.mxu0 0.0
  %1172 = vmatprep.subr.mxu0 0.0
  %1173 = vmatpush1.msra.mxu0 0.0
  %1174 = vmatprep.subr.mxu0 0.0
  %1175 = vmatpush1.msra.mxu0 0.0
  %1176 = vmatprep.subr.mxu0 0.0
  %1177 = vmatpush1.msra.mxu0 0.0
  %1178 = vmatprep.subr.mxu0 0.0
  %1179 = vmatpush1.msra.mxu0 0.0
  %1180 = vmatprep.subr.mxu0 0.0
  %1181 = vmatpush1.msra.mxu0 0.0
  %1182 = vmatprep.subr.mxu0 0.0
  %1183 = vmatpush1.msra.mxu0 0.0
  %1184 = vmatprep.subr.mxu0 0.0
  %1185 = vmatpush1.msra.mxu0 0.0
  %1186 = vmatprep.subr.mxu0 0.0
  %1187 = vmatpush1.msra.mxu0 0.0
  %1188 = vmatprep.subr.mxu0 0.0
  %1189 = vmatpush1.msra.mxu0 0.0
  %1190 = vmatprep.subr.mxu0 0.0
  %1191 = vmatpush1.msra.mxu0 0.0
  %1192 = vmatprep.subr.mxu0 0.0
  %1193 = vmatpush1.msra.mxu0 0.0
  %1194 = vmatprep.subr.mxu0 0.0
  %1195 = vmatpush1.msra.mxu0 0.0
  %1196 = vmatprep.subr.mxu0 0.0
  %1197 = vmatpush1.msra.mxu0 0.0
  %1198 = vmatprep.subr.mxu0 0.0
  %1199 = vmatpush1.msra.mxu0 0.0
  %1200 = vmatprep.subr.mxu0 0.0
  %1201 = vmatpush1.msra.mxu0 0.0
  %1202 = vmatprep.subr.mxu0 0.0
  %1203 = vmatpush1.msra.mxu0 0.0
  %1204 = vmatprep.subr.mxu0 0.0
  %1205 = vmatpush1.msra.mxu0 0.0
  %1206 = vmatprep.subr.mxu0 0.0
  %1207 = vmatpush1.msra.mxu0 0.0
  %1208 = vmatprep.subr.mxu0 0.0
  %1209 = vmatpush1.msra.mxu0 0.0
  %1210 = vmatprep.subr.mxu0 0.0
  %1211 = vmatpush1.msra.mxu0 0.0
  %1212 = vmatprep.mubr.f32.mxu0 0.0
  %1213 = vmatmul.mubr.f32.gmra.mrb[0].mxu0 %v1146
  %v1214 = vpop.f32.mrb[0].mxu0
  %v1215 = vadd.f32 %v1144, %v1214
  %v1216 = vpop.f32.mrb[0].mxu0
  %1217 = vdwg.mxu0
  %1218 = vst [vmem:[%s4] sm:$0xff] %v1215
  // Predicated region
  $region18: #{net_forward.3} parent=0 // pred_check
    _
  $region19: #{net_forward.3} parent=0 // pred_check_branch
    %1220 = sbr.rel (0) target = $region21
  $region20: #{net_forward.3} parent=0 // pred_region
    _
  $region21: #{net_forward.3} parent=0 // pred_fallthru
    _
  // Predicated region
  $region22: #{net_forward.3} parent=0 // pred_check
    _
  $region23: #{net_forward.3} parent=0 // pred_check_branch
    %1222 = sbr.rel (0) target = $region25
  $region24: #{net_forward.3} parent=0 // pred_region
    _
  $region25: #{net_forward.3} parent=0 // pred_fallthru
    _

// kernel: net_forward.2
$region0: #{net_forward.2}
  #allocation0 [shape = 'u32[]', space=smem, size = 0x4, offset = 0x4, fixed_abs, tag = 'smem constant byte address 0x4 - core index']
  #allocation1 [shape = 'u32[144,128]{1,0:T(1,128)}', space=vmem, size = 0x12000, scoped, tag = 'internal scratch']
  %s0 = inlined_call_operand.vmem [shape: bf16[8,37632], index: 0, kind: input, shape index: {}]
  %s1 = inlined_call_operand.hbm [shape: s8[37632,512], index: 1, kind: input, shape index: {}]
  %s2 = inlined_call_operand.vmem [shape: f32[8,1024], index: 2, kind: output, shape index: {}]
  %s3 = sld [smem:[#allocation0]]
  $region49: #{net_forward.2} parent=0
    _
  %s5 = ssub.s32 1, %s3
  %s6 = scalar_select 0, %s5, %s3
  $region1: #{net_forward.2} parent=0
    #allocation2 [shape = 'u8[6422528]{0}', space=vmem, size = 0x620000, scoped, tag = 'input window, operand 1']
    #allocation3 [shape = 's32[2]{0}', space=sflag, size = 0x8, scoped, tag = 'scoped memory for net_forward.2']
    %7 = vsyncpa [#allocation3], 0
    %s8 = scalar_lea.sflag [#allocation3], 1
    %9 = vsyncpa %s8, 0
    loop: start=0, step=1, limit=8
    $region2: #{net_forward.2} parent=1 // loop_pre_header
      _
    $region3: #{net_forward.2} parent=1 // loop_header
      %s11 = sphi 0, %s15
      %p12 = scmp.ge.s32.totalorder %s11, 8
      %s18 = sphi 0, %s30
      %s19 = sphi 0, %s26
      %s20 = sphi 0, %s18
      %s21 = sphi 0, %s19
      %s22 = sphi 0, %s20
      %s23 = sphi 0, %s21
      %s37 = sphi 0, %s39
      %s40 = sphi 0, %s37
      %s41 = sphi 0, %s40
      %s57 = sphi 0, %s41
      %s67 = sphi 0, %s69
      %s70 = sphi 0, %s67
      %s71 = sphi 0, %s70
      %s87 = sphi 0, %s71
      %s93 = sphi 0, %s95
      %s96 = sphi 0, %s93
      %s97 = sphi 0, %s96
      %s113 = sphi 0, %s97
    $region4: #{net_forward.2} parent=1 // loop_header_branch
      %14 = sbr.rel (%p12) target = $region8
    $region5: #{net_forward.2} parent=1 // loop_body
      %s16 = ssub.s32 %s11, 1
      %s17 = ssub.s32 %s11, 2
      %s24 = sadd.s32 1, %s19
      %p25 = scmp.ge.s32.totalorder %s24, 3
      %s26 = scalar_select %p25, 0, %s24
      %s27 = sadd.s32 1, %s18
      %s28 = scalar_select %p25, %s27, %s18
      %p29 = scmp.ge.s32.totalorder %s28, 2
      %s30 = scalar_select %p29, 0, %s28
      %s31 = smul.u32 %s18, 3
      %s32 = sadd.s32 %s31, %s19
      %s33 = smul.u32 %s30, 3
      %s34 = sadd.s32 %s33, %s26
      %s35 = ssub.s32 %s32, %s34
      %p36 = scmp.eq.s32.totalorder %s35, 0
      %s38 = sadd.s32 %s37, 1
      %s39 = scalar_select %p36, %s37, %s38
      %p42 = pneg %p36
      %p43 = scmp.eq.s32.totalorder %s11, 5
      %p44 = por %p42, %p43
      %p45 = scmp.ne.s32.totalorder %s37, %s40
      %p46 = scmp.eq.s32.totalorder %s11, 0
      %p47 = por %p45, %p46
      %p48 = scmp.ne.s32.totalorder %s37, %s40
      %p49 = scmp.eq.s32.totalorder %s16, 5
      %p50 = por %p48, %p49
      %p51 = scmp.ne.s32.totalorder %s40, %s41
      %p52 = scmp.eq.s32.totalorder %s16, 0
      %p53 = por %p51, %p52
      %p54 = scmp.ne.s32.totalorder %s40, %s41
      %p55 = scmp.eq.s32.totalorder %s17, 5
      %p56 = por %p54, %p55
      %p58 = scmp.ne.s32.totalorder %s41, %s57
      %p59 = scmp.eq.s32.totalorder %s17, 0
      %p60 = por %p58, %p59
      %s61 = smul.u32 %s18, 3
      %s62 = sadd.s32 %s61, %s19
      %s63 = smul.u32 %s30, 3
      %s64 = sadd.s32 %s63, %s26
      %s65 = ssub.s32 %s62, %s64
      %p66 = scmp.eq.s32.totalorder %s65, 0
      %s68 = sadd.s32 %s67, 1
      %s69 = scalar_select %p66, %s67, %s68
      %p72 = pneg %p66
      %p73 = scmp.eq.s32.totalorder %s11, 5
      %p74 = por %p72, %p73
      %p75 = scmp.ne.s32.totalorder %s67, %s70
      %p76 = scmp.eq.s32.totalorder %s11, 0
      %p77 = por %p75, %p76
      %p78 = scmp.ne.s32.totalorder %s67, %s70
      %p79 = scmp.eq.s32.totalorder %s16, 5
      %p80 = por %p78, %p79
      %p81 = scmp.ne.s32.totalorder %s70, %s71
      %p82 = scmp.eq.s32.totalorder %s16, 0
      %p83 = por %p81, %p82
      %p84 = scmp.ne.s32.totalorder %s70, %s71
      %p85 = scmp.eq.s32.totalorder %s17, 5
      %p86 = por %p84, %p85
      %p88 = scmp.ne.s32.totalorder %s71, %s87
      %p89 = scmp.eq.s32.totalorder %s17, 0
      %p90 = por %p88, %p89
      %s91 = ssub.s32 %s18, %s30
      %p92 = scmp.eq.s32.totalorder %s91, 0
      %s94 = sadd.s32 %s93, 1
      %s95 = scalar_select %p92, %s93, %s94
      %p98 = pneg %p92
      %p99 = scmp.eq.s32.totalorder %s11, 5
      %p100 = por %p98, %p99
      %p101 = scmp.ne.s32.totalorder %s93, %s96
      %p102 = scmp.eq.s32.totalorder %s11, 0
      %p103 = por %p101, %p102
      %p104 = scmp.ne.s32.totalorder %s93, %s96
      %p105 = scmp.eq.s32.totalorder %s16, 5
      %p106 = por %p104, %p105
      %p107 = scmp.ne.s32.totalorder %s96, %s97
      %p108 = scmp.eq.s32.totalorder %s16, 0
      %p109 = por %p107, %p108
      %p110 = scmp.ne.s32.totalorder %s96, %s97
      %p111 = scmp.eq.s32.totalorder %s17, 5
      %p112 = por %p110, %p111
      %p114 = scmp.ne.s32.totalorder %s97, %s113
      %p115 = scmp.eq.s32.totalorder %s17, 0
      %p116 = por %p114, %p115
      %p117 = scmp.le.s32.totalorder 1, %s11
      %p118 = scmp.lt.s32.totalorder %s11, 7
      %p119 = pnand %p117, %p118
      %p120 = pneg %p119
      // Predicated region
      $region9: #{net_forward.2} parent=5 // pred_check
        _
      $region10: #{net_forward.2} parent=5 // pred_check_branch
        %122 = sbr.rel (%p119) target = $region12
      $region11: #{net_forward.2} parent=5 // pred_region
        %s123 = ssub.s32 %s11, 1
      $region12: #{net_forward.2} parent=5 // pred_fallthru
        _
      %p124 = scmp.lt.s32.totalorder %s11, 6
      // Predicated region
      $region13: #{net_forward.2} parent=5 // pred_check
        %p125 = pneg %p124
      $region14: #{net_forward.2} parent=5 // pred_check_branch
        %127 = sbr.rel (%p125) target = $region16
      $region15: #{net_forward.2} parent=5 // pred_region
        // Predicated region
        $region17: #{net_forward.2} parent=15 // pred_check
          %p128 = pneg %p47
        $region18: #{net_forward.2} parent=15 // pred_check_branch
          %130 = sbr.rel (%p128) target = $region20
        $region19: #{net_forward.2} parent=15 // pred_region
          %s131 = smul.u32 %s18, 3
          %s132 = sadd.s32 %s131, %s19
          %s133 = smul.u32 49, %s132
          %p134 = scmp.lt.s32.totalorder %s133, 293
          %s135 = scalar_select %p134, %s133, 293
          %s136 = smul.addr %s135, 4
          %s137 = scalar_lea.vmem %s0, %s136
          %s138 = smul.u32 %s18, 3
          %s139 = sadd.s32 %s138, %s19
          %s140 = smul.u32 49, %s139
        $region20: #{net_forward.2} parent=15 // pred_fallthru
          _
        // Predicated region
        $region21: #{net_forward.2} parent=15 // pred_check
          %p141 = pneg %p77
        $region22: #{net_forward.2} parent=15 // pred_check_branch
          %143 = sbr.rel (%p141) target = $region24
        $region23: #{net_forward.2} parent=15 // pred_region
          %s144 = sand.u32 %s67, 1
          %s145 = scalar_lea.sflag [#allocation3], %s144
          %s146 = sand.u32 %s67, 1
          %s147 = smul.addr %s146, 6272
          %s148 = scalar_lea.vmem [#allocation2], %s147
          %s149 = smul.u32 %s18, 3
          %s150 = sadd.s32 %s149, %s19
          %s151 = smul.u32 196, %s150
          %s153 = ssub.s32 100352, 100352
          %154 = vsyncadd %s145, %s153
          %s155 = smul.addr %s151, 4
          %s156 = smul.addr %s155, 128
          %s157 = scalar_lea.hbm %s1, %s156
          %s158 = sshll.u32 %s148, 4
          %s159 = int_to_ptr.vmem [resolvable:$true] %s158
          %164 = dma.hbm_to_vmem [thread:$0]  %s157, 100352, %s159, %s145, 512, 512, 32
        $region24: #{net_forward.2} parent=15 // pred_fallthru
          _
      $region16: #{net_forward.2} parent=5 // pred_fallthru
        _
      %p165 = scmp.le.s32.totalorder 1, %s11
      %p166 = scmp.lt.s32.totalorder %s11, 7
      %p167 = pnand %p165, %p166
      %p168 = pneg %p167
      // Predicated region
      $region25: #{net_forward.2} parent=5 // pred_check
        _
      $region26: #{net_forward.2} parent=5 // pred_check_branch
        %170 = sbr.rel (%p167) target = $region28
      $region27: #{net_forward.2} parent=5 // pred_region
        %s171 = ssub.s32 %s11, 1
        %s172 = sand.u32 %s70, 1
        %s173 = scalar_lea.sflag [#allocation3], %s172
        %s174 = sand.u32 %s70, 1
        %s175 = smul.addr %s174, 6272
        %s176 = scalar_lea.vmem [#allocation2], %s175
        // Predicated region
        $region29: #{net_forward.2} parent=27 // pred_check
          %p177 = pneg %p83
        $region30: #{net_forward.2} parent=27 // pred_check_branch
          %179 = sbr.rel (%p177) target = $region32
        $region31: #{net_forward.2} parent=27 // pred_region
          %180 = dma.done %s173, 100352
        $region32: #{net_forward.2} parent=27 // pred_fallthru
          _
        %s181 = smul.u32 %s20, 3
        %s182 = sadd.s32 %s181, %s21
        %s183 = smul.u32 49, %s182
        %p184 = scmp.lt.s32.totalorder %s183, 293
        %s185 = scalar_select %p184, %s183, 293
        %s186 = smul.addr %s185, 4
        %s187 = scalar_lea.vmem %s0, %s186
        %p188 = pneg %p53
        %p189 = pneg %p50
        %s190 = sand.u32 %s70, 1
        %s191 = scalar_lea.sflag [#allocation3], %s190
        %s192 = sand.u32 %s70, 1
        %s193 = smul.addr %s192, 6272
        %s194 = scalar_lea.vmem [#allocation2], %s193
        %p195 = pneg %p83
        %p196 = pneg %p80
        %p197 = pneg %p109
        %p198 = pneg %p106
        %s199 = smul.u32 4, %s20
        %p200 = scmp.lt.s32.totalorder %s199, 7
        %s201 = scalar_select %p200, %s199, 7
        %s202 = smul.addr %s201, 8
        %s203 = scalar_lea.vmem %s2, %s202
        %s204 = smul.u32 %s20, 3
        %s205 = sadd.s32 %s204, %s21
        %s206 = smul.u32 49, %s205
        %p207 = scmp.lt.s32.totalorder %s206, 293
        %s208 = scalar_select %p207, %s206, 293
        %s209 = smul.addr %s208, 4
        %s210 = scalar_lea.vmem %s0, %s209
        %s211 = smul.u32 %s20, 3
        %s212 = sadd.s32 %s211, %s21
        %s213 = smul.u32 49, %s212
        %s214 = smul.u32 %s20, 3
        %s215 = sadd.s32 %s214, %s21
        %s216 = smul.u32 196, %s215
        %s217 = smul.u32 4, %s20
        %p218 = scmp.lt.s32.totalorder %s217, 7
        %s219 = scalar_select %p218, %s217, 7
        %s220 = smul.addr %s219, 8
        %s221 = scalar_lea.vmem %s2, %s220
        %s222 = smul.u32 4, %s20
        %p224 = scmp.eq.s32.totalorder %s21, 0
        // Predicated region
        $region33: #{net_forward.2} parent=27 // pred_check
          %p225 = pneg %p224
        $region34: #{net_forward.2} parent=27 // pred_check_branch
          %227 = sbr.rel (%p225) target = $region36
        $region35: #{net_forward.2} parent=27 // pred_region
          %228 = vst [vmem:[%s221] sm:$0xff] 0.0
          %229 = vst [vmem:[%s221 + $0x8] sm:$0xff] 0.0
          %230 = vst [vmem:[%s221 + $0x10] sm:$0xff] 0.0
          %231 = vst [vmem:[%s221 + $0x18] sm:$0xff] 0.0
        $region36: #{net_forward.2} parent=27 // pred_fallthru
          _
        %v232 = vld [vmem:[%s176] sm:$0xff]
        %v233 = vld [vmem:[%s176 + $0x8] sm:$0xff]
        %v234 = vld [vmem:[%s176 + $0x10] sm:$0xff]
        %v235 = vld [vmem:[%s176 + $0x18] sm:$0xff]
        %v236 = vld [vmem:[%s176 + $0x20] sm:$0xff]
        %v237 = vld [vmem:[%s176 + $0x28] sm:$0xff]
        %v238 = vld [vmem:[%s176 + $0x30] sm:$0xff]
        %v239 = vld [vmem:[%s176 + $0x38] sm:$0xff]
        %v240 = vld [vmem:[%s176 + $0x40] sm:$0xff]
        %v241 = vld [vmem:[%s176 + $0x48] sm:$0xff]
        %v242 = vld [vmem:[%s176 + $0x50] sm:$0xff]
        %v243 = vld [vmem:[%s176 + $0x58] sm:$0xff]
        %v244 = vld [vmem:[%s176 + $0x60] sm:$0xff]
        %v245 = vld [vmem:[%s176 + $0x68] sm:$0xff]
        %v246 = vld [vmem:[%s176 + $0x70] sm:$0xff]
        %v247 = vld [vmem:[%s176 + $0x78] sm:$0xff]
        %v248 = vld [vmem:[%s176 + $0x80] sm:$0xff]
        %v249 = vld [vmem:[%s176 + $0x88] sm:$0xff]
        %v250 = vld [vmem:[%s176 + $0x90] sm:$0xff]
        %v251 = vld [vmem:[%s176 + $0x98] sm:$0xff]
        %v252 = vld [vmem:[%s176 + $0xa0] sm:$0xff]
        %v253 = vld [vmem:[%s176 + $0xa8] sm:$0xff]
        %v254 = vld [vmem:[%s176 + $0xb0] sm:$0xff]
        %v255 = vld [vmem:[%s176 + $0xb8] sm:$0xff]
        %v256 = vld [vmem:[%s176 + $0xc0] sm:$0xff]
        %v257 = vld [vmem:[%s176 + $0xc8] sm:$0xff]
        %v258 = vld [vmem:[%s176 + $0xd0] sm:$0xff]
        %v259 = vld [vmem:[%s176 + $0xd8] sm:$0xff]
        %v260 = vld [vmem:[%s176 + $0xe0] sm:$0xff]
        %v261 = vld [vmem:[%s176 + $0xe8] sm:$0xff]
        %v262 = vld [vmem:[%s176 + $0xf0] sm:$0xff]
        %v263 = vld [vmem:[%s176 + $0xf8] sm:$0xff]
        %v264 = vld [vmem:[%s176 + $0x100] sm:$0xff]
        %v265 = vld [vmem:[%s176 + $0x108] sm:$0xff]
        %v266 = vld [vmem:[%s176 + $0x110] sm:$0xff]
        %v267 = vld [vmem:[%s176 + $0x118] sm:$0xff]
        %v268 = vld [vmem:[%s176 + $0x120] sm:$0xff]
        %v269 = vld [vmem:[%s176 + $0x128] sm:$0xff]
        %v270 = vld [vmem:[%s176 + $0x130] sm:$0xff]
        %v271 = vld [vmem:[%s176 + $0x138] sm:$0xff]
        %v272 = vld [vmem:[%s176 + $0x140] sm:$0xff]
        %v273 = vld [vmem:[%s176 + $0x148] sm:$0xff]
        %v274 = vld [vmem:[%s176 + $0x150] sm:$0xff]
        %v275 = vld [vmem:[%s176 + $0x158] sm:$0xff]
        %v276 = vld [vmem:[%s176 + $0x160] sm:$0xff]
        %v277 = vld [vmem:[%s176 + $0x168] sm:$0xff]
        %v278 = vld [vmem:[%s176 + $0x170] sm:$0xff]
        %v279 = vld [vmem:[%s176 + $0x178] sm:$0xff]
        %v280 = vld [vmem:[%s176 + $0x180] sm:$0xff]
        %v281 = vld [vmem:[%s176 + $0x188] sm:$0xff]
        %v282 = vld [vmem:[%s176 + $0x190] sm:$0xff]
        %v283 = vld [vmem:[%s176 + $0x198] sm:$0xff]
        %v284 = vld [vmem:[%s176 + $0x1a0] sm:$0xff]
        %v285 = vld [vmem:[%s176 + $0x1a8] sm:$0xff]
        %v286 = vld [vmem:[%s176 + $0x1b0] sm:$0xff]
        %v287 = vld [vmem:[%s176 + $0x1b8] sm:$0xff]
        %v288 = vld [vmem:[%s176 + $0x1c0] sm:$0xff]
        %v289 = vld [vmem:[%s176 + $0x1c8] sm:$0xff]
        %v290 = vld [vmem:[%s176 + $0x1d0] sm:$0xff]
        %v291 = vld [vmem:[%s176 + $0x1d8] sm:$0xff]
        %v292 = vld [vmem:[%s176 + $0x1e0] sm:$0xff]
        %v293 = vld [vmem:[%s176 + $0x1e8] sm:$0xff]
        %v294 = vld [vmem:[%s176 + $0x1f0] sm:$0xff]
        %v295 = vld [vmem:[%s176 + $0x1f8] sm:$0xff]
        %v296 = vld [vmem:[%s176 + $0x200] sm:$0xff]
        %v297 = vld [vmem:[%s176 + $0x208] sm:$0xff]
        %v298 = vld [vmem:[%s176 + $0x210] sm:$0xff]
        %v299 = vld [vmem:[%s176 + $0x218] sm:$0xff]
        %v300 = vld [vmem:[%s176 + $0x220] sm:$0xff]
        %v301 = vld [vmem:[%s176 + $0x228] sm:$0xff]
        %v302 = vld [vmem:[%s176 + $0x230] sm:$0xff]
        %v303 = vld [vmem:[%s176 + $0x238] sm:$0xff]
        %v304 = vld [vmem:[%s176 + $0x240] sm:$0xff]
        %v305 = vld [vmem:[%s176 + $0x248] sm:$0xff]
        %v306 = vld [vmem:[%s176 + $0x250] sm:$0xff]
        %v307 = vld [vmem:[%s176 + $0x258] sm:$0xff]
        %v308 = vld [vmem:[%s176 + $0x260] sm:$0xff]
        %v309 = vld [vmem:[%s176 + $0x268] sm:$0xff]
        %v310 = vld [vmem:[%s176 + $0x270] sm:$0xff]
        %v311 = vld [vmem:[%s176 + $0x278] sm:$0xff]
        %v312 = vld [vmem:[%s176 + $0x280] sm:$0xff]
        %v313 = vld [vmem:[%s176 + $0x288] sm:$0xff]
        %v314 = vld [vmem:[%s176 + $0x290] sm:$0xff]
        %v315 = vld [vmem:[%s176 + $0x298] sm:$0xff]
        %v316 = vld [vmem:[%s176 + $0x2a0] sm:$0xff]
        %v317 = vld [vmem:[%s176 + $0x2a8] sm:$0xff]
        %v318 = vld [vmem:[%s176 + $0x2b0] sm:$0xff]
        %v319 = vld [vmem:[%s176 + $0x2b8] sm:$0xff]
        %v320 = vld [vmem:[%s176 + $0x2c0] sm:$0xff]
        %v321 = vld [vmem:[%s176 + $0x2c8] sm:$0xff]
        %v322 = vld [vmem:[%s176 + $0x2d0] sm:$0xff]
        %v323 = vld [vmem:[%s176 + $0x2d8] sm:$0xff]
        %v324 = vld [vmem:[%s176 + $0x2e0] sm:$0xff]
        %v325 = vld [vmem:[%s176 + $0x2e8] sm:$0xff]
        %v326 = vld [vmem:[%s176 + $0x2f0] sm:$0xff]
        %v327 = vld [vmem:[%s176 + $0x2f8] sm:$0xff]
        %v328 = vld [vmem:[%s176 + $0x300] sm:$0xff]
        %v329 = vld [vmem:[%s176 + $0x308] sm:$0xff]
        %v330 = vld [vmem:[%s176 + $0x310] sm:$0xff]
        %v331 = vld [vmem:[%s176 + $0x318] sm:$0xff]
        %v332 = vld [vmem:[%s176 + $0x320] sm:$0xff]
        %v333 = vld [vmem:[%s176 + $0x328] sm:$0xff]
        %v334 = vld [vmem:[%s176 + $0x330] sm:$0xff]
        %v335 = vld [vmem:[%s176 + $0x338] sm:$0xff]
        %v336 = vld [vmem:[%s176 + $0x340] sm:$0xff]
        %v337 = vld [vmem:[%s176 + $0x348] sm:$0xff]
        %v338 = vld [vmem:[%s176 + $0x350] sm:$0xff]
        %v339 = vld [vmem:[%s176 + $0x358] sm:$0xff]
        %v340 = vld [vmem:[%s176 + $0x360] sm:$0xff]
        %v341 = vld [vmem:[%s176 + $0x368] sm:$0xff]
        %v342 = vld [vmem:[%s176 + $0x370] sm:$0xff]
        %v343 = vld [vmem:[%s176 + $0x378] sm:$0xff]
        %v344 = vld [vmem:[%s176 + $0x380] sm:$0xff]
        %v345 = vld [vmem:[%s176 + $0x388] sm:$0xff]
        %v346 = vld [vmem:[%s176 + $0x390] sm:$0xff]
        %v347 = vld [vmem:[%s176 + $0x398] sm:$0xff]
        %v348 = vld [vmem:[%s176 + $0x3a0] sm:$0xff]
        %v349 = vld [vmem:[%s176 + $0x3a8] sm:$0xff]
        %v350 = vld [vmem:[%s176 + $0x3b0] sm:$0xff]
        %v351 = vld [vmem:[%s176 + $0x3b8] sm:$0xff]
        %v352 = vld [vmem:[%s176 + $0x3c0] sm:$0xff]
        %v353 = vld [vmem:[%s176 + $0x3c8] sm:$0xff]
        %v354 = vld [vmem:[%s176 + $0x3d0] sm:$0xff]
        %v355 = vld [vmem:[%s176 + $0x3d8] sm:$0xff]
        %v356 = vld [vmem:[%s176 + $0x3e0] sm:$0xff]
        %v357 = vld [vmem:[%s176 + $0x3e8] sm:$0xff]
        %v358 = vld [vmem:[%s176 + $0x3f0] sm:$0xff]
        %v359 = vld [vmem:[%s176 + $0x3f8] sm:$0xff]
        %v360 = vld [vmem:[%s176 + $0x400] sm:$0xff]
        %v361 = vld [vmem:[%s176 + $0x408] sm:$0xff]
        %v362 = vld [vmem:[%s176 + $0x410] sm:$0xff]
        %v363 = vld [vmem:[%s176 + $0x418] sm:$0xff]
        %v364 = vld [vmem:[%s176 + $0x420] sm:$0xff]
        %v365 = vld [vmem:[%s176 + $0x428] sm:$0xff]
        %v366 = vld [vmem:[%s176 + $0x430] sm:$0xff]
        %v367 = vld [vmem:[%s176 + $0x438] sm:$0xff]
        %v368 = vld [vmem:[%s176 + $0x440] sm:$0xff]
        %v369 = vld [vmem:[%s176 + $0x448] sm:$0xff]
        %v370 = vld [vmem:[%s176 + $0x450] sm:$0xff]
        %v371 = vld [vmem:[%s176 + $0x458] sm:$0xff]
        %v372 = vld [vmem:[%s176 + $0x460] sm:$0xff]
        %v373 = vld [vmem:[%s176 + $0x468] sm:$0xff]
        %v374 = vld [vmem:[%s176 + $0x470] sm:$0xff]
        %v375 = vld [vmem:[%s176 + $0x478] sm:$0xff]
        %v376 = vld [vmem:[%s176 + $0x480] sm:$0xff]
        %v377 = vld [vmem:[%s176 + $0x488] sm:$0xff]
        %v378 = vld [vmem:[%s176 + $0x490] sm:$0xff]
        %v379 = vld [vmem:[%s176 + $0x498] sm:$0xff]
        %v380 = vld [vmem:[%s176 + $0x4a0] sm:$0xff]
        %v381 = vld [vmem:[%s176 + $0x4a8] sm:$0xff]
        %v382 = vld [vmem:[%s176 + $0x4b0] sm:$0xff]
        %v383 = vld [vmem:[%s176 + $0x4b8] sm:$0xff]
        %v384 = vld [vmem:[%s176 + $0x4c0] sm:$0xff]
        %v385 = vld [vmem:[%s176 + $0x4c8] sm:$0xff]
        %v386 = vld [vmem:[%s176 + $0x4d0] sm:$0xff]
        %v387 = vld [vmem:[%s176 + $0x4d8] sm:$0xff]
        %v388 = vld [vmem:[%s176 + $0x4e0] sm:$0xff]
        %v389 = vld [vmem:[%s176 + $0x4e8] sm:$0xff]
        %v390 = vld [vmem:[%s176 + $0x4f0] sm:$0xff]
        %v391 = vld [vmem:[%s176 + $0x4f8] sm:$0xff]
        %v392 = vld [vmem:[%s176 + $0x500] sm:$0xff]
        %v393 = vld [vmem:[%s176 + $0x508] sm:$0xff]
        %v394 = vld [vmem:[%s176 + $0x510] sm:$0xff]
        %v395 = vld [vmem:[%s176 + $0x518] sm:$0xff]
        %v396 = vld [vmem:[%s176 + $0x520] sm:$0xff]
        %v397 = vld [vmem:[%s176 + $0x528] sm:$0xff]
        %v398 = vld [vmem:[%s176 + $0x530] sm:$0xff]
        %v399 = vld [vmem:[%s176 + $0x538] sm:$0xff]
        %v400 = vld [vmem:[%s176 + $0x540] sm:$0xff]
        %v401 = vld [vmem:[%s176 + $0x548] sm:$0xff]
        %v402 = vld [vmem:[%s176 + $0x550] sm:$0xff]
        %v403 = vld [vmem:[%s176 + $0x558] sm:$0xff]
        %v404 = vld [vmem:[%s176 + $0x560] sm:$0xff]
        %v405 = vld [vmem:[%s176 + $0x568] sm:$0xff]
        %v406 = vld [vmem:[%s176 + $0x570] sm:$0xff]
        %v407 = vld [vmem:[%s176 + $0x578] sm:$0xff]
        %v408 = vld [vmem:[%s176 + $0x580] sm:$0xff]
        %v409 = vld [vmem:[%s176 + $0x588] sm:$0xff]
        %v410 = vld [vmem:[%s176 + $0x590] sm:$0xff]
        %v411 = vld [vmem:[%s176 + $0x598] sm:$0xff]
        %v412 = vld [vmem:[%s176 + $0x5a0] sm:$0xff]
        %v413 = vld [vmem:[%s176 + $0x5a8] sm:$0xff]
        %v414 = vld [vmem:[%s176 + $0x5b0] sm:$0xff]
        %v415 = vld [vmem:[%s176 + $0x5b8] sm:$0xff]
        %v416 = vld [vmem:[%s176 + $0x5c0] sm:$0xff]
        %v417 = vld [vmem:[%s176 + $0x5c8] sm:$0xff]
        %v418 = vld [vmem:[%s176 + $0x5d0] sm:$0xff]
        %v419 = vld [vmem:[%s176 + $0x5d8] sm:$0xff]
        %v420 = vld [vmem:[%s176 + $0x5e0] sm:$0xff]
        %v421 = vld [vmem:[%s176 + $0x5e8] sm:$0xff]
        %v422 = vld [vmem:[%s176 + $0x5f0] sm:$0xff]
        %v423 = vld [vmem:[%s176 + $0x5f8] sm:$0xff]
        %v424 = vld [vmem:[%s176 + $0x600] sm:$0xff]
        %v425 = vld [vmem:[%s176 + $0x608] sm:$0xff]
        %v426 = vld [vmem:[%s176 + $0x610] sm:$0xff]
        %v427 = vld [vmem:[%s176 + $0x618] sm:$0xff]
        %v428 = vld [vmem:[%s176 + $0x620] sm:$0xff]
        %v429 = vld [vmem:[%s176 + $0x628] sm:$0xff]
        %v430 = vld [vmem:[%s176 + $0x630] sm:$0xff]
        %v431 = vld [vmem:[%s176 + $0x638] sm:$0xff]
        %v432 = vld [vmem:[%s176 + $0x640] sm:$0xff]
        %v433 = vld [vmem:[%s176 + $0x648] sm:$0xff]
        %v434 = vld [vmem:[%s176 + $0x650] sm:$0xff]
        %v435 = vld [vmem:[%s176 + $0x658] sm:$0xff]
        %v436 = vld [vmem:[%s176 + $0x660] sm:$0xff]
        %v437 = vld [vmem:[%s176 + $0x668] sm:$0xff]
        %v438 = vld [vmem:[%s176 + $0x670] sm:$0xff]
        %v439 = vld [vmem:[%s176 + $0x678] sm:$0xff]
        %v440 = vld [vmem:[%s176 + $0x680] sm:$0xff]
        %v441 = vld [vmem:[%s176 + $0x688] sm:$0xff]
        %v442 = vld [vmem:[%s176 + $0x690] sm:$0xff]
        %v443 = vld [vmem:[%s176 + $0x698] sm:$0xff]
        %v444 = vld [vmem:[%s176 + $0x6a0] sm:$0xff]
        %v445 = vld [vmem:[%s176 + $0x6a8] sm:$0xff]
        %v446 = vld [vmem:[%s176 + $0x6b0] sm:$0xff]
        %v447 = vld [vmem:[%s176 + $0x6b8] sm:$0xff]
        %v448 = vld [vmem:[%s176 + $0x6c0] sm:$0xff]
        %v449 = vld [vmem:[%s176 + $0x6c8] sm:$0xff]
        %v450 = vld [vmem:[%s176 + $0x6d0] sm:$0xff]
        %v451 = vld [vmem:[%s176 + $0x6d8] sm:$0xff]
        %v452 = vld [vmem:[%s176 + $0x6e0] sm:$0xff]
        %v453 = vld [vmem:[%s176 + $0x6e8] sm:$0xff]
        %v454 = vld [vmem:[%s176 + $0x6f0] sm:$0xff]
        %v455 = vld [vmem:[%s176 + $0x6f8] sm:$0xff]
        %v456 = vld [vmem:[%s176 + $0x700] sm:$0xff]
        %v457 = vld [vmem:[%s176 + $0x708] sm:$0xff]
        %v458 = vld [vmem:[%s176 + $0x710] sm:$0xff]
        %v459 = vld [vmem:[%s176 + $0x718] sm:$0xff]
        %v460 = vld [vmem:[%s176 + $0x720] sm:$0xff]
        %v461 = vld [vmem:[%s176 + $0x728] sm:$0xff]
        %v462 = vld [vmem:[%s176 + $0x730] sm:$0xff]
        %v463 = vld [vmem:[%s176 + $0x738] sm:$0xff]
        %v464 = vld [vmem:[%s176 + $0x740] sm:$0xff]
        %v465 = vld [vmem:[%s176 + $0x748] sm:$0xff]
        %v466 = vld [vmem:[%s176 + $0x750] sm:$0xff]
        %v467 = vld [vmem:[%s176 + $0x758] sm:$0xff]
        %v468 = vld [vmem:[%s176 + $0x760] sm:$0xff]
        %v469 = vld [vmem:[%s176 + $0x768] sm:$0xff]
        %v470 = vld [vmem:[%s176 + $0x770] sm:$0xff]
        %v471 = vld [vmem:[%s176 + $0x778] sm:$0xff]
        %v472 = vld [vmem:[%s176 + $0x780] sm:$0xff]
        %v473 = vld [vmem:[%s176 + $0x788] sm:$0xff]
        %v474 = vld [vmem:[%s176 + $0x790] sm:$0xff]
        %v475 = vld [vmem:[%s176 + $0x798] sm:$0xff]
        %v476 = vld [vmem:[%s176 + $0x7a0] sm:$0xff]
        %v477 = vld [vmem:[%s176 + $0x7a8] sm:$0xff]
        %v478 = vld [vmem:[%s176 + $0x7b0] sm:$0xff]
        %v479 = vld [vmem:[%s176 + $0x7b8] sm:$0xff]
        %v480 = vld [vmem:[%s176 + $0x7c0] sm:$0xff]
        %v481 = vld [vmem:[%s176 + $0x7c8] sm:$0xff]
        %v482 = vld [vmem:[%s176 + $0x7d0] sm:$0xff]
        %v483 = vld [vmem:[%s176 + $0x7d8] sm:$0xff]
        %v484 = vld [vmem:[%s176 + $0x7e0] sm:$0xff]
        %v485 = vld [vmem:[%s176 + $0x7e8] sm:$0xff]
        %v486 = vld [vmem:[%s176 + $0x7f0] sm:$0xff]
        %v487 = vld [vmem:[%s176 + $0x7f8] sm:$0xff]
        %v488 = vld [vmem:[%s176 + $0x800] sm:$0xff]
        %v489 = vld [vmem:[%s176 + $0x808] sm:$0xff]
        %v490 = vld [vmem:[%s176 + $0x810] sm:$0xff]
        %v491 = vld [vmem:[%s176 + $0x818] sm:$0xff]
        %v492 = vld [vmem:[%s176 + $0x820] sm:$0xff]
        %v493 = vld [vmem:[%s176 + $0x828] sm:$0xff]
        %v494 = vld [vmem:[%s176 + $0x830] sm:$0xff]
        %v495 = vld [vmem:[%s176 + $0x838] sm:$0xff]
        %v496 = vld [vmem:[%s176 + $0x840] sm:$0xff]
        %v497 = vld [vmem:[%s176 + $0x848] sm:$0xff]
        %v498 = vld [vmem:[%s176 + $0x850] sm:$0xff]
        %v499 = vld [vmem:[%s176 + $0x858] sm:$0xff]
        %v500 = vld [vmem:[%s176 + $0x860] sm:$0xff]
        %v501 = vld [vmem:[%s176 + $0x868] sm:$0xff]
        %v502 = vld [vmem:[%s176 + $0x870] sm:$0xff]
        %v503 = vld [vmem:[%s176 + $0x878] sm:$0xff]
        %v504 = vld [vmem:[%s176 + $0x880] sm:$0xff]
        %v505 = vld [vmem:[%s176 + $0x888] sm:$0xff]
        %v506 = vld [vmem:[%s176 + $0x890] sm:$0xff]
        %v507 = vld [vmem:[%s176 + $0x898] sm:$0xff]
        %v508 = vld [vmem:[%s176 + $0x8a0] sm:$0xff]
        %v509 = vld [vmem:[%s176 + $0x8a8] sm:$0xff]
        %v510 = vld [vmem:[%s176 + $0x8b0] sm:$0xff]
        %v511 = vld [vmem:[%s176 + $0x8b8] sm:$0xff]
        %v512 = vld [vmem:[%s176 + $0x8c0] sm:$0xff]
        %v513 = vld [vmem:[%s176 + $0x8c8] sm:$0xff]
        %v514 = vld [vmem:[%s176 + $0x8d0] sm:$0xff]
        %v515 = vld [vmem:[%s176 + $0x8d8] sm:$0xff]
        %v516 = vld [vmem:[%s176 + $0x8e0] sm:$0xff]
        %v517 = vld [vmem:[%s176 + $0x8e8] sm:$0xff]
        %v518 = vld [vmem:[%s176 + $0x8f0] sm:$0xff]
        %v519 = vld [vmem:[%s176 + $0x8f8] sm:$0xff]
        %v520 = vld [vmem:[%s176 + $0x900] sm:$0xff]
        %v521 = vld [vmem:[%s176 + $0x908] sm:$0xff]
        %v522 = vld [vmem:[%s176 + $0x910] sm:$0xff]
        %v523 = vld [vmem:[%s176 + $0x918] sm:$0xff]
        %v524 = vld [vmem:[%s176 + $0x920] sm:$0xff]
        %v525 = vld [vmem:[%s176 + $0x928] sm:$0xff]
        %v526 = vld [vmem:[%s176 + $0x930] sm:$0xff]
        %v527 = vld [vmem:[%s176 + $0x938] sm:$0xff]
        %v528 = vld [vmem:[%s176 + $0x940] sm:$0xff]
        %v529 = vld [vmem:[%s176 + $0x948] sm:$0xff]
        %v530 = vld [vmem:[%s176 + $0x950] sm:$0xff]
        %v531 = vld [vmem:[%s176 + $0x958] sm:$0xff]
        %v532 = vld [vmem:[%s176 + $0x960] sm:$0xff]
        %v533 = vld [vmem:[%s176 + $0x968] sm:$0xff]
        %v534 = vld [vmem:[%s176 + $0x970] sm:$0xff]
        %v535 = vld [vmem:[%s176 + $0x978] sm:$0xff]
        %v536 = vld [vmem:[%s176 + $0x980] sm:$0xff]
        %v537 = vld [vmem:[%s176 + $0x988] sm:$0xff]
        %v538 = vld [vmem:[%s176 + $0x990] sm:$0xff]
        %v539 = vld [vmem:[%s176 + $0x998] sm:$0xff]
        %v540 = vld [vmem:[%s176 + $0x9a0] sm:$0xff]
        %v541 = vld [vmem:[%s176 + $0x9a8] sm:$0xff]
        %v542 = vld [vmem:[%s176 + $0x9b0] sm:$0xff]
        %v543 = vld [vmem:[%s176 + $0x9b8] sm:$0xff]
        %v544 = vld [vmem:[%s176 + $0x9c0] sm:$0xff]
        %v545 = vld [vmem:[%s176 + $0x9c8] sm:$0xff]
        %v546 = vld [vmem:[%s176 + $0x9d0] sm:$0xff]
        %v547 = vld [vmem:[%s176 + $0x9d8] sm:$0xff]
        %v548 = vld [vmem:[%s176 + $0x9e0] sm:$0xff]
        %v549 = vld [vmem:[%s176 + $0x9e8] sm:$0xff]
        %v550 = vld [vmem:[%s176 + $0x9f0] sm:$0xff]
        %v551 = vld [vmem:[%s176 + $0x9f8] sm:$0xff]
        %v552 = vld [vmem:[%s176 + $0xa00] sm:$0xff]
        %v553 = vld [vmem:[%s176 + $0xa08] sm:$0xff]
        %v554 = vld [vmem:[%s176 + $0xa10] sm:$0xff]
        %v555 = vld [vmem:[%s176 + $0xa18] sm:$0xff]
        %v556 = vld [vmem:[%s176 + $0xa20] sm:$0xff]
        %v557 = vld [vmem:[%s176 + $0xa28] sm:$0xff]
        %v558 = vld [vmem:[%s176 + $0xa30] sm:$0xff]
        %v559 = vld [vmem:[%s176 + $0xa38] sm:$0xff]
        %v560 = vld [vmem:[%s176 + $0xa40] sm:$0xff]
        %v561 = vld [vmem:[%s176 + $0xa48] sm:$0xff]
        %v562 = vld [vmem:[%s176 + $0xa50] sm:$0xff]
        %v563 = vld [vmem:[%s176 + $0xa58] sm:$0xff]
        %v564 = vld [vmem:[%s176 + $0xa60] sm:$0xff]
        %v565 = vld [vmem:[%s176 + $0xa68] sm:$0xff]
        %v566 = vld [vmem:[%s176 + $0xa70] sm:$0xff]
        %v567 = vld [vmem:[%s176 + $0xa78] sm:$0xff]
        %v568 = vld [vmem:[%s176 + $0xa80] sm:$0xff]
        %v569 = vld [vmem:[%s176 + $0xa88] sm:$0xff]
        %v570 = vld [vmem:[%s176 + $0xa90] sm:$0xff]
        %v571 = vld [vmem:[%s176 + $0xa98] sm:$0xff]
        %v572 = vld [vmem:[%s176 + $0xaa0] sm:$0xff]
        %v573 = vld [vmem:[%s176 + $0xaa8] sm:$0xff]
        %v574 = vld [vmem:[%s176 + $0xab0] sm:$0xff]
        %v575 = vld [vmem:[%s176 + $0xab8] sm:$0xff]
        %v576 = vld [vmem:[%s176 + $0xac0] sm:$0xff]
        %v577 = vld [vmem:[%s176 + $0xac8] sm:$0xff]
        %v578 = vld [vmem:[%s176 + $0xad0] sm:$0xff]
        %v579 = vld [vmem:[%s176 + $0xad8] sm:$0xff]
        %v580 = vld [vmem:[%s176 + $0xae0] sm:$0xff]
        %v581 = vld [vmem:[%s176 + $0xae8] sm:$0xff]
        %v582 = vld [vmem:[%s176 + $0xaf0] sm:$0xff]
        %v583 = vld [vmem:[%s176 + $0xaf8] sm:$0xff]
        %v584 = vld [vmem:[%s176 + $0xb00] sm:$0xff]
        %v585 = vld [vmem:[%s176 + $0xb08] sm:$0xff]
        %v586 = vld [vmem:[%s176 + $0xb10] sm:$0xff]
        %v587 = vld [vmem:[%s176 + $0xb18] sm:$0xff]
        %v588 = vld [vmem:[%s176 + $0xb20] sm:$0xff]
        %v589 = vld [vmem:[%s176 + $0xb28] sm:$0xff]
        %v590 = vld [vmem:[%s176 + $0xb30] sm:$0xff]
        %v591 = vld [vmem:[%s176 + $0xb38] sm:$0xff]
        %v592 = vld [vmem:[%s176 + $0xb40] sm:$0xff]
        %v593 = vld [vmem:[%s176 + $0xb48] sm:$0xff]
        %v594 = vld [vmem:[%s176 + $0xb50] sm:$0xff]
        %v595 = vld [vmem:[%s176 + $0xb58] sm:$0xff]
        %v596 = vld [vmem:[%s176 + $0xb60] sm:$0xff]
        %v597 = vld [vmem:[%s176 + $0xb68] sm:$0xff]
        %v598 = vld [vmem:[%s176 + $0xb70] sm:$0xff]
        %v599 = vld [vmem:[%s176 + $0xb78] sm:$0xff]
        %v600 = vld [vmem:[%s176 + $0xb80] sm:$0xff]
        %v601 = vld [vmem:[%s176 + $0xb88] sm:$0xff]
        %v602 = vld [vmem:[%s176 + $0xb90] sm:$0xff]
        %v603 = vld [vmem:[%s176 + $0xb98] sm:$0xff]
        %v604 = vld [vmem:[%s176 + $0xba0] sm:$0xff]
        %v605 = vld [vmem:[%s176 + $0xba8] sm:$0xff]
        %v606 = vld [vmem:[%s176 + $0xbb0] sm:$0xff]
        %v607 = vld [vmem:[%s176 + $0xbb8] sm:$0xff]
        %v608 = vld [vmem:[%s176 + $0xbc0] sm:$0xff]
        %v609 = vld [vmem:[%s176 + $0xbc8] sm:$0xff]
        %v610 = vld [vmem:[%s176 + $0xbd0] sm:$0xff]
        %v611 = vld [vmem:[%s176 + $0xbd8] sm:$0xff]
        %v612 = vld [vmem:[%s176 + $0xbe0] sm:$0xff]
        %v613 = vld [vmem:[%s176 + $0xbe8] sm:$0xff]
        %v614 = vld [vmem:[%s176 + $0xbf0] sm:$0xff]
        %v615 = vld [vmem:[%s176 + $0xbf8] sm:$0xff]
        %v616 = vld [vmem:[%s176 + $0xc00] sm:$0xff]
        %v617 = vld [vmem:[%s176 + $0xc08] sm:$0xff]
        %v618 = vld [vmem:[%s176 + $0xc10] sm:$0xff]
        %v619 = vld [vmem:[%s176 + $0xc18] sm:$0xff]
        %v620 = vld [vmem:[%s176 + $0xc20] sm:$0xff]
        %v621 = vld [vmem:[%s176 + $0xc28] sm:$0xff]
        %v622 = vld [vmem:[%s176 + $0xc30] sm:$0xff]
        %v623 = vld [vmem:[%s176 + $0xc38] sm:$0xff]
        %v624 = vld [vmem:[%s176 + $0xc40] sm:$0xff]
        %v625 = vld [vmem:[%s176 + $0xc48] sm:$0xff]
        %v626 = vld [vmem:[%s176 + $0xc50] sm:$0xff]
        %v627 = vld [vmem:[%s176 + $0xc58] sm:$0xff]
        %v628 = vld [vmem:[%s176 + $0xc60] sm:$0xff]
        %v629 = vld [vmem:[%s176 + $0xc68] sm:$0xff]
        %v630 = vld [vmem:[%s176 + $0xc70] sm:$0xff]
        %v631 = vld [vmem:[%s176 + $0xc78] sm:$0xff]
        %v632 = vld [vmem:[%s176 + $0xc80] sm:$0xff]
        %v633 = vld [vmem:[%s176 + $0xc88] sm:$0xff]
        %v634 = vld [vmem:[%s176 + $0xc90] sm:$0xff]
        %v635 = vld [vmem:[%s176 + $0xc98] sm:$0xff]
        %v636 = vld [vmem:[%s176 + $0xca0] sm:$0xff]
        %v637 = vld [vmem:[%s176 + $0xca8] sm:$0xff]
        %v638 = vld [vmem:[%s176 + $0xcb0] sm:$0xff]
        %v639 = vld [vmem:[%s176 + $0xcb8] sm:$0xff]
        %v640 = vld [vmem:[%s176 + $0xcc0] sm:$0xff]
        %v641 = vld [vmem:[%s176 + $0xcc8] sm:$0xff]
        %v642 = vld [vmem:[%s176 + $0xcd0] sm:$0xff]
        %v643 = vld [vmem:[%s176 + $0xcd8] sm:$0xff]
        %v644 = vld [vmem:[%s176 + $0xce0] sm:$0xff]
        %v645 = vld [vmem:[%s176 + $0xce8] sm:$0xff]
        %v646 = vld [vmem:[%s176 + $0xcf0] sm:$0xff]
        %v647 = vld [vmem:[%s176 + $0xcf8] sm:$0xff]
        %v648 = vld [vmem:[%s176 + $0xd00] sm:$0xff]
        %v649 = vld [vmem:[%s176 + $0xd08] sm:$0xff]
        %v650 = vld [vmem:[%s176 + $0xd10] sm:$0xff]
        %v651 = vld [vmem:[%s176 + $0xd18] sm:$0xff]
        %v652 = vld [vmem:[%s176 + $0xd20] sm:$0xff]
        %v653 = vld [vmem:[%s176 + $0xd28] sm:$0xff]
        %v654 = vld [vmem:[%s176 + $0xd30] sm:$0xff]
        %v655 = vld [vmem:[%s176 + $0xd38] sm:$0xff]
        %v656 = vld [vmem:[%s176 + $0xd40] sm:$0xff]
        %v657 = vld [vmem:[%s176 + $0xd48] sm:$0xff]
        %v658 = vld [vmem:[%s176 + $0xd50] sm:$0xff]
        %v659 = vld [vmem:[%s176 + $0xd58] sm:$0xff]
        %v660 = vld [vmem:[%s176 + $0xd60] sm:$0xff]
        %v661 = vld [vmem:[%s176 + $0xd68] sm:$0xff]
        %v662 = vld [vmem:[%s176 + $0xd70] sm:$0xff]
        %v663 = vld [vmem:[%s176 + $0xd78] sm:$0xff]
        %v664 = vld [vmem:[%s176 + $0xd80] sm:$0xff]
        %v665 = vld [vmem:[%s176 + $0xd88] sm:$0xff]
        %v666 = vld [vmem:[%s176 + $0xd90] sm:$0xff]
        %v667 = vld [vmem:[%s176 + $0xd98] sm:$0xff]
        %v668 = vld [vmem:[%s176 + $0xda0] sm:$0xff]
        %v669 = vld [vmem:[%s176 + $0xda8] sm:$0xff]
        %v670 = vld [vmem:[%s176 + $0xdb0] sm:$0xff]
        %v671 = vld [vmem:[%s176 + $0xdb8] sm:$0xff]
        %v672 = vld [vmem:[%s176 + $0xdc0] sm:$0xff]
        %v673 = vld [vmem:[%s176 + $0xdc8] sm:$0xff]
        %v674 = vld [vmem:[%s176 + $0xdd0] sm:$0xff]
        %v675 = vld [vmem:[%s176 + $0xdd8] sm:$0xff]
        %v676 = vld [vmem:[%s176 + $0xde0] sm:$0xff]
        %v677 = vld [vmem:[%s176 + $0xde8] sm:$0xff]
        %v678 = vld [vmem:[%s176 + $0xdf0] sm:$0xff]
        %v679 = vld [vmem:[%s176 + $0xdf8] sm:$0xff]
        %v680 = vld [vmem:[%s176 + $0xe00] sm:$0xff]
        %v681 = vld [vmem:[%s176 + $0xe08] sm:$0xff]
        %v682 = vld [vmem:[%s176 + $0xe10] sm:$0xff]
        %v683 = vld [vmem:[%s176 + $0xe18] sm:$0xff]
        %v684 = vld [vmem:[%s176 + $0xe20] sm:$0xff]
        %v685 = vld [vmem:[%s176 + $0xe28] sm:$0xff]
        %v686 = vld [vmem:[%s176 + $0xe30] sm:$0xff]
        %v687 = vld [vmem:[%s176 + $0xe38] sm:$0xff]
        %v688 = vld [vmem:[%s176 + $0xe40] sm:$0xff]
        %v689 = vld [vmem:[%s176 + $0xe48] sm:$0xff]
        %v690 = vld [vmem:[%s176 + $0xe50] sm:$0xff]
        %v691 = vld [vmem:[%s176 + $0xe58] sm:$0xff]
        %v692 = vld [vmem:[%s176 + $0xe60] sm:$0xff]
        %v693 = vld [vmem:[%s176 + $0xe68] sm:$0xff]
        %v694 = vld [vmem:[%s176 + $0xe70] sm:$0xff]
        %v695 = vld [vmem:[%s176 + $0xe78] sm:$0xff]
        %v696 = vld [vmem:[%s176 + $0xe80] sm:$0xff]
        %v697 = vld [vmem:[%s176 + $0xe88] sm:$0xff]
        %v698 = vld [vmem:[%s176 + $0xe90] sm:$0xff]
        %v699 = vld [vmem:[%s176 + $0xe98] sm:$0xff]
        %v700 = vld [vmem:[%s176 + $0xea0] sm:$0xff]
        %v701 = vld [vmem:[%s176 + $0xea8] sm:$0xff]
        %v702 = vld [vmem:[%s176 + $0xeb0] sm:$0xff]
        %v703 = vld [vmem:[%s176 + $0xeb8] sm:$0xff]
        %v704 = vld [vmem:[%s176 + $0xec0] sm:$0xff]
        %v705 = vld [vmem:[%s176 + $0xec8] sm:$0xff]
        %v706 = vld [vmem:[%s176 + $0xed0] sm:$0xff]
        %v707 = vld [vmem:[%s176 + $0xed8] sm:$0xff]
        %v708 = vld [vmem:[%s176 + $0xee0] sm:$0xff]
        %v709 = vld [vmem:[%s176 + $0xee8] sm:$0xff]
        %v710 = vld [vmem:[%s176 + $0xef0] sm:$0xff]
        %v711 = vld [vmem:[%s176 + $0xef8] sm:$0xff]
        %v712 = vld [vmem:[%s176 + $0xf00] sm:$0xff]
        %v713 = vld [vmem:[%s176 + $0xf08] sm:$0xff]
        %v714 = vld [vmem:[%s176 + $0xf10] sm:$0xff]
        %v715 = vld [vmem:[%s176 + $0xf18] sm:$0xff]
        %v716 = vld [vmem:[%s176 + $0xf20] sm:$0xff]
        %v717 = vld [vmem:[%s176 + $0xf28] sm:$0xff]
        %v718 = vld [vmem:[%s176 + $0xf30] sm:$0xff]
        %v719 = vld [vmem:[%s176 + $0xf38] sm:$0xff]
        %v720 = vld [vmem:[%s176 + $0xf40] sm:$0xff]
        %v721 = vld [vmem:[%s176 + $0xf48] sm:$0xff]
        %v722 = vld [vmem:[%s176 + $0xf50] sm:$0xff]
        %v723 = vld [vmem:[%s176 + $0xf58] sm:$0xff]
        %v724 = vld [vmem:[%s176 + $0xf60] sm:$0xff]
        %v725 = vld [vmem:[%s176 + $0xf68] sm:$0xff]
        %v726 = vld [vmem:[%s176 + $0xf70] sm:$0xff]
        %v727 = vld [vmem:[%s176 + $0xf78] sm:$0xff]
        %v728 = vld [vmem:[%s176 + $0xf80] sm:$0xff]
        %v729 = vld [vmem:[%s176 + $0xf88] sm:$0xff]
        %v730 = vld [vmem:[%s176 + $0xf90] sm:$0xff]
        %v731 = vld [vmem:[%s176 + $0xf98] sm:$0xff]
        %v732 = vld [vmem:[%s176 + $0xfa0] sm:$0xff]
        %v733 = vld [vmem:[%s176 + $0xfa8] sm:$0xff]
        %v734 = vld [vmem:[%s176 + $0xfb0] sm:$0xff]
        %v735 = vld [vmem:[%s176 + $0xfb8] sm:$0xff]
        %v736 = vld [vmem:[%s176 + $0xfc0] sm:$0xff]
        %v737 = vld [vmem:[%s176 + $0xfc8] sm:$0xff]
        %v738 = vld [vmem:[%s176 + $0xfd0] sm:$0xff]
        %v739 = vld [vmem:[%s176 + $0xfd8] sm:$0xff]
        %v740 = vld [vmem:[%s176 + $0xfe0] sm:$0xff]
        %v741 = vld [vmem:[%s176 + $0xfe8] sm:$0xff]
        %v742 = vld [vmem:[%s176 + $0xff0] sm:$0xff]
        %v743 = vld [vmem:[%s176 + $0xff8] sm:$0xff]
        %v744 = vld [vmem:[%s176 + $0x1000] sm:$0xff]
        %v745 = vld [vmem:[%s176 + $0x1008] sm:$0xff]
        %v746 = vld [vmem:[%s176 + $0x1010] sm:$0xff]
        %v747 = vld [vmem:[%s176 + $0x1018] sm:$0xff]
        %v748 = vld [vmem:[%s176 + $0x1020] sm:$0xff]
        %v749 = vld [vmem:[%s176 + $0x1028] sm:$0xff]
        %v750 = vld [vmem:[%s176 + $0x1030] sm:$0xff]
        %v751 = vld [vmem:[%s176 + $0x1038] sm:$0xff]
        %v752 = vld [vmem:[%s176 + $0x1040] sm:$0xff]
        %v753 = vld [vmem:[%s176 + $0x1048] sm:$0xff]
        %v754 = vld [vmem:[%s176 + $0x1050] sm:$0xff]
        %v755 = vld [vmem:[%s176 + $0x1058] sm:$0xff]
        %v756 = vld [vmem:[%s176 + $0x1060] sm:$0xff]
        %v757 = vld [vmem:[%s176 + $0x1068] sm:$0xff]
        %v758 = vld [vmem:[%s176 + $0x1070] sm:$0xff]
        %v759 = vld [vmem:[%s176 + $0x1078] sm:$0xff]
        %v760 = vld [vmem:[%s176 + $0x1080] sm:$0xff]
        %v761 = vld [vmem:[%s176 + $0x1088] sm:$0xff]
        %v762 = vld [vmem:[%s176 + $0x1090] sm:$0xff]
        %v763 = vld [vmem:[%s176 + $0x1098] sm:$0xff]
        %v764 = vld [vmem:[%s176 + $0x10a0] sm:$0xff]
        %v765 = vld [vmem:[%s176 + $0x10a8] sm:$0xff]
        %v766 = vld [vmem:[%s176 + $0x10b0] sm:$0xff]
        %v767 = vld [vmem:[%s176 + $0x10b8] sm:$0xff]
        %v768 = vld [vmem:[%s176 + $0x10c0] sm:$0xff]
        %v769 = vld [vmem:[%s176 + $0x10c8] sm:$0xff]
        %v770 = vld [vmem:[%s176 + $0x10d0] sm:$0xff]
        %v771 = vld [vmem:[%s176 + $0x10d8] sm:$0xff]
        %v772 = vld [vmem:[%s176 + $0x10e0] sm:$0xff]
        %v773 = vld [vmem:[%s176 + $0x10e8] sm:$0xff]
        %v774 = vld [vmem:[%s176 + $0x10f0] sm:$0xff]
        %v775 = vld [vmem:[%s176 + $0x10f8] sm:$0xff]
        %v776 = vld [vmem:[%s176 + $0x1100] sm:$0xff]
        %v777 = vld [vmem:[%s176 + $0x1108] sm:$0xff]
        %v778 = vld [vmem:[%s176 + $0x1110] sm:$0xff]
        %v779 = vld [vmem:[%s176 + $0x1118] sm:$0xff]
        %v780 = vld [vmem:[%s176 + $0x1120] sm:$0xff]
        %v781 = vld [vmem:[%s176 + $0x1128] sm:$0xff]
        %v782 = vld [vmem:[%s176 + $0x1130] sm:$0xff]
        %v783 = vld [vmem:[%s176 + $0x1138] sm:$0xff]
        %v784 = vld [vmem:[%s176 + $0x1140] sm:$0xff]
        %v785 = vld [vmem:[%s176 + $0x1148] sm:$0xff]
        %v786 = vld [vmem:[%s176 + $0x1150] sm:$0xff]
        %v787 = vld [vmem:[%s176 + $0x1158] sm:$0xff]
        %v788 = vld [vmem:[%s176 + $0x1160] sm:$0xff]
        %v789 = vld [vmem:[%s176 + $0x1168] sm:$0xff]
        %v790 = vld [vmem:[%s176 + $0x1170] sm:$0xff]
        %v791 = vld [vmem:[%s176 + $0x1178] sm:$0xff]
        %v792 = vld [vmem:[%s176 + $0x1180] sm:$0xff]
        %v793 = vld [vmem:[%s176 + $0x1188] sm:$0xff]
        %v794 = vld [vmem:[%s176 + $0x1190] sm:$0xff]
        %v795 = vld [vmem:[%s176 + $0x1198] sm:$0xff]
        %v796 = vld [vmem:[%s176 + $0x11a0] sm:$0xff]
        %v797 = vld [vmem:[%s176 + $0x11a8] sm:$0xff]
        %v798 = vld [vmem:[%s176 + $0x11b0] sm:$0xff]
        %v799 = vld [vmem:[%s176 + $0x11b8] sm:$0xff]
        %v800 = vld [vmem:[%s176 + $0x11c0] sm:$0xff]
        %v801 = vld [vmem:[%s176 + $0x11c8] sm:$0xff]
        %v802 = vld [vmem:[%s176 + $0x11d0] sm:$0xff]
        %v803 = vld [vmem:[%s176 + $0x11d8] sm:$0xff]
        %v804 = vld [vmem:[%s176 + $0x11e0] sm:$0xff]
        %v805 = vld [vmem:[%s176 + $0x11e8] sm:$0xff]
        %v806 = vld [vmem:[%s176 + $0x11f0] sm:$0xff]
        %v807 = vld [vmem:[%s176 + $0x11f8] sm:$0xff]
        %v808 = vld [vmem:[%s176 + $0x1200] sm:$0xff]
        %v809 = vld [vmem:[%s176 + $0x1208] sm:$0xff]
        %v810 = vld [vmem:[%s176 + $0x1210] sm:$0xff]
        %v811 = vld [vmem:[%s176 + $0x1218] sm:$0xff]
        %v812 = vld [vmem:[%s176 + $0x1220] sm:$0xff]
        %v813 = vld [vmem:[%s176 + $0x1228] sm:$0xff]
        %v814 = vld [vmem:[%s176 + $0x1230] sm:$0xff]
        %v815 = vld [vmem:[%s176 + $0x1238] sm:$0xff]
        %v816 = vld [vmem:[%s176 + $0x1240] sm:$0xff]
        %v817 = vld [vmem:[%s176 + $0x1248] sm:$0xff]
        %v818 = vld [vmem:[%s176 + $0x1250] sm:$0xff]
        %v819 = vld [vmem:[%s176 + $0x1258] sm:$0xff]
        %v820 = vld [vmem:[%s176 + $0x1260] sm:$0xff]
        %v821 = vld [vmem:[%s176 + $0x1268] sm:$0xff]
        %v822 = vld [vmem:[%s176 + $0x1270] sm:$0xff]
        %v823 = vld [vmem:[%s176 + $0x1278] sm:$0xff]
        %v824 = vld [vmem:[%s176 + $0x1280] sm:$0xff]
        %v825 = vld [vmem:[%s176 + $0x1288] sm:$0xff]
        %v826 = vld [vmem:[%s176 + $0x1290] sm:$0xff]
        %v827 = vld [vmem:[%s176 + $0x1298] sm:$0xff]
        %v828 = vld [vmem:[%s176 + $0x12a0] sm:$0xff]
        %v829 = vld [vmem:[%s176 + $0x12a8] sm:$0xff]
        %v830 = vld [vmem:[%s176 + $0x12b0] sm:$0xff]
        %v831 = vld [vmem:[%s176 + $0x12b8] sm:$0xff]
        %v832 = vld [vmem:[%s176 + $0x12c0] sm:$0xff]
        %v833 = vld [vmem:[%s176 + $0x12c8] sm:$0xff]
        %v834 = vld [vmem:[%s176 + $0x12d0] sm:$0xff]
        %v835 = vld [vmem:[%s176 + $0x12d8] sm:$0xff]
        %v836 = vld [vmem:[%s176 + $0x12e0] sm:$0xff]
        %v837 = vld [vmem:[%s176 + $0x12e8] sm:$0xff]
        %v838 = vld [vmem:[%s176 + $0x12f0] sm:$0xff]
        %v839 = vld [vmem:[%s176 + $0x12f8] sm:$0xff]
        %v840 = vld [vmem:[%s176 + $0x1300] sm:$0xff]
        %v841 = vld [vmem:[%s176 + $0x1308] sm:$0xff]
        %v842 = vld [vmem:[%s176 + $0x1310] sm:$0xff]
        %v843 = vld [vmem:[%s176 + $0x1318] sm:$0xff]
        %v844 = vld [vmem:[%s176 + $0x1320] sm:$0xff]
        %v845 = vld [vmem:[%s176 + $0x1328] sm:$0xff]
        %v846 = vld [vmem:[%s176 + $0x1330] sm:$0xff]
        %v847 = vld [vmem:[%s176 + $0x1338] sm:$0xff]
        %v848 = vld [vmem:[%s176 + $0x1340] sm:$0xff]
        %v849 = vld [vmem:[%s176 + $0x1348] sm:$0xff]
        %v850 = vld [vmem:[%s176 + $0x1350] sm:$0xff]
        %v851 = vld [vmem:[%s176 + $0x1358] sm:$0xff]
        %v852 = vld [vmem:[%s176 + $0x1360] sm:$0xff]
        %v853 = vld [vmem:[%s176 + $0x1368] sm:$0xff]
        %v854 = vld [vmem:[%s176 + $0x1370] sm:$0xff]
        %v855 = vld [vmem:[%s176 + $0x1378] sm:$0xff]
        %v856 = vld [vmem:[%s176 + $0x1380] sm:$0xff]
        %v857 = vld [vmem:[%s176 + $0x1388] sm:$0xff]
        %v858 = vld [vmem:[%s176 + $0x1390] sm:$0xff]
        %v859 = vld [vmem:[%s176 + $0x1398] sm:$0xff]
        %v860 = vld [vmem:[%s176 + $0x13a0] sm:$0xff]
        %v861 = vld [vmem:[%s176 + $0x13a8] sm:$0xff]
        %v862 = vld [vmem:[%s176 + $0x13b0] sm:$0xff]
        %v863 = vld [vmem:[%s176 + $0x13b8] sm:$0xff]
        %v864 = vld [vmem:[%s176 + $0x13c0] sm:$0xff]
        %v865 = vld [vmem:[%s176 + $0x13c8] sm:$0xff]
        %v866 = vld [vmem:[%s176 + $0x13d0] sm:$0xff]
        %v867 = vld [vmem:[%s176 + $0x13d8] sm:$0xff]
        %v868 = vld [vmem:[%s176 + $0x13e0] sm:$0xff]
        %v869 = vld [vmem:[%s176 + $0x13e8] sm:$0xff]
        %v870 = vld [vmem:[%s176 + $0x13f0] sm:$0xff]
        %v871 = vld [vmem:[%s176 + $0x13f8] sm:$0xff]
        %v872 = vld [vmem:[%s176 + $0x1400] sm:$0xff]
        %v873 = vld [vmem:[%s176 + $0x1408] sm:$0xff]
        %v874 = vld [vmem:[%s176 + $0x1410] sm:$0xff]
        %v875 = vld [vmem:[%s176 + $0x1418] sm:$0xff]
        %v876 = vld [vmem:[%s176 + $0x1420] sm:$0xff]
        %v877 = vld [vmem:[%s176 + $0x1428] sm:$0xff]
        %v878 = vld [vmem:[%s176 + $0x1430] sm:$0xff]
        %v879 = vld [vmem:[%s176 + $0x1438] sm:$0xff]
        %v880 = vld [vmem:[%s176 + $0x1440] sm:$0xff]
        %v881 = vld [vmem:[%s176 + $0x1448] sm:$0xff]
        %v882 = vld [vmem:[%s176 + $0x1450] sm:$0xff]
        %v883 = vld [vmem:[%s176 + $0x1458] sm:$0xff]
        %v884 = vld [vmem:[%s176 + $0x1460] sm:$0xff]
        %v885 = vld [vmem:[%s176 + $0x1468] sm:$0xff]
        %v886 = vld [vmem:[%s176 + $0x1470] sm:$0xff]
        %v887 = vld [vmem:[%s176 + $0x1478] sm:$0xff]
        %v888 = vld [vmem:[%s176 + $0x1480] sm:$0xff]
        %v889 = vld [vmem:[%s176 + $0x1488] sm:$0xff]
        %v890 = vld [vmem:[%s176 + $0x1490] sm:$0xff]
        %v891 = vld [vmem:[%s176 + $0x1498] sm:$0xff]
        %v892 = vld [vmem:[%s176 + $0x14a0] sm:$0xff]
        %v893 = vld [vmem:[%s176 + $0x14a8] sm:$0xff]
        %v894 = vld [vmem:[%s176 + $0x14b0] sm:$0xff]
        %v895 = vld [vmem:[%s176 + $0x14b8] sm:$0xff]
        %v896 = vld [vmem:[%s176 + $0x14c0] sm:$0xff]
        %v897 = vld [vmem:[%s176 + $0x14c8] sm:$0xff]
        %v898 = vld [vmem:[%s176 + $0x14d0] sm:$0xff]
        %v899 = vld [vmem:[%s176 + $0x14d8] sm:$0xff]
        %v900 = vld [vmem:[%s176 + $0x14e0] sm:$0xff]
        %v901 = vld [vmem:[%s176 + $0x14e8] sm:$0xff]
        %v902 = vld [vmem:[%s176 + $0x14f0] sm:$0xff]
        %v903 = vld [vmem:[%s176 + $0x14f8] sm:$0xff]
        %v904 = vld [vmem:[%s176 + $0x1500] sm:$0xff]
        %v905 = vld [vmem:[%s176 + $0x1508] sm:$0xff]
        %v906 = vld [vmem:[%s176 + $0x1510] sm:$0xff]
        %v907 = vld [vmem:[%s176 + $0x1518] sm:$0xff]
        %v908 = vld [vmem:[%s176 + $0x1520] sm:$0xff]
        %v909 = vld [vmem:[%s176 + $0x1528] sm:$0xff]
        %v910 = vld [vmem:[%s176 + $0x1530] sm:$0xff]
        %v911 = vld [vmem:[%s176 + $0x1538] sm:$0xff]
        %v912 = vld [vmem:[%s176 + $0x1540] sm:$0xff]
        %v913 = vld [vmem:[%s176 + $0x1548] sm:$0xff]
        %v914 = vld [vmem:[%s176 + $0x1550] sm:$0xff]
        %v915 = vld [vmem:[%s176 + $0x1558] sm:$0xff]
        %v916 = vld [vmem:[%s176 + $0x1560] sm:$0xff]
        %v917 = vld [vmem:[%s176 + $0x1568] sm:$0xff]
        %v918 = vld [vmem:[%s176 + $0x1570] sm:$0xff]
        %v919 = vld [vmem:[%s176 + $0x1578] sm:$0xff]
        %v920 = vld [vmem:[%s176 + $0x1580] sm:$0xff]
        %v921 = vld [vmem:[%s176 + $0x1588] sm:$0xff]
        %v922 = vld [vmem:[%s176 + $0x1590] sm:$0xff]
        %v923 = vld [vmem:[%s176 + $0x1598] sm:$0xff]
        %v924 = vld [vmem:[%s176 + $0x15a0] sm:$0xff]
        %v925 = vld [vmem:[%s176 + $0x15a8] sm:$0xff]
        %v926 = vld [vmem:[%s176 + $0x15b0] sm:$0xff]
        %v927 = vld [vmem:[%s176 + $0x15b8] sm:$0xff]
        %v928 = vld [vmem:[%s176 + $0x15c0] sm:$0xff]
        %v929 = vld [vmem:[%s176 + $0x15c8] sm:$0xff]
        %v930 = vld [vmem:[%s176 + $0x15d0] sm:$0xff]
        %v931 = vld [vmem:[%s176 + $0x15d8] sm:$0xff]
        %v932 = vld [vmem:[%s176 + $0x15e0] sm:$0xff]
        %v933 = vld [vmem:[%s176 + $0x15e8] sm:$0xff]
        %v934 = vld [vmem:[%s176 + $0x15f0] sm:$0xff]
        %v935 = vld [vmem:[%s176 + $0x15f8] sm:$0xff]
        %v936 = vld [vmem:[%s176 + $0x1600] sm:$0xff]
        %v937 = vld [vmem:[%s176 + $0x1608] sm:$0xff]
        %v938 = vld [vmem:[%s176 + $0x1610] sm:$0xff]
        %v939 = vld [vmem:[%s176 + $0x1618] sm:$0xff]
        %v940 = vld [vmem:[%s176 + $0x1620] sm:$0xff]
        %v941 = vld [vmem:[%s176 + $0x1628] sm:$0xff]
        %v942 = vld [vmem:[%s176 + $0x1630] sm:$0xff]
        %v943 = vld [vmem:[%s176 + $0x1638] sm:$0xff]
        %v944 = vld [vmem:[%s176 + $0x1640] sm:$0xff]
        %v945 = vld [vmem:[%s176 + $0x1648] sm:$0xff]
        %v946 = vld [vmem:[%s176 + $0x1650] sm:$0xff]
        %v947 = vld [vmem:[%s176 + $0x1658] sm:$0xff]
        %v948 = vld [vmem:[%s176 + $0x1660] sm:$0xff]
        %v949 = vld [vmem:[%s176 + $0x1668] sm:$0xff]
        %v950 = vld [vmem:[%s176 + $0x1670] sm:$0xff]
        %v951 = vld [vmem:[%s176 + $0x1678] sm:$0xff]
        %v952 = vld [vmem:[%s176 + $0x1680] sm:$0xff]
        %v953 = vld [vmem:[%s176 + $0x1688] sm:$0xff]
        %v954 = vld [vmem:[%s176 + $0x1690] sm:$0xff]
        %v955 = vld [vmem:[%s176 + $0x1698] sm:$0xff]
        %v956 = vld [vmem:[%s176 + $0x16a0] sm:$0xff]
        %v957 = vld [vmem:[%s176 + $0x16a8] sm:$0xff]
        %v958 = vld [vmem:[%s176 + $0x16b0] sm:$0xff]
        %v959 = vld [vmem:[%s176 + $0x16b8] sm:$0xff]
        %v960 = vld [vmem:[%s176 + $0x16c0] sm:$0xff]
        %v961 = vld [vmem:[%s176 + $0x16c8] sm:$0xff]
        %v962 = vld [vmem:[%s176 + $0x16d0] sm:$0xff]
        %v963 = vld [vmem:[%s176 + $0x16d8] sm:$0xff]
        %v964 = vld [vmem:[%s176 + $0x16e0] sm:$0xff]
        %v965 = vld [vmem:[%s176 + $0x16e8] sm:$0xff]
        %v966 = vld [vmem:[%s176 + $0x16f0] sm:$0xff]
        %v967 = vld [vmem:[%s176 + $0x16f8] sm:$0xff]
        %v968 = vld [vmem:[%s176 + $0x1700] sm:$0xff]
        %v969 = vld [vmem:[%s176 + $0x1708] sm:$0xff]
        %v970 = vld [vmem:[%s176 + $0x1710] sm:$0xff]
        %v971 = vld [vmem:[%s176 + $0x1718] sm:$0xff]
        %v972 = vld [vmem:[%s176 + $0x1720] sm:$0xff]
        %v973 = vld [vmem:[%s176 + $0x1728] sm:$0xff]
        %v974 = vld [vmem:[%s176 + $0x1730] sm:$0xff]
        %v975 = vld [vmem:[%s176 + $0x1738] sm:$0xff]
        %v976 = vld [vmem:[%s176 + $0x1740] sm:$0xff]
        %v977 = vld [vmem:[%s176 + $0x1748] sm:$0xff]
        %v978 = vld [vmem:[%s176 + $0x1750] sm:$0xff]
        %v979 = vld [vmem:[%s176 + $0x1758] sm:$0xff]
        %v980 = vld [vmem:[%s176 + $0x1760] sm:$0xff]
        %v981 = vld [vmem:[%s176 + $0x1768] sm:$0xff]
        %v982 = vld [vmem:[%s176 + $0x1770] sm:$0xff]
        %v983 = vld [vmem:[%s176 + $0x1778] sm:$0xff]
        %v984 = vld [vmem:[%s176 + $0x1780] sm:$0xff]
        %v985 = vld [vmem:[%s176 + $0x1788] sm:$0xff]
        %v986 = vld [vmem:[%s176 + $0x1790] sm:$0xff]
        %v987 = vld [vmem:[%s176 + $0x1798] sm:$0xff]
        %v988 = vld [vmem:[%s176 + $0x17a0] sm:$0xff]
        %v989 = vld [vmem:[%s176 + $0x17a8] sm:$0xff]
        %v990 = vld [vmem:[%s176 + $0x17b0] sm:$0xff]
        %v991 = vld [vmem:[%s176 + $0x17b8] sm:$0xff]
        %v992 = vld [vmem:[%s176 + $0x17c0] sm:$0xff]
        %v993 = vld [vmem:[%s176 + $0x17c8] sm:$0xff]
        %v994 = vld [vmem:[%s176 + $0x17d0] sm:$0xff]
        %v995 = vld [vmem:[%s176 + $0x17d8] sm:$0xff]
        %v996 = vld [vmem:[%s176 + $0x17e0] sm:$0xff]
        %v997 = vld [vmem:[%s176 + $0x17e8] sm:$0xff]
        %v998 = vld [vmem:[%s176 + $0x17f0] sm:$0xff]
        %v999 = vld [vmem:[%s176 + $0x17f8] sm:$0xff]
        %v1000 = vld [vmem:[%s176 + $0x1800] sm:$0xff]
        %v1001 = vld [vmem:[%s176 + $0x1808] sm:$0xff]
        %v1002 = vld [vmem:[%s176 + $0x1810] sm:$0xff]
        %v1003 = vld [vmem:[%s176 + $0x1818] sm:$0xff]
        %v1004 = vld [vmem:[%s176 + $0x1820] sm:$0xff]
        %v1005 = vld [vmem:[%s176 + $0x1828] sm:$0xff]
        %v1006 = vld [vmem:[%s176 + $0x1830] sm:$0xff]
        %v1007 = vld [vmem:[%s176 + $0x1838] sm:$0xff]
        %v1008 = vld [vmem:[%s176 + $0x1840] sm:$0xff]
        %v1009 = vld [vmem:[%s176 + $0x1848] sm:$0xff]
        %v1010 = vld [vmem:[%s176 + $0x1850] sm:$0xff]
        %v1011 = vld [vmem:[%s176 + $0x1858] sm:$0xff]
        %v1012 = vld [vmem:[%s176 + $0x1860] sm:$0xff]
        %v1013 = vld [vmem:[%s176 + $0x1868] sm:$0xff]
        %v1014 = vld [vmem:[%s176 + $0x1870] sm:$0xff]
        %v1015 = vld [vmem:[%s176 + $0x1878] sm:$0xff]
        %v1016 = vunpack.c.l.s8.bf16 %v232
        %v1017 = vunpack.c.l.s8.bf16 %v233
        %v1018 = vunpack.c.l.s8.bf16 %v234
        %v1019 = vunpack.c.l.s8.bf16 %v235
        %v1020 = vunpack.c.h.s8.bf16 %v232
        %v1021 = vunpack.c.h.s8.bf16 %v233
        %v1022 = vunpack.c.h.s8.bf16 %v234
        %v1023 = vunpack.c.h.s8.bf16 %v235
        %v1024 = vunpack.c.l.s8.bf16 %v236
        %v1025 = vunpack.c.l.s8.bf16 %v237
        %v1026 = vunpack.c.l.s8.bf16 %v238
        %v1027 = vunpack.c.l.s8.bf16 %v239
        %v1028 = vunpack.c.h.s8.bf16 %v236
        %v1029 = vunpack.c.h.s8.bf16 %v237
        %v1030 = vunpack.c.h.s8.bf16 %v238
        %v1031 = vunpack.c.h.s8.bf16 %v239
        %v1032 = vunpack.c.l.s8.bf16 %v240
        %v1033 = vunpack.c.l.s8.bf16 %v241
        %v1034 = vunpack.c.l.s8.bf16 %v242
        %v1035 = vunpack.c.l.s8.bf16 %v243
        %v1036 = vunpack.c.h.s8.bf16 %v240
        %v1037 = vunpack.c.h.s8.bf16 %v241
        %v1038 = vunpack.c.h.s8.bf16 %v242
        %v1039 = vunpack.c.h.s8.bf16 %v243
        %v1040 = vunpack.c.l.s8.bf16 %v244
        %v1041 = vunpack.c.l.s8.bf16 %v245
        %v1042 = vunpack.c.l.s8.bf16 %v246
        %v1043 = vunpack.c.l.s8.bf16 %v247
        %v1044 = vunpack.c.h.s8.bf16 %v244
        %v1045 = vunpack.c.h.s8.bf16 %v245
        %v1046 = vunpack.c.h.s8.bf16 %v246
        %v1047 = vunpack.c.h.s8.bf16 %v247
        %v1048 = vunpack.c.l.s8.bf16 %v248
        %v1049 = vunpack.c.l.s8.bf16 %v249
        %v1050 = vunpack.c.l.s8.bf16 %v250
        %v1051 = vunpack.c.l.s8.bf16 %v251
        %v1052 = vunpack.c.h.s8.bf16 %v248
        %v1053 = vunpack.c.h.s8.bf16 %v249
        %v1054 = vunpack.c.h.s8.bf16 %v250
        %v1055 = vunpack.c.h.s8.bf16 %v251
        %v1056 = vunpack.c.l.s8.bf16 %v252
        %v1057 = vunpack.c.l.s8.bf16 %v253
        %v1058 = vunpack.c.l.s8.bf16 %v254
        %v1059 = vunpack.c.l.s8.bf16 %v255
        %v1060 = vunpack.c.h.s8.bf16 %v252
        %v1061 = vunpack.c.h.s8.bf16 %v253
        %v1062 = vunpack.c.h.s8.bf16 %v254
        %v1063 = vunpack.c.h.s8.bf16 %v255
        %v1064 = vunpack.c.l.s8.bf16 %v256
        %v1065 = vunpack.c.l.s8.bf16 %v257
        %v1066 = vunpack.c.l.s8.bf16 %v258
        %v1067 = vunpack.c.l.s8.bf16 %v259
        %v1068 = vunpack.c.h.s8.bf16 %v256
        %v1069 = vunpack.c.h.s8.bf16 %v257
        %v1070 = vunpack.c.h.s8.bf16 %v258
        %v1071 = vunpack.c.h.s8.bf16 %v259
        %v1072 = vunpack.c.l.s8.bf16 %v260
        %v1073 = vunpack.c.l.s8.bf16 %v261
        %v1074 = vunpack.c.l.s8.bf16 %v262
        %v1075 = vunpack.c.l.s8.bf16 %v263
        %v1076 = vunpack.c.h.s8.bf16 %v260
        %v1077 = vunpack.c.h.s8.bf16 %v261
        %v1078 = vunpack.c.h.s8.bf16 %v262
        %v1079 = vunpack.c.h.s8.bf16 %v263
        %v1080 = vunpack.c.l.s8.bf16 %v264
        %v1081 = vunpack.c.l.s8.bf16 %v265
        %v1082 = vunpack.c.l.s8.bf16 %v266
        %v1083 = vunpack.c.l.s8.bf16 %v267
        %v1084 = vunpack.c.h.s8.bf16 %v264
        %v1085 = vunpack.c.h.s8.bf16 %v265
        %v1086 = vunpack.c.h.s8.bf16 %v266
        %v1087 = vunpack.c.h.s8.bf16 %v267
        %v1088 = vunpack.c.l.s8.bf16 %v268
        %v1089 = vunpack.c.l.s8.bf16 %v269
        %v1090 = vunpack.c.l.s8.bf16 %v270
        %v1091 = vunpack.c.l.s8.bf16 %v271
        %v1092 = vunpack.c.h.s8.bf16 %v268
        %v1093 = vunpack.c.h.s8.bf16 %v269
        %v1094 = vunpack.c.h.s8.bf16 %v270
        %v1095 = vunpack.c.h.s8.bf16 %v271
        %v1096 = vunpack.c.l.s8.bf16 %v272
        %v1097 = vunpack.c.l.s8.bf16 %v273
        %v1098 = vunpack.c.l.s8.bf16 %v274
        %v1099 = vunpack.c.l.s8.bf16 %v275
        %v1100 = vunpack.c.h.s8.bf16 %v272
        %v1101 = vunpack.c.h.s8.bf16 %v273
        %v1102 = vunpack.c.h.s8.bf16 %v274
        %v1103 = vunpack.c.h.s8.bf16 %v275
        %v1104 = vunpack.c.l.s8.bf16 %v276
        %v1105 = vunpack.c.l.s8.bf16 %v277
        %v1106 = vunpack.c.l.s8.bf16 %v278
        %v1107 = vunpack.c.l.s8.bf16 %v279
        %v1108 = vunpack.c.h.s8.bf16 %v276
        %v1109 = vunpack.c.h.s8.bf16 %v277
        %v1110 = vunpack.c.h.s8.bf16 %v278
        %v1111 = vunpack.c.h.s8.bf16 %v279
        %v1112 = vunpack.c.l.s8.bf16 %v280
        %v1113 = vunpack.c.l.s8.bf16 %v281
        %v1114 = vunpack.c.l.s8.bf16 %v282
        %v1115 = vunpack.c.l.s8.bf16 %v283
        %v1116 = vunpack.c.h.s8.bf16 %v280
        %v1117 = vunpack.c.h.s8.bf16 %v281
        %v1118 = vunpack.c.h.s8.bf16 %v282
        %v1119 = vunpack.c.h.s8.bf16 %v283
        %v1120 = vunpack.c.l.s8.bf16 %v284
        %v1121 = vunpack.c.l.s8.bf16 %v285
        %v1122 = vunpack.c.l.s8.bf16 %v286
        %v1123 = vunpack.c.l.s8.bf16 %v287
        %v1124 = vunpack.c.h.s8.bf16 %v284
        %v1125 = vunpack.c.h.s8.bf16 %v285
        %v1126 = vunpack.c.h.s8.bf16 %v286
        %v1127 = vunpack.c.h.s8.bf16 %v287
        %v1128 = vunpack.c.l.s8.bf16 %v288
        %v1129 = vunpack.c.l.s8.bf16 %v289
        %v1130 = vunpack.c.l.s8.bf16 %v290
        %v1131 = vunpack.c.l.s8.bf16 %v291
        %v1132 = vunpack.c.h.s8.bf16 %v288
        %v1133 = vunpack.c.h.s8.bf16 %v289
        %v1134 = vunpack.c.h.s8.bf16 %v290
        %v1135 = vunpack.c.h.s8.bf16 %v291
        %v1136 = vunpack.c.l.s8.bf16 %v292
        %v1137 = vunpack.c.l.s8.bf16 %v293
        %v1138 = vunpack.c.l.s8.bf16 %v294
        %v1139 = vunpack.c.l.s8.bf16 %v295
        %v1140 = vunpack.c.h.s8.bf16 %v292
        %v1141 = vunpack.c.h.s8.bf16 %v293
        %v1142 = vunpack.c.h.s8.bf16 %v294
        %v1143 = vunpack.c.h.s8.bf16 %v295
        %v1144 = vunpack.c.l.s8.bf16 %v296
        %v1145 = vunpack.c.l.s8.bf16 %v297
        %v1146 = vunpack.c.l.s8.bf16 %v298
        %v1147 = vunpack.c.l.s8.bf16 %v299
        %v1148 = vunpack.c.h.s8.bf16 %v296
        %v1149 = vunpack.c.h.s8.bf16 %v297
        %v1150 = vunpack.c.h.s8.bf16 %v298
        %v1151 = vunpack.c.h.s8.bf16 %v299
        %v1152 = vunpack.c.l.s8.bf16 %v300
        %v1153 = vunpack.c.l.s8.bf16 %v301
        %v1154 = vunpack.c.l.s8.bf16 %v302
        %v1155 = vunpack.c.l.s8.bf16 %v303
        %v1156 = vunpack.c.h.s8.bf16 %v300
        %v1157 = vunpack.c.h.s8.bf16 %v301
        %v1158 = vunpack.c.h.s8.bf16 %v302
        %v1159 = vunpack.c.h.s8.bf16 %v303
        %v1160 = vunpack.c.l.s8.bf16 %v304
        %v1161 = vunpack.c.l.s8.bf16 %v305
        %v1162 = vunpack.c.l.s8.bf16 %v306
        %v1163 = vunpack.c.l.s8.bf16 %v307
        %v1164 = vunpack.c.h.s8.bf16 %v304
        %v1165 = vunpack.c.h.s8.bf16 %v305
        %v1166 = vunpack.c.h.s8.bf16 %v306
        %v1167 = vunpack.c.h.s8.bf16 %v307
        %v1168 = vunpack.c.l.s8.bf16 %v308
        %v1169 = vunpack.c.l.s8.bf16 %v309
        %v1170 = vunpack.c.l.s8.bf16 %v310
        %v1171 = vunpack.c.l.s8.bf16 %v311
        %v1172 = vunpack.c.h.s8.bf16 %v308
        %v1173 = vunpack.c.h.s8.bf16 %v309
        %v1174 = vunpack.c.h.s8.bf16 %v310
        %v1175 = vunpack.c.h.s8.bf16 %v311
        %v1176 = vunpack.c.l.s8.bf16 %v312
        %v1177 = vunpack.c.l.s8.bf16 %v313
        %v1178 = vunpack.c.l.s8.bf16 %v314
        %v1179 = vunpack.c.l.s8.bf16 %v315
        %v1180 = vunpack.c.h.s8.bf16 %v312
        %v1181 = vunpack.c.h.s8.bf16 %v313
        %v1182 = vunpack.c.h.s8.bf16 %v314
        %v1183 = vunpack.c.h.s8.bf16 %v315
        %v1184 = vunpack.c.l.s8.bf16 %v316
        %v1185 = vunpack.c.l.s8.bf16 %v317
        %v1186 = vunpack.c.l.s8.bf16 %v318
        %v1187 = vunpack.c.l.s8.bf16 %v319
        %v1188 = vunpack.c.h.s8.bf16 %v316
        %v1189 = vunpack.c.h.s8.bf16 %v317
        %v1190 = vunpack.c.h.s8.bf16 %v318
        %v1191 = vunpack.c.h.s8.bf16 %v319
        %v1192 = vunpack.c.l.s8.bf16 %v320
        %v1193 = vunpack.c.l.s8.bf16 %v321
        %v1194 = vunpack.c.l.s8.bf16 %v322
        %v1195 = vunpack.c.l.s8.bf16 %v323
        %v1196 = vunpack.c.h.s8.bf16 %v320
        %v1197 = vunpack.c.h.s8.bf16 %v321
        %v1198 = vunpack.c.h.s8.bf16 %v322
        %v1199 = vunpack.c.h.s8.bf16 %v323
        %v1200 = vunpack.c.l.s8.bf16 %v324
        %v1201 = vunpack.c.l.s8.bf16 %v325
        %v1202 = vunpack.c.l.s8.bf16 %v326
        %v1203 = vunpack.c.l.s8.bf16 %v327
        %v1204 = vunpack.c.h.s8.bf16 %v324
        %v1205 = vunpack.c.h.s8.bf16 %v325
        %v1206 = vunpack.c.h.s8.bf16 %v326
        %v1207 = vunpack.c.h.s8.bf16 %v327
        %v1208 = vunpack.c.l.s8.bf16 %v328
        %v1209 = vunpack.c.l.s8.bf16 %v329
        %v1210 = vunpack.c.l.s8.bf16 %v330
        %v1211 = vunpack.c.l.s8.bf16 %v331
        %v1212 = vunpack.c.h.s8.bf16 %v328
        %v1213 = vunpack.c.h.s8.bf16 %v329
        %v1214 = vunpack.c.h.s8.bf16 %v330
        %v1215 = vunpack.c.h.s8.bf16 %v331
        %v1216 = vunpack.c.l.s8.bf16 %v332
        %v1217 = vunpack.c.l.s8.bf16 %v333
        %v1218 = vunpack.c.l.s8.bf16 %v334
        %v1219 = vunpack.c.l.s8.bf16 %v335
        %v1220 = vunpack.c.h.s8.bf16 %v332
        %v1221 = vunpack.c.h.s8.bf16 %v333
        %v1222 = vunpack.c.h.s8.bf16 %v334
        %v1223 = vunpack.c.h.s8.bf16 %v335
        %v1224 = vunpack.c.l.s8.bf16 %v336
        %v1225 = vunpack.c.l.s8.bf16 %v337
        %v1226 = vunpack.c.l.s8.bf16 %v338
        %v1227 = vunpack.c.l.s8.bf16 %v339
        %v1228 = vunpack.c.h.s8.bf16 %v336
        %v1229 = vunpack.c.h.s8.bf16 %v337
        %v1230 = vunpack.c.h.s8.bf16 %v338
        %v1231 = vunpack.c.h.s8.bf16 %v339
        %v1232 = vunpack.c.l.s8.bf16 %v340
        %v1233 = vunpack.c.l.s8.bf16 %v341
        %v1234 = vunpack.c.l.s8.bf16 %v342
        %v1235 = vunpack.c.l.s8.bf16 %v343
        %v1236 = vunpack.c.h.s8.bf16 %v340
        %v1237 = vunpack.c.h.s8.bf16 %v341
        %v1238 = vunpack.c.h.s8.bf16 %v342
        %v1239 = vunpack.c.h.s8.bf16 %v343
        %v1240 = vunpack.c.l.s8.bf16 %v344
        %v1241 = vunpack.c.l.s8.bf16 %v345
        %v1242 = vunpack.c.l.s8.bf16 %v346
        %v1243 = vunpack.c.l.s8.bf16 %v347
        %v1244 = vunpack.c.h.s8.bf16 %v344
        %v1245 = vunpack.c.h.s8.bf16 %v345
        %v1246 = vunpack.c.h.s8.bf16 %v346
        %v1247 = vunpack.c.h.s8.bf16 %v347
        %v1248 = vunpack.c.l.s8.bf16 %v348
        %v1249 = vunpack.c.l.s8.bf16 %v349
        %v1250 = vunpack.c.l.s8.bf16 %v350
        %v1251 = vunpack.c.l.s8.bf16 %v351
        %v1252 = vunpack.c.h.s8.bf16 %v348
        %v1253 = vunpack.c.h.s8.bf16 %v349
        %v1254 = vunpack.c.h.s8.bf16 %v350
        %v1255 = vunpack.c.h.s8.bf16 %v351
        %v1256 = vunpack.c.l.s8.bf16 %v352
        %v1257 = vunpack.c.l.s8.bf16 %v353
        %v1258 = vunpack.c.l.s8.bf16 %v354
        %v1259 = vunpack.c.l.s8.bf16 %v355
        %v1260 = vunpack.c.h.s8.bf16 %v352
        %v1261 = vunpack.c.h.s8.bf16 %v353
        %v1262 = vunpack.c.h.s8.bf16 %v354
        %v1263 = vunpack.c.h.s8.bf16 %v355
        %v1264 = vunpack.c.l.s8.bf16 %v356
        %v1265 = vunpack.c.l.s8.bf16 %v357
        %v1266 = vunpack.c.l.s8.bf16 %v358
        %v1267 = vunpack.c.l.s8.bf16 %v359
        %v1268 = vunpack.c.h.s8.bf16 %v356
        %v1269 = vunpack.c.h.s8.bf16 %v357
        %v1270 = vunpack.c.h.s8.bf16 %v358
        %v1271 = vunpack.c.h.s8.bf16 %v359
        %v1272 = vunpack.c.l.s8.bf16 %v360
        %v1273 = vunpack.c.l.s8.bf16 %v361
        %v1274 = vunpack.c.l.s8.bf16 %v362
        %v1275 = vunpack.c.l.s8.bf16 %v363
        %v1276 = vunpack.c.h.s8.bf16 %v360
        %v1277 = vunpack.c.h.s8.bf16 %v361
        %v1278 = vunpack.c.h.s8.bf16 %v362
        %v1279 = vunpack.c.h.s8.bf16 %v363
        %v1280 = vunpack.c.l.s8.bf16 %v364
        %v1281 = vunpack.c.l.s8.bf16 %v365
        %v1282 = vunpack.c.l.s8.bf16 %v366
        %v1283 = vunpack.c.l.s8.bf16 %v367
        %v1284 = vunpack.c.h.s8.bf16 %v364
        %v1285 = vunpack.c.h.s8.bf16 %v365
        %v1286 = vunpack.c.h.s8.bf16 %v366
        %v1287 = vunpack.c.h.s8.bf16 %v367
        %v1288 = vunpack.c.l.s8.bf16 %v368
        %v1289 = vunpack.c.l.s8.bf16 %v369
        %v1290 = vunpack.c.l.s8.bf16 %v370
        %v1291 = vunpack.c.l.s8.bf16 %v371
        %v1292 = vunpack.c.h.s8.bf16 %v368
        %v1293 = vunpack.c.h.s8.bf16 %v369
        %v1294 = vunpack.c.h.s8.bf16 %v370
        %v1295 = vunpack.c.h.s8.bf16 %v371
        %v1296 = vunpack.c.l.s8.bf16 %v372
        %v1297 = vunpack.c.l.s8.bf16 %v373
        %v1298 = vunpack.c.l.s8.bf16 %v374
        %v1299 = vunpack.c.l.s8.bf16 %v375
        %v1300 = vunpack.c.h.s8.bf16 %v372
        %v1301 = vunpack.c.h.s8.bf16 %v373
        %v1302 = vunpack.c.h.s8.bf16 %v374
        %v1303 = vunpack.c.h.s8.bf16 %v375
        %v1304 = vunpack.c.l.s8.bf16 %v376
        %v1305 = vunpack.c.l.s8.bf16 %v377
        %v1306 = vunpack.c.l.s8.bf16 %v378
        %v1307 = vunpack.c.l.s8.bf16 %v379
        %v1308 = vunpack.c.h.s8.bf16 %v376
        %v1309 = vunpack.c.h.s8.bf16 %v377
        %v1310 = vunpack.c.h.s8.bf16 %v378
        %v1311 = vunpack.c.h.s8.bf16 %v379
        %v1312 = vunpack.c.l.s8.bf16 %v380
        %v1313 = vunpack.c.l.s8.bf16 %v381
        %v1314 = vunpack.c.l.s8.bf16 %v382
        %v1315 = vunpack.c.l.s8.bf16 %v383
        %v1316 = vunpack.c.h.s8.bf16 %v380
        %v1317 = vunpack.c.h.s8.bf16 %v381
        %v1318 = vunpack.c.h.s8.bf16 %v382
        %v1319 = vunpack.c.h.s8.bf16 %v383
        %v1320 = vunpack.c.l.s8.bf16 %v384
        %v1321 = vunpack.c.l.s8.bf16 %v385
        %v1322 = vunpack.c.l.s8.bf16 %v386
        %v1323 = vunpack.c.l.s8.bf16 %v387
        %v1324 = vunpack.c.h.s8.bf16 %v384
        %v1325 = vunpack.c.h.s8.bf16 %v385
        %v1326 = vunpack.c.h.s8.bf16 %v386
        %v1327 = vunpack.c.h.s8.bf16 %v387
        %v1328 = vunpack.c.l.s8.bf16 %v388
        %v1329 = vunpack.c.l.s8.bf16 %v389
        %v1330 = vunpack.c.l.s8.bf16 %v390
        %v1331 = vunpack.c.l.s8.bf16 %v391
        %v1332 = vunpack.c.h.s8.bf16 %v388
        %v1333 = vunpack.c.h.s8.bf16 %v389
        %v1334 = vunpack.c.h.s8.bf16 %v390
        %v1335 = vunpack.c.h.s8.bf16 %v391
        %v1336 = vunpack.c.l.s8.bf16 %v392
        %v1337 = vunpack.c.l.s8.bf16 %v393
        %v1338 = vunpack.c.l.s8.bf16 %v394
        %v1339 = vunpack.c.l.s8.bf16 %v395
        %v1340 = vunpack.c.h.s8.bf16 %v392
        %v1341 = vunpack.c.h.s8.bf16 %v393
        %v1342 = vunpack.c.h.s8.bf16 %v394
        %v1343 = vunpack.c.h.s8.bf16 %v395
        %v1344 = vunpack.c.l.s8.bf16 %v396
        %v1345 = vunpack.c.l.s8.bf16 %v397
        %v1346 = vunpack.c.l.s8.bf16 %v398
        %v1347 = vunpack.c.l.s8.bf16 %v399
        %v1348 = vunpack.c.h.s8.bf16 %v396
        %v1349 = vunpack.c.h.s8.bf16 %v397
        %v1350 = vunpack.c.h.s8.bf16 %v398
        %v1351 = vunpack.c.h.s8.bf16 %v399
        %v1352 = vunpack.c.l.s8.bf16 %v400
        %v1353 = vunpack.c.l.s8.bf16 %v401
        %v1354 = vunpack.c.l.s8.bf16 %v402
        %v1355 = vunpack.c.l.s8.bf16 %v403
        %v1356 = vunpack.c.h.s8.bf16 %v400
        %v1357 = vunpack.c.h.s8.bf16 %v401
        %v1358 = vunpack.c.h.s8.bf16 %v402
        %v1359 = vunpack.c.h.s8.bf16 %v403
        %v1360 = vunpack.c.l.s8.bf16 %v404
        %v1361 = vunpack.c.l.s8.bf16 %v405
        %v1362 = vunpack.c.l.s8.bf16 %v406
        %v1363 = vunpack.c.l.s8.bf16 %v407
        %v1364 = vunpack.c.h.s8.bf16 %v404
        %v1365 = vunpack.c.h.s8.bf16 %v405
        %v1366 = vunpack.c.h.s8.bf16 %v406
        %v1367 = vunpack.c.h.s8.bf16 %v407
        %v1368 = vunpack.c.l.s8.bf16 %v408
        %v1369 = vunpack.c.l.s8.bf16 %v409
        %v1370 = vunpack.c.l.s8.bf16 %v410
        %v1371 = vunpack.c.l.s8.bf16 %v411
        %v1372 = vunpack.c.h.s8.bf16 %v408
        %v1373 = vunpack.c.h.s8.bf16 %v409
        %v1374 = vunpack.c.h.s8.bf16 %v410
        %v1375 = vunpack.c.h.s8.bf16 %v411
        %v1376 = vunpack.c.l.s8.bf16 %v412
        %v1377 = vunpack.c.l.s8.bf16 %v413
        %v1378 = vunpack.c.l.s8.bf16 %v414
        %v1379 = vunpack.c.l.s8.bf16 %v415
        %v1380 = vunpack.c.h.s8.bf16 %v412
        %v1381 = vunpack.c.h.s8.bf16 %v413
        %v1382 = vunpack.c.h.s8.bf16 %v414
        %v1383 = vunpack.c.h.s8.bf16 %v415
        %v1384 = vunpack.c.l.s8.bf16 %v416
        %v1385 = vunpack.c.l.s8.bf16 %v417
        %v1386 = vunpack.c.l.s8.bf16 %v418
        %v1387 = vunpack.c.l.s8.bf16 %v419
        %v1388 = vunpack.c.h.s8.bf16 %v416
        %v1389 = vunpack.c.h.s8.bf16 %v417
        %v1390 = vunpack.c.h.s8.bf16 %v418
        %v1391 = vunpack.c.h.s8.bf16 %v419
        %v1392 = vunpack.c.l.s8.bf16 %v420
        %v1393 = vunpack.c.l.s8.bf16 %v421
        %v1394 = vunpack.c.l.s8.bf16 %v422
        %v1395 = vunpack.c.l.s8.bf16 %v423
        %v1396 = vunpack.c.h.s8.bf16 %v420
        %v1397 = vunpack.c.h.s8.bf16 %v421
        %v1398 = vunpack.c.h.s8.bf16 %v422
        %v1399 = vunpack.c.h.s8.bf16 %v423
        %v1400 = vunpack.c.l.s8.bf16 %v424
        %v1401 = vunpack.c.l.s8.bf16 %v425
        %v1402 = vunpack.c.l.s8.bf16 %v426
        %v1403 = vunpack.c.l.s8.bf16 %v427
        %v1404 = vunpack.c.h.s8.bf16 %v424
        %v1405 = vunpack.c.h.s8.bf16 %v425
        %v1406 = vunpack.c.h.s8.bf16 %v426
        %v1407 = vunpack.c.h.s8.bf16 %v427
        %v1408 = vunpack.c.l.s8.bf16 %v428
        %v1409 = vunpack.c.l.s8.bf16 %v429
        %v1410 = vunpack.c.l.s8.bf16 %v430
        %v1411 = vunpack.c.l.s8.bf16 %v431
        %v1412 = vunpack.c.h.s8.bf16 %v428
        %v1413 = vunpack.c.h.s8.bf16 %v429
        %v1414 = vunpack.c.h.s8.bf16 %v430
        %v1415 = vunpack.c.h.s8.bf16 %v431
        %v1416 = vunpack.c.l.s8.bf16 %v432
        %v1417 = vunpack.c.l.s8.bf16 %v433
        %v1418 = vunpack.c.l.s8.bf16 %v434
        %v1419 = vunpack.c.l.s8.bf16 %v435
        %v1420 = vunpack.c.h.s8.bf16 %v432
        %v1421 = vunpack.c.h.s8.bf16 %v433
        %v1422 = vunpack.c.h.s8.bf16 %v434
        %v1423 = vunpack.c.h.s8.bf16 %v435
        %v1424 = vunpack.c.l.s8.bf16 %v436
        %v1425 = vunpack.c.l.s8.bf16 %v437
        %v1426 = vunpack.c.l.s8.bf16 %v438
        %v1427 = vunpack.c.l.s8.bf16 %v439
        %v1428 = vunpack.c.h.s8.bf16 %v436
        %v1429 = vunpack.c.h.s8.bf16 %v437
        %v1430 = vunpack.c.h.s8.bf16 %v438
        %v1431 = vunpack.c.h.s8.bf16 %v439
        %v1432 = vunpack.c.l.s8.bf16 %v440
        %v1433 = vunpack.c.l.s8.bf16 %v441
        %v1434 = vunpack.c.l.s8.bf16 %v442
        %v1435 = vunpack.c.l.s8.bf16 %v443
        %v1436 = vunpack.c.h.s8.bf16 %v440
        %v1437 = vunpack.c.h.s8.bf16 %v441
        %v1438 = vunpack.c.h.s8.bf16 %v442
        %v1439 = vunpack.c.h.s8.bf16 %v443
        %v1440 = vunpack.c.l.s8.bf16 %v444
        %v1441 = vunpack.c.l.s8.bf16 %v445
        %v1442 = vunpack.c.l.s8.bf16 %v446
        %v1443 = vunpack.c.l.s8.bf16 %v447
        %v1444 = vunpack.c.h.s8.bf16 %v444
        %v1445 = vunpack.c.h.s8.bf16 %v445
        %v1446 = vunpack.c.h.s8.bf16 %v446
        %v1447 = vunpack.c.h.s8.bf16 %v447
        %v1448 = vunpack.c.l.s8.bf16 %v448
        %v1449 = vunpack.c.l.s8.bf16 %v449
        %v1450 = vunpack.c.l.s8.bf16 %v450
        %v1451 = vunpack.c.l.s8.bf16 %v451
        %v1452 = vunpack.c.h.s8.bf16 %v448
        %v1453 = vunpack.c.h.s8.bf16 %v449
        %v1454 = vunpack.c.h.s8.bf16 %v450
        %v1455 = vunpack.c.h.s8.bf16 %v451
        %v1456 = vunpack.c.l.s8.bf16 %v452
        %v1457 = vunpack.c.l.s8.bf16 %v453
        %v1458 = vunpack.c.l.s8.bf16 %v454
        %v1459 = vunpack.c.l.s8.bf16 %v455
        %v1460 = vunpack.c.h.s8.bf16 %v452
        %v1461 = vunpack.c.h.s8.bf16 %v453
        %v1462 = vunpack.c.h.s8.bf16 %v454
        %v1463 = vunpack.c.h.s8.bf16 %v455
        %v1464 = vunpack.c.l.s8.bf16 %v456
        %v1465 = vunpack.c.l.s8.bf16 %v457
        %v1466 = vunpack.c.l.s8.bf16 %v458
        %v1467 = vunpack.c.l.s8.bf16 %v459
        %v1468 = vunpack.c.h.s8.bf16 %v456
        %v1469 = vunpack.c.h.s8.bf16 %v457
        %v1470 = vunpack.c.h.s8.bf16 %v458
        %v1471 = vunpack.c.h.s8.bf16 %v459
        %v1472 = vunpack.c.l.s8.bf16 %v460
        %v1473 = vunpack.c.l.s8.bf16 %v461
        %v1474 = vunpack.c.l.s8.bf16 %v462
        %v1475 = vunpack.c.l.s8.bf16 %v463
        %v1476 = vunpack.c.h.s8.bf16 %v460
        %v1477 = vunpack.c.h.s8.bf16 %v461
        %v1478 = vunpack.c.h.s8.bf16 %v462
        %v1479 = vunpack.c.h.s8.bf16 %v463
        %v1480 = vunpack.c.l.s8.bf16 %v464
        %v1481 = vunpack.c.l.s8.bf16 %v465
        %v1482 = vunpack.c.l.s8.bf16 %v466
        %v1483 = vunpack.c.l.s8.bf16 %v467
        %v1484 = vunpack.c.h.s8.bf16 %v464
        %v1485 = vunpack.c.h.s8.bf16 %v465
        %v1486 = vunpack.c.h.s8.bf16 %v466
        %v1487 = vunpack.c.h.s8.bf16 %v467
        %v1488 = vunpack.c.l.s8.bf16 %v468
        %v1489 = vunpack.c.l.s8.bf16 %v469
        %v1490 = vunpack.c.l.s8.bf16 %v470
        %v1491 = vunpack.c.l.s8.bf16 %v471
        %v1492 = vunpack.c.h.s8.bf16 %v468
        %v1493 = vunpack.c.h.s8.bf16 %v469
        %v1494 = vunpack.c.h.s8.bf16 %v470
        %v1495 = vunpack.c.h.s8.bf16 %v471
        %v1496 = vunpack.c.l.s8.bf16 %v472
        %v1497 = vunpack.c.l.s8.bf16 %v473
        %v1498 = vunpack.c.l.s8.bf16 %v474
        %v1499 = vunpack.c.l.s8.bf16 %v475
        %v1500 = vunpack.c.h.s8.bf16 %v472
        %v1501 = vunpack.c.h.s8.bf16 %v473
        %v1502 = vunpack.c.h.s8.bf16 %v474
        %v1503 = vunpack.c.h.s8.bf16 %v475
        %v1504 = vunpack.c.l.s8.bf16 %v476
        %v1505 = vunpack.c.l.s8.bf16 %v477
        %v1506 = vunpack.c.l.s8.bf16 %v478
        %v1507 = vunpack.c.l.s8.bf16 %v479
        %v1508 = vunpack.c.h.s8.bf16 %v476
        %v1509 = vunpack.c.h.s8.bf16 %v477
        %v1510 = vunpack.c.h.s8.bf16 %v478
        %v1511 = vunpack.c.h.s8.bf16 %v479
        %v1512 = vunpack.c.l.s8.bf16 %v480
        %v1513 = vunpack.c.l.s8.bf16 %v481
        %v1514 = vunpack.c.l.s8.bf16 %v482
        %v1515 = vunpack.c.l.s8.bf16 %v483
        %v1516 = vunpack.c.h.s8.bf16 %v480
        %v1517 = vunpack.c.h.s8.bf16 %v481
        %v1518 = vunpack.c.h.s8.bf16 %v482
        %v1519 = vunpack.c.h.s8.bf16 %v483
        %v1520 = vunpack.c.l.s8.bf16 %v484
        %v1521 = vunpack.c.l.s8.bf16 %v485
        %v1522 = vunpack.c.l.s8.bf16 %v486
        %v1523 = vunpack.c.l.s8.bf16 %v487
        %v1524 = vunpack.c.h.s8.bf16 %v484
        %v1525 = vunpack.c.h.s8.bf16 %v485
        %v1526 = vunpack.c.h.s8.bf16 %v486
        %v1527 = vunpack.c.h.s8.bf16 %v487
        %v1528 = vunpack.c.l.s8.bf16 %v488
        %v1529 = vunpack.c.l.s8.bf16 %v489
        %v1530 = vunpack.c.l.s8.bf16 %v490
        %v1531 = vunpack.c.l.s8.bf16 %v491
        %v1532 = vunpack.c.h.s8.bf16 %v488
        %v1533 = vunpack.c.h.s8.bf16 %v489
        %v1534 = vunpack.c.h.s8.bf16 %v490
        %v1535 = vunpack.c.h.s8.bf16 %v491
        %v1536 = vunpack.c.l.s8.bf16 %v492
        %v1537 = vunpack.c.l.s8.bf16 %v493
        %v1538 = vunpack.c.l.s8.bf16 %v494
        %v1539 = vunpack.c.l.s8.bf16 %v495
        %v1540 = vunpack.c.h.s8.bf16 %v492
        %v1541 = vunpack.c.h.s8.bf16 %v493
        %v1542 = vunpack.c.h.s8.bf16 %v494
        %v1543 = vunpack.c.h.s8.bf16 %v495
        %v1544 = vunpack.c.l.s8.bf16 %v496
        %v1545 = vunpack.c.l.s8.bf16 %v497
        %v1546 = vunpack.c.l.s8.bf16 %v498
        %v1547 = vunpack.c.l.s8.bf16 %v499
        %v1548 = vunpack.c.h.s8.bf16 %v496
        %v1549 = vunpack.c.h.s8.bf16 %v497
        %v1550 = vunpack.c.h.s8.bf16 %v498
        %v1551 = vunpack.c.h.s8.bf16 %v499
        %v1552 = vunpack.c.l.s8.bf16 %v500
        %v1553 = vunpack.c.l.s8.bf16 %v501
        %v1554 = vunpack.c.l.s8.bf16 %v502
        %v1555 = vunpack.c.l.s8.bf16 %v503
        %v1556 = vunpack.c.h.s8.bf16 %v500
        %v1557 = vunpack.c.h.s8.bf16 %v501
        %v1558 = vunpack.c.h.s8.bf16 %v502
        %v1559 = vunpack.c.h.s8.bf16 %v503
        %v1560 = vunpack.c.l.s8.bf16 %v504
        %v1561 = vunpack.c.l.s8.bf16 %v505
        %v1562 = vunpack.c.l.s8.bf16 %v506
        %v1563 = vunpack.c.l.s8.bf16 %v507
        %v1564 = vunpack.c.h.s8.bf16 %v504
        %v1565 = vunpack.c.h.s8.bf16 %v505
        %v1566 = vunpack.c.h.s8.bf16 %v506
        %v1567 = vunpack.c.h.s8.bf16 %v507
        %v1568 = vunpack.c.l.s8.bf16 %v508
        %v1569 = vunpack.c.l.s8.bf16 %v509
        %v1570 = vunpack.c.l.s8.bf16 %v510
        %v1571 = vunpack.c.l.s8.bf16 %v511
        %v1572 = vunpack.c.h.s8.bf16 %v508
        %v1573 = vunpack.c.h.s8.bf16 %v509
        %v1574 = vunpack.c.h.s8.bf16 %v510
        %v1575 = vunpack.c.h.s8.bf16 %v511
        %v1576 = vunpack.c.l.s8.bf16 %v512
        %v1577 = vunpack.c.l.s8.bf16 %v513
        %v1578 = vunpack.c.l.s8.bf16 %v514
        %v1579 = vunpack.c.l.s8.bf16 %v515
        %v1580 = vunpack.c.h.s8.bf16 %v512
        %v1581 = vunpack.c.h.s8.bf16 %v513
        %v1582 = vunpack.c.h.s8.bf16 %v514
        %v1583 = vunpack.c.h.s8.bf16 %v515
        %v1584 = vunpack.c.l.s8.bf16 %v516
        %v1585 = vunpack.c.l.s8.bf16 %v517
        %v1586 = vunpack.c.l.s8.bf16 %v518
        %v1587 = vunpack.c.l.s8.bf16 %v519
        %v1588 = vunpack.c.h.s8.bf16 %v516
        %v1589 = vunpack.c.h.s8.bf16 %v517
        %v1590 = vunpack.c.h.s8.bf16 %v518
        %v1591 = vunpack.c.h.s8.bf16 %v519
        %v1592 = vunpack.c.l.s8.bf16 %v520
        %v1593 = vunpack.c.l.s8.bf16 %v521
        %v1594 = vunpack.c.l.s8.bf16 %v522
        %v1595 = vunpack.c.l.s8.bf16 %v523
        %v1596 = vunpack.c.h.s8.bf16 %v520
        %v1597 = vunpack.c.h.s8.bf16 %v521
        %v1598 = vunpack.c.h.s8.bf16 %v522
        %v1599 = vunpack.c.h.s8.bf16 %v523
        %v1600 = vunpack.c.l.s8.bf16 %v524
        %v1601 = vunpack.c.l.s8.bf16 %v525
        %v1602 = vunpack.c.l.s8.bf16 %v526
        %v1603 = vunpack.c.l.s8.bf16 %v527
        %v1604 = vunpack.c.h.s8.bf16 %v524
        %v1605 = vunpack.c.h.s8.bf16 %v525
        %v1606 = vunpack.c.h.s8.bf16 %v526
        %v1607 = vunpack.c.h.s8.bf16 %v527
        %v1608 = vunpack.c.l.s8.bf16 %v528
        %v1609 = vunpack.c.l.s8.bf16 %v529
        %v1610 = vunpack.c.l.s8.bf16 %v530
        %v1611 = vunpack.c.l.s8.bf16 %v531
        %v1612 = vunpack.c.h.s8.bf16 %v528
        %v1613 = vunpack.c.h.s8.bf16 %v529
        %v1614 = vunpack.c.h.s8.bf16 %v530
        %v1615 = vunpack.c.h.s8.bf16 %v531
        %v1616 = vunpack.c.l.s8.bf16 %v532
        %v1617 = vunpack.c.l.s8.bf16 %v533
        %v1618 = vunpack.c.l.s8.bf16 %v534
        %v1619 = vunpack.c.l.s8.bf16 %v535
        %v1620 = vunpack.c.h.s8.bf16 %v532
        %v1621 = vunpack.c.h.s8.bf16 %v533
        %v1622 = vunpack.c.h.s8.bf16 %v534
        %v1623 = vunpack.c.h.s8.bf16 %v535
        %v1624 = vunpack.c.l.s8.bf16 %v536
        %v1625 = vunpack.c.l.s8.bf16 %v537
        %v1626 = vunpack.c.l.s8.bf16 %v538
        %v1627 = vunpack.c.l.s8.bf16 %v539
        %v1628 = vunpack.c.h.s8.bf16 %v536
        %v1629 = vunpack.c.h.s8.bf16 %v537
        %v1630 = vunpack.c.h.s8.bf16 %v538
        %v1631 = vunpack.c.h.s8.bf16 %v539
        %v1632 = vunpack.c.l.s8.bf16 %v540
        %v1633 = vunpack.c.l.s8.bf16 %v541
        %v1634 = vunpack.c.l.s8.bf16 %v542
        %v1635 = vunpack.c.l.s8.bf16 %v543
        %v1636 = vunpack.c.h.s8.bf16 %v540
        %v1637 = vunpack.c.h.s8.bf16 %v541
        %v1638 = vunpack.c.h.s8.bf16 %v542
        %v1639 = vunpack.c.h.s8.bf16 %v543
        %v1640 = vunpack.c.l.s8.bf16 %v544
        %v1641 = vunpack.c.l.s8.bf16 %v545
        %v1642 = vunpack.c.l.s8.bf16 %v546
        %v1643 = vunpack.c.l.s8.bf16 %v547
        %v1644 = vunpack.c.h.s8.bf16 %v544
        %v1645 = vunpack.c.h.s8.bf16 %v545
        %v1646 = vunpack.c.h.s8.bf16 %v546
        %v1647 = vunpack.c.h.s8.bf16 %v547
        %v1648 = vunpack.c.l.s8.bf16 %v548
        %v1649 = vunpack.c.l.s8.bf16 %v549
        %v1650 = vunpack.c.l.s8.bf16 %v550
        %v1651 = vunpack.c.l.s8.bf16 %v551
        %v1652 = vunpack.c.h.s8.bf16 %v548
        %v1653 = vunpack.c.h.s8.bf16 %v549
        %v1654 = vunpack.c.h.s8.bf16 %v550
        %v1655 = vunpack.c.h.s8.bf16 %v551
        %v1656 = vunpack.c.l.s8.bf16 %v552
        %v1657 = vunpack.c.l.s8.bf16 %v553
        %v1658 = vunpack.c.l.s8.bf16 %v554
        %v1659 = vunpack.c.l.s8.bf16 %v555
        %v1660 = vunpack.c.h.s8.bf16 %v552
        %v1661 = vunpack.c.h.s8.bf16 %v553
        %v1662 = vunpack.c.h.s8.bf16 %v554
        %v1663 = vunpack.c.h.s8.bf16 %v555
        %v1664 = vunpack.c.l.s8.bf16 %v556
        %v1665 = vunpack.c.l.s8.bf16 %v557
        %v1666 = vunpack.c.l.s8.bf16 %v558
        %v1667 = vunpack.c.l.s8.bf16 %v559
        %v1668 = vunpack.c.h.s8.bf16 %v556
        %v1669 = vunpack.c.h.s8.bf16 %v557
        %v1670 = vunpack.c.h.s8.bf16 %v558
        %v1671 = vunpack.c.h.s8.bf16 %v559
        %v1672 = vunpack.c.l.s8.bf16 %v560
        %v1673 = vunpack.c.l.s8.bf16 %v561
        %v1674 = vunpack.c.l.s8.bf16 %v562
        %v1675 = vunpack.c.l.s8.bf16 %v563
        %v1676 = vunpack.c.h.s8.bf16 %v560
        %v1677 = vunpack.c.h.s8.bf16 %v561
        %v1678 = vunpack.c.h.s8.bf16 %v562
        %v1679 = vunpack.c.h.s8.bf16 %v563
        %v1680 = vunpack.c.l.s8.bf16 %v564
        %v1681 = vunpack.c.l.s8.bf16 %v565
        %v1682 = vunpack.c.l.s8.bf16 %v566
        %v1683 = vunpack.c.l.s8.bf16 %v567
        %v1684 = vunpack.c.h.s8.bf16 %v564
        %v1685 = vunpack.c.h.s8.bf16 %v565
        %v1686 = vunpack.c.h.s8.bf16 %v566
        %v1687 = vunpack.c.h.s8.bf16 %v567
        %v1688 = vunpack.c.l.s8.bf16 %v568
        %v1689 = vunpack.c.l.s8.bf16 %v569
        %v1690 = vunpack.c.l.s8.bf16 %v570
        %v1691 = vunpack.c.l.s8.bf16 %v571
        %v1692 = vunpack.c.h.s8.bf16 %v568
        %v1693 = vunpack.c.h.s8.bf16 %v569
        %v1694 = vunpack.c.h.s8.bf16 %v570
        %v1695 = vunpack.c.h.s8.bf16 %v571
        %v1696 = vunpack.c.l.s8.bf16 %v572
        %v1697 = vunpack.c.l.s8.bf16 %v573
        %v1698 = vunpack.c.l.s8.bf16 %v574
        %v1699 = vunpack.c.l.s8.bf16 %v575
        %v1700 = vunpack.c.h.s8.bf16 %v572
        %v1701 = vunpack.c.h.s8.bf16 %v573
        %v1702 = vunpack.c.h.s8.bf16 %v574
        %v1703 = vunpack.c.h.s8.bf16 %v575
        %v1704 = vunpack.c.l.s8.bf16 %v576
        %v1705 = vunpack.c.l.s8.bf16 %v577
        %v1706 = vunpack.c.l.s8.bf16 %v578
        %v1707 = vunpack.c.l.s8.bf16 %v579
        %v1708 = vunpack.c.h.s8.bf16 %v576
        %v1709 = vunpack.c.h.s8.bf16 %v577
        %v1710 = vunpack.c.h.s8.bf16 %v578
        %v1711 = vunpack.c.h.s8.bf16 %v579
        %v1712 = vunpack.c.l.s8.bf16 %v580
        %v1713 = vunpack.c.l.s8.bf16 %v581
        %v1714 = vunpack.c.l.s8.bf16 %v582
        %v1715 = vunpack.c.l.s8.bf16 %v583
        %v1716 = vunpack.c.h.s8.bf16 %v580
        %v1717 = vunpack.c.h.s8.bf16 %v581
        %v1718 = vunpack.c.h.s8.bf16 %v582
        %v1719 = vunpack.c.h.s8.bf16 %v583
        %v1720 = vunpack.c.l.s8.bf16 %v584
        %v1721 = vunpack.c.l.s8.bf16 %v585
        %v1722 = vunpack.c.l.s8.bf16 %v586
        %v1723 = vunpack.c.l.s8.bf16 %v587
        %v1724 = vunpack.c.h.s8.bf16 %v584
        %v1725 = vunpack.c.h.s8.bf16 %v585
        %v1726 = vunpack.c.h.s8.bf16 %v586
        %v1727 = vunpack.c.h.s8.bf16 %v587
        %v1728 = vunpack.c.l.s8.bf16 %v588
        %v1729 = vunpack.c.l.s8.bf16 %v589
        %v1730 = vunpack.c.l.s8.bf16 %v590
        %v1731 = vunpack.c.l.s8.bf16 %v591
        %v1732 = vunpack.c.h.s8.bf16 %v588
        %v1733 = vunpack.c.h.s8.bf16 %v589
        %v1734 = vunpack.c.h.s8.bf16 %v590
        %v1735 = vunpack.c.h.s8.bf16 %v591
        %v1736 = vunpack.c.l.s8.bf16 %v592
        %v1737 = vunpack.c.l.s8.bf16 %v593
        %v1738 = vunpack.c.l.s8.bf16 %v594
        %v1739 = vunpack.c.l.s8.bf16 %v595
        %v1740 = vunpack.c.h.s8.bf16 %v592
        %v1741 = vunpack.c.h.s8.bf16 %v593
        %v1742 = vunpack.c.h.s8.bf16 %v594
        %v1743 = vunpack.c.h.s8.bf16 %v595
        %v1744 = vunpack.c.l.s8.bf16 %v596
        %v1745 = vunpack.c.l.s8.bf16 %v597
        %v1746 = vunpack.c.l.s8.bf16 %v598
        %v1747 = vunpack.c.l.s8.bf16 %v599
        %v1748 = vunpack.c.h.s8.bf16 %v596
        %v1749 = vunpack.c.h.s8.bf16 %v597
        %v1750 = vunpack.c.h.s8.bf16 %v598
        %v1751 = vunpack.c.h.s8.bf16 %v599
        %v1752 = vunpack.c.l.s8.bf16 %v600
        %v1753 = vunpack.c.l.s8.bf16 %v601
        %v1754 = vunpack.c.l.s8.bf16 %v602
        %v1755 = vunpack.c.l.s8.bf16 %v603
        %v1756 = vunpack.c.h.s8.bf16 %v600
        %v1757 = vunpack.c.h.s8.bf16 %v601
        %v1758 = vunpack.c.h.s8.bf16 %v602
        %v1759 = vunpack.c.h.s8.bf16 %v603
        %v1760 = vunpack.c.l.s8.bf16 %v604
        %v1761 = vunpack.c.l.s8.bf16 %v605
        %v1762 = vunpack.c.l.s8.bf16 %v606
        %v1763 = vunpack.c.l.s8.bf16 %v607
        %v1764 = vunpack.c.h.s8.bf16 %v604
        %v1765 = vunpack.c.h.s8.bf16 %v605
        %v1766 = vunpack.c.h.s8.bf16 %v606
        %v1767 = vunpack.c.h.s8.bf16 %v607
        %v1768 = vunpack.c.l.s8.bf16 %v608
        %v1769 = vunpack.c.l.s8.bf16 %v609
        %v1770 = vunpack.c.l.s8.bf16 %v610
        %v1771 = vunpack.c.l.s8.bf16 %v611
        %v1772 = vunpack.c.h.s8.bf16 %v608
        %v1773 = vunpack.c.h.s8.bf16 %v609
        %v1774 = vunpack.c.h.s8.bf16 %v610
        %v1775 = vunpack.c.h.s8.bf16 %v611
        %v1776 = vunpack.c.l.s8.bf16 %v612
        %v1777 = vunpack.c.l.s8.bf16 %v613
        %v1778 = vunpack.c.l.s8.bf16 %v614
        %v1779 = vunpack.c.l.s8.bf16 %v615
        %v1780 = vunpack.c.h.s8.bf16 %v612
        %v1781 = vunpack.c.h.s8.bf16 %v613
        %v1782 = vunpack.c.h.s8.bf16 %v614
        %v1783 = vunpack.c.h.s8.bf16 %v615
        %v1784 = vunpack.c.l.s8.bf16 %v616
        %v1785 = vunpack.c.l.s8.bf16 %v617
        %v1786 = vunpack.c.l.s8.bf16 %v618
        %v1787 = vunpack.c.l.s8.bf16 %v619
        %v1788 = vunpack.c.h.s8.bf16 %v616
        %v1789 = vunpack.c.h.s8.bf16 %v617
        %v1790 = vunpack.c.h.s8.bf16 %v618
        %v1791 = vunpack.c.h.s8.bf16 %v619
        %v1792 = vunpack.c.l.s8.bf16 %v620
        %v1793 = vunpack.c.l.s8.bf16 %v621
        %v1794 = vunpack.c.l.s8.bf16 %v622
        %v1795 = vunpack.c.l.s8.bf16 %v623
        %v1796 = vunpack.c.h.s8.bf16 %v620
        %v1797 = vunpack.c.h.s8.bf16 %v621
        %v1798 = vunpack.c.h.s8.bf16 %v622
        %v1799 = vunpack.c.h.s8.bf16 %v623
        %v1800 = vunpack.c.l.s8.bf16 %v624
        %v1801 = vunpack.c.l.s8.bf16 %v625
        %v1802 = vunpack.c.l.s8.bf16 %v626
        %v1803 = vunpack.c.l.s8.bf16 %v627
        %v1804 = vunpack.c.h.s8.bf16 %v624
        %v1805 = vunpack.c.h.s8.bf16 %v625
        %v1806 = vunpack.c.h.s8.bf16 %v626
        %v1807 = vunpack.c.h.s8.bf16 %v627
        %v1808 = vunpack.c.l.s8.bf16 %v628
        %v1809 = vunpack.c.l.s8.bf16 %v629
        %v1810 = vunpack.c.l.s8.bf16 %v630
        %v1811 = vunpack.c.l.s8.bf16 %v631
        %v1812 = vunpack.c.h.s8.bf16 %v628
        %v1813 = vunpack.c.h.s8.bf16 %v629
        %v1814 = vunpack.c.h.s8.bf16 %v630
        %v1815 = vunpack.c.h.s8.bf16 %v631
        %v1816 = vunpack.c.l.s8.bf16 %v632
        %v1817 = vunpack.c.l.s8.bf16 %v633
        %v1818 = vunpack.c.l.s8.bf16 %v634
        %v1819 = vunpack.c.l.s8.bf16 %v635
        %v1820 = vunpack.c.h.s8.bf16 %v632
        %v1821 = vunpack.c.h.s8.bf16 %v633
        %v1822 = vunpack.c.h.s8.bf16 %v634
        %v1823 = vunpack.c.h.s8.bf16 %v635
        %v1824 = vunpack.c.l.s8.bf16 %v636
        %v1825 = vunpack.c.l.s8.bf16 %v637
        %v1826 = vunpack.c.l.s8.bf16 %v638
        %v1827 = vunpack.c.l.s8.bf16 %v639
        %v1828 = vunpack.c.h.s8.bf16 %v636
        %v1829 = vunpack.c.h.s8.bf16 %v637
        %v1830 = vunpack.c.h.s8.bf16 %v638
        %v1831 = vunpack.c.h.s8.bf16 %v639
        %v1832 = vunpack.c.l.s8.bf16 %v640
        %v1833 = vunpack.c.l.s8.bf16 %v641
        %v1834 = vunpack.c.l.s8.bf16 %v642
        %v1835 = vunpack.c.l.s8.bf16 %v643
        %v1836 = vunpack.c.h.s8.bf16 %v640
        %v1837 = vunpack.c.h.s8.bf16 %v641
        %v1838 = vunpack.c.h.s8.bf16 %v642
        %v1839 = vunpack.c.h.s8.bf16 %v643
        %v1840 = vunpack.c.l.s8.bf16 %v644
        %v1841 = vunpack.c.l.s8.bf16 %v645
        %v1842 = vunpack.c.l.s8.bf16 %v646
        %v1843 = vunpack.c.l.s8.bf16 %v647
        %v1844 = vunpack.c.h.s8.bf16 %v644
        %v1845 = vunpack.c.h.s8.bf16 %v645
        %v1846 = vunpack.c.h.s8.bf16 %v646
        %v1847 = vunpack.c.h.s8.bf16 %v647
        %v1848 = vunpack.c.l.s8.bf16 %v648
        %v1849 = vunpack.c.l.s8.bf16 %v649
        %v1850 = vunpack.c.l.s8.bf16 %v650
        %v1851 = vunpack.c.l.s8.bf16 %v651
        %v1852 = vunpack.c.h.s8.bf16 %v648
        %v1853 = vunpack.c.h.s8.bf16 %v649
        %v1854 = vunpack.c.h.s8.bf16 %v650
        %v1855 = vunpack.c.h.s8.bf16 %v651
        %v1856 = vunpack.c.l.s8.bf16 %v652
        %v1857 = vunpack.c.l.s8.bf16 %v653
        %v1858 = vunpack.c.l.s8.bf16 %v654
        %v1859 = vunpack.c.l.s8.bf16 %v655
        %v1860 = vunpack.c.h.s8.bf16 %v652
        %v1861 = vunpack.c.h.s8.bf16 %v653
        %v1862 = vunpack.c.h.s8.bf16 %v654
        %v1863 = vunpack.c.h.s8.bf16 %v655
        %v1864 = vunpack.c.l.s8.bf16 %v656
        %v1865 = vunpack.c.l.s8.bf16 %v657
        %v1866 = vunpack.c.l.s8.bf16 %v658
        %v1867 = vunpack.c.l.s8.bf16 %v659
        %v1868 = vunpack.c.h.s8.bf16 %v656
        %v1869 = vunpack.c.h.s8.bf16 %v657
        %v1870 = vunpack.c.h.s8.bf16 %v658
        %v1871 = vunpack.c.h.s8.bf16 %v659
        %v1872 = vunpack.c.l.s8.bf16 %v660
        %v1873 = vunpack.c.l.s8.bf16 %v661
        %v1874 = vunpack.c.l.s8.bf16 %v662
        %v1875 = vunpack.c.l.s8.bf16 %v663
        %v1876 = vunpack.c.h.s8.bf16 %v660
        %v1877 = vunpack.c.h.s8.bf16 %v661
        %v1878 = vunpack.c.h.s8.bf16 %v662
        %v1879 = vunpack.c.h.s8.bf16 %v663
        %v1880 = vunpack.c.l.s8.bf16 %v664
        %v1881 = vunpack.c.l.s8.bf16 %v665
        %v1882 = vunpack.c.l.s8.bf16 %v666
        %v1883 = vunpack.c.l.s8.bf16 %v667
        %v1884 = vunpack.c.h.s8.bf16 %v664
        %v1885 = vunpack.c.h.s8.bf16 %v665
        %v1886 = vunpack.c.h.s8.bf16 %v666
        %v1887 = vunpack.c.h.s8.bf16 %v667
        %v1888 = vunpack.c.l.s8.bf16 %v668
        %v1889 = vunpack.c.l.s8.bf16 %v669
        %v1890 = vunpack.c.l.s8.bf16 %v670
        %v1891 = vunpack.c.l.s8.bf16 %v671
        %v1892 = vunpack.c.h.s8.bf16 %v668
        %v1893 = vunpack.c.h.s8.bf16 %v669
        %v1894 = vunpack.c.h.s8.bf16 %v670
        %v1895 = vunpack.c.h.s8.bf16 %v671
        %v1896 = vunpack.c.l.s8.bf16 %v672
        %v1897 = vunpack.c.l.s8.bf16 %v673
        %v1898 = vunpack.c.l.s8.bf16 %v674
        %v1899 = vunpack.c.l.s8.bf16 %v675
        %v1900 = vunpack.c.h.s8.bf16 %v672
        %v1901 = vunpack.c.h.s8.bf16 %v673
        %v1902 = vunpack.c.h.s8.bf16 %v674
        %v1903 = vunpack.c.h.s8.bf16 %v675
        %v1904 = vunpack.c.l.s8.bf16 %v676
        %v1905 = vunpack.c.l.s8.bf16 %v677
        %v1906 = vunpack.c.l.s8.bf16 %v678
        %v1907 = vunpack.c.l.s8.bf16 %v679
        %v1908 = vunpack.c.h.s8.bf16 %v676
        %v1909 = vunpack.c.h.s8.bf16 %v677
        %v1910 = vunpack.c.h.s8.bf16 %v678
        %v1911 = vunpack.c.h.s8.bf16 %v679
        %v1912 = vunpack.c.l.s8.bf16 %v680
        %v1913 = vunpack.c.l.s8.bf16 %v681
        %v1914 = vunpack.c.l.s8.bf16 %v682
        %v1915 = vunpack.c.l.s8.bf16 %v683
        %v1916 = vunpack.c.h.s8.bf16 %v680
        %v1917 = vunpack.c.h.s8.bf16 %v681
        %v1918 = vunpack.c.h.s8.bf16 %v682
        %v1919 = vunpack.c.h.s8.bf16 %v683
        %v1920 = vunpack.c.l.s8.bf16 %v684
        %v1921 = vunpack.c.l.s8.bf16 %v685
        %v1922 = vunpack.c.l.s8.bf16 %v686
        %v1923 = vunpack.c.l.s8.bf16 %v687
        %v1924 = vunpack.c.h.s8.bf16 %v684
        %v1925 = vunpack.c.h.s8.bf16 %v685
        %v1926 = vunpack.c.h.s8.bf16 %v686
        %v1927 = vunpack.c.h.s8.bf16 %v687
        %v1928 = vunpack.c.l.s8.bf16 %v688
        %v1929 = vunpack.c.l.s8.bf16 %v689
        %v1930 = vunpack.c.l.s8.bf16 %v690
        %v1931 = vunpack.c.l.s8.bf16 %v691
        %v1932 = vunpack.c.h.s8.bf16 %v688
        %v1933 = vunpack.c.h.s8.bf16 %v689
        %v1934 = vunpack.c.h.s8.bf16 %v690
        %v1935 = vunpack.c.h.s8.bf16 %v691
        %v1936 = vunpack.c.l.s8.bf16 %v692
        %v1937 = vunpack.c.l.s8.bf16 %v693
        %v1938 = vunpack.c.l.s8.bf16 %v694
        %v1939 = vunpack.c.l.s8.bf16 %v695
        %v1940 = vunpack.c.h.s8.bf16 %v692
        %v1941 = vunpack.c.h.s8.bf16 %v693
        %v1942 = vunpack.c.h.s8.bf16 %v694
        %v1943 = vunpack.c.h.s8.bf16 %v695
        %v1944 = vunpack.c.l.s8.bf16 %v696
        %v1945 = vunpack.c.l.s8.bf16 %v697
        %v1946 = vunpack.c.l.s8.bf16 %v698
        %v1947 = vunpack.c.l.s8.bf16 %v699
        %v1948 = vunpack.c.h.s8.bf16 %v696
        %v1949 = vunpack.c.h.s8.bf16 %v697
        %v1950 = vunpack.c.h.s8.bf16 %v698
        %v1951 = vunpack.c.h.s8.bf16 %v699
        %v1952 = vunpack.c.l.s8.bf16 %v700
        %v1953 = vunpack.c.l.s8.bf16 %v701
        %v1954 = vunpack.c.l.s8.bf16 %v702
        %v1955 = vunpack.c.l.s8.bf16 %v703
        %v1956 = vunpack.c.h.s8.bf16 %v700
        %v1957 = vunpack.c.h.s8.bf16 %v701
        %v1958 = vunpack.c.h.s8.bf16 %v702
        %v1959 = vunpack.c.h.s8.bf16 %v703
        %v1960 = vunpack.c.l.s8.bf16 %v704
        %v1961 = vunpack.c.l.s8.bf16 %v705
        %v1962 = vunpack.c.l.s8.bf16 %v706
        %v1963 = vunpack.c.l.s8.bf16 %v707
        %v1964 = vunpack.c.h.s8.bf16 %v704
        %v1965 = vunpack.c.h.s8.bf16 %v705
        %v1966 = vunpack.c.h.s8.bf16 %v706
        %v1967 = vunpack.c.h.s8.bf16 %v707
        %v1968 = vunpack.c.l.s8.bf16 %v708
        %v1969 = vunpack.c.l.s8.bf16 %v709
        %v1970 = vunpack.c.l.s8.bf16 %v710
        %v1971 = vunpack.c.l.s8.bf16 %v711
        %v1972 = vunpack.c.h.s8.bf16 %v708
        %v1973 = vunpack.c.h.s8.bf16 %v709
        %v1974 = vunpack.c.h.s8.bf16 %v710
        %v1975 = vunpack.c.h.s8.bf16 %v711
        %v1976 = vunpack.c.l.s8.bf16 %v712
        %v1977 = vunpack.c.l.s8.bf16 %v713
        %v1978 = vunpack.c.l.s8.bf16 %v714
        %v1979 = vunpack.c.l.s8.bf16 %v715
        %v1980 = vunpack.c.h.s8.bf16 %v712
        %v1981 = vunpack.c.h.s8.bf16 %v713
        %v1982 = vunpack.c.h.s8.bf16 %v714
        %v1983 = vunpack.c.h.s8.bf16 %v715
        %v1984 = vunpack.c.l.s8.bf16 %v716
        %v1985 = vunpack.c.l.s8.bf16 %v717
        %v1986 = vunpack.c.l.s8.bf16 %v718
        %v1987 = vunpack.c.l.s8.bf16 %v719
        %v1988 = vunpack.c.h.s8.bf16 %v716
        %v1989 = vunpack.c.h.s8.bf16 %v717
        %v1990 = vunpack.c.h.s8.bf16 %v718
        %v1991 = vunpack.c.h.s8.bf16 %v719
        %v1992 = vunpack.c.l.s8.bf16 %v720
        %v1993 = vunpack.c.l.s8.bf16 %v721
        %v1994 = vunpack.c.l.s8.bf16 %v722
        %v1995 = vunpack.c.l.s8.bf16 %v723
        %v1996 = vunpack.c.h.s8.bf16 %v720
        %v1997 = vunpack.c.h.s8.bf16 %v721
        %v1998 = vunpack.c.h.s8.bf16 %v722
        %v1999 = vunpack.c.h.s8.bf16 %v723
        %v2000 = vunpack.c.l.s8.bf16 %v724
        %v2001 = vunpack.c.l.s8.bf16 %v725
        %v2002 = vunpack.c.l.s8.bf16 %v726
        %v2003 = vunpack.c.l.s8.bf16 %v727
        %v2004 = vunpack.c.h.s8.bf16 %v724
        %v2005 = vunpack.c.h.s8.bf16 %v725
        %v2006 = vunpack.c.h.s8.bf16 %v726
        %v2007 = vunpack.c.h.s8.bf16 %v727
        %v2008 = vunpack.c.l.s8.bf16 %v728
        %v2009 = vunpack.c.l.s8.bf16 %v729
        %v2010 = vunpack.c.l.s8.bf16 %v730
        %v2011 = vunpack.c.l.s8.bf16 %v731
        %v2012 = vunpack.c.h.s8.bf16 %v728
        %v2013 = vunpack.c.h.s8.bf16 %v729
        %v2014 = vunpack.c.h.s8.bf16 %v730
        %v2015 = vunpack.c.h.s8.bf16 %v731
        %v2016 = vunpack.c.l.s8.bf16 %v732
        %v2017 = vunpack.c.l.s8.bf16 %v733
        %v2018 = vunpack.c.l.s8.bf16 %v734
        %v2019 = vunpack.c.l.s8.bf16 %v735
        %v2020 = vunpack.c.h.s8.bf16 %v732
        %v2021 = vunpack.c.h.s8.bf16 %v733
        %v2022 = vunpack.c.h.s8.bf16 %v734
        %v2023 = vunpack.c.h.s8.bf16 %v735
        %v2024 = vunpack.c.l.s8.bf16 %v736
        %v2025 = vunpack.c.l.s8.bf16 %v737
        %v2026 = vunpack.c.l.s8.bf16 %v738
        %v2027 = vunpack.c.l.s8.bf16 %v739
        %v2028 = vunpack.c.h.s8.bf16 %v736
        %v2029 = vunpack.c.h.s8.bf16 %v737
        %v2030 = vunpack.c.h.s8.bf16 %v738
        %v2031 = vunpack.c.h.s8.bf16 %v739
        %v2032 = vunpack.c.l.s8.bf16 %v740
        %v2033 = vunpack.c.l.s8.bf16 %v741
        %v2034 = vunpack.c.l.s8.bf16 %v742
        %v2035 = vunpack.c.l.s8.bf16 %v743
        %v2036 = vunpack.c.h.s8.bf16 %v740
        %v2037 = vunpack.c.h.s8.bf16 %v741
        %v2038 = vunpack.c.h.s8.bf16 %v742
        %v2039 = vunpack.c.h.s8.bf16 %v743
        %v2040 = vunpack.c.l.s8.bf16 %v744
        %v2041 = vunpack.c.l.s8.bf16 %v745
        %v2042 = vunpack.c.l.s8.bf16 %v746
        %v2043 = vunpack.c.l.s8.bf16 %v747
        %v2044 = vunpack.c.h.s8.bf16 %v744
        %v2045 = vunpack.c.h.s8.bf16 %v745
        %v2046 = vunpack.c.h.s8.bf16 %v746
        %v2047 = vunpack.c.h.s8.bf16 %v747
        %v2048 = vunpack.c.l.s8.bf16 %v748
        %v2049 = vunpack.c.l.s8.bf16 %v749
        %v2050 = vunpack.c.l.s8.bf16 %v750
        %v2051 = vunpack.c.l.s8.bf16 %v751
        %v2052 = vunpack.c.h.s8.bf16 %v748
        %v2053 = vunpack.c.h.s8.bf16 %v749
        %v2054 = vunpack.c.h.s8.bf16 %v750
        %v2055 = vunpack.c.h.s8.bf16 %v751
        %v2056 = vunpack.c.l.s8.bf16 %v752
        %v2057 = vunpack.c.l.s8.bf16 %v753
        %v2058 = vunpack.c.l.s8.bf16 %v754
        %v2059 = vunpack.c.l.s8.bf16 %v755
        %v2060 = vunpack.c.h.s8.bf16 %v752
        %v2061 = vunpack.c.h.s8.bf16 %v753
        %v2062 = vunpack.c.h.s8.bf16 %v754
        %v2063 = vunpack.c.h.s8.bf16 %v755
        %v2064 = vunpack.c.l.s8.bf16 %v756
        %v2065 = vunpack.c.l.s8.bf16 %v757
        %v2066 = vunpack.c.l.s8.bf16 %v758
        %v2067 = vunpack.c.l.s8.bf16 %v759
        %v2068 = vunpack.c.h.s8.bf16 %v756
        %v2069 = vunpack.c.h.s8.bf16 %v757
        %v2070 = vunpack.c.h.s8.bf16 %v758
        %v2071 = vunpack.c.h.s8.bf16 %v759
        %v2072 = vunpack.c.l.s8.bf16 %v760
        %v2073 = vunpack.c.l.s8.bf16 %v761
        %v2074 = vunpack.c.l.s8.bf16 %v762
        %v2075 = vunpack.c.l.s8.bf16 %v763
        %v2076 = vunpack.c.h.s8.bf16 %v760
        %v2077 = vunpack.c.h.s8.bf16 %v761
        %v2078 = vunpack.c.h.s8.bf16 %v762
        %v2079 = vunpack.c.h.s8.bf16 %v763
        %v2080 = vunpack.c.l.s8.bf16 %v764
        %v2081 = vunpack.c.l.s8.bf16 %v765
        %v2082 = vunpack.c.l.s8.bf16 %v766
        %v2083 = vunpack.c.l.s8.bf16 %v767
        %v2084 = vunpack.c.h.s8.bf16 %v764
        %v2085 = vunpack.c.h.s8.bf16 %v765
        %v2086 = vunpack.c.h.s8.bf16 %v766
        %v2087 = vunpack.c.h.s8.bf16 %v767
        %v2088 = vunpack.c.l.s8.bf16 %v768
        %v2089 = vunpack.c.l.s8.bf16 %v769
        %v2090 = vunpack.c.l.s8.bf16 %v770
        %v2091 = vunpack.c.l.s8.bf16 %v771
        %v2092 = vunpack.c.h.s8.bf16 %v768
        %v2093 = vunpack.c.h.s8.bf16 %v769
        %v2094 = vunpack.c.h.s8.bf16 %v770
        %v2095 = vunpack.c.h.s8.bf16 %v771
        %v2096 = vunpack.c.l.s8.bf16 %v772
        %v2097 = vunpack.c.l.s8.bf16 %v773
        %v2098 = vunpack.c.l.s8.bf16 %v774
        %v2099 = vunpack.c.l.s8.bf16 %v775
        %v2100 = vunpack.c.h.s8.bf16 %v772
        %v2101 = vunpack.c.h.s8.bf16 %v773
        %v2102 = vunpack.c.h.s8.bf16 %v774
        %v2103 = vunpack.c.h.s8.bf16 %v775
        %v2104 = vunpack.c.l.s8.bf16 %v776
        %v2105 = vunpack.c.l.s8.bf16 %v777
        %v2106 = vunpack.c.l.s8.bf16 %v778
        %v2107 = vunpack.c.l.s8.bf16 %v779
        %v2108 = vunpack.c.h.s8.bf16 %v776
        %v2109 = vunpack.c.h.s8.bf16 %v777
        %v2110 = vunpack.c.h.s8.bf16 %v778
        %v2111 = vunpack.c.h.s8.bf16 %v779
        %v2112 = vunpack.c.l.s8.bf16 %v780
        %v2113 = vunpack.c.l.s8.bf16 %v781
        %v2114 = vunpack.c.l.s8.bf16 %v782
        %v2115 = vunpack.c.l.s8.bf16 %v783
        %v2116 = vunpack.c.h.s8.bf16 %v780
        %v2117 = vunpack.c.h.s8.bf16 %v781
        %v2118 = vunpack.c.h.s8.bf16 %v782
        %v2119 = vunpack.c.h.s8.bf16 %v783
        %v2120 = vunpack.c.l.s8.bf16 %v784
        %v2121 = vunpack.c.l.s8.bf16 %v785
        %v2122 = vunpack.c.l.s8.bf16 %v786
        %v2123 = vunpack.c.l.s8.bf16 %v787
        %v2124 = vunpack.c.h.s8.bf16 %v784
        %v2125 = vunpack.c.h.s8.bf16 %v785
        %v2126 = vunpack.c.h.s8.bf16 %v786
        %v2127 = vunpack.c.h.s8.bf16 %v787
        %v2128 = vunpack.c.l.s8.bf16 %v788
        %v2129 = vunpack.c.l.s8.bf16 %v789
        %v2130 = vunpack.c.l.s8.bf16 %v790
        %v2131 = vunpack.c.l.s8.bf16 %v791
        %v2132 = vunpack.c.h.s8.bf16 %v788
        %v2133 = vunpack.c.h.s8.bf16 %v789
        %v2134 = vunpack.c.h.s8.bf16 %v790
        %v2135 = vunpack.c.h.s8.bf16 %v791
        %v2136 = vunpack.c.l.s8.bf16 %v792
        %v2137 = vunpack.c.l.s8.bf16 %v793
        %v2138 = vunpack.c.l.s8.bf16 %v794
        %v2139 = vunpack.c.l.s8.bf16 %v795
        %v2140 = vunpack.c.h.s8.bf16 %v792
        %v2141 = vunpack.c.h.s8.bf16 %v793
        %v2142 = vunpack.c.h.s8.bf16 %v794
        %v2143 = vunpack.c.h.s8.bf16 %v795
        %v2144 = vunpack.c.l.s8.bf16 %v796
        %v2145 = vunpack.c.l.s8.bf16 %v797
        %v2146 = vunpack.c.l.s8.bf16 %v798
        %v2147 = vunpack.c.l.s8.bf16 %v799
        %v2148 = vunpack.c.h.s8.bf16 %v796
        %v2149 = vunpack.c.h.s8.bf16 %v797
        %v2150 = vunpack.c.h.s8.bf16 %v798
        %v2151 = vunpack.c.h.s8.bf16 %v799
        %v2152 = vunpack.c.l.s8.bf16 %v800
        %v2153 = vunpack.c.l.s8.bf16 %v801
        %v2154 = vunpack.c.l.s8.bf16 %v802
        %v2155 = vunpack.c.l.s8.bf16 %v803
        %v2156 = vunpack.c.h.s8.bf16 %v800
        %v2157 = vunpack.c.h.s8.bf16 %v801
        %v2158 = vunpack.c.h.s8.bf16 %v802
        %v2159 = vunpack.c.h.s8.bf16 %v803
        %v2160 = vunpack.c.l.s8.bf16 %v804
        %v2161 = vunpack.c.l.s8.bf16 %v805
        %v2162 = vunpack.c.l.s8.bf16 %v806
        %v2163 = vunpack.c.l.s8.bf16 %v807
        %v2164 = vunpack.c.h.s8.bf16 %v804
        %v2165 = vunpack.c.h.s8.bf16 %v805
        %v2166 = vunpack.c.h.s8.bf16 %v806
        %v2167 = vunpack.c.h.s8.bf16 %v807
        %v2168 = vunpack.c.l.s8.bf16 %v808
        %v2169 = vunpack.c.l.s8.bf16 %v809
        %v2170 = vunpack.c.l.s8.bf16 %v810
        %v2171 = vunpack.c.l.s8.bf16 %v811
        %v2172 = vunpack.c.h.s8.bf16 %v808
        %v2173 = vunpack.c.h.s8.bf16 %v809
        %v2174 = vunpack.c.h.s8.bf16 %v810
        %v2175 = vunpack.c.h.s8.bf16 %v811
        %v2176 = vunpack.c.l.s8.bf16 %v812
        %v2177 = vunpack.c.l.s8.bf16 %v813
        %v2178 = vunpack.c.l.s8.bf16 %v814
        %v2179 = vunpack.c.l.s8.bf16 %v815
        %v2180 = vunpack.c.h.s8.bf16 %v812
        %v2181 = vunpack.c.h.s8.bf16 %v813
        %v2182 = vunpack.c.h.s8.bf16 %v814
        %v2183 = vunpack.c.h.s8.bf16 %v815
        %v2184 = vunpack.c.l.s8.bf16 %v816
        %v2185 = vunpack.c.l.s8.bf16 %v817
        %v2186 = vunpack.c.l.s8.bf16 %v818
        %v2187 = vunpack.c.l.s8.bf16 %v819
        %v2188 = vunpack.c.h.s8.bf16 %v816
        %v2189 = vunpack.c.h.s8.bf16 %v817
        %v2190 = vunpack.c.h.s8.bf16 %v818
        %v2191 = vunpack.c.h.s8.bf16 %v819
        %v2192 = vunpack.c.l.s8.bf16 %v820
        %v2193 = vunpack.c.l.s8.bf16 %v821
        %v2194 = vunpack.c.l.s8.bf16 %v822
        %v2195 = vunpack.c.l.s8.bf16 %v823
        %v2196 = vunpack.c.h.s8.bf16 %v820
        %v2197 = vunpack.c.h.s8.bf16 %v821
        %v2198 = vunpack.c.h.s8.bf16 %v822
        %v2199 = vunpack.c.h.s8.bf16 %v823
        %v2200 = vunpack.c.l.s8.bf16 %v824
        %v2201 = vunpack.c.l.s8.bf16 %v825
        %v2202 = vunpack.c.l.s8.bf16 %v826
        %v2203 = vunpack.c.l.s8.bf16 %v827
        %v2204 = vunpack.c.h.s8.bf16 %v824
        %v2205 = vunpack.c.h.s8.bf16 %v825
        %v2206 = vunpack.c.h.s8.bf16 %v826
        %v2207 = vunpack.c.h.s8.bf16 %v827
        %v2208 = vunpack.c.l.s8.bf16 %v828
        %v2209 = vunpack.c.l.s8.bf16 %v829
        %v2210 = vunpack.c.l.s8.bf16 %v830
        %v2211 = vunpack.c.l.s8.bf16 %v831
        %v2212 = vunpack.c.h.s8.bf16 %v828
        %v2213 = vunpack.c.h.s8.bf16 %v829
        %v2214 = vunpack.c.h.s8.bf16 %v830
        %v2215 = vunpack.c.h.s8.bf16 %v831
        %v2216 = vunpack.c.l.s8.bf16 %v832
        %v2217 = vunpack.c.l.s8.bf16 %v833
        %v2218 = vunpack.c.l.s8.bf16 %v834
        %v2219 = vunpack.c.l.s8.bf16 %v835
        %v2220 = vunpack.c.h.s8.bf16 %v832
        %v2221 = vunpack.c.h.s8.bf16 %v833
        %v2222 = vunpack.c.h.s8.bf16 %v834
        %v2223 = vunpack.c.h.s8.bf16 %v835
        %v2224 = vunpack.c.l.s8.bf16 %v836
        %v2225 = vunpack.c.l.s8.bf16 %v837
        %v2226 = vunpack.c.l.s8.bf16 %v838
        %v2227 = vunpack.c.l.s8.bf16 %v839
        %v2228 = vunpack.c.h.s8.bf16 %v836
        %v2229 = vunpack.c.h.s8.bf16 %v837
        %v2230 = vunpack.c.h.s8.bf16 %v838
        %v2231 = vunpack.c.h.s8.bf16 %v839
        %v2232 = vunpack.c.l.s8.bf16 %v840
        %v2233 = vunpack.c.l.s8.bf16 %v841
        %v2234 = vunpack.c.l.s8.bf16 %v842
        %v2235 = vunpack.c.l.s8.bf16 %v843
        %v2236 = vunpack.c.h.s8.bf16 %v840
        %v2237 = vunpack.c.h.s8.bf16 %v841
        %v2238 = vunpack.c.h.s8.bf16 %v842
        %v2239 = vunpack.c.h.s8.bf16 %v843
        %v2240 = vunpack.c.l.s8.bf16 %v844
        %v2241 = vunpack.c.l.s8.bf16 %v845
        %v2242 = vunpack.c.l.s8.bf16 %v846
        %v2243 = vunpack.c.l.s8.bf16 %v847
        %v2244 = vunpack.c.h.s8.bf16 %v844
        %v2245 = vunpack.c.h.s8.bf16 %v845
        %v2246 = vunpack.c.h.s8.bf16 %v846
        %v2247 = vunpack.c.h.s8.bf16 %v847
        %v2248 = vunpack.c.l.s8.bf16 %v848
        %v2249 = vunpack.c.l.s8.bf16 %v849
        %v2250 = vunpack.c.l.s8.bf16 %v850
        %v2251 = vunpack.c.l.s8.bf16 %v851
        %v2252 = vunpack.c.h.s8.bf16 %v848
        %v2253 = vunpack.c.h.s8.bf16 %v849
        %v2254 = vunpack.c.h.s8.bf16 %v850
        %v2255 = vunpack.c.h.s8.bf16 %v851
        %v2256 = vunpack.c.l.s8.bf16 %v852
        %v2257 = vunpack.c.l.s8.bf16 %v853
        %v2258 = vunpack.c.l.s8.bf16 %v854
        %v2259 = vunpack.c.l.s8.bf16 %v855
        %v2260 = vunpack.c.h.s8.bf16 %v852
        %v2261 = vunpack.c.h.s8.bf16 %v853
        %v2262 = vunpack.c.h.s8.bf16 %v854
        %v2263 = vunpack.c.h.s8.bf16 %v855
        %v2264 = vunpack.c.l.s8.bf16 %v856
        %v2265 = vunpack.c.l.s8.bf16 %v857
        %v2266 = vunpack.c.l.s8.bf16 %v858
        %v2267 = vunpack.c.l.s8.bf16 %v859
        %v2268 = vunpack.c.h.s8.bf16 %v856
        %v2269 = vunpack.c.h.s8.bf16 %v857
        %v2270 = vunpack.c.h.s8.bf16 %v858
        %v2271 = vunpack.c.h.s8.bf16 %v859
        %v2272 = vunpack.c.l.s8.bf16 %v860
        %v2273 = vunpack.c.l.s8.bf16 %v861
        %v2274 = vunpack.c.l.s8.bf16 %v862
        %v2275 = vunpack.c.l.s8.bf16 %v863
        %v2276 = vunpack.c.h.s8.bf16 %v860
        %v2277 = vunpack.c.h.s8.bf16 %v861
        %v2278 = vunpack.c.h.s8.bf16 %v862
        %v2279 = vunpack.c.h.s8.bf16 %v863
        %v2280 = vunpack.c.l.s8.bf16 %v864
        %v2281 = vunpack.c.l.s8.bf16 %v865
        %v2282 = vunpack.c.l.s8.bf16 %v866
        %v2283 = vunpack.c.l.s8.bf16 %v867
        %v2284 = vunpack.c.h.s8.bf16 %v864
        %v2285 = vunpack.c.h.s8.bf16 %v865
        %v2286 = vunpack.c.h.s8.bf16 %v866
        %v2287 = vunpack.c.h.s8.bf16 %v867
        %v2288 = vunpack.c.l.s8.bf16 %v868
        %v2289 = vunpack.c.l.s8.bf16 %v869
        %v2290 = vunpack.c.l.s8.bf16 %v870
        %v2291 = vunpack.c.l.s8.bf16 %v871
        %v2292 = vunpack.c.h.s8.bf16 %v868
        %v2293 = vunpack.c.h.s8.bf16 %v869
        %v2294 = vunpack.c.h.s8.bf16 %v870
        %v2295 = vunpack.c.h.s8.bf16 %v871
        %v2296 = vunpack.c.l.s8.bf16 %v872
        %v2297 = vunpack.c.l.s8.bf16 %v873
        %v2298 = vunpack.c.l.s8.bf16 %v874
        %v2299 = vunpack.c.l.s8.bf16 %v875
        %v2300 = vunpack.c.h.s8.bf16 %v872
        %v2301 = vunpack.c.h.s8.bf16 %v873
        %v2302 = vunpack.c.h.s8.bf16 %v874
        %v2303 = vunpack.c.h.s8.bf16 %v875
        %v2304 = vunpack.c.l.s8.bf16 %v876
        %v2305 = vunpack.c.l.s8.bf16 %v877
        %v2306 = vunpack.c.l.s8.bf16 %v878
        %v2307 = vunpack.c.l.s8.bf16 %v879
        %v2308 = vunpack.c.h.s8.bf16 %v876
        %v2309 = vunpack.c.h.s8.bf16 %v877
        %v2310 = vunpack.c.h.s8.bf16 %v878
        %v2311 = vunpack.c.h.s8.bf16 %v879
        %v2312 = vunpack.c.l.s8.bf16 %v880
        %v2313 = vunpack.c.l.s8.bf16 %v881
        %v2314 = vunpack.c.l.s8.bf16 %v882
        %v2315 = vunpack.c.l.s8.bf16 %v883
        %v2316 = vunpack.c.h.s8.bf16 %v880
        %v2317 = vunpack.c.h.s8.bf16 %v881
        %v2318 = vunpack.c.h.s8.bf16 %v882
        %v2319 = vunpack.c.h.s8.bf16 %v883
        %v2320 = vunpack.c.l.s8.bf16 %v884
        %v2321 = vunpack.c.l.s8.bf16 %v885
        %v2322 = vunpack.c.l.s8.bf16 %v886
        %v2323 = vunpack.c.l.s8.bf16 %v887
        %v2324 = vunpack.c.h.s8.bf16 %v884
        %v2325 = vunpack.c.h.s8.bf16 %v885
        %v2326 = vunpack.c.h.s8.bf16 %v886
        %v2327 = vunpack.c.h.s8.bf16 %v887
        %v2328 = vunpack.c.l.s8.bf16 %v888
        %v2329 = vunpack.c.l.s8.bf16 %v889
        %v2330 = vunpack.c.l.s8.bf16 %v890
        %v2331 = vunpack.c.l.s8.bf16 %v891
        %v2332 = vunpack.c.h.s8.bf16 %v888
        %v2333 = vunpack.c.h.s8.bf16 %v889
        %v2334 = vunpack.c.h.s8.bf16 %v890
        %v2335 = vunpack.c.h.s8.bf16 %v891
        %v2336 = vunpack.c.l.s8.bf16 %v892
        %v2337 = vunpack.c.l.s8.bf16 %v893
        %v2338 = vunpack.c.l.s8.bf16 %v894
        %v2339 = vunpack.c.l.s8.bf16 %v895
        %v2340 = vunpack.c.h.s8.bf16 %v892
        %v2341 = vunpack.c.h.s8.bf16 %v893
        %v2342 = vunpack.c.h.s8.bf16 %v894
        %v2343 = vunpack.c.h.s8.bf16 %v895
        %v2344 = vunpack.c.l.s8.bf16 %v896
        %v2345 = vunpack.c.l.s8.bf16 %v897
        %v2346 = vunpack.c.l.s8.bf16 %v898
        %v2347 = vunpack.c.l.s8.bf16 %v899
        %v2348 = vunpack.c.h.s8.bf16 %v896
        %v2349 = vunpack.c.h.s8.bf16 %v897
        %v2350 = vunpack.c.h.s8.bf16 %v898
        %v2351 = vunpack.c.h.s8.bf16 %v899
        %v2352 = vunpack.c.l.s8.bf16 %v900
        %v2353 = vunpack.c.l.s8.bf16 %v901
        %v2354 = vunpack.c.l.s8.bf16 %v902
        %v2355 = vunpack.c.l.s8.bf16 %v903
        %v2356 = vunpack.c.h.s8.bf16 %v900
        %v2357 = vunpack.c.h.s8.bf16 %v901
        %v2358 = vunpack.c.h.s8.bf16 %v902
        %v2359 = vunpack.c.h.s8.bf16 %v903
        %v2360 = vunpack.c.l.s8.bf16 %v904
        %v2361 = vunpack.c.l.s8.bf16 %v905
        %v2362 = vunpack.c.l.s8.bf16 %v906
        %v2363 = vunpack.c.l.s8.bf16 %v907
        %v2364 = vunpack.c.h.s8.bf16 %v904
        %v2365 = vunpack.c.h.s8.bf16 %v905
        %v2366 = vunpack.c.h.s8.bf16 %v906
        %v2367 = vunpack.c.h.s8.bf16 %v907
        %v2368 = vunpack.c.l.s8.bf16 %v908
        %v2369 = vunpack.c.l.s8.bf16 %v909
        %v2370 = vunpack.c.l.s8.bf16 %v910
        %v2371 = vunpack.c.l.s8.bf16 %v911
        %v2372 = vunpack.c.h.s8.bf16 %v908
        %v2373 = vunpack.c.h.s8.bf16 %v909
        %v2374 = vunpack.c.h.s8.bf16 %v910
        %v2375 = vunpack.c.h.s8.bf16 %v911
        %v2376 = vunpack.c.l.s8.bf16 %v912
        %v2377 = vunpack.c.l.s8.bf16 %v913
        %v2378 = vunpack.c.l.s8.bf16 %v914
        %v2379 = vunpack.c.l.s8.bf16 %v915
        %v2380 = vunpack.c.h.s8.bf16 %v912
        %v2381 = vunpack.c.h.s8.bf16 %v913
        %v2382 = vunpack.c.h.s8.bf16 %v914
        %v2383 = vunpack.c.h.s8.bf16 %v915
        %v2384 = vunpack.c.l.s8.bf16 %v916
        %v2385 = vunpack.c.l.s8.bf16 %v917
        %v2386 = vunpack.c.l.s8.bf16 %v918
        %v2387 = vunpack.c.l.s8.bf16 %v919
        %v2388 = vunpack.c.h.s8.bf16 %v916
        %v2389 = vunpack.c.h.s8.bf16 %v917
        %v2390 = vunpack.c.h.s8.bf16 %v918
        %v2391 = vunpack.c.h.s8.bf16 %v919
        %v2392 = vunpack.c.l.s8.bf16 %v920
        %v2393 = vunpack.c.l.s8.bf16 %v921
        %v2394 = vunpack.c.l.s8.bf16 %v922
        %v2395 = vunpack.c.l.s8.bf16 %v923
        %v2396 = vunpack.c.h.s8.bf16 %v920
        %v2397 = vunpack.c.h.s8.bf16 %v921
        %v2398 = vunpack.c.h.s8.bf16 %v922
        %v2399 = vunpack.c.h.s8.bf16 %v923
        %v2400 = vunpack.c.l.s8.bf16 %v924
        %v2401 = vunpack.c.l.s8.bf16 %v925
        %v2402 = vunpack.c.l.s8.bf16 %v926
        %v2403 = vunpack.c.l.s8.bf16 %v927
        %v2404 = vunpack.c.h.s8.bf16 %v924
        %v2405 = vunpack.c.h.s8.bf16 %v925
        %v2406 = vunpack.c.h.s8.bf16 %v926
        %v2407 = vunpack.c.h.s8.bf16 %v927
        %v2408 = vunpack.c.l.s8.bf16 %v928
        %v2409 = vunpack.c.l.s8.bf16 %v929
        %v2410 = vunpack.c.l.s8.bf16 %v930
        %v2411 = vunpack.c.l.s8.bf16 %v931
        %v2412 = vunpack.c.h.s8.bf16 %v928
        %v2413 = vunpack.c.h.s8.bf16 %v929
        %v2414 = vunpack.c.h.s8.bf16 %v930
        %v2415 = vunpack.c.h.s8.bf16 %v931
        %v2416 = vunpack.c.l.s8.bf16 %v932
        %v2417 = vunpack.c.l.s8.bf16 %v933
        %v2418 = vunpack.c.l.s8.bf16 %v934
        %v2419 = vunpack.c.l.s8.bf16 %v935
        %v2420 = vunpack.c.h.s8.bf16 %v932
        %v2421 = vunpack.c.h.s8.bf16 %v933
        %v2422 = vunpack.c.h.s8.bf16 %v934
        %v2423 = vunpack.c.h.s8.bf16 %v935
        %v2424 = vunpack.c.l.s8.bf16 %v936
        %v2425 = vunpack.c.l.s8.bf16 %v937
        %v2426 = vunpack.c.l.s8.bf16 %v938
        %v2427 = vunpack.c.l.s8.bf16 %v939
        %v2428 = vunpack.c.h.s8.bf16 %v936
        %v2429 = vunpack.c.h.s8.bf16 %v937
        %v2430 = vunpack.c.h.s8.bf16 %v938
        %v2431 = vunpack.c.h.s8.bf16 %v939
        %v2432 = vunpack.c.l.s8.bf16 %v940
        %v2433 = vunpack.c.l.s8.bf16 %v941
        %v2434 = vunpack.c.l.s8.bf16 %v942
        %v2435 = vunpack.c.l.s8.bf16 %v943
        %v2436 = vunpack.c.h.s8.bf16 %v940
        %v2437 = vunpack.c.h.s8.bf16 %v941
        %v2438 = vunpack.c.h.s8.bf16 %v942
        %v2439 = vunpack.c.h.s8.bf16 %v943
        %v2440 = vunpack.c.l.s8.bf16 %v944
        %v2441 = vunpack.c.l.s8.bf16 %v945
        %v2442 = vunpack.c.l.s8.bf16 %v946
        %v2443 = vunpack.c.l.s8.bf16 %v947
        %v2444 = vunpack.c.h.s8.bf16 %v944
        %v2445 = vunpack.c.h.s8.bf16 %v945
        %v2446 = vunpack.c.h.s8.bf16 %v946
        %v2447 = vunpack.c.h.s8.bf16 %v947
        %v2448 = vunpack.c.l.s8.bf16 %v948
        %v2449 = vunpack.c.l.s8.bf16 %v949
        %v2450 = vunpack.c.l.s8.bf16 %v950
        %v2451 = vunpack.c.l.s8.bf16 %v951
        %v2452 = vunpack.c.h.s8.bf16 %v948
        %v2453 = vunpack.c.h.s8.bf16 %v949
        %v2454 = vunpack.c.h.s8.bf16 %v950
        %v2455 = vunpack.c.h.s8.bf16 %v951
        %v2456 = vunpack.c.l.s8.bf16 %v952
        %v2457 = vunpack.c.l.s8.bf16 %v953
        %v2458 = vunpack.c.l.s8.bf16 %v954
        %v2459 = vunpack.c.l.s8.bf16 %v955
        %v2460 = vunpack.c.h.s8.bf16 %v952
        %v2461 = vunpack.c.h.s8.bf16 %v953
        %v2462 = vunpack.c.h.s8.bf16 %v954
        %v2463 = vunpack.c.h.s8.bf16 %v955
        %v2464 = vunpack.c.l.s8.bf16 %v956
        %v2465 = vunpack.c.l.s8.bf16 %v957
        %v2466 = vunpack.c.l.s8.bf16 %v958
        %v2467 = vunpack.c.l.s8.bf16 %v959
        %v2468 = vunpack.c.h.s8.bf16 %v956
        %v2469 = vunpack.c.h.s8.bf16 %v957
        %v2470 = vunpack.c.h.s8.bf16 %v958
        %v2471 = vunpack.c.h.s8.bf16 %v959
        %v2472 = vunpack.c.l.s8.bf16 %v960
        %v2473 = vunpack.c.l.s8.bf16 %v961
        %v2474 = vunpack.c.l.s8.bf16 %v962
        %v2475 = vunpack.c.l.s8.bf16 %v963
        %v2476 = vunpack.c.h.s8.bf16 %v960
        %v2477 = vunpack.c.h.s8.bf16 %v961
        %v2478 = vunpack.c.h.s8.bf16 %v962
        %v2479 = vunpack.c.h.s8.bf16 %v963
        %v2480 = vunpack.c.l.s8.bf16 %v964
        %v2481 = vunpack.c.l.s8.bf16 %v965
        %v2482 = vunpack.c.l.s8.bf16 %v966
        %v2483 = vunpack.c.l.s8.bf16 %v967
        %v2484 = vunpack.c.h.s8.bf16 %v964
        %v2485 = vunpack.c.h.s8.bf16 %v965
        %v2486 = vunpack.c.h.s8.bf16 %v966
        %v2487 = vunpack.c.h.s8.bf16 %v967
        %v2488 = vunpack.c.l.s8.bf16 %v968
        %v2489 = vunpack.c.l.s8.bf16 %v969
        %v2490 = vunpack.c.l.s8.bf16 %v970
        %v2491 = vunpack.c.l.s8.bf16 %v971
        %v2492 = vunpack.c.h.s8.bf16 %v968
        %v2493 = vunpack.c.h.s8.bf16 %v969
        %v2494 = vunpack.c.h.s8.bf16 %v970
        %v2495 = vunpack.c.h.s8.bf16 %v971
        %v2496 = vunpack.c.l.s8.bf16 %v972
        %v2497 = vunpack.c.l.s8.bf16 %v973
        %v2498 = vunpack.c.l.s8.bf16 %v974
        %v2499 = vunpack.c.l.s8.bf16 %v975
        %v2500 = vunpack.c.h.s8.bf16 %v972
        %v2501 = vunpack.c.h.s8.bf16 %v973
        %v2502 = vunpack.c.h.s8.bf16 %v974
        %v2503 = vunpack.c.h.s8.bf16 %v975
        %v2504 = vunpack.c.l.s8.bf16 %v976
        %v2505 = vunpack.c.l.s8.bf16 %v977
        %v2506 = vunpack.c.l.s8.bf16 %v978
        %v2507 = vunpack.c.l.s8.bf16 %v979
        %v2508 = vunpack.c.h.s8.bf16 %v976
        %v2509 = vunpack.c.h.s8.bf16 %v977
        %v2510 = vunpack.c.h.s8.bf16 %v978
        %v2511 = vunpack.c.h.s8.bf16 %v979
        %v2512 = vunpack.c.l.s8.bf16 %v980
        %v2513 = vunpack.c.l.s8.bf16 %v981
        %v2514 = vunpack.c.l.s8.bf16 %v982
        %v2515 = vunpack.c.l.s8.bf16 %v983
        %v2516 = vunpack.c.h.s8.bf16 %v980
        %v2517 = vunpack.c.h.s8.bf16 %v981
        %v2518 = vunpack.c.h.s8.bf16 %v982
        %v2519 = vunpack.c.h.s8.bf16 %v983
        %v2520 = vunpack.c.l.s8.bf16 %v984
        %v2521 = vunpack.c.l.s8.bf16 %v985
        %v2522 = vunpack.c.l.s8.bf16 %v986
        %v2523 = vunpack.c.l.s8.bf16 %v987
        %v2524 = vunpack.c.h.s8.bf16 %v984
        %v2525 = vunpack.c.h.s8.bf16 %v985
        %v2526 = vunpack.c.h.s8.bf16 %v986
        %v2527 = vunpack.c.h.s8.bf16 %v987
        %v2528 = vunpack.c.l.s8.bf16 %v988
        %v2529 = vunpack.c.l.s8.bf16 %v989
        %v2530 = vunpack.c.l.s8.bf16 %v990
        %v2531 = vunpack.c.l.s8.bf16 %v991
        %v2532 = vunpack.c.h.s8.bf16 %v988
        %v2533 = vunpack.c.h.s8.bf16 %v989
        %v2534 = vunpack.c.h.s8.bf16 %v990
        %v2535 = vunpack.c.h.s8.bf16 %v991
        %v2536 = vunpack.c.l.s8.bf16 %v992
        %v2537 = vunpack.c.l.s8.bf16 %v993
        %v2538 = vunpack.c.l.s8.bf16 %v994
        %v2539 = vunpack.c.l.s8.bf16 %v995
        %v2540 = vunpack.c.h.s8.bf16 %v992
        %v2541 = vunpack.c.h.s8.bf16 %v993
        %v2542 = vunpack.c.h.s8.bf16 %v994
        %v2543 = vunpack.c.h.s8.bf16 %v995
        %v2544 = vunpack.c.l.s8.bf16 %v996
        %v2545 = vunpack.c.l.s8.bf16 %v997
        %v2546 = vunpack.c.l.s8.bf16 %v998
        %v2547 = vunpack.c.l.s8.bf16 %v999
        %v2548 = vunpack.c.h.s8.bf16 %v996
        %v2549 = vunpack.c.h.s8.bf16 %v997
        %v2550 = vunpack.c.h.s8.bf16 %v998
        %v2551 = vunpack.c.h.s8.bf16 %v999
        %v2552 = vunpack.c.l.s8.bf16 %v1000
        %v2553 = vunpack.c.l.s8.bf16 %v1001
        %v2554 = vunpack.c.l.s8.bf16 %v1002
        %v2555 = vunpack.c.l.s8.bf16 %v1003
        %v2556 = vunpack.c.h.s8.bf16 %v1000
        %v2557 = vunpack.c.h.s8.bf16 %v1001
        %v2558 = vunpack.c.h.s8.bf16 %v1002
        %v2559 = vunpack.c.h.s8.bf16 %v1003
        %v2560 = vunpack.c.l.s8.bf16 %v1004
        %v2561 = vunpack.c.l.s8.bf16 %v1005
        %v2562 = vunpack.c.l.s8.bf16 %v1006
        %v2563 = vunpack.c.l.s8.bf16 %v1007
        %v2564 = vunpack.c.h.s8.bf16 %v1004
        %v2565 = vunpack.c.h.s8.bf16 %v1005
        %v2566 = vunpack.c.h.s8.bf16 %v1006
        %v2567 = vunpack.c.h.s8.bf16 %v1007
        %v2568 = vunpack.c.l.s8.bf16 %v1008
        %v2569 = vunpack.c.l.s8.bf16 %v1009
        %v2570 = vunpack.c.l.s8.bf16 %v1010
        %v2571 = vunpack.c.l.s8.bf16 %v1011
        %v2572 = vunpack.c.h.s8.bf16 %v1008
        %v2573 = vunpack.c.h.s8.bf16 %v1009
        %v2574 = vunpack.c.h.s8.bf16 %v1010
        %v2575 = vunpack.c.h.s8.bf16 %v1011
        %v2576 = vunpack.c.l.s8.bf16 %v1012
        %v2577 = vunpack.c.l.s8.bf16 %v1013
        %v2578 = vunpack.c.l.s8.bf16 %v1014
        %v2579 = vunpack.c.l.s8.bf16 %v1015
        %v2580 = vunpack.c.h.s8.bf16 %v1012
        %v2581 = vunpack.c.h.s8.bf16 %v1013
        %v2582 = vunpack.c.h.s8.bf16 %v1014
        %v2583 = vunpack.c.h.s8.bf16 %v1015
        %v2584 = vld [vmem:[%s221] sm:$0xff]
        %v2585 = vld [vmem:[%s221 + $0x8] sm:$0xff]
        %v2586 = vld [vmem:[%s221 + $0x10] sm:$0xff]
        %v2587 = vld [vmem:[%s221 + $0x18] sm:$0xff]
        %v2588 = vld [vmem:[%s210] sm:$0xff]
        %v2589 = vld [vmem:[%s210 + $0x8] sm:$0xff]
        %v2590 = vld [vmem:[%s210 + $0x10] sm:$0xff]
        %v2591 = vld [vmem:[%s210 + $0x18] sm:$0xff]
        %v2592 = vld [vmem:[%s210 + $0x20] sm:$0xff]
        %v2593 = vld [vmem:[%s210 + $0x28] sm:$0xff]
        %v2594 = vld [vmem:[%s210 + $0x30] sm:$0xff]
        %v2595 = vld [vmem:[%s210 + $0x38] sm:$0xff]
        %v2596 = vld [vmem:[%s210 + $0x40] sm:$0xff]
        %v2597 = vld [vmem:[%s210 + $0x48] sm:$0xff]
        %v2598 = vld [vmem:[%s210 + $0x50] sm:$0xff]
        %v2599 = vld [vmem:[%s210 + $0x58] sm:$0xff]
        %v2600 = vld [vmem:[%s210 + $0x60] sm:$0xff]
        %v2601 = vld [vmem:[%s210 + $0x68] sm:$0xff]
        %v2602 = vld [vmem:[%s210 + $0x70] sm:$0xff]
        %v2603 = vld [vmem:[%s210 + $0x78] sm:$0xff]
        %v2604 = vld [vmem:[%s210 + $0x80] sm:$0xff]
        %v2605 = vld [vmem:[%s210 + $0x88] sm:$0xff]
        %v2606 = vld [vmem:[%s210 + $0x90] sm:$0xff]
        %v2607 = vld [vmem:[%s210 + $0x98] sm:$0xff]
        %v2608 = vld [vmem:[%s210 + $0xa0] sm:$0xff]
        %v2609 = vld [vmem:[%s210 + $0xa8] sm:$0xff]
        %v2610 = vld [vmem:[%s210 + $0xb0] sm:$0xff]
        %v2611 = vld [vmem:[%s210 + $0xb8] sm:$0xff]
        %v2612 = vld [vmem:[%s210 + $0xc0] sm:$0xf]
        %v2638 = vunpack.c.l.b16 %v2588
        %v2639 = vunpack.c.h.b16 %v2588
        %v2640 = vunpack.c.l.b16 %v2589
        %v2641 = vunpack.c.h.b16 %v2589
        %v2642 = vunpack.c.l.b16 %v2590
        %v2643 = vunpack.c.h.b16 %v2590
        %v2644 = vunpack.c.l.b16 %v2591
        %v2645 = vunpack.c.h.b16 %v2591
        %v2646 = vunpack.c.l.b16 %v2592
        %v2647 = vunpack.c.h.b16 %v2592
        %v2648 = vunpack.c.l.b16 %v2593
        %v2649 = vunpack.c.h.b16 %v2593
        %v2650 = vunpack.c.l.b16 %v2594
        %v2651 = vunpack.c.h.b16 %v2594
        %v2652 = vunpack.c.l.b16 %v2595
        %v2653 = vunpack.c.h.b16 %v2595
        %v2654 = vunpack.c.l.b16 %v2596
        %v2655 = vunpack.c.h.b16 %v2596
        %v2656 = vunpack.c.l.b16 %v2597
        %v2657 = vunpack.c.h.b16 %v2597
        %v2658 = vunpack.c.l.b16 %v2598
        %v2659 = vunpack.c.h.b16 %v2598
        %v2660 = vunpack.c.l.b16 %v2599
        %v2661 = vunpack.c.h.b16 %v2599
        %v2662 = vunpack.c.l.b16 %v2600
        %v2663 = vunpack.c.h.b16 %v2600
        %v2664 = vunpack.c.l.b16 %v2601
        %v2665 = vunpack.c.h.b16 %v2601
        %v2666 = vunpack.c.l.b16 %v2602
        %v2667 = vunpack.c.h.b16 %v2602
        %v2668 = vunpack.c.l.b16 %v2603
        %v2669 = vunpack.c.h.b16 %v2603
        %v2670 = vunpack.c.l.b16 %v2604
        %v2671 = vunpack.c.h.b16 %v2604
        %v2672 = vunpack.c.l.b16 %v2605
        %v2673 = vunpack.c.h.b16 %v2605
        %v2674 = vunpack.c.l.b16 %v2606
        %v2675 = vunpack.c.h.b16 %v2606
        %v2676 = vunpack.c.l.b16 %v2607
        %v2677 = vunpack.c.h.b16 %v2607
        %v2678 = vunpack.c.l.b16 %v2608
        %v2679 = vunpack.c.h.b16 %v2608
        %v2680 = vunpack.c.l.b16 %v2609
        %v2681 = vunpack.c.h.b16 %v2609
        %v2682 = vunpack.c.l.b16 %v2610
        %v2683 = vunpack.c.h.b16 %v2610
        %v2684 = vunpack.c.l.b16 %v2611
        %v2685 = vunpack.c.h.b16 %v2611
        %v2686 = vunpack.c.l.b16 %v2612
        %v2687 = vpack.c.b16 %v2638, %v2638
        %v2688 = vpack.c.b16 %v2639, %v2639
        %v2689 = vpack.c.b16 %v2640, %v2640
        %v2690 = vpack.c.b16 %v2641, %v2641
        %v2691 = vpack.c.b16 %v2642, %v2642
        %v2692 = vpack.c.b16 %v2643, %v2643
        %v2693 = vpack.c.b16 %v2644, %v2644
        %v2694 = vpack.c.b16 %v2645, %v2645
        %v2695 = vpack.c.b16 %v2646, %v2646
        %v2696 = vpack.c.b16 %v2647, %v2647
        %v2697 = vpack.c.b16 %v2648, %v2648
        %v2698 = vpack.c.b16 %v2649, %v2649
        %v2699 = vpack.c.b16 %v2650, %v2650
        %v2700 = vpack.c.b16 %v2651, %v2651
        %v2701 = vpack.c.b16 %v2652, %v2652
        %v2702 = vpack.c.b16 %v2653, %v2653
        %v2703 = vpack.c.b16 %v2654, %v2654
        %v2704 = vpack.c.b16 %v2655, %v2655
        %v2705 = vpack.c.b16 %v2656, %v2656
        %v2706 = vpack.c.b16 %v2657, %v2657
        %v2707 = vpack.c.b16 %v2658, %v2658
        %v2708 = vpack.c.b16 %v2659, %v2659
        %v2709 = vpack.c.b16 %v2660, %v2660
        %v2710 = vpack.c.b16 %v2661, %v2661
        %v2711 = vpack.c.b16 %v2662, %v2662
        %v2712 = vpack.c.b16 %v2663, %v2663
        %v2713 = vpack.c.b16 %v2664, %v2664
        %v2714 = vpack.c.b16 %v2665, %v2665
        %v2715 = vpack.c.b16 %v2666, %v2666
        %v2716 = vpack.c.b16 %v2667, %v2667
        %v2717 = vpack.c.b16 %v2668, %v2668
        %v2718 = vpack.c.b16 %v2669, %v2669
        %v2719 = vpack.c.b16 %v2670, %v2670
        %v2720 = vpack.c.b16 %v2671, %v2671
        %v2721 = vpack.c.b16 %v2672, %v2672
        %v2722 = vpack.c.b16 %v2673, %v2673
        %v2723 = vpack.c.b16 %v2674, %v2674
        %v2724 = vpack.c.b16 %v2675, %v2675
        %v2725 = vpack.c.b16 %v2676, %v2676
        %v2726 = vpack.c.b16 %v2677, %v2677
        %v2727 = vpack.c.b16 %v2678, %v2678
        %v2728 = vpack.c.b16 %v2679, %v2679
        %v2729 = vpack.c.b16 %v2680, %v2680
        %v2730 = vpack.c.b16 %v2681, %v2681
        %v2731 = vpack.c.b16 %v2682, %v2682
        %v2732 = vpack.c.b16 %v2683, %v2683
        %v2733 = vpack.c.b16 %v2684, %v2684
        %v2734 = vpack.c.b16 %v2685, %v2685
        %v2735 = vpack.c.b16 %v2686, %v2686
        %2785 = vmatprep.subr.bf16.mxu0 %v1017
        %2786 = vmatpush1.bf16.msra.mxu0 %v1016
        %2787 = vmatprep.subr.bf16.mxu0 %v1021
        %2788 = vmatpush1.bf16.msra.mxu0 %v1020
        %2789 = vmatprep.subr.bf16.mxu0 %v1025
        %2790 = vmatpush1.bf16.msra.mxu0 %v1024
        %2791 = vmatprep.subr.bf16.mxu0 %v1029
        %2792 = vmatpush1.bf16.msra.mxu0 %v1028
        %2793 = vmatprep.subr.bf16.mxu0 %v1033
        %2794 = vmatpush1.bf16.msra.mxu0 %v1032
        %2795 = vmatprep.subr.bf16.mxu0 %v1037
        %2796 = vmatpush1.bf16.msra.mxu0 %v1036
        %2797 = vmatprep.subr.bf16.mxu0 %v1041
        %2798 = vmatpush1.bf16.msra.mxu0 %v1040
        %2799 = vmatprep.subr.bf16.mxu0 %v1045
        %2800 = vmatpush1.bf16.msra.mxu0 %v1044
        %2801 = vmatprep.subr.bf16.mxu0 %v1049
        %2802 = vmatpush1.bf16.msra.mxu0 %v1048
        %2803 = vmatprep.subr.bf16.mxu0 %v1053
        %2804 = vmatpush1.bf16.msra.mxu0 %v1052
        %2805 = vmatprep.subr.bf16.mxu0 %v1057
        %2806 = vmatpush1.bf16.msra.mxu0 %v1056
        %2807 = vmatprep.subr.bf16.mxu0 %v1061
        %2808 = vmatpush1.bf16.msra.mxu0 %v1060
        %2809 = vmatprep.subr.bf16.mxu0 %v1065
        %2810 = vmatpush1.bf16.msra.mxu0 %v1064
        %2811 = vmatprep.subr.bf16.mxu0 %v1069
        %2812 = vmatpush1.bf16.msra.mxu0 %v1068
        %2813 = vmatprep.subr.bf16.mxu0 %v1073
        %2814 = vmatpush1.bf16.msra.mxu0 %v1072
        %2815 = vmatprep.subr.bf16.mxu0 %v1077
        %2816 = vmatpush1.bf16.msra.mxu0 %v1076
        %2817 = vmatprep.mubr.bf16.mxu0 %v2688
        %2818 = vmatmul.mubr.bf16.gmra.mrb[0].mxu0 %v2687
        %v2819 = vpop.f32.mrb[0].mxu0
        %v2820 = vadd.f32 0.0, %v2819
        %v2821 = vpop.f32.mrb[0].mxu0
        %v2822 = vadd.f32 0.0, %v2821
        %v2823 = vpop.f32.mrb[0].mxu0
        %v2824 = vpop.f32.mrb[0].mxu0
        %2825 = vdwg.mxu0
        %2826 = vmatprep.subr.bf16.mxu0 %v1081
        %2827 = vmatpush1.bf16.msra.mxu0 %v1080
        %2828 = vmatprep.subr.bf16.mxu0 %v1085
        %2829 = vmatpush1.bf16.msra.mxu0 %v1084
        %2830 = vmatprep.subr.bf16.mxu0 %v1089
        %2831 = vmatpush1.bf16.msra.mxu0 %v1088
        %2832 = vmatprep.subr.bf16.mxu0 %v1093
        %2833 = vmatpush1.bf16.msra.mxu0 %v1092
        %2834 = vmatprep.subr.bf16.mxu0 %v1097
        %2835 = vmatpush1.bf16.msra.mxu0 %v1096
        %2836 = vmatprep.subr.bf16.mxu0 %v1101
        %2837 = vmatpush1.bf16.msra.mxu0 %v1100
        %2838 = vmatprep.subr.bf16.mxu0 %v1105
        %2839 = vmatpush1.bf16.msra.mxu0 %v1104
        %2840 = vmatprep.subr.bf16.mxu0 %v1109
        %2841 = vmatpush1.bf16.msra.mxu0 %v1108
        %2842 = vmatprep.subr.bf16.mxu0 %v1113
        %2843 = vmatpush1.bf16.msra.mxu0 %v1112
        %2844 = vmatprep.subr.bf16.mxu0 %v1117
        %2845 = vmatpush1.bf16.msra.mxu0 %v1116
        %2846 = vmatprep.subr.bf16.mxu0 %v1121
        %2847 = vmatpush1.bf16.msra.mxu0 %v1120
        %2848 = vmatprep.subr.bf16.mxu0 %v1125
        %2849 = vmatpush1.bf16.msra.mxu0 %v1124
        %2850 = vmatprep.subr.bf16.mxu0 %v1129
        %2851 = vmatpush1.bf16.msra.mxu0 %v1128
        %2852 = vmatprep.subr.bf16.mxu0 %v1133
        %2853 = vmatpush1.bf16.msra.mxu0 %v1132
        %2854 = vmatprep.subr.bf16.mxu0 %v1137
        %2855 = vmatpush1.bf16.msra.mxu0 %v1136
        %2856 = vmatprep.subr.bf16.mxu0 %v1141
        %2857 = vmatpush1.bf16.msra.mxu0 %v1140
        %2858 = vmatprep.mubr.bf16.mxu0 %v2690
        %2859 = vmatmul.mubr.bf16.gmra.mrb[0].mxu0 %v2689
        %v2860 = vpop.f32.mrb[0].mxu0
        %v2861 = vadd.f32 %v2820, %v2860
        %v2862 = vpop.f32.mrb[0].mxu0
        %v2863 = vadd.f32 %v2822, %v2862
        %v2864 = vpop.f32.mrb[0].mxu0
        %v2865 = vpop.f32.mrb[0].mxu0
        %2866 = vdwg.mxu0
        %2867 = vmatprep.subr.bf16.mxu0 %v1145
        %2868 = vmatpush1.bf16.msra.mxu0 %v1144
        %2869 = vmatprep.subr.bf16.mxu0 %v1149
        %2870 = vmatpush1.bf16.msra.mxu0 %v1148
        %2871 = vmatprep.subr.bf16.mxu0 %v1153
        %2872 = vmatpush1.bf16.msra.mxu0 %v1152
        %2873 = vmatprep.subr.bf16.mxu0 %v1157
        %2874 = vmatpush1.bf16.msra.mxu0 %v1156
        %2875 = vmatprep.subr.bf16.mxu0 %v1161
        %2876 = vmatpush1.bf16.msra.mxu0 %v1160
        %2877 = vmatprep.subr.bf16.mxu0 %v1165
        %2878 = vmatpush1.bf16.msra.mxu0 %v1164
        %2879 = vmatprep.subr.bf16.mxu0 %v1169
        %2880 = vmatpush1.bf16.msra.mxu0 %v1168
        %2881 = vmatprep.subr.bf16.mxu0 %v1173
        %2882 = vmatpush1.bf16.msra.mxu0 %v1172
        %2883 = vmatprep.subr.bf16.mxu0 %v1177
        %2884 = vmatpush1.bf16.msra.mxu0 %v1176
        %2885 = vmatprep.subr.bf16.mxu0 %v1181
        %2886 = vmatpush1.bf16.msra.mxu0 %v1180
        %2887 = vmatprep.subr.bf16.mxu0 %v1185
        %2888 = vmatpush1.bf16.msra.mxu0 %v1184
        %2889 = vmatprep.subr.bf16.mxu0 %v1189
        %2890 = vmatpush1.bf16.msra.mxu0 %v1188
        %2891 = vmatprep.subr.bf16.mxu0 %v1193
        %2892 = vmatpush1.bf16.msra.mxu0 %v1192
        %2893 = vmatprep.subr.bf16.mxu0 %v1197
        %2894 = vmatpush1.bf16.msra.mxu0 %v1196
        %2895 = vmatprep.subr.bf16.mxu0 %v1201
        %2896 = vmatpush1.bf16.msra.mxu0 %v1200
        %2897 = vmatprep.subr.bf16.mxu0 %v1205
        %2898 = vmatpush1.bf16.msra.mxu0 %v1204
        %2899 = vmatprep.mubr.bf16.mxu0 %v2692
        %2900 = vmatmul.mubr.bf16.gmra.mrb[0].mxu0 %v2691
        %v2901 = vpop.f32.mrb[0].mxu0
        %v2902 = vadd.f32 %v2861, %v2901
        %v2903 = vpop.f32.mrb[0].mxu0
        %v2904 = vadd.f32 %v2863, %v2903
        %v2905 = vpop.f32.mrb[0].mxu0
        %v2906 = vpop.f32.mrb[0].mxu0
        %2907 = vdwg.mxu0
        %2908 = vmatprep.subr.bf16.mxu0 %v1209
        %2909 = vmatpush1.bf16.msra.mxu0 %v1208
        %2910 = vmatprep.subr.bf16.mxu0 %v1213
        %2911 = vmatpush1.bf16.msra.mxu0 %v1212
        %2912 = vmatprep.subr.bf16.mxu0 %v1217
        %2913 = vmatpush1.bf16.msra.mxu0 %v1216
        %2914 = vmatprep.subr.bf16.mxu0 %v1221
        %2915 = vmatpush1.bf16.msra.mxu0 %v1220
        %2916 = vmatprep.subr.bf16.mxu0 %v1225
        %2917 = vmatpush1.bf16.msra.mxu0 %v1224
        %2918 = vmatprep.subr.bf16.mxu0 %v1229
        %2919 = vmatpush1.bf16.msra.mxu0 %v1228
        %2920 = vmatprep.subr.bf16.mxu0 %v1233
        %2921 = vmatpush1.bf16.msra.mxu0 %v1232
        %2922 = vmatprep.subr.bf16.mxu0 %v1237
        %2923 = vmatpush1.bf16.msra.mxu0 %v1236
        %2924 = vmatprep.subr.bf16.mxu0 %v1241
        %2925 = vmatpush1.bf16.msra.mxu0 %v1240
        %2926 = vmatprep.subr.bf16.mxu0 %v1245
        %2927 = vmatpush1.bf16.msra.mxu0 %v1244
        %2928 = vmatprep.subr.bf16.mxu0 %v1249
        %2929 = vmatpush1.bf16.msra.mxu0 %v1248
        %2930 = vmatprep.subr.bf16.mxu0 %v1253
        %2931 = vmatpush1.bf16.msra.mxu0 %v1252
        %2932 = vmatprep.subr.bf16.mxu0 %v1257
        %2933 = vmatpush1.bf16.msra.mxu0 %v1256
        %2934 = vmatprep.subr.bf16.mxu0 %v1261
        %2935 = vmatpush1.bf16.msra.mxu0 %v1260
        %2936 = vmatprep.subr.bf16.mxu0 %v1265
        %2937 = vmatpush1.bf16.msra.mxu0 %v1264
        %2938 = vmatprep.subr.bf16.mxu0 %v1269
        %2939 = vmatpush1.bf16.msra.mxu0 %v1268
        %2940 = vmatprep.mubr.bf16.mxu0 %v2694
        %2941 = vmatmul.mubr.bf16.gmra.mrb[0].mxu0 %v2693
        %v2942 = vpop.f32.mrb[0].mxu0
        %v2943 = vadd.f32 %v2902, %v2942
        %v2944 = vpop.f32.mrb[0].mxu0
        %v2945 = vadd.f32 %v2904, %v2944
        %v2946 = vpop.f32.mrb[0].mxu0
        %v2947 = vpop.f32.mrb[0].mxu0
        %2948 = vdwg.mxu0
        %2949 = vmatprep.subr.bf16.mxu0 %v1273
        %2950 = vmatpush1.bf16.msra.mxu0 %v1272
        %2951 = vmatprep.subr.bf16.mxu0 %v1277
        %2952 = vmatpush1.bf16.msra.mxu0 %v1276
        %2953 = vmatprep.subr.bf16.mxu0 %v1281
        %2954 = vmatpush1.bf16.msra.mxu0 %v1280
        %2955 = vmatprep.subr.bf16.mxu0 %v1285
        %2956 = vmatpush1.bf16.msra.mxu0 %v1284
        %2957 = vmatprep.subr.bf16.mxu0 %v1289
        %2958 = vmatpush1.bf16.msra.mxu0 %v1288
        %2959 = vmatprep.subr.bf16.mxu0 %v1293
        %2960 = vmatpush1.bf16.msra.mxu0 %v1292
        %2961 = vmatprep.subr.bf16.mxu0 %v1297
        %2962 = vmatpush1.bf16.msra.mxu0 %v1296
        %2963 = vmatprep.subr.bf16.mxu0 %v1301
        %2964 = vmatpush1.bf16.msra.mxu0 %v1300
        %2965 = vmatprep.subr.bf16.mxu0 %v1305
        %2966 = vmatpush1.bf16.msra.mxu0 %v1304
        %2967 = vmatprep.subr.bf16.mxu0 %v1309
        %2968 = vmatpush1.bf16.msra.mxu0 %v1308
        %2969 = vmatprep.subr.bf16.mxu0 %v1313
        %2970 = vmatpush1.bf16.msra.mxu0 %v1312
        %2971 = vmatprep.subr.bf16.mxu0 %v1317
        %2972 = vmatpush1.bf16.msra.mxu0 %v1316
        %2973 = vmatprep.subr.bf16.mxu0 %v1321
        %2974 = vmatpush1.bf16.msra.mxu0 %v1320
        %2975 = vmatprep.subr.bf16.mxu0 %v1325
        %2976 = vmatpush1.bf16.msra.mxu0 %v1324
        %2977 = vmatprep.subr.bf16.mxu0 %v1329
        %2978 = vmatpush1.bf16.msra.mxu0 %v1328
        %2979 = vmatprep.subr.bf16.mxu0 %v1333
        %2980 = vmatpush1.bf16.msra.mxu0 %v1332
        %2981 = vmatprep.mubr.bf16.mxu0 %v2696
        %2982 = vmatmul.mubr.bf16.gmra.mrb[0].mxu0 %v2695
        %v2983 = vpop.f32.mrb[0].mxu0
        %v2984 = vadd.f32 %v2943, %v2983
        %v2985 = vpop.f32.mrb[0].mxu0
        %v2986 = vadd.f32 %v2945, %v2985
        %v2987 = vpop.f32.mrb[0].mxu0
        %v2988 = vpop.f32.mrb[0].mxu0
        %2989 = vdwg.mxu0
        %2990 = vmatprep.subr.bf16.mxu0 %v1337
        %2991 = vmatpush1.bf16.msra.mxu0 %v1336
        %2992 = vmatprep.subr.bf16.mxu0 %v1341
        %2993 = vmatpush1.bf16.msra.mxu0 %v1340
        %2994 = vmatprep.subr.bf16.mxu0 %v1345
        %2995 = vmatpush1.bf16.msra.mxu0 %v1344
        %2996 = vmatprep.subr.bf16.mxu0 %v1349
        %2997 = vmatpush1.bf16.msra.mxu0 %v1348
        %2998 = vmatprep.subr.bf16.mxu0 %v1353
        %2999 = vmatpush1.bf16.msra.mxu0 %v1352
        %3000 = vmatprep.subr.bf16.mxu0 %v1357
        %3001 = vmatpush1.bf16.msra.mxu0 %v1356
        %3002 = vmatprep.subr.bf16.mxu0 %v1361
        %3003 = vmatpush1.bf16.msra.mxu0 %v1360
        %3004 = vmatprep.subr.bf16.mxu0 %v1365
        %3005 = vmatpush1.bf16.msra.mxu0 %v1364
        %3006 = vmatprep.subr.bf16.mxu0 %v1369
        %3007 = vmatpush1.bf16.msra.mxu0 %v1368
        %3008 = vmatprep.subr.bf16.mxu0 %v1373
        %3009 = vmatpush1.bf16.msra.mxu0 %v1372
        %3010 = vmatprep.subr.bf16.mxu0 %v1377
        %3011 = vmatpush1.bf16.msra.mxu0 %v1376
        %3012 = vmatprep.subr.bf16.mxu0 %v1381
        %3013 = vmatpush1.bf16.msra.mxu0 %v1380
        %3014 = vmatprep.subr.bf16.mxu0 %v1385
        %3015 = vmatpush1.bf16.msra.mxu0 %v1384
        %3016 = vmatprep.subr.bf16.mxu0 %v1389
        %3017 = vmatpush1.bf16.msra.mxu0 %v1388
        %3018 = vmatprep.subr.bf16.mxu0 %v1393
        %3019 = vmatpush1.bf16.msra.mxu0 %v1392
        %3020 = vmatprep.subr.bf16.mxu0 %v1397
        %3021 = vmatpush1.bf16.msra.mxu0 %v1396
        %3022 = vmatprep.mubr.bf16.mxu0 %v2698
        %3023 = vmatmul.mubr.bf16.gmra.mrb[0].mxu0 %v2697
        %v3024 = vpop.f32.mrb[0].mxu0
        %v3025 = vadd.f32 %v2984, %v3024
        %v3026 = vpop.f32.mrb[0].mxu0
        %v3027 = vadd.f32 %v2986, %v3026
        %v3028 = vpop.f32.mrb[0].mxu0
        %v3029 = vpop.f32.mrb[0].mxu0
        %3030 = vdwg.mxu0
        %3031 = vmatprep.subr.bf16.mxu0 %v1401
        %3032 = vmatpush1.bf16.msra.mxu0 %v1400
        %3033 = vmatprep.subr.bf16.mxu0 %v1405
        %3034 = vmatpush1.bf16.msra.mxu0 %v1404
        %3035 = vmatprep.subr.bf16.mxu0 %v1409
        %3036 = vmatpush1.bf16.msra.mxu0 %v1408
        %3037 = vmatprep.subr.bf16.mxu0 %v1413
        %3038 = vmatpush1.bf16.msra.mxu0 %v1412
        %3039 = vmatprep.subr.bf16.mxu0 %v1417
        %3040 = vmatpush1.bf16.msra.mxu0 %v1416
        %3041 = vmatprep.subr.bf16.mxu0 %v1421
        %3042 = vmatpush1.bf16.msra.mxu0 %v1420
        %3043 = vmatprep.subr.bf16.mxu0 %v1425
        %3044 = vmatpush1.bf16.msra.mxu0 %v1424
        %3045 = vmatprep.subr.bf16.mxu0 %v1429
        %3046 = vmatpush1.bf16.msra.mxu0 %v1428
        %3047 = vmatprep.subr.bf16.mxu0 %v1433
        %3048 = vmatpush1.bf16.msra.mxu0 %v1432
        %3049 = vmatprep.subr.bf16.mxu0 %v1437
        %3050 = vmatpush1.bf16.msra.mxu0 %v1436
        %3051 = vmatprep.subr.bf16.mxu0 %v1441
        %3052 = vmatpush1.bf16.msra.mxu0 %v1440
        %3053 = vmatprep.subr.bf16.mxu0 %v1445
        %3054 = vmatpush1.bf16.msra.mxu0 %v1444
        %3055 = vmatprep.subr.bf16.mxu0 %v1449
        %3056 = vmatpush1.bf16.msra.mxu0 %v1448
        %3057 = vmatprep.subr.bf16.mxu0 %v1453
        %3058 = vmatpush1.bf16.msra.mxu0 %v1452
        %3059 = vmatprep.subr.bf16.mxu0 %v1457
        %3060 = vmatpush1.bf16.msra.mxu0 %v1456
        %3061 = vmatprep.subr.bf16.mxu0 %v1461
        %3062 = vmatpush1.bf16.msra.mxu0 %v1460
        %3063 = vmatprep.mubr.bf16.mxu0 %v2700
        %3064 = vmatmul.mubr.bf16.gmra.mrb[0].mxu0 %v2699
        %v3065 = vpop.f32.mrb[0].mxu0
        %v3066 = vadd.f32 %v3025, %v3065
        %v3067 = vpop.f32.mrb[0].mxu0
        %v3068 = vadd.f32 %v3027, %v3067
        %v3069 = vpop.f32.mrb[0].mxu0
        %v3070 = vpop.f32.mrb[0].mxu0
        %3071 = vdwg.mxu0
        %3072 = vmatprep.subr.bf16.mxu0 %v1465
        %3073 = vmatpush1.bf16.msra.mxu0 %v1464
        %3074 = vmatprep.subr.bf16.mxu0 %v1469
        %3075 = vmatpush1.bf16.msra.mxu0 %v1468
        %3076 = vmatprep.subr.bf16.mxu0 %v1473
        %3077 = vmatpush1.bf16.msra.mxu0 %v1472
        %3078 = vmatprep.subr.bf16.mxu0 %v1477
        %3079 = vmatpush1.bf16.msra.mxu0 %v1476
        %3080 = vmatprep.subr.bf16.mxu0 %v1481
        %3081 = vmatpush1.bf16.msra.mxu0 %v1480
        %3082 = vmatprep.subr.bf16.mxu0 %v1485
        %3083 = vmatpush1.bf16.msra.mxu0 %v1484
        %3084 = vmatprep.subr.bf16.mxu0 %v1489
        %3085 = vmatpush1.bf16.msra.mxu0 %v1488
        %3086 = vmatprep.subr.bf16.mxu0 %v1493
        %3087 = vmatpush1.bf16.msra.mxu0 %v1492
        %3088 = vmatprep.subr.bf16.mxu0 %v1497
        %3089 = vmatpush1.bf16.msra.mxu0 %v1496
        %3090 = vmatprep.subr.bf16.mxu0 %v1501
        %3091 = vmatpush1.bf16.msra.mxu0 %v1500
        %3092 = vmatprep.subr.bf16.mxu0 %v1505
        %3093 = vmatpush1.bf16.msra.mxu0 %v1504
        %3094 = vmatprep.subr.bf16.mxu0 %v1509
        %3095 = vmatpush1.bf16.msra.mxu0 %v1508
        %3096 = vmatprep.subr.bf16.mxu0 %v1513
        %3097 = vmatpush1.bf16.msra.mxu0 %v1512
        %3098 = vmatprep.subr.bf16.mxu0 %v1517
        %3099 = vmatpush1.bf16.msra.mxu0 %v1516
        %3100 = vmatprep.subr.bf16.mxu0 %v1521
        %3101 = vmatpush1.bf16.msra.mxu0 %v1520
        %3102 = vmatprep.subr.bf16.mxu0 %v1525
        %3103 = vmatpush1.bf16.msra.mxu0 %v1524
        %3104 = vmatprep.mubr.bf16.mxu0 %v2702
        %3105 = vmatmul.mubr.bf16.gmra.mrb[0].mxu0 %v2701
        %v3106 = vpop.f32.mrb[0].mxu0
        %v3107 = vadd.f32 %v3066, %v3106
        %v3108 = vpop.f32.mrb[0].mxu0
        %v3109 = vadd.f32 %v3068, %v3108
        %v3110 = vpop.f32.mrb[0].mxu0
        %v3111 = vpop.f32.mrb[0].mxu0
        %3112 = vdwg.mxu0
        %3113 = vmatprep.subr.bf16.mxu0 %v1529
        %3114 = vmatpush1.bf16.msra.mxu0 %v1528
        %3115 = vmatprep.subr.bf16.mxu0 %v1533
        %3116 = vmatpush1.bf16.msra.mxu0 %v1532
        %3117 = vmatprep.subr.bf16.mxu0 %v1537
        %3118 = vmatpush1.bf16.msra.mxu0 %v1536
        %3119 = vmatprep.subr.bf16.mxu0 %v1541
        %3120 = vmatpush1.bf16.msra.mxu0 %v1540
        %3121 = vmatprep.subr.bf16.mxu0 %v1545
        %3122 = vmatpush1.bf16.msra.mxu0 %v1544
        %3123 = vmatprep.subr.bf16.mxu0 %v1549
        %3124 = vmatpush1.bf16.msra.mxu0 %v1548
        %3125 = vmatprep.subr.bf16.mxu0 %v1553
        %3126 = vmatpush1.bf16.msra.mxu0 %v1552
        %3127 = vmatprep.subr.bf16.mxu0 %v1557
        %3128 = vmatpush1.bf16.msra.mxu0 %v1556
        %3129 = vmatprep.subr.bf16.mxu0 %v1561
        %3130 = vmatpush1.bf16.msra.mxu0 %v1560
        %3131 = vmatprep.subr.bf16.mxu0 %v1565
        %3132 = vmatpush1.bf16.msra.mxu0 %v1564
        %3133 = vmatprep.subr.bf16.mxu0 %v1569
        %3134 = vmatpush1.bf16.msra.mxu0 %v1568
        %3135 = vmatprep.subr.bf16.mxu0 %v1573
        %3136 = vmatpush1.bf16.msra.mxu0 %v1572
        %3137 = vmatprep.subr.bf16.mxu0 %v1577
        %3138 = vmatpush1.bf16.msra.mxu0 %v1576
        %3139 = vmatprep.subr.bf16.mxu0 %v1581
        %3140 = vmatpush1.bf16.msra.mxu0 %v1580
        %3141 = vmatprep.subr.bf16.mxu0 %v1585
        %3142 = vmatpush1.bf16.msra.mxu0 %v1584
        %3143 = vmatprep.subr.bf16.mxu0 %v1589
        %3144 = vmatpush1.bf16.msra.mxu0 %v1588
        %3145 = vmatprep.mubr.bf16.mxu0 %v2704
        %3146 = vmatmul.mubr.bf16.gmra.mrb[0].mxu0 %v2703
        %v3147 = vpop.f32.mrb[0].mxu0
        %v3148 = vadd.f32 %v3107, %v3147
        %v3149 = vpop.f32.mrb[0].mxu0
        %v3150 = vadd.f32 %v3109, %v3149
        %v3151 = vpop.f32.mrb[0].mxu0
        %v3152 = vpop.f32.mrb[0].mxu0
        %3153 = vdwg.mxu0
        %3154 = vmatprep.subr.bf16.mxu0 %v1593
        %3155 = vmatpush1.bf16.msra.mxu0 %v1592
        %3156 = vmatprep.subr.bf16.mxu0 %v1597
        %3157 = vmatpush1.bf16.msra.mxu0 %v1596
        %3158 = vmatprep.subr.bf16.mxu0 %v1601
        %3159 = vmatpush1.bf16.msra.mxu0 %v1600
        %3160 = vmatprep.subr.bf16.mxu0 %v1605
        %3161 = vmatpush1.bf16.msra.mxu0 %v1604
        %3162 = vmatprep.subr.bf16.mxu0 %v1609
        %3163 = vmatpush1.bf16.msra.mxu0 %v1608
        %3164 = vmatprep.subr.bf16.mxu0 %v1613
        %3165 = vmatpush1.bf16.msra.mxu0 %v1612
        %3166 = vmatprep.subr.bf16.mxu0 %v1617
        %3167 = vmatpush1.bf16.msra.mxu0 %v1616
        %3168 = vmatprep.subr.bf16.mxu0 %v1621
        %3169 = vmatpush1.bf16.msra.mxu0 %v1620
        %3170 = vmatprep.subr.bf16.mxu0 %v1625
        %3171 = vmatpush1.bf16.msra.mxu0 %v1624
        %3172 = vmatprep.subr.bf16.mxu0 %v1629
        %3173 = vmatpush1.bf16.msra.mxu0 %v1628
        %3174 = vmatprep.subr.bf16.mxu0 %v1633
        %3175 = vmatpush1.bf16.msra.mxu0 %v1632
        %3176 = vmatprep.subr.bf16.mxu0 %v1637
        %3177 = vmatpush1.bf16.msra.mxu0 %v1636
        %3178 = vmatprep.subr.bf16.mxu0 %v1641
        %3179 = vmatpush1.bf16.msra.mxu0 %v1640
        %3180 = vmatprep.subr.bf16.mxu0 %v1645
        %3181 = vmatpush1.bf16.msra.mxu0 %v1644
        %3182 = vmatprep.subr.bf16.mxu0 %v1649
        %3183 = vmatpush1.bf16.msra.mxu0 %v1648
        %3184 = vmatprep.subr.bf16.mxu0 %v1653
        %3185 = vmatpush1.bf16.msra.mxu0 %v1652
        %3186 = vmatprep.mubr.bf16.mxu0 %v2706
        %3187 = vmatmul.mubr.bf16.gmra.mrb[0].mxu0 %v2705
        %v3188 = vpop.f32.mrb[0].mxu0
        %v3189 = vadd.f32 %v3148, %v3188
        %v3190 = vpop.f32.mrb[0].mxu0
        %v3191 = vadd.f32 %v3150, %v3190
        %v3192 = vpop.f32.mrb[0].mxu0
        %v3193 = vpop.f32.mrb[0].mxu0
        %3194 = vdwg.mxu0
        %3195 = vmatprep.subr.bf16.mxu0 %v1657
        %3196 = vmatpush1.bf16.msra.mxu0 %v1656
        %3197 = vmatprep.subr.bf16.mxu0 %v1661
        %3198 = vmatpush1.bf16.msra.mxu0 %v1660
        %3199 = vmatprep.subr.bf16.mxu0 %v1665
        %3200 = vmatpush1.bf16.msra.mxu0 %v1664
        %3201 = vmatprep.subr.bf16.mxu0 %v1669
        %3202 = vmatpush1.bf16.msra.mxu0 %v1668
        %3203 = vmatprep.subr.bf16.mxu0 %v1673
        %3204 = vmatpush1.bf16.msra.mxu0 %v1672
        %3205 = vmatprep.subr.bf16.mxu0 %v1677
        %3206 = vmatpush1.bf16.msra.mxu0 %v1676
        %3207 = vmatprep.subr.bf16.mxu0 %v1681
        %3208 = vmatpush1.bf16.msra.mxu0 %v1680
        %3209 = vmatprep.subr.bf16.mxu0 %v1685
        %3210 = vmatpush1.bf16.msra.mxu0 %v1684
        %3211 = vmatprep.subr.bf16.mxu0 %v1689
        %3212 = vmatpush1.bf16.msra.mxu0 %v1688
        %3213 = vmatprep.subr.bf16.mxu0 %v1693
        %3214 = vmatpush1.bf16.msra.mxu0 %v1692
        %3215 = vmatprep.subr.bf16.mxu0 %v1697
        %3216 = vmatpush1.bf16.msra.mxu0 %v1696
        %3217 = vmatprep.subr.bf16.mxu0 %v1701
        %3218 = vmatpush1.bf16.msra.mxu0 %v1700
        %3219 = vmatprep.subr.bf16.mxu0 %v1705
        %3220 = vmatpush1.bf16.msra.mxu0 %v1704
        %3221 = vmatprep.subr.bf16.mxu0 %v1709
        %3222 = vmatpush1.bf16.msra.mxu0 %v1708
        %3223 = vmatprep.subr.bf16.mxu0 %v1713
        %3224 = vmatpush1.bf16.msra.mxu0 %v1712
        %3225 = vmatprep.subr.bf16.mxu0 %v1717
        %3226 = vmatpush1.bf16.msra.mxu0 %v1716
        %3227 = vmatprep.mubr.bf16.mxu0 %v2708
        %3228 = vmatmul.mubr.bf16.gmra.mrb[0].mxu0 %v2707
        %v3229 = vpop.f32.mrb[0].mxu0
        %v3230 = vadd.f32 %v3189, %v3229
        %v3231 = vpop.f32.mrb[0].mxu0
        %v3232 = vadd.f32 %v3191, %v3231
        %v3233 = vpop.f32.mrb[0].mxu0
        %v3234 = vpop.f32.mrb[0].mxu0
        %3235 = vdwg.mxu0
        %3236 = vmatprep.subr.bf16.mxu0 %v1721
        %3237 = vmatpush1.bf16.msra.mxu0 %v1720
        %3238 = vmatprep.subr.bf16.mxu0 %v1725
        %3239 = vmatpush1.bf16.msra.mxu0 %v1724
        %3240 = vmatprep.subr.bf16.mxu0 %v1729
        %3241 = vmatpush1.bf16.msra.mxu0 %v1728
        %3242 = vmatprep.subr.bf16.mxu0 %v1733
        %3243 = vmatpush1.bf16.msra.mxu0 %v1732
        %3244 = vmatprep.subr.bf16.mxu0 %v1737
        %3245 = vmatpush1.bf16.msra.mxu0 %v1736
        %3246 = vmatprep.subr.bf16.mxu0 %v1741
        %3247 = vmatpush1.bf16.msra.mxu0 %v1740
        %3248 = vmatprep.subr.bf16.mxu0 %v1745
        %3249 = vmatpush1.bf16.msra.mxu0 %v1744
        %3250 = vmatprep.subr.bf16.mxu0 %v1749
        %3251 = vmatpush1.bf16.msra.mxu0 %v1748
        %3252 = vmatprep.subr.bf16.mxu0 %v1753
        %3253 = vmatpush1.bf16.msra.mxu0 %v1752
        %3254 = vmatprep.subr.bf16.mxu0 %v1757
        %3255 = vmatpush1.bf16.msra.mxu0 %v1756
        %3256 = vmatprep.subr.bf16.mxu0 %v1761
        %3257 = vmatpush1.bf16.msra.mxu0 %v1760
        %3258 = vmatprep.subr.bf16.mxu0 %v1765
        %3259 = vmatpush1.bf16.msra.mxu0 %v1764
        %3260 = vmatprep.subr.bf16.mxu0 %v1769
        %3261 = vmatpush1.bf16.msra.mxu0 %v1768
        %3262 = vmatprep.subr.bf16.mxu0 %v1773
        %3263 = vmatpush1.bf16.msra.mxu0 %v1772
        %3264 = vmatprep.subr.bf16.mxu0 %v1777
        %3265 = vmatpush1.bf16.msra.mxu0 %v1776
        %3266 = vmatprep.subr.bf16.mxu0 %v1781
        %3267 = vmatpush1.bf16.msra.mxu0 %v1780
        %3268 = vmatprep.mubr.bf16.mxu0 %v2710
        %3269 = vmatmul.mubr.bf16.gmra.mrb[0].mxu0 %v2709
        %v3270 = vpop.f32.mrb[0].mxu0
        %v3271 = vadd.f32 %v3230, %v3270
        %v3272 = vpop.f32.mrb[0].mxu0
        %v3273 = vadd.f32 %v3232, %v3272
        %v3274 = vpop.f32.mrb[0].mxu0
        %v3275 = vpop.f32.mrb[0].mxu0
        %3276 = vdwg.mxu0
        %3277 = vmatprep.subr.bf16.mxu0 %v1785
        %3278 = vmatpush1.bf16.msra.mxu0 %v1784
        %3279 = vmatprep.subr.bf16.mxu0 %v1789
        %3280 = vmatpush1.bf16.msra.mxu0 %v1788
        %3281 = vmatprep.subr.bf16.mxu0 %v1793
        %3282 = vmatpush1.bf16.msra.mxu0 %v1792
        %3283 = vmatprep.subr.bf16.mxu0 %v1797
        %3284 = vmatpush1.bf16.msra.mxu0 %v1796
        %3285 = vmatprep.subr.bf16.mxu0 %v1801
        %3286 = vmatpush1.bf16.msra.mxu0 %v1800
        %3287 = vmatprep.subr.bf16.mxu0 %v1805
        %3288 = vmatpush1.bf16.msra.mxu0 %v1804
        %3289 = vmatprep.subr.bf16.mxu0 %v1809
        %3290 = vmatpush1.bf16.msra.mxu0 %v1808
        %3291 = vmatprep.subr.bf16.mxu0 %v1813
        %3292 = vmatpush1.bf16.msra.mxu0 %v1812
        %3293 = vmatprep.subr.bf16.mxu0 %v1817
        %3294 = vmatpush1.bf16.msra.mxu0 %v1816
        %3295 = vmatprep.subr.bf16.mxu0 %v1821
        %3296 = vmatpush1.bf16.msra.mxu0 %v1820
        %3297 = vmatprep.subr.bf16.mxu0 %v1825
        %3298 = vmatpush1.bf16.msra.mxu0 %v1824
        %3299 = vmatprep.subr.bf16.mxu0 %v1829
        %3300 = vmatpush1.bf16.msra.mxu0 %v1828
        %3301 = vmatprep.subr.bf16.mxu0 %v1833
        %3302 = vmatpush1.bf16.msra.mxu0 %v1832
        %3303 = vmatprep.subr.bf16.mxu0 %v1837
        %3304 = vmatpush1.bf16.msra.mxu0 %v1836
        %3305 = vmatprep.subr.bf16.mxu0 %v1841
        %3306 = vmatpush1.bf16.msra.mxu0 %v1840
        %3307 = vmatprep.subr.bf16.mxu0 %v1845
        %3308 = vmatpush1.bf16.msra.mxu0 %v1844
        %3309 = vmatprep.mubr.bf16.mxu0 %v2712
        %3310 = vmatmul.mubr.bf16.gmra.mrb[0].mxu0 %v2711
        %v3311 = vpop.f32.mrb[0].mxu0
        %v3312 = vadd.f32 %v3271, %v3311
        %v3313 = vpop.f32.mrb[0].mxu0
        %v3314 = vadd.f32 %v3273, %v3313
        %v3315 = vpop.f32.mrb[0].mxu0
        %v3316 = vpop.f32.mrb[0].mxu0
        %3317 = vdwg.mxu0
        %3318 = vmatprep.subr.bf16.mxu0 %v1849
        %3319 = vmatpush1.bf16.msra.mxu0 %v1848
        %3320 = vmatprep.subr.bf16.mxu0 %v1853
        %3321 = vmatpush1.bf16.msra.mxu0 %v1852
        %3322 = vmatprep.subr.bf16.mxu0 %v1857
        %3323 = vmatpush1.bf16.msra.mxu0 %v1856
        %3324 = vmatprep.subr.bf16.mxu0 %v1861
        %3325 = vmatpush1.bf16.msra.mxu0 %v1860
        %3326 = vmatprep.subr.bf16.mxu0 %v1865
        %3327 = vmatpush1.bf16.msra.mxu0 %v1864
        %3328 = vmatprep.subr.bf16.mxu0 %v1869
        %3329 = vmatpush1.bf16.msra.mxu0 %v1868
        %3330 = vmatprep.subr.bf16.mxu0 %v1873
        %3331 = vmatpush1.bf16.msra.mxu0 %v1872
        %3332 = vmatprep.subr.bf16.mxu0 %v1877
        %3333 = vmatpush1.bf16.msra.mxu0 %v1876
        %3334 = vmatprep.subr.bf16.mxu0 %v1881
        %3335 = vmatpush1.bf16.msra.mxu0 %v1880
        %3336 = vmatprep.subr.bf16.mxu0 %v1885
        %3337 = vmatpush1.bf16.msra.mxu0 %v1884
        %3338 = vmatprep.subr.bf16.mxu0 %v1889
        %3339 = vmatpush1.bf16.msra.mxu0 %v1888
        %3340 = vmatprep.subr.bf16.mxu0 %v1893
        %3341 = vmatpush1.bf16.msra.mxu0 %v1892
        %3342 = vmatprep.subr.bf16.mxu0 %v1897
        %3343 = vmatpush1.bf16.msra.mxu0 %v1896
        %3344 = vmatprep.subr.bf16.mxu0 %v1901
        %3345 = vmatpush1.bf16.msra.mxu0 %v1900
        %3346 = vmatprep.subr.bf16.mxu0 %v1905
        %3347 = vmatpush1.bf16.msra.mxu0 %v1904
        %3348 = vmatprep.subr.bf16.mxu0 %v1909
        %3349 = vmatpush1.bf16.msra.mxu0 %v1908
        %3350 = vmatprep.mubr.bf16.mxu0 %v2714
        %3351 = vmatmul.mubr.bf16.gmra.mrb[0].mxu0 %v2713
        %v3352 = vpop.f32.mrb[0].mxu0
        %v3353 = vadd.f32 %v3312, %v3352
        %v3354 = vpop.f32.mrb[0].mxu0
        %v3355 = vadd.f32 %v3314, %v3354
        %v3356 = vpop.f32.mrb[0].mxu0
        %v3357 = vpop.f32.mrb[0].mxu0
        %3358 = vdwg.mxu0
        %3359 = vmatprep.subr.bf16.mxu0 %v1913
        %3360 = vmatpush1.bf16.msra.mxu0 %v1912
        %3361 = vmatprep.subr.bf16.mxu0 %v1917
        %3362 = vmatpush1.bf16.msra.mxu0 %v1916
        %3363 = vmatprep.subr.bf16.mxu0 %v1921
        %3364 = vmatpush1.bf16.msra.mxu0 %v1920
        %3365 = vmatprep.subr.bf16.mxu0 %v1925
        %3366 = vmatpush1.bf16.msra.mxu0 %v1924
        %3367 = vmatprep.subr.bf16.mxu0 %v1929
        %3368 = vmatpush1.bf16.msra.mxu0 %v1928
        %3369 = vmatprep.subr.bf16.mxu0 %v1933
        %3370 = vmatpush1.bf16.msra.mxu0 %v1932
        %3371 = vmatprep.subr.bf16.mxu0 %v1937
        %3372 = vmatpush1.bf16.msra.mxu0 %v1936
        %3373 = vmatprep.subr.bf16.mxu0 %v1941
        %3374 = vmatpush1.bf16.msra.mxu0 %v1940
        %3375 = vmatprep.subr.bf16.mxu0 %v1945
        %3376 = vmatpush1.bf16.msra.mxu0 %v1944
        %3377 = vmatprep.subr.bf16.mxu0 %v1949
        %3378 = vmatpush1.bf16.msra.mxu0 %v1948
        %3379 = vmatprep.subr.bf16.mxu0 %v1953
        %3380 = vmatpush1.bf16.msra.mxu0 %v1952
        %3381 = vmatprep.subr.bf16.mxu0 %v1957
        %3382 = vmatpush1.bf16.msra.mxu0 %v1956
        %3383 = vmatprep.subr.bf16.mxu0 %v1961
        %3384 = vmatpush1.bf16.msra.mxu0 %v1960
        %3385 = vmatprep.subr.bf16.mxu0 %v1965
        %3386 = vmatpush1.bf16.msra.mxu0 %v1964
        %3387 = vmatprep.subr.bf16.mxu0 %v1969
        %3388 = vmatpush1.bf16.msra.mxu0 %v1968
        %3389 = vmatprep.subr.bf16.mxu0 %v1973
        %3390 = vmatpush1.bf16.msra.mxu0 %v1972
        %3391 = vmatprep.mubr.bf16.mxu0 %v2716
        %3392 = vmatmul.mubr.bf16.gmra.mrb[0].mxu0 %v2715
        %v3393 = vpop.f32.mrb[0].mxu0
        %v3394 = vadd.f32 %v3353, %v3393
        %v3395 = vpop.f32.mrb[0].mxu0
        %v3396 = vadd.f32 %v3355, %v3395
        %v3397 = vpop.f32.mrb[0].mxu0
        %v3398 = vpop.f32.mrb[0].mxu0
        %3399 = vdwg.mxu0
        %3400 = vmatprep.subr.bf16.mxu0 %v1977
        %3401 = vmatpush1.bf16.msra.mxu0 %v1976
        %3402 = vmatprep.subr.bf16.mxu0 %v1981
        %3403 = vmatpush1.bf16.msra.mxu0 %v1980
        %3404 = vmatprep.subr.bf16.mxu0 %v1985
        %3405 = vmatpush1.bf16.msra.mxu0 %v1984
        %3406 = vmatprep.subr.bf16.mxu0 %v1989
        %3407 = vmatpush1.bf16.msra.mxu0 %v1988
        %3408 = vmatprep.subr.bf16.mxu0 %v1993
        %3409 = vmatpush1.bf16.msra.mxu0 %v1992
        %3410 = vmatprep.subr.bf16.mxu0 %v1997
        %3411 = vmatpush1.bf16.msra.mxu0 %v1996
        %3412 = vmatprep.subr.bf16.mxu0 %v2001
        %3413 = vmatpush1.bf16.msra.mxu0 %v2000
        %3414 = vmatprep.subr.bf16.mxu0 %v2005
        %3415 = vmatpush1.bf16.msra.mxu0 %v2004
        %3416 = vmatprep.subr.bf16.mxu0 %v2009
        %3417 = vmatpush1.bf16.msra.mxu0 %v2008
        %3418 = vmatprep.subr.bf16.mxu0 %v2013
        %3419 = vmatpush1.bf16.msra.mxu0 %v2012
        %3420 = vmatprep.subr.bf16.mxu0 %v2017
        %3421 = vmatpush1.bf16.msra.mxu0 %v2016
        %3422 = vmatprep.subr.bf16.mxu0 %v2021
        %3423 = vmatpush1.bf16.msra.mxu0 %v2020
        %3424 = vmatprep.subr.bf16.mxu0 %v2025
        %3425 = vmatpush1.bf16.msra.mxu0 %v2024
        %3426 = vmatprep.subr.bf16.mxu0 %v2029
        %3427 = vmatpush1.bf16.msra.mxu0 %v2028
        %3428 = vmatprep.subr.bf16.mxu0 %v2033
        %3429 = vmatpush1.bf16.msra.mxu0 %v2032
        %3430 = vmatprep.subr.bf16.mxu0 %v2037
        %3431 = vmatpush1.bf16.msra.mxu0 %v2036
        %3432 = vmatprep.mubr.bf16.mxu0 %v2718
        %3433 = vmatmul.mubr.bf16.gmra.mrb[0].mxu0 %v2717
        %v3434 = vpop.f32.mrb[0].mxu0
        %v3435 = vadd.f32 %v3394, %v3434
        %v3436 = vpop.f32.mrb[0].mxu0
        %v3437 = vadd.f32 %v3396, %v3436
        %v3438 = vpop.f32.mrb[0].mxu0
        %v3439 = vpop.f32.mrb[0].mxu0
        %3440 = vdwg.mxu0
        %3441 = vmatprep.subr.bf16.mxu0 %v2041
        %3442 = vmatpush1.bf16.msra.mxu0 %v2040
        %3443 = vmatprep.subr.bf16.mxu0 %v2045
        %3444 = vmatpush1.bf16.msra.mxu0 %v2044
        %3445 = vmatprep.subr.bf16.mxu0 %v2049
        %3446 = vmatpush1.bf16.msra.mxu0 %v2048
        %3447 = vmatprep.subr.bf16.mxu0 %v2053
        %3448 = vmatpush1.bf16.msra.mxu0 %v2052
        %3449 = vmatprep.subr.bf16.mxu0 %v2057
        %3450 = vmatpush1.bf16.msra.mxu0 %v2056
        %3451 = vmatprep.subr.bf16.mxu0 %v2061
        %3452 = vmatpush1.bf16.msra.mxu0 %v2060
        %3453 = vmatprep.subr.bf16.mxu0 %v2065
        %3454 = vmatpush1.bf16.msra.mxu0 %v2064
        %3455 = vmatprep.subr.bf16.mxu0 %v2069
        %3456 = vmatpush1.bf16.msra.mxu0 %v2068
        %3457 = vmatprep.subr.bf16.mxu0 %v2073
        %3458 = vmatpush1.bf16.msra.mxu0 %v2072
        %3459 = vmatprep.subr.bf16.mxu0 %v2077
        %3460 = vmatpush1.bf16.msra.mxu0 %v2076
        %3461 = vmatprep.subr.bf16.mxu0 %v2081
        %3462 = vmatpush1.bf16.msra.mxu0 %v2080
        %3463 = vmatprep.subr.bf16.mxu0 %v2085
        %3464 = vmatpush1.bf16.msra.mxu0 %v2084
        %3465 = vmatprep.subr.bf16.mxu0 %v2089
        %3466 = vmatpush1.bf16.msra.mxu0 %v2088
        %3467 = vmatprep.subr.bf16.mxu0 %v2093
        %3468 = vmatpush1.bf16.msra.mxu0 %v2092
        %3469 = vmatprep.subr.bf16.mxu0 %v2097
        %3470 = vmatpush1.bf16.msra.mxu0 %v2096
        %3471 = vmatprep.subr.bf16.mxu0 %v2101
        %3472 = vmatpush1.bf16.msra.mxu0 %v2100
        %3473 = vmatprep.mubr.bf16.mxu0 %v2720
        %3474 = vmatmul.mubr.bf16.gmra.mrb[0].mxu0 %v2719
        %v3475 = vpop.f32.mrb[0].mxu0
        %v3476 = vadd.f32 %v3435, %v3475
        %v3477 = vpop.f32.mrb[0].mxu0
        %v3478 = vadd.f32 %v3437, %v3477
        %v3479 = vpop.f32.mrb[0].mxu0
        %v3480 = vpop.f32.mrb[0].mxu0
        %3481 = vdwg.mxu0
        %3482 = vmatprep.subr.bf16.mxu0 %v2105
        %3483 = vmatpush1.bf16.msra.mxu0 %v2104
        %3484 = vmatprep.subr.bf16.mxu0 %v2109
        %3485 = vmatpush1.bf16.msra.mxu0 %v2108
        %3486 = vmatprep.subr.bf16.mxu0 %v2113
        %3487 = vmatpush1.bf16.msra.mxu0 %v2112
        %3488 = vmatprep.subr.bf16.mxu0 %v2117
        %3489 = vmatpush1.bf16.msra.mxu0 %v2116
        %3490 = vmatprep.subr.bf16.mxu0 %v2121
        %3491 = vmatpush1.bf16.msra.mxu0 %v2120
        %3492 = vmatprep.subr.bf16.mxu0 %v2125
        %3493 = vmatpush1.bf16.msra.mxu0 %v2124
        %3494 = vmatprep.subr.bf16.mxu0 %v2129
        %3495 = vmatpush1.bf16.msra.mxu0 %v2128
        %3496 = vmatprep.subr.bf16.mxu0 %v2133
        %3497 = vmatpush1.bf16.msra.mxu0 %v2132
        %3498 = vmatprep.subr.bf16.mxu0 %v2137
        %3499 = vmatpush1.bf16.msra.mxu0 %v2136
        %3500 = vmatprep.subr.bf16.mxu0 %v2141
        %3501 = vmatpush1.bf16.msra.mxu0 %v2140
        %3502 = vmatprep.subr.bf16.mxu0 %v2145
        %3503 = vmatpush1.bf16.msra.mxu0 %v2144
        %3504 = vmatprep.subr.bf16.mxu0 %v2149
        %3505 = vmatpush1.bf16.msra.mxu0 %v2148
        %3506 = vmatprep.subr.bf16.mxu0 %v2153
        %3507 = vmatpush1.bf16.msra.mxu0 %v2152
        %3508 = vmatprep.subr.bf16.mxu0 %v2157
        %3509 = vmatpush1.bf16.msra.mxu0 %v2156
        %3510 = vmatprep.subr.bf16.mxu0 %v2161
        %3511 = vmatpush1.bf16.msra.mxu0 %v2160
        %3512 = vmatprep.subr.bf16.mxu0 %v2165
        %3513 = vmatpush1.bf16.msra.mxu0 %v2164
        %3514 = vmatprep.mubr.bf16.mxu0 %v2722
        %3515 = vmatmul.mubr.bf16.gmra.mrb[0].mxu0 %v2721
        %v3516 = vpop.f32.mrb[0].mxu0
        %v3517 = vadd.f32 %v3476, %v3516
        %v3518 = vpop.f32.mrb[0].mxu0
        %v3519 = vadd.f32 %v3478, %v3518
        %v3520 = vpop.f32.mrb[0].mxu0
        %v3521 = vpop.f32.mrb[0].mxu0
        %3522 = vdwg.mxu0
        %3523 = vmatprep.subr.bf16.mxu0 %v2169
        %3524 = vmatpush1.bf16.msra.mxu0 %v2168
        %3525 = vmatprep.subr.bf16.mxu0 %v2173
        %3526 = vmatpush1.bf16.msra.mxu0 %v2172
        %3527 = vmatprep.subr.bf16.mxu0 %v2177
        %3528 = vmatpush1.bf16.msra.mxu0 %v2176
        %3529 = vmatprep.subr.bf16.mxu0 %v2181
        %3530 = vmatpush1.bf16.msra.mxu0 %v2180
        %3531 = vmatprep.subr.bf16.mxu0 %v2185
        %3532 = vmatpush1.bf16.msra.mxu0 %v2184
        %3533 = vmatprep.subr.bf16.mxu0 %v2189
        %3534 = vmatpush1.bf16.msra.mxu0 %v2188
        %3535 = vmatprep.subr.bf16.mxu0 %v2193
        %3536 = vmatpush1.bf16.msra.mxu0 %v2192
        %3537 = vmatprep.subr.bf16.mxu0 %v2197
        %3538 = vmatpush1.bf16.msra.mxu0 %v2196
        %3539 = vmatprep.subr.bf16.mxu0 %v2201
        %3540 = vmatpush1.bf16.msra.mxu0 %v2200
        %3541 = vmatprep.subr.bf16.mxu0 %v2205
        %3542 = vmatpush1.bf16.msra.mxu0 %v2204
        %3543 = vmatprep.subr.bf16.mxu0 %v2209
        %3544 = vmatpush1.bf16.msra.mxu0 %v2208
        %3545 = vmatprep.subr.bf16.mxu0 %v2213
        %3546 = vmatpush1.bf16.msra.mxu0 %v2212
        %3547 = vmatprep.subr.bf16.mxu0 %v2217
        %3548 = vmatpush1.bf16.msra.mxu0 %v2216
        %3549 = vmatprep.subr.bf16.mxu0 %v2221
        %3550 = vmatpush1.bf16.msra.mxu0 %v2220
        %3551 = vmatprep.subr.bf16.mxu0 %v2225
        %3552 = vmatpush1.bf16.msra.mxu0 %v2224
        %3553 = vmatprep.subr.bf16.mxu0 %v2229
        %3554 = vmatpush1.bf16.msra.mxu0 %v2228
        %3555 = vmatprep.mubr.bf16.mxu0 %v2724
        %3556 = vmatmul.mubr.bf16.gmra.mrb[0].mxu0 %v2723
        %v3557 = vpop.f32.mrb[0].mxu0
        %v3558 = vadd.f32 %v3517, %v3557
        %v3559 = vpop.f32.mrb[0].mxu0
        %v3560 = vadd.f32 %v3519, %v3559
        %v3561 = vpop.f32.mrb[0].mxu0
        %v3562 = vpop.f32.mrb[0].mxu0
        %3563 = vdwg.mxu0
        %3564 = vmatprep.subr.bf16.mxu0 %v2233
        %3565 = vmatpush1.bf16.msra.mxu0 %v2232
        %3566 = vmatprep.subr.bf16.mxu0 %v2237
        %3567 = vmatpush1.bf16.msra.mxu0 %v2236
        %3568 = vmatprep.subr.bf16.mxu0 %v2241
        %3569 = vmatpush1.bf16.msra.mxu0 %v2240
        %3570 = vmatprep.subr.bf16.mxu0 %v2245
        %3571 = vmatpush1.bf16.msra.mxu0 %v2244
        %3572 = vmatprep.subr.bf16.mxu0 %v2249
        %3573 = vmatpush1.bf16.msra.mxu0 %v2248
        %3574 = vmatprep.subr.bf16.mxu0 %v2253
        %3575 = vmatpush1.bf16.msra.mxu0 %v2252
        %3576 = vmatprep.subr.bf16.mxu0 %v2257
        %3577 = vmatpush1.bf16.msra.mxu0 %v2256
        %3578 = vmatprep.subr.bf16.mxu0 %v2261
        %3579 = vmatpush1.bf16.msra.mxu0 %v2260
        %3580 = vmatprep.subr.bf16.mxu0 %v2265
        %3581 = vmatpush1.bf16.msra.mxu0 %v2264
        %3582 = vmatprep.subr.bf16.mxu0 %v2269
        %3583 = vmatpush1.bf16.msra.mxu0 %v2268
        %3584 = vmatprep.subr.bf16.mxu0 %v2273
        %3585 = vmatpush1.bf16.msra.mxu0 %v2272
        %3586 = vmatprep.subr.bf16.mxu0 %v2277
        %3587 = vmatpush1.bf16.msra.mxu0 %v2276
        %3588 = vmatprep.subr.bf16.mxu0 %v2281
        %3589 = vmatpush1.bf16.msra.mxu0 %v2280
        %3590 = vmatprep.subr.bf16.mxu0 %v2285
        %3591 = vmatpush1.bf16.msra.mxu0 %v2284
        %3592 = vmatprep.subr.bf16.mxu0 %v2289
        %3593 = vmatpush1.bf16.msra.mxu0 %v2288
        %3594 = vmatprep.subr.bf16.mxu0 %v2293
        %3595 = vmatpush1.bf16.msra.mxu0 %v2292
        %3596 = vmatprep.mubr.bf16.mxu0 %v2726
        %3597 = vmatmul.mubr.bf16.gmra.mrb[0].mxu0 %v2725
        %v3598 = vpop.f32.mrb[0].mxu0
        %v3599 = vadd.f32 %v3558, %v3598
        %v3600 = vpop.f32.mrb[0].mxu0
        %v3601 = vadd.f32 %v3560, %v3600
        %v3602 = vpop.f32.mrb[0].mxu0
        %v3603 = vpop.f32.mrb[0].mxu0
        %3604 = vdwg.mxu0
        %3605 = vmatprep.subr.bf16.mxu0 %v2297
        %3606 = vmatpush1.bf16.msra.mxu0 %v2296
        %3607 = vmatprep.subr.bf16.mxu0 %v2301
        %3608 = vmatpush1.bf16.msra.mxu0 %v2300
        %3609 = vmatprep.subr.bf16.mxu0 %v2305
        %3610 = vmatpush1.bf16.msra.mxu0 %v2304
        %3611 = vmatprep.subr.bf16.mxu0 %v2309
        %3612 = vmatpush1.bf16.msra.mxu0 %v2308
        %3613 = vmatprep.subr.bf16.mxu0 %v2313
        %3614 = vmatpush1.bf16.msra.mxu0 %v2312
        %3615 = vmatprep.subr.bf16.mxu0 %v2317
        %3616 = vmatpush1.bf16.msra.mxu0 %v2316
        %3617 = vmatprep.subr.bf16.mxu0 %v2321
        %3618 = vmatpush1.bf16.msra.mxu0 %v2320
        %3619 = vmatprep.subr.bf16.mxu0 %v2325
        %3620 = vmatpush1.bf16.msra.mxu0 %v2324
        %3621 = vmatprep.subr.bf16.mxu0 %v2329
        %3622 = vmatpush1.bf16.msra.mxu0 %v2328
        %3623 = vmatprep.subr.bf16.mxu0 %v2333
        %3624 = vmatpush1.bf16.msra.mxu0 %v2332
        %3625 = vmatprep.subr.bf16.mxu0 %v2337
        %3626 = vmatpush1.bf16.msra.mxu0 %v2336
        %3627 = vmatprep.subr.bf16.mxu0 %v2341
        %3628 = vmatpush1.bf16.msra.mxu0 %v2340
        %3629 = vmatprep.subr.bf16.mxu0 %v2345
        %3630 = vmatpush1.bf16.msra.mxu0 %v2344
        %3631 = vmatprep.subr.bf16.mxu0 %v2349
        %3632 = vmatpush1.bf16.msra.mxu0 %v2348
        %3633 = vmatprep.subr.bf16.mxu0 %v2353
        %3634 = vmatpush1.bf16.msra.mxu0 %v2352
        %3635 = vmatprep.subr.bf16.mxu0 %v2357
        %3636 = vmatpush1.bf16.msra.mxu0 %v2356
        %3637 = vmatprep.mubr.bf16.mxu0 %v2728
        %3638 = vmatmul.mubr.bf16.gmra.mrb[0].mxu0 %v2727
        %v3639 = vpop.f32.mrb[0].mxu0
        %v3640 = vadd.f32 %v3599, %v3639
        %v3641 = vpop.f32.mrb[0].mxu0
        %v3642 = vadd.f32 %v3601, %v3641
        %v3643 = vpop.f32.mrb[0].mxu0
        %v3644 = vpop.f32.mrb[0].mxu0
        %3645 = vdwg.mxu0
        %3646 = vmatprep.subr.bf16.mxu0 %v2361
        %3647 = vmatpush1.bf16.msra.mxu0 %v2360
        %3648 = vmatprep.subr.bf16.mxu0 %v2365
        %3649 = vmatpush1.bf16.msra.mxu0 %v2364
        %3650 = vmatprep.subr.bf16.mxu0 %v2369
        %3651 = vmatpush1.bf16.msra.mxu0 %v2368
        %3652 = vmatprep.subr.bf16.mxu0 %v2373
        %3653 = vmatpush1.bf16.msra.mxu0 %v2372
        %3654 = vmatprep.subr.bf16.mxu0 %v2377
        %3655 = vmatpush1.bf16.msra.mxu0 %v2376
        %3656 = vmatprep.subr.bf16.mxu0 %v2381
        %3657 = vmatpush1.bf16.msra.mxu0 %v2380
        %3658 = vmatprep.subr.bf16.mxu0 %v2385
        %3659 = vmatpush1.bf16.msra.mxu0 %v2384
        %3660 = vmatprep.subr.bf16.mxu0 %v2389
        %3661 = vmatpush1.bf16.msra.mxu0 %v2388
        %3662 = vmatprep.subr.bf16.mxu0 %v2393
        %3663 = vmatpush1.bf16.msra.mxu0 %v2392
        %3664 = vmatprep.subr.bf16.mxu0 %v2397
        %3665 = vmatpush1.bf16.msra.mxu0 %v2396
        %3666 = vmatprep.subr.bf16.mxu0 %v2401
        %3667 = vmatpush1.bf16.msra.mxu0 %v2400
        %3668 = vmatprep.subr.bf16.mxu0 %v2405
        %3669 = vmatpush1.bf16.msra.mxu0 %v2404
        %3670 = vmatprep.subr.bf16.mxu0 %v2409
        %3671 = vmatpush1.bf16.msra.mxu0 %v2408
        %3672 = vmatprep.subr.bf16.mxu0 %v2413
        %3673 = vmatpush1.bf16.msra.mxu0 %v2412
        %3674 = vmatprep.subr.bf16.mxu0 %v2417
        %3675 = vmatpush1.bf16.msra.mxu0 %v2416
        %3676 = vmatprep.subr.bf16.mxu0 %v2421
        %3677 = vmatpush1.bf16.msra.mxu0 %v2420
        %3678 = vmatprep.mubr.bf16.mxu0 %v2730
        %3679 = vmatmul.mubr.bf16.gmra.mrb[0].mxu0 %v2729
        %v3680 = vpop.f32.mrb[0].mxu0
        %v3681 = vadd.f32 %v3640, %v3680
        %v3682 = vpop.f32.mrb[0].mxu0
        %v3683 = vadd.f32 %v3642, %v3682
        %v3684 = vpop.f32.mrb[0].mxu0
        %v3685 = vpop.f32.mrb[0].mxu0
        %3686 = vdwg.mxu0
        %3687 = vmatprep.subr.bf16.mxu0 %v2425
        %3688 = vmatpush1.bf16.msra.mxu0 %v2424
        %3689 = vmatprep.subr.bf16.mxu0 %v2429
        %3690 = vmatpush1.bf16.msra.mxu0 %v2428
        %3691 = vmatprep.subr.bf16.mxu0 %v2433
        %3692 = vmatpush1.bf16.msra.mxu0 %v2432
        %3693 = vmatprep.subr.bf16.mxu0 %v2437
        %3694 = vmatpush1.bf16.msra.mxu0 %v2436
        %3695 = vmatprep.subr.bf16.mxu0 %v2441
        %3696 = vmatpush1.bf16.msra.mxu0 %v2440
        %3697 = vmatprep.subr.bf16.mxu0 %v2445
        %3698 = vmatpush1.bf16.msra.mxu0 %v2444
        %3699 = vmatprep.subr.bf16.mxu0 %v2449
        %3700 = vmatpush1.bf16.msra.mxu0 %v2448
        %3701 = vmatprep.subr.bf16.mxu0 %v2453
        %3702 = vmatpush1.bf16.msra.mxu0 %v2452
        %3703 = vmatprep.subr.bf16.mxu0 %v2457
        %3704 = vmatpush1.bf16.msra.mxu0 %v2456
        %3705 = vmatprep.subr.bf16.mxu0 %v2461
        %3706 = vmatpush1.bf16.msra.mxu0 %v2460
        %3707 = vmatprep.subr.bf16.mxu0 %v2465
        %3708 = vmatpush1.bf16.msra.mxu0 %v2464
        %3709 = vmatprep.subr.bf16.mxu0 %v2469
        %3710 = vmatpush1.bf16.msra.mxu0 %v2468
        %3711 = vmatprep.subr.bf16.mxu0 %v2473
        %3712 = vmatpush1.bf16.msra.mxu0 %v2472
        %3713 = vmatprep.subr.bf16.mxu0 %v2477
        %3714 = vmatpush1.bf16.msra.mxu0 %v2476
        %3715 = vmatprep.subr.bf16.mxu0 %v2481
        %3716 = vmatpush1.bf16.msra.mxu0 %v2480
        %3717 = vmatprep.subr.bf16.mxu0 %v2485
        %3718 = vmatpush1.bf16.msra.mxu0 %v2484
        %3719 = vmatprep.mubr.bf16.mxu0 %v2732
        %3720 = vmatmul.mubr.bf16.gmra.mrb[0].mxu0 %v2731
        %v3721 = vpop.f32.mrb[0].mxu0
        %v3722 = vadd.f32 %v3681, %v3721
        %v3723 = vpop.f32.mrb[0].mxu0
        %v3724 = vadd.f32 %v3683, %v3723
        %v3725 = vpop.f32.mrb[0].mxu0
        %v3726 = vpop.f32.mrb[0].mxu0
        %3727 = vdwg.mxu0
        %3728 = vmatprep.subr.bf16.mxu0 %v2489
        %3729 = vmatpush1.bf16.msra.mxu0 %v2488
        %3730 = vmatprep.subr.bf16.mxu0 %v2493
        %3731 = vmatpush1.bf16.msra.mxu0 %v2492
        %3732 = vmatprep.subr.bf16.mxu0 %v2497
        %3733 = vmatpush1.bf16.msra.mxu0 %v2496
        %3734 = vmatprep.subr.bf16.mxu0 %v2501
        %3735 = vmatpush1.bf16.msra.mxu0 %v2500
        %3736 = vmatprep.subr.bf16.mxu0 %v2505
        %3737 = vmatpush1.bf16.msra.mxu0 %v2504
        %3738 = vmatprep.subr.bf16.mxu0 %v2509
        %3739 = vmatpush1.bf16.msra.mxu0 %v2508
        %3740 = vmatprep.subr.bf16.mxu0 %v2513
        %3741 = vmatpush1.bf16.msra.mxu0 %v2512
        %3742 = vmatprep.subr.bf16.mxu0 %v2517
        %3743 = vmatpush1.bf16.msra.mxu0 %v2516
        %3744 = vmatprep.subr.bf16.mxu0 %v2521
        %3745 = vmatpush1.bf16.msra.mxu0 %v2520
        %3746 = vmatprep.subr.bf16.mxu0 %v2525
        %3747 = vmatpush1.bf16.msra.mxu0 %v2524
        %3748 = vmatprep.subr.bf16.mxu0 %v2529
        %3749 = vmatpush1.bf16.msra.mxu0 %v2528
        %3750 = vmatprep.subr.bf16.mxu0 %v2533
        %3751 = vmatpush1.bf16.msra.mxu0 %v2532
        %3752 = vmatprep.subr.bf16.mxu0 %v2537
        %3753 = vmatpush1.bf16.msra.mxu0 %v2536
        %3754 = vmatprep.subr.bf16.mxu0 %v2541
        %3755 = vmatpush1.bf16.msra.mxu0 %v2540
        %3756 = vmatprep.subr.bf16.mxu0 %v2545
        %3757 = vmatpush1.bf16.msra.mxu0 %v2544
        %3758 = vmatprep.subr.bf16.mxu0 %v2549
        %3759 = vmatpush1.bf16.msra.mxu0 %v2548
        %3760 = vmatprep.mubr.bf16.mxu0 %v2734
        %3761 = vmatmul.mubr.bf16.gmra.mrb[0].mxu0 %v2733
        %v3762 = vpop.f32.mrb[0].mxu0
        %v3763 = vadd.f32 %v3722, %v3762
        %v3764 = vpop.f32.mrb[0].mxu0
        %v3765 = vadd.f32 %v3724, %v3764
        %v3766 = vpop.f32.mrb[0].mxu0
        %v3767 = vpop.f32.mrb[0].mxu0
        %3768 = vdwg.mxu0
        %3769 = vmatprep.subr.bf16.mxu0 %v2553
        %3770 = vmatpush1.bf16.msra.mxu0 %v2552
        %3771 = vmatprep.subr.bf16.mxu0 %v2557
        %3772 = vmatpush1.bf16.msra.mxu0 %v2556
        %3773 = vmatprep.subr.bf16.mxu0 %v2561
        %3774 = vmatpush1.bf16.msra.mxu0 %v2560
        %3775 = vmatprep.subr.bf16.mxu0 %v2565
        %3776 = vmatpush1.bf16.msra.mxu0 %v2564
        %3777 = vmatprep.subr.bf16.mxu0 %v2569
        %3778 = vmatpush1.bf16.msra.mxu0 %v2568
        %3779 = vmatprep.subr.bf16.mxu0 %v2573
        %3780 = vmatpush1.bf16.msra.mxu0 %v2572
        %3781 = vmatprep.subr.bf16.mxu0 %v2577
        %3782 = vmatpush1.bf16.msra.mxu0 %v2576
        %3783 = vmatprep.subr.bf16.mxu0 %v2581
        %3784 = vmatpush1.bf16.msra.mxu0 %v2580
        %3785 = vmatprep.subr.bf16.mxu0 0
        %3786 = vmatpush1.bf16.msra.mxu0 0
        %3787 = vmatprep.subr.bf16.mxu0 0
        %3788 = vmatpush1.bf16.msra.mxu0 0
        %3789 = vmatprep.subr.bf16.mxu0 0
        %3790 = vmatpush1.bf16.msra.mxu0 0
        %3791 = vmatprep.subr.bf16.mxu0 0
        %3792 = vmatpush1.bf16.msra.mxu0 0
        %3793 = vmatprep.subr.bf16.mxu0 0
        %3794 = vmatpush1.bf16.msra.mxu0 0
        %3795 = vmatprep.subr.bf16.mxu0 0
        %3796 = vmatpush1.bf16.msra.mxu0 0
        %3797 = vmatprep.subr.bf16.mxu0 0
        %3798 = vmatpush1.bf16.msra.mxu0 0
        %3799 = vmatprep.subr.bf16.mxu0 0
        %3800 = vmatpush1.bf16.msra.mxu0 0
        %3801 = vmatprep.mubr.bf16.mxu0 0
        %3802 = vmatmul.mubr.bf16.gmra.mrb[0].mxu0 %v2735
        %v3803 = vpop.f32.mrb[0].mxu0
        %v3804 = vadd.f32 %v3763, %v3803
        %v3805 = vpop.f32.mrb[0].mxu0
        %v3806 = vadd.f32 %v3765, %v3805
        %v3807 = vpop.f32.mrb[0].mxu0
        %v3808 = vpop.f32.mrb[0].mxu0
        %3809 = vdwg.mxu0
        %3810 = vmatprep.subr.bf16.mxu0 %v1019
        %3811 = vmatpush1.bf16.msra.mxu0 %v1018
        %3812 = vmatprep.subr.bf16.mxu0 %v1023
        %3813 = vmatpush1.bf16.msra.mxu0 %v1022
        %3814 = vmatprep.subr.bf16.mxu0 %v1027
        %3815 = vmatpush1.bf16.msra.mxu0 %v1026
        %3816 = vmatprep.subr.bf16.mxu0 %v1031
        %3817 = vmatpush1.bf16.msra.mxu0 %v1030
        %3818 = vmatprep.subr.bf16.mxu0 %v1035
        %3819 = vmatpush1.bf16.msra.mxu0 %v1034
        %3820 = vmatprep.subr.bf16.mxu0 %v1039
        %3821 = vmatpush1.bf16.msra.mxu0 %v1038
        %3822 = vmatprep.subr.bf16.mxu0 %v1043
        %3823 = vmatpush1.bf16.msra.mxu0 %v1042
        %3824 = vmatprep.subr.bf16.mxu0 %v1047
        %3825 = vmatpush1.bf16.msra.mxu0 %v1046
        %3826 = vmatprep.subr.bf16.mxu0 %v1051
        %3827 = vmatpush1.bf16.msra.mxu0 %v1050
        %3828 = vmatprep.subr.bf16.mxu0 %v1055
        %3829 = vmatpush1.bf16.msra.mxu0 %v1054
        %3830 = vmatprep.subr.bf16.mxu0 %v1059
        %3831 = vmatpush1.bf16.msra.mxu0 %v1058
        %3832 = vmatprep.subr.bf16.mxu0 %v1063
        %3833 = vmatpush1.bf16.msra.mxu0 %v1062
        %3834 = vmatprep.subr.bf16.mxu0 %v1067
        %3835 = vmatpush1.bf16.msra.mxu0 %v1066
        %3836 = vmatprep.subr.bf16.mxu0 %v1071
        %3837 = vmatpush1.bf16.msra.mxu0 %v1070
        %3838 = vmatprep.subr.bf16.mxu0 %v1075
        %3839 = vmatpush1.bf16.msra.mxu0 %v1074
        %3840 = vmatprep.subr.bf16.mxu0 %v1079
        %3841 = vmatpush1.bf16.msra.mxu0 %v1078
        %3842 = vmatprep.mubr.bf16.mxu0 %v2688
        %3843 = vmatmul.mubr.bf16.gmra.mrb[0].mxu0 %v2687
        %v3844 = vpop.f32.mrb[0].mxu0
        %v3845 = vadd.f32 0.0, %v3844
        %v3846 = vpop.f32.mrb[0].mxu0
        %v3847 = vadd.f32 0.0, %v3846
        %v3848 = vpop.f32.mrb[0].mxu0
        %v3849 = vpop.f32.mrb[0].mxu0
        %3850 = vdwg.mxu0
        %3851 = vmatprep.subr.bf16.mxu0 %v1083
        %3852 = vmatpush1.bf16.msra.mxu0 %v1082
        %3853 = vmatprep.subr.bf16.mxu0 %v1087
        %3854 = vmatpush1.bf16.msra.mxu0 %v1086
        %3855 = vmatprep.subr.bf16.mxu0 %v1091
        %3856 = vmatpush1.bf16.msra.mxu0 %v1090
        %3857 = vmatprep.subr.bf16.mxu0 %v1095
        %3858 = vmatpush1.bf16.msra.mxu0 %v1094
        %3859 = vmatprep.subr.bf16.mxu0 %v1099
        %3860 = vmatpush1.bf16.msra.mxu0 %v1098
        %3861 = vmatprep.subr.bf16.mxu0 %v1103
        %3862 = vmatpush1.bf16.msra.mxu0 %v1102
        %3863 = vmatprep.subr.bf16.mxu0 %v1107
        %3864 = vmatpush1.bf16.msra.mxu0 %v1106
        %3865 = vmatprep.subr.bf16.mxu0 %v1111
        %3866 = vmatpush1.bf16.msra.mxu0 %v1110
        %3867 = vmatprep.subr.bf16.mxu0 %v1115
        %3868 = vmatpush1.bf16.msra.mxu0 %v1114
        %3869 = vmatprep.subr.bf16.mxu0 %v1119
        %3870 = vmatpush1.bf16.msra.mxu0 %v1118
        %3871 = vmatprep.subr.bf16.mxu0 %v1123
        %3872 = vmatpush1.bf16.msra.mxu0 %v1122
        %3873 = vmatprep.subr.bf16.mxu0 %v1127
        %3874 = vmatpush1.bf16.msra.mxu0 %v1126
        %3875 = vmatprep.subr.bf16.mxu0 %v1131
        %3876 = vmatpush1.bf16.msra.mxu0 %v1130
        %3877 = vmatprep.subr.bf16.mxu0 %v1135
        %3878 = vmatpush1.bf16.msra.mxu0 %v1134
        %3879 = vmatprep.subr.bf16.mxu0 %v1139
        %3880 = vmatpush1.bf16.msra.mxu0 %v1138
        %3881 = vmatprep.subr.bf16.mxu0 %v1143
        %3882 = vmatpush1.bf16.msra.mxu0 %v1142
        %3883 = vmatprep.mubr.bf16.mxu0 %v2690
        %3884 = vmatmul.mubr.bf16.gmra.mrb[0].mxu0 %v2689
        %v3885 = vpop.f32.mrb[0].mxu0
        %v3886 = vadd.f32 %v3845, %v3885
        %v3887 = vpop.f32.mrb[0].mxu0
        %v3888 = vadd.f32 %v3847, %v3887
        %v3889 = vpop.f32.mrb[0].mxu0
        %v3890 = vpop.f32.mrb[0].mxu0
        %3891 = vdwg.mxu0
        %3892 = vmatprep.subr.bf16.mxu0 %v1147
        %3893 = vmatpush1.bf16.msra.mxu0 %v1146
        %3894 = vmatprep.subr.bf16.mxu0 %v1151
        %3895 = vmatpush1.bf16.msra.mxu0 %v1150
        %3896 = vmatprep.subr.bf16.mxu0 %v1155
        %3897 = vmatpush1.bf16.msra.mxu0 %v1154
        %3898 = vmatprep.subr.bf16.mxu0 %v1159
        %3899 = vmatpush1.bf16.msra.mxu0 %v1158
        %3900 = vmatprep.subr.bf16.mxu0 %v1163
        %3901 = vmatpush1.bf16.msra.mxu0 %v1162
        %3902 = vmatprep.subr.bf16.mxu0 %v1167
        %3903 = vmatpush1.bf16.msra.mxu0 %v1166
        %3904 = vmatprep.subr.bf16.mxu0 %v1171
        %3905 = vmatpush1.bf16.msra.mxu0 %v1170
        %3906 = vmatprep.subr.bf16.mxu0 %v1175
        %3907 = vmatpush1.bf16.msra.mxu0 %v1174
        %3908 = vmatprep.subr.bf16.mxu0 %v1179
        %3909 = vmatpush1.bf16.msra.mxu0 %v1178
        %3910 = vmatprep.subr.bf16.mxu0 %v1183
        %3911 = vmatpush1.bf16.msra.mxu0 %v1182
        %3912 = vmatprep.subr.bf16.mxu0 %v1187
        %3913 = vmatpush1.bf16.msra.mxu0 %v1186
        %3914 = vmatprep.subr.bf16.mxu0 %v1191
        %3915 = vmatpush1.bf16.msra.mxu0 %v1190
        %3916 = vmatprep.subr.bf16.mxu0 %v1195
        %3917 = vmatpush1.bf16.msra.mxu0 %v1194
        %3918 = vmatprep.subr.bf16.mxu0 %v1199
        %3919 = vmatpush1.bf16.msra.mxu0 %v1198
        %3920 = vmatprep.subr.bf16.mxu0 %v1203
        %3921 = vmatpush1.bf16.msra.mxu0 %v1202
        %3922 = vmatprep.subr.bf16.mxu0 %v1207
        %3923 = vmatpush1.bf16.msra.mxu0 %v1206
        %3924 = vmatprep.mubr.bf16.mxu0 %v2692
        %3925 = vmatmul.mubr.bf16.gmra.mrb[0].mxu0 %v2691
        %v3926 = vpop.f32.mrb[0].mxu0
        %v3927 = vadd.f32 %v3886, %v3926
        %v3928 = vpop.f32.mrb[0].mxu0
        %v3929 = vadd.f32 %v3888, %v3928
        %v3930 = vpop.f32.mrb[0].mxu0
        %v3931 = vpop.f32.mrb[0].mxu0
        %3932 = vdwg.mxu0
        %3933 = vmatprep.subr.bf16.mxu0 %v1211
        %3934 = vmatpush1.bf16.msra.mxu0 %v1210
        %3935 = vmatprep.subr.bf16.mxu0 %v1215
        %3936 = vmatpush1.bf16.msra.mxu0 %v1214
        %3937 = vmatprep.subr.bf16.mxu0 %v1219
        %3938 = vmatpush1.bf16.msra.mxu0 %v1218
        %3939 = vmatprep.subr.bf16.mxu0 %v1223
        %3940 = vmatpush1.bf16.msra.mxu0 %v1222
        %3941 = vmatprep.subr.bf16.mxu0 %v1227
        %3942 = vmatpush1.bf16.msra.mxu0 %v1226
        %3943 = vmatprep.subr.bf16.mxu0 %v1231
        %3944 = vmatpush1.bf16.msra.mxu0 %v1230
        %3945 = vmatprep.subr.bf16.mxu0 %v1235
        %3946 = vmatpush1.bf16.msra.mxu0 %v1234
        %3947 = vmatprep.subr.bf16.mxu0 %v1239
        %3948 = vmatpush1.bf16.msra.mxu0 %v1238
        %3949 = vmatprep.subr.bf16.mxu0 %v1243
        %3950 = vmatpush1.bf16.msra.mxu0 %v1242
        %3951 = vmatprep.subr.bf16.mxu0 %v1247
        %3952 = vmatpush1.bf16.msra.mxu0 %v1246
        %3953 = vmatprep.subr.bf16.mxu0 %v1251
        %3954 = vmatpush1.bf16.msra.mxu0 %v1250
        %3955 = vmatprep.subr.bf16.mxu0 %v1255
        %3956 = vmatpush1.bf16.msra.mxu0 %v1254
        %3957 = vmatprep.subr.bf16.mxu0 %v1259
        %3958 = vmatpush1.bf16.msra.mxu0 %v1258
        %3959 = vmatprep.subr.bf16.mxu0 %v1263
        %3960 = vmatpush1.bf16.msra.mxu0 %v1262
        %3961 = vmatprep.subr.bf16.mxu0 %v1267
        %3962 = vmatpush1.bf16.msra.mxu0 %v1266
        %3963 = vmatprep.subr.bf16.mxu0 %v1271
        %3964 = vmatpush1.bf16.msra.mxu0 %v1270
        %3965 = vmatprep.mubr.bf16.mxu0 %v2694
        %3966 = vmatmul.mubr.bf16.gmra.mrb[0].mxu0 %v2693
        %v3967 = vpop.f32.mrb[0].mxu0
        %v3968 = vadd.f32 %v3927, %v3967
        %v3969 = vpop.f32.mrb[0].mxu0
        %v3970 = vadd.f32 %v3929, %v3969
        %v3971 = vpop.f32.mrb[0].mxu0
        %v3972 = vpop.f32.mrb[0].mxu0
        %3973 = vdwg.mxu0
        %3974 = vmatprep.subr.bf16.mxu0 %v1275
        %3975 = vmatpush1.bf16.msra.mxu0 %v1274
        %3976 = vmatprep.subr.bf16.mxu0 %v1279
        %3977 = vmatpush1.bf16.msra.mxu0 %v1278
        %3978 = vmatprep.subr.bf16.mxu0 %v1283
        %3979 = vmatpush1.bf16.msra.mxu0 %v1282
        %3980 = vmatprep.subr.bf16.mxu0 %v1287
        %3981 = vmatpush1.bf16.msra.mxu0 %v1286
        %3982 = vmatprep.subr.bf16.mxu0 %v1291
        %3983 = vmatpush1.bf16.msra.mxu0 %v1290
        %3984 = vmatprep.subr.bf16.mxu0 %v1295
        %3985 = vmatpush1.bf16.msra.mxu0 %v1294
        %3986 = vmatprep.subr.bf16.mxu0 %v1299
        %3987 = vmatpush1.bf16.msra.mxu0 %v1298
        %3988 = vmatprep.subr.bf16.mxu0 %v1303
        %3989 = vmatpush1.bf16.msra.mxu0 %v1302
        %3990 = vmatprep.subr.bf16.mxu0 %v1307
        %3991 = vmatpush1.bf16.msra.mxu0 %v1306
        %3992 = vmatprep.subr.bf16.mxu0 %v1311
        %3993 = vmatpush1.bf16.msra.mxu0 %v1310
        %3994 = vmatprep.subr.bf16.mxu0 %v1315
        %3995 = vmatpush1.bf16.msra.mxu0 %v1314
        %3996 = vmatprep.subr.bf16.mxu0 %v1319
        %3997 = vmatpush1.bf16.msra.mxu0 %v1318
        %3998 = vmatprep.subr.bf16.mxu0 %v1323
        %3999 = vmatpush1.bf16.msra.mxu0 %v1322
        %4000 = vmatprep.subr.bf16.mxu0 %v1327
        %4001 = vmatpush1.bf16.msra.mxu0 %v1326
        %4002 = vmatprep.subr.bf16.mxu0 %v1331
        %4003 = vmatpush1.bf16.msra.mxu0 %v1330
        %4004 = vmatprep.subr.bf16.mxu0 %v1335
        %4005 = vmatpush1.bf16.msra.mxu0 %v1334
        %4006 = vmatprep.mubr.bf16.mxu0 %v2696
        %4007 = vmatmul.mubr.bf16.gmra.mrb[0].mxu0 %v2695
        %v4008 = vpop.f32.mrb[0].mxu0
        %v4009 = vadd.f32 %v3968, %v4008
        %v4010 = vpop.f32.mrb[0].mxu0
        %v4011 = vadd.f32 %v3970, %v4010
        %v4012 = vpop.f32.mrb[0].mxu0
        %v4013 = vpop.f32.mrb[0].mxu0
        %4014 = vdwg.mxu0
        %4015 = vmatprep.subr.bf16.mxu0 %v1339
        %4016 = vmatpush1.bf16.msra.mxu0 %v1338
        %4017 = vmatprep.subr.bf16.mxu0 %v1343
        %4018 = vmatpush1.bf16.msra.mxu0 %v1342
        %4019 = vmatprep.subr.bf16.mxu0 %v1347
        %4020 = vmatpush1.bf16.msra.mxu0 %v1346
        %4021 = vmatprep.subr.bf16.mxu0 %v1351
        %4022 = vmatpush1.bf16.msra.mxu0 %v1350
        %4023 = vmatprep.subr.bf16.mxu0 %v1355
        %4024 = vmatpush1.bf16.msra.mxu0 %v1354
        %4025 = vmatprep.subr.bf16.mxu0 %v1359
        %4026 = vmatpush1.bf16.msra.mxu0 %v1358
        %4027 = vmatprep.subr.bf16.mxu0 %v1363
        %4028 = vmatpush1.bf16.msra.mxu0 %v1362
        %4029 = vmatprep.subr.bf16.mxu0 %v1367
        %4030 = vmatpush1.bf16.msra.mxu0 %v1366
        %4031 = vmatprep.subr.bf16.mxu0 %v1371
        %4032 = vmatpush1.bf16.msra.mxu0 %v1370
        %4033 = vmatprep.subr.bf16.mxu0 %v1375
        %4034 = vmatpush1.bf16.msra.mxu0 %v1374
        %4035 = vmatprep.subr.bf16.mxu0 %v1379
        %4036 = vmatpush1.bf16.msra.mxu0 %v1378
        %4037 = vmatprep.subr.bf16.mxu0 %v1383
        %4038 = vmatpush1.bf16.msra.mxu0 %v1382
        %4039 = vmatprep.subr.bf16.mxu0 %v1387
        %4040 = vmatpush1.bf16.msra.mxu0 %v1386
        %4041 = vmatprep.subr.bf16.mxu0 %v1391
        %4042 = vmatpush1.bf16.msra.mxu0 %v1390
        %4043 = vmatprep.subr.bf16.mxu0 %v1395
        %4044 = vmatpush1.bf16.msra.mxu0 %v1394
        %4045 = vmatprep.subr.bf16.mxu0 %v1399
        %4046 = vmatpush1.bf16.msra.mxu0 %v1398
        %4047 = vmatprep.mubr.bf16.mxu0 %v2698
        %4048 = vmatmul.mubr.bf16.gmra.mrb[0].mxu0 %v2697
        %v4049 = vpop.f32.mrb[0].mxu0
        %v4050 = vadd.f32 %v4009, %v4049
        %v4051 = vpop.f32.mrb[0].mxu0
        %v4052 = vadd.f32 %v4011, %v4051
        %v4053 = vpop.f32.mrb[0].mxu0
        %v4054 = vpop.f32.mrb[0].mxu0
        %4055 = vdwg.mxu0
        %4056 = vmatprep.subr.bf16.mxu0 %v1403
        %4057 = vmatpush1.bf16.msra.mxu0 %v1402
        %4058 = vmatprep.subr.bf16.mxu0 %v1407
        %4059 = vmatpush1.bf16.msra.mxu0 %v1406
        %4060 = vmatprep.subr.bf16.mxu0 %v1411
        %4061 = vmatpush1.bf16.msra.mxu0 %v1410
        %4062 = vmatprep.subr.bf16.mxu0 %v1415
        %4063 = vmatpush1.bf16.msra.mxu0 %v1414
        %4064 = vmatprep.subr.bf16.mxu0 %v1419
        %4065 = vmatpush1.bf16.msra.mxu0 %v1418
        %4066 = vmatprep.subr.bf16.mxu0 %v1423
        %4067 = vmatpush1.bf16.msra.mxu0 %v1422
        %4068 = vmatprep.subr.bf16.mxu0 %v1427
        %4069 = vmatpush1.bf16.msra.mxu0 %v1426
        %4070 = vmatprep.subr.bf16.mxu0 %v1431
        %4071 = vmatpush1.bf16.msra.mxu0 %v1430
        %4072 = vmatprep.subr.bf16.mxu0 %v1435
        %4073 = vmatpush1.bf16.msra.mxu0 %v1434
        %4074 = vmatprep.subr.bf16.mxu0 %v1439
        %4075 = vmatpush1.bf16.msra.mxu0 %v1438
        %4076 = vmatprep.subr.bf16.mxu0 %v1443
        %4077 = vmatpush1.bf16.msra.mxu0 %v1442
        %4078 = vmatprep.subr.bf16.mxu0 %v1447
        %4079 = vmatpush1.bf16.msra.mxu0 %v1446
        %4080 = vmatprep.subr.bf16.mxu0 %v1451
        %4081 = vmatpush1.bf16.msra.mxu0 %v1450
        %4082 = vmatprep.subr.bf16.mxu0 %v1455
        %4083 = vmatpush1.bf16.msra.mxu0 %v1454
        %4084 = vmatprep.subr.bf16.mxu0 %v1459
        %4085 = vmatpush1.bf16.msra.mxu0 %v1458
        %4086 = vmatprep.subr.bf16.mxu0 %v1463
        %4087 = vmatpush1.bf16.msra.mxu0 %v1462
        %4088 = vmatprep.mubr.bf16.mxu0 %v2700
        %4089 = vmatmul.mubr.bf16.gmra.mrb[0].mxu0 %v2699
        %v4090 = vpop.f32.mrb[0].mxu0
        %v4091 = vadd.f32 %v4050, %v4090
        %v4092 = vpop.f32.mrb[0].mxu0
        %v4093 = vadd.f32 %v4052, %v4092
        %v4094 = vpop.f32.mrb[0].mxu0
        %v4095 = vpop.f32.mrb[0].mxu0
        %4096 = vdwg.mxu0
        %4097 = vmatprep.subr.bf16.mxu0 %v1467
        %4098 = vmatpush1.bf16.msra.mxu0 %v1466
        %4099 = vmatprep.subr.bf16.mxu0 %v1471
        %4100 = vmatpush1.bf16.msra.mxu0 %v1470
        %4101 = vmatprep.subr.bf16.mxu0 %v1475
        %4102 = vmatpush1.bf16.msra.mxu0 %v1474
        %4103 = vmatprep.subr.bf16.mxu0 %v1479
        %4104 = vmatpush1.bf16.msra.mxu0 %v1478
        %4105 = vmatprep.subr.bf16.mxu0 %v1483
        %4106 = vmatpush1.bf16.msra.mxu0 %v1482
        %4107 = vmatprep.subr.bf16.mxu0 %v1487
        %4108 = vmatpush1.bf16.msra.mxu0 %v1486
        %4109 = vmatprep.subr.bf16.mxu0 %v1491
        %4110 = vmatpush1.bf16.msra.mxu0 %v1490
        %4111 = vmatprep.subr.bf16.mxu0 %v1495
        %4112 = vmatpush1.bf16.msra.mxu0 %v1494
        %4113 = vmatprep.subr.bf16.mxu0 %v1499
        %4114 = vmatpush1.bf16.msra.mxu0 %v1498
        %4115 = vmatprep.subr.bf16.mxu0 %v1503
        %4116 = vmatpush1.bf16.msra.mxu0 %v1502
        %4117 = vmatprep.subr.bf16.mxu0 %v1507
        %4118 = vmatpush1.bf16.msra.mxu0 %v1506
        %4119 = vmatprep.subr.bf16.mxu0 %v1511
        %4120 = vmatpush1.bf16.msra.mxu0 %v1510
        %4121 = vmatprep.subr.bf16.mxu0 %v1515
        %4122 = vmatpush1.bf16.msra.mxu0 %v1514
        %4123 = vmatprep.subr.bf16.mxu0 %v1519
        %4124 = vmatpush1.bf16.msra.mxu0 %v1518
        %4125 = vmatprep.subr.bf16.mxu0 %v1523
        %4126 = vmatpush1.bf16.msra.mxu0 %v1522
        %4127 = vmatprep.subr.bf16.mxu0 %v1527
        %4128 = vmatpush1.bf16.msra.mxu0 %v1526
        %4129 = vmatprep.mubr.bf16.mxu0 %v2702
        %4130 = vmatmul.mubr.bf16.gmra.mrb[0].mxu0 %v2701
        %v4131 = vpop.f32.mrb[0].mxu0
        %v4132 = vadd.f32 %v4091, %v4131
        %v4133 = vpop.f32.mrb[0].mxu0
        %v4134 = vadd.f32 %v4093, %v4133
        %v4135 = vpop.f32.mrb[0].mxu0
        %v4136 = vpop.f32.mrb[0].mxu0
        %4137 = vdwg.mxu0
        %4138 = vmatprep.subr.bf16.mxu0 %v1531
        %4139 = vmatpush1.bf16.msra.mxu0 %v1530
        %4140 = vmatprep.subr.bf16.mxu0 %v1535
        %4141 = vmatpush1.bf16.msra.mxu0 %v1534
        %4142 = vmatprep.subr.bf16.mxu0 %v1539
        %4143 = vmatpush1.bf16.msra.mxu0 %v1538
        %4144 = vmatprep.subr.bf16.mxu0 %v1543
        %4145 = vmatpush1.bf16.msra.mxu0 %v1542
        %4146 = vmatprep.subr.bf16.mxu0 %v1547
        %4147 = vmatpush1.bf16.msra.mxu0 %v1546
        %4148 = vmatprep.subr.bf16.mxu0 %v1551
        %4149 = vmatpush1.bf16.msra.mxu0 %v1550
        %4150 = vmatprep.subr.bf16.mxu0 %v1555
        %4151 = vmatpush1.bf16.msra.mxu0 %v1554
        %4152 = vmatprep.subr.bf16.mxu0 %v1559
        %4153 = vmatpush1.bf16.msra.mxu0 %v1558
        %4154 = vmatprep.subr.bf16.mxu0 %v1563
        %4155 = vmatpush1.bf16.msra.mxu0 %v1562
        %4156 = vmatprep.subr.bf16.mxu0 %v1567
        %4157 = vmatpush1.bf16.msra.mxu0 %v1566
        %4158 = vmatprep.subr.bf16.mxu0 %v1571
        %4159 = vmatpush1.bf16.msra.mxu0 %v1570
        %4160 = vmatprep.subr.bf16.mxu0 %v1575
        %4161 = vmatpush1.bf16.msra.mxu0 %v1574
        %4162 = vmatprep.subr.bf16.mxu0 %v1579
        %4163 = vmatpush1.bf16.msra.mxu0 %v1578
        %4164 = vmatprep.subr.bf16.mxu0 %v1583
        %4165 = vmatpush1.bf16.msra.mxu0 %v1582
        %4166 = vmatprep.subr.bf16.mxu0 %v1587
        %4167 = vmatpush1.bf16.msra.mxu0 %v1586
        %4168 = vmatprep.subr.bf16.mxu0 %v1591
        %4169 = vmatpush1.bf16.msra.mxu0 %v1590
        %4170 = vmatprep.mubr.bf16.mxu0 %v2704
        %4171 = vmatmul.mubr.bf16.gmra.mrb[0].mxu0 %v2703
        %v4172 = vpop.f32.mrb[0].mxu0
        %v4173 = vadd.f32 %v4132, %v4172
        %v4174 = vpop.f32.mrb[0].mxu0
        %v4175 = vadd.f32 %v4134, %v4174
        %v4176 = vpop.f32.mrb[0].mxu0
        %v4177 = vpop.f32.mrb[0].mxu0
        %4178 = vdwg.mxu0
        %4179 = vmatprep.subr.bf16.mxu0 %v1595
        %4180 = vmatpush1.bf16.msra.mxu0 %v1594
        %4181 = vmatprep.subr.bf16.mxu0 %v1599
        %4182 = vmatpush1.bf16.msra.mxu0 %v1598
        %4183 = vmatprep.subr.bf16.mxu0 %v1603
        %4184 = vmatpush1.bf16.msra.mxu0 %v1602
        %4185 = vmatprep.subr.bf16.mxu0 %v1607
        %4186 = vmatpush1.bf16.msra.mxu0 %v1606
        %4187 = vmatprep.subr.bf16.mxu0 %v1611
        %4188 = vmatpush1.bf16.msra.mxu0 %v1610
        %4189 = vmatprep.subr.bf16.mxu0 %v1615
        %4190 = vmatpush1.bf16.msra.mxu0 %v1614
        %4191 = vmatprep.subr.bf16.mxu0 %v1619
        %4192 = vmatpush1.bf16.msra.mxu0 %v1618
        %4193 = vmatprep.subr.bf16.mxu0 %v1623
        %4194 = vmatpush1.bf16.msra.mxu0 %v1622
        %4195 = vmatprep.subr.bf16.mxu0 %v1627
        %4196 = vmatpush1.bf16.msra.mxu0 %v1626
        %4197 = vmatprep.subr.bf16.mxu0 %v1631
        %4198 = vmatpush1.bf16.msra.mxu0 %v1630
        %4199 = vmatprep.subr.bf16.mxu0 %v1635
        %4200 = vmatpush1.bf16.msra.mxu0 %v1634
        %4201 = vmatprep.subr.bf16.mxu0 %v1639
        %4202 = vmatpush1.bf16.msra.mxu0 %v1638
        %4203 = vmatprep.subr.bf16.mxu0 %v1643
        %4204 = vmatpush1.bf16.msra.mxu0 %v1642
        %4205 = vmatprep.subr.bf16.mxu0 %v1647
        %4206 = vmatpush1.bf16.msra.mxu0 %v1646
        %4207 = vmatprep.subr.bf16.mxu0 %v1651
        %4208 = vmatpush1.bf16.msra.mxu0 %v1650
        %4209 = vmatprep.subr.bf16.mxu0 %v1655
        %4210 = vmatpush1.bf16.msra.mxu0 %v1654
        %4211 = vmatprep.mubr.bf16.mxu0 %v2706
        %4212 = vmatmul.mubr.bf16.gmra.mrb[0].mxu0 %v2705
        %v4213 = vpop.f32.mrb[0].mxu0
        %v4214 = vadd.f32 %v4173, %v4213
        %v4215 = vpop.f32.mrb[0].mxu0
        %v4216 = vadd.f32 %v4175, %v4215
        %v4217 = vpop.f32.mrb[0].mxu0
        %v4218 = vpop.f32.mrb[0].mxu0
        %4219 = vdwg.mxu0
        %4220 = vmatprep.subr.bf16.mxu0 %v1659
        %4221 = vmatpush1.bf16.msra.mxu0 %v1658
        %4222 = vmatprep.subr.bf16.mxu0 %v1663
        %4223 = vmatpush1.bf16.msra.mxu0 %v1662
        %4224 = vmatprep.subr.bf16.mxu0 %v1667
        %4225 = vmatpush1.bf16.msra.mxu0 %v1666
        %4226 = vmatprep.subr.bf16.mxu0 %v1671
        %4227 = vmatpush1.bf16.msra.mxu0 %v1670
        %4228 = vmatprep.subr.bf16.mxu0 %v1675
        %4229 = vmatpush1.bf16.msra.mxu0 %v1674
        %4230 = vmatprep.subr.bf16.mxu0 %v1679
        %4231 = vmatpush1.bf16.msra.mxu0 %v1678
        %4232 = vmatprep.subr.bf16.mxu0 %v1683
        %4233 = vmatpush1.bf16.msra.mxu0 %v1682
        %4234 = vmatprep.subr.bf16.mxu0 %v1687
        %4235 = vmatpush1.bf16.msra.mxu0 %v1686
        %4236 = vmatprep.subr.bf16.mxu0 %v1691
        %4237 = vmatpush1.bf16.msra.mxu0 %v1690
        %4238 = vmatprep.subr.bf16.mxu0 %v1695
        %4239 = vmatpush1.bf16.msra.mxu0 %v1694
        %4240 = vmatprep.subr.bf16.mxu0 %v1699
        %4241 = vmatpush1.bf16.msra.mxu0 %v1698
        %4242 = vmatprep.subr.bf16.mxu0 %v1703
        %4243 = vmatpush1.bf16.msra.mxu0 %v1702
        %4244 = vmatprep.subr.bf16.mxu0 %v1707
        %4245 = vmatpush1.bf16.msra.mxu0 %v1706
        %4246 = vmatprep.subr.bf16.mxu0 %v1711
        %4247 = vmatpush1.bf16.msra.mxu0 %v1710
        %4248 = vmatprep.subr.bf16.mxu0 %v1715
        %4249 = vmatpush1.bf16.msra.mxu0 %v1714
        %4250 = vmatprep.subr.bf16.mxu0 %v1719
        %4251 = vmatpush1.bf16.msra.mxu0 %v1718
        %4252 = vmatprep.mubr.bf16.mxu0 %v2708
        %4253 = vmatmul.mubr.bf16.gmra.mrb[0].mxu0 %v2707
        %v4254 = vpop.f32.mrb[0].mxu0
        %v4255 = vadd.f32 %v4214, %v4254
        %v4256 = vpop.f32.mrb[0].mxu0
        %v4257 = vadd.f32 %v4216, %v4256
        %v4258 = vpop.f32.mrb[0].mxu0
        %v4259 = vpop.f32.mrb[0].mxu0
        %4260 = vdwg.mxu0
        %4261 = vmatprep.subr.bf16.mxu0 %v1723
        %4262 = vmatpush1.bf16.msra.mxu0 %v1722
        %4263 = vmatprep.subr.bf16.mxu0 %v1727
        %4264 = vmatpush1.bf16.msra.mxu0 %v1726
        %4265 = vmatprep.subr.bf16.mxu0 %v1731
        %4266 = vmatpush1.bf16.msra.mxu0 %v1730
        %4267 = vmatprep.subr.bf16.mxu0 %v1735
        %4268 = vmatpush1.bf16.msra.mxu0 %v1734
        %4269 = vmatprep.subr.bf16.mxu0 %v1739
        %4270 = vmatpush1.bf16.msra.mxu0 %v1738
        %4271 = vmatprep.subr.bf16.mxu0 %v1743
        %4272 = vmatpush1.bf16.msra.mxu0 %v1742
        %4273 = vmatprep.subr.bf16.mxu0 %v1747
        %4274 = vmatpush1.bf16.msra.mxu0 %v1746
        %4275 = vmatprep.subr.bf16.mxu0 %v1751
        %4276 = vmatpush1.bf16.msra.mxu0 %v1750
        %4277 = vmatprep.subr.bf16.mxu0 %v1755
        %4278 = vmatpush1.bf16.msra.mxu0 %v1754
        %4279 = vmatprep.subr.bf16.mxu0 %v1759
        %4280 = vmatpush1.bf16.msra.mxu0 %v1758
        %4281 = vmatprep.subr.bf16.mxu0 %v1763
        %4282 = vmatpush1.bf16.msra.mxu0 %v1762
        %4283 = vmatprep.subr.bf16.mxu0 %v1767
        %4284 = vmatpush1.bf16.msra.mxu0 %v1766
        %4285 = vmatprep.subr.bf16.mxu0 %v1771
        %4286 = vmatpush1.bf16.msra.mxu0 %v1770
        %4287 = vmatprep.subr.bf16.mxu0 %v1775
        %4288 = vmatpush1.bf16.msra.mxu0 %v1774
        %4289 = vmatprep.subr.bf16.mxu0 %v1779
        %4290 = vmatpush1.bf16.msra.mxu0 %v1778
        %4291 = vmatprep.subr.bf16.mxu0 %v1783
        %4292 = vmatpush1.bf16.msra.mxu0 %v1782
        %4293 = vmatprep.mubr.bf16.mxu0 %v2710
        %4294 = vmatmul.mubr.bf16.gmra.mrb[0].mxu0 %v2709
        %v4295 = vpop.f32.mrb[0].mxu0
        %v4296 = vadd.f32 %v4255, %v4295
        %v4297 = vpop.f32.mrb[0].mxu0
        %v4298 = vadd.f32 %v4257, %v4297
        %v4299 = vpop.f32.mrb[0].mxu0
        %v4300 = vpop.f32.mrb[0].mxu0
        %4301 = vdwg.mxu0
        %4302 = vmatprep.subr.bf16.mxu0 %v1787
        %4303 = vmatpush1.bf16.msra.mxu0 %v1786
        %4304 = vmatprep.subr.bf16.mxu0 %v1791
        %4305 = vmatpush1.bf16.msra.mxu0 %v1790
        %4306 = vmatprep.subr.bf16.mxu0 %v1795
        %4307 = vmatpush1.bf16.msra.mxu0 %v1794
        %4308 = vmatprep.subr.bf16.mxu0 %v1799
        %4309 = vmatpush1.bf16.msra.mxu0 %v1798
        %4310 = vmatprep.subr.bf16.mxu0 %v1803
        %4311 = vmatpush1.bf16.msra.mxu0 %v1802
        %4312 = vmatprep.subr.bf16.mxu0 %v1807
        %4313 = vmatpush1.bf16.msra.mxu0 %v1806
        %4314 = vmatprep.subr.bf16.mxu0 %v1811
        %4315 = vmatpush1.bf16.msra.mxu0 %v1810
        %4316 = vmatprep.subr.bf16.mxu0 %v1815
        %4317 = vmatpush1.bf16.msra.mxu0 %v1814
        %4318 = vmatprep.subr.bf16.mxu0 %v1819
        %4319 = vmatpush1.bf16.msra.mxu0 %v1818
        %4320 = vmatprep.subr.bf16.mxu0 %v1823
        %4321 = vmatpush1.bf16.msra.mxu0 %v1822
        %4322 = vmatprep.subr.bf16.mxu0 %v1827
        %4323 = vmatpush1.bf16.msra.mxu0 %v1826
        %4324 = vmatprep.subr.bf16.mxu0 %v1831
        %4325 = vmatpush1.bf16.msra.mxu0 %v1830
        %4326 = vmatprep.subr.bf16.mxu0 %v1835
        %4327 = vmatpush1.bf16.msra.mxu0 %v1834
        %4328 = vmatprep.subr.bf16.mxu0 %v1839
        %4329 = vmatpush1.bf16.msra.mxu0 %v1838
        %4330 = vmatprep.subr.bf16.mxu0 %v1843
        %4331 = vmatpush1.bf16.msra.mxu0 %v1842
        %4332 = vmatprep.subr.bf16.mxu0 %v1847
        %4333 = vmatpush1.bf16.msra.mxu0 %v1846
        %4334 = vmatprep.mubr.bf16.mxu0 %v2712
        %4335 = vmatmul.mubr.bf16.gmra.mrb[0].mxu0 %v2711
        %v4336 = vpop.f32.mrb[0].mxu0
        %v4337 = vadd.f32 %v4296, %v4336
        %v4338 = vpop.f32.mrb[0].mxu0
        %v4339 = vadd.f32 %v4298, %v4338
        %v4340 = vpop.f32.mrb[0].mxu0
        %v4341 = vpop.f32.mrb[0].mxu0
        %4342 = vdwg.mxu0
        %4343 = vmatprep.subr.bf16.mxu0 %v1851
        %4344 = vmatpush1.bf16.msra.mxu0 %v1850
        %4345 = vmatprep.subr.bf16.mxu0 %v1855
        %4346 = vmatpush1.bf16.msra.mxu0 %v1854
        %4347 = vmatprep.subr.bf16.mxu0 %v1859
        %4348 = vmatpush1.bf16.msra.mxu0 %v1858
        %4349 = vmatprep.subr.bf16.mxu0 %v1863
        %4350 = vmatpush1.bf16.msra.mxu0 %v1862
        %4351 = vmatprep.subr.bf16.mxu0 %v1867
        %4352 = vmatpush1.bf16.msra.mxu0 %v1866
        %4353 = vmatprep.subr.bf16.mxu0 %v1871
        %4354 = vmatpush1.bf16.msra.mxu0 %v1870
        %4355 = vmatprep.subr.bf16.mxu0 %v1875
        %4356 = vmatpush1.bf16.msra.mxu0 %v1874
        %4357 = vmatprep.subr.bf16.mxu0 %v1879
        %4358 = vmatpush1.bf16.msra.mxu0 %v1878
        %4359 = vmatprep.subr.bf16.mxu0 %v1883
        %4360 = vmatpush1.bf16.msra.mxu0 %v1882
        %4361 = vmatprep.subr.bf16.mxu0 %v1887
        %4362 = vmatpush1.bf16.msra.mxu0 %v1886
        %4363 = vmatprep.subr.bf16.mxu0 %v1891
        %4364 = vmatpush1.bf16.msra.mxu0 %v1890
        %4365 = vmatprep.subr.bf16.mxu0 %v1895
        %4366 = vmatpush1.bf16.msra.mxu0 %v1894
        %4367 = vmatprep.subr.bf16.mxu0 %v1899
        %4368 = vmatpush1.bf16.msra.mxu0 %v1898
        %4369 = vmatprep.subr.bf16.mxu0 %v1903
        %4370 = vmatpush1.bf16.msra.mxu0 %v1902
        %4371 = vmatprep.subr.bf16.mxu0 %v1907
        %4372 = vmatpush1.bf16.msra.mxu0 %v1906
        %4373 = vmatprep.subr.bf16.mxu0 %v1911
        %4374 = vmatpush1.bf16.msra.mxu0 %v1910
        %4375 = vmatprep.mubr.bf16.mxu0 %v2714
        %4376 = vmatmul.mubr.bf16.gmra.mrb[0].mxu0 %v2713
        %v4377 = vpop.f32.mrb[0].mxu0
        %v4378 = vadd.f32 %v4337, %v4377
        %v4379 = vpop.f32.mrb[0].mxu0
        %v4380 = vadd.f32 %v4339, %v4379
        %v4381 = vpop.f32.mrb[0].mxu0
        %v4382 = vpop.f32.mrb[0].mxu0
        %4383 = vdwg.mxu0
        %4384 = vmatprep.subr.bf16.mxu0 %v1915
        %4385 = vmatpush1.bf16.msra.mxu0 %v1914
        %4386 = vmatprep.subr.bf16.mxu0 %v1919
        %4387 = vmatpush1.bf16.msra.mxu0 %v1918
        %4388 = vmatprep.subr.bf16.mxu0 %v1923
        %4389 = vmatpush1.bf16.msra.mxu0 %v1922
        %4390 = vmatprep.subr.bf16.mxu0 %v1927
        %4391 = vmatpush1.bf16.msra.mxu0 %v1926
        %4392 = vmatprep.subr.bf16.mxu0 %v1931
        %4393 = vmatpush1.bf16.msra.mxu0 %v1930
        %4394 = vmatprep.subr.bf16.mxu0 %v1935
        %4395 = vmatpush1.bf16.msra.mxu0 %v1934
        %4396 = vmatprep.subr.bf16.mxu0 %v1939
        %4397 = vmatpush1.bf16.msra.mxu0 %v1938
        %4398 = vmatprep.subr.bf16.mxu0 %v1943
        %4399 = vmatpush1.bf16.msra.mxu0 %v1942
        %4400 = vmatprep.subr.bf16.mxu0 %v1947
        %4401 = vmatpush1.bf16.msra.mxu0 %v1946
        %4402 = vmatprep.subr.bf16.mxu0 %v1951
        %4403 = vmatpush1.bf16.msra.mxu0 %v1950
        %4404 = vmatprep.subr.bf16.mxu0 %v1955
        %4405 = vmatpush1.bf16.msra.mxu0 %v1954
        %4406 = vmatprep.subr.bf16.mxu0 %v1959
        %4407 = vmatpush1.bf16.msra.mxu0 %v1958
        %4408 = vmatprep.subr.bf16.mxu0 %v1963
        %4409 = vmatpush1.bf16.msra.mxu0 %v1962
        %4410 = vmatprep.subr.bf16.mxu0 %v1967
        %4411 = vmatpush1.bf16.msra.mxu0 %v1966
        %4412 = vmatprep.subr.bf16.mxu0 %v1971
        %4413 = vmatpush1.bf16.msra.mxu0 %v1970
        %4414 = vmatprep.subr.bf16.mxu0 %v1975
        %4415 = vmatpush1.bf16.msra.mxu0 %v1974
        %4416 = vmatprep.mubr.bf16.mxu0 %v2716
        %4417 = vmatmul.mubr.bf16.gmra.mrb[0].mxu0 %v2715
        %v4418 = vpop.f32.mrb[0].mxu0
        %v4419 = vadd.f32 %v4378, %v4418
        %v4420 = vpop.f32.mrb[0].mxu0
        %v4421 = vadd.f32 %v4380, %v4420
        %v4422 = vpop.f32.mrb[0].mxu0
        %v4423 = vpop.f32.mrb[0].mxu0
        %4424 = vdwg.mxu0
        %4425 = vmatprep.subr.bf16.mxu0 %v1979
        %4426 = vmatpush1.bf16.msra.mxu0 %v1978
        %4427 = vmatprep.subr.bf16.mxu0 %v1983
        %4428 = vmatpush1.bf16.msra.mxu0 %v1982
        %4429 = vmatprep.subr.bf16.mxu0 %v1987
        %4430 = vmatpush1.bf16.msra.mxu0 %v1986
        %4431 = vmatprep.subr.bf16.mxu0 %v1991
        %4432 = vmatpush1.bf16.msra.mxu0 %v1990
        %4433 = vmatprep.subr.bf16.mxu0 %v1995
        %4434 = vmatpush1.bf16.msra.mxu0 %v1994
        %4435 = vmatprep.subr.bf16.mxu0 %v1999
        %4436 = vmatpush1.bf16.msra.mxu0 %v1998
        %4437 = vmatprep.subr.bf16.mxu0 %v2003
        %4438 = vmatpush1.bf16.msra.mxu0 %v2002
        %4439 = vmatprep.subr.bf16.mxu0 %v2007
        %4440 = vmatpush1.bf16.msra.mxu0 %v2006
        %4441 = vmatprep.subr.bf16.mxu0 %v2011
        %4442 = vmatpush1.bf16.msra.mxu0 %v2010
        %4443 = vmatprep.subr.bf16.mxu0 %v2015
        %4444 = vmatpush1.bf16.msra.mxu0 %v2014
        %4445 = vmatprep.subr.bf16.mxu0 %v2019
        %4446 = vmatpush1.bf16.msra.mxu0 %v2018
        %4447 = vmatprep.subr.bf16.mxu0 %v2023
        %4448 = vmatpush1.bf16.msra.mxu0 %v2022
        %4449 = vmatprep.subr.bf16.mxu0 %v2027
        %4450 = vmatpush1.bf16.msra.mxu0 %v2026
        %4451 = vmatprep.subr.bf16.mxu0 %v2031
        %4452 = vmatpush1.bf16.msra.mxu0 %v2030
        %4453 = vmatprep.subr.bf16.mxu0 %v2035
        %4454 = vmatpush1.bf16.msra.mxu0 %v2034
        %4455 = vmatprep.subr.bf16.mxu0 %v2039
        %4456 = vmatpush1.bf16.msra.mxu0 %v2038
        %4457 = vmatprep.mubr.bf16.mxu0 %v2718
        %4458 = vmatmul.mubr.bf16.gmra.mrb[0].mxu0 %v2717
        %v4459 = vpop.f32.mrb[0].mxu0
        %v4460 = vadd.f32 %v4419, %v4459
        %v4461 = vpop.f32.mrb[0].mxu0
        %v4462 = vadd.f32 %v4421, %v4461
        %v4463 = vpop.f32.mrb[0].mxu0
        %v4464 = vpop.f32.mrb[0].mxu0
        %4465 = vdwg.mxu0
        %4466 = vmatprep.subr.bf16.mxu0 %v2043
        %4467 = vmatpush1.bf16.msra.mxu0 %v2042
        %4468 = vmatprep.subr.bf16.mxu0 %v2047
        %4469 = vmatpush1.bf16.msra.mxu0 %v2046
        %4470 = vmatprep.subr.bf16.mxu0 %v2051
        %4471 = vmatpush1.bf16.msra.mxu0 %v2050
        %4472 = vmatprep.subr.bf16.mxu0 %v2055
        %4473 = vmatpush1.bf16.msra.mxu0 %v2054
        %4474 = vmatprep.subr.bf16.mxu0 %v2059
        %4475 = vmatpush1.bf16.msra.mxu0 %v2058
        %4476 = vmatprep.subr.bf16.mxu0 %v2063
        %4477 = vmatpush1.bf16.msra.mxu0 %v2062
        %4478 = vmatprep.subr.bf16.mxu0 %v2067
        %4479 = vmatpush1.bf16.msra.mxu0 %v2066
        %4480 = vmatprep.subr.bf16.mxu0 %v2071
        %4481 = vmatpush1.bf16.msra.mxu0 %v2070
        %4482 = vmatprep.subr.bf16.mxu0 %v2075
        %4483 = vmatpush1.bf16.msra.mxu0 %v2074
        %4484 = vmatprep.subr.bf16.mxu0 %v2079
        %4485 = vmatpush1.bf16.msra.mxu0 %v2078
        %4486 = vmatprep.subr.bf16.mxu0 %v2083
        %4487 = vmatpush1.bf16.msra.mxu0 %v2082
        %4488 = vmatprep.subr.bf16.mxu0 %v2087
        %4489 = vmatpush1.bf16.msra.mxu0 %v2086
        %4490 = vmatprep.subr.bf16.mxu0 %v2091
        %4491 = vmatpush1.bf16.msra.mxu0 %v2090
        %4492 = vmatprep.subr.bf16.mxu0 %v2095
        %4493 = vmatpush1.bf16.msra.mxu0 %v2094
        %4494 = vmatprep.subr.bf16.mxu0 %v2099
        %4495 = vmatpush1.bf16.msra.mxu0 %v2098
        %4496 = vmatprep.subr.bf16.mxu0 %v2103
        %4497 = vmatpush1.bf16.msra.mxu0 %v2102
        %4498 = vmatprep.mubr.bf16.mxu0 %v2720
        %4499 = vmatmul.mubr.bf16.gmra.mrb[0].mxu0 %v2719
        %v4500 = vpop.f32.mrb[0].mxu0
        %v4501 = vadd.f32 %v4460, %v4500
        %v4502 = vpop.f32.mrb[0].mxu0
        %v4503 = vadd.f32 %v4462, %v4502
        %v4504 = vpop.f32.mrb[0].mxu0
        %v4505 = vpop.f32.mrb[0].mxu0
        %4506 = vdwg.mxu0
        %4507 = vmatprep.subr.bf16.mxu0 %v2107
        %4508 = vmatpush1.bf16.msra.mxu0 %v2106
        %4509 = vmatprep.subr.bf16.mxu0 %v2111
        %4510 = vmatpush1.bf16.msra.mxu0 %v2110
        %4511 = vmatprep.subr.bf16.mxu0 %v2115
        %4512 = vmatpush1.bf16.msra.mxu0 %v2114
        %4513 = vmatprep.subr.bf16.mxu0 %v2119
        %4514 = vmatpush1.bf16.msra.mxu0 %v2118
        %4515 = vmatprep.subr.bf16.mxu0 %v2123
        %4516 = vmatpush1.bf16.msra.mxu0 %v2122
        %4517 = vmatprep.subr.bf16.mxu0 %v2127
        %4518 = vmatpush1.bf16.msra.mxu0 %v2126
        %4519 = vmatprep.subr.bf16.mxu0 %v2131
        %4520 = vmatpush1.bf16.msra.mxu0 %v2130
        %4521 = vmatprep.subr.bf16.mxu0 %v2135
        %4522 = vmatpush1.bf16.msra.mxu0 %v2134
        %4523 = vmatprep.subr.bf16.mxu0 %v2139
        %4524 = vmatpush1.bf16.msra.mxu0 %v2138
        %4525 = vmatprep.subr.bf16.mxu0 %v2143
        %4526 = vmatpush1.bf16.msra.mxu0 %v2142
        %4527 = vmatprep.subr.bf16.mxu0 %v2147
        %4528 = vmatpush1.bf16.msra.mxu0 %v2146
        %4529 = vmatprep.subr.bf16.mxu0 %v2151
        %4530 = vmatpush1.bf16.msra.mxu0 %v2150
        %4531 = vmatprep.subr.bf16.mxu0 %v2155
        %4532 = vmatpush1.bf16.msra.mxu0 %v2154
        %4533 = vmatprep.subr.bf16.mxu0 %v2159
        %4534 = vmatpush1.bf16.msra.mxu0 %v2158
        %4535 = vmatprep.subr.bf16.mxu0 %v2163
        %4536 = vmatpush1.bf16.msra.mxu0 %v2162
        %4537 = vmatprep.subr.bf16.mxu0 %v2167
        %4538 = vmatpush1.bf16.msra.mxu0 %v2166
        %4539 = vmatprep.mubr.bf16.mxu0 %v2722
        %4540 = vmatmul.mubr.bf16.gmra.mrb[0].mxu0 %v2721
        %v4541 = vpop.f32.mrb[0].mxu0
        %v4542 = vadd.f32 %v4501, %v4541
        %v4543 = vpop.f32.mrb[0].mxu0
        %v4544 = vadd.f32 %v4503, %v4543
        %v4545 = vpop.f32.mrb[0].mxu0
        %v4546 = vpop.f32.mrb[0].mxu0
        %4547 = vdwg.mxu0
        %4548 = vmatprep.subr.bf16.mxu0 %v2171
        %4549 = vmatpush1.bf16.msra.mxu0 %v2170
        %4550 = vmatprep.subr.bf16.mxu0 %v2175
        %4551 = vmatpush1.bf16.msra.mxu0 %v2174
        %4552 = vmatprep.subr.bf16.mxu0 %v2179
        %4553 = vmatpush1.bf16.msra.mxu0 %v2178
        %4554 = vmatprep.subr.bf16.mxu0 %v2183
        %4555 = vmatpush1.bf16.msra.mxu0 %v2182
        %4556 = vmatprep.subr.bf16.mxu0 %v2187
        %4557 = vmatpush1.bf16.msra.mxu0 %v2186
        %4558 = vmatprep.subr.bf16.mxu0 %v2191
        %4559 = vmatpush1.bf16.msra.mxu0 %v2190
        %4560 = vmatprep.subr.bf16.mxu0 %v2195
        %4561 = vmatpush1.bf16.msra.mxu0 %v2194
        %4562 = vmatprep.subr.bf16.mxu0 %v2199
        %4563 = vmatpush1.bf16.msra.mxu0 %v2198
        %4564 = vmatprep.subr.bf16.mxu0 %v2203
        %4565 = vmatpush1.bf16.msra.mxu0 %v2202
        %4566 = vmatprep.subr.bf16.mxu0 %v2207
        %4567 = vmatpush1.bf16.msra.mxu0 %v2206
        %4568 = vmatprep.subr.bf16.mxu0 %v2211
        %4569 = vmatpush1.bf16.msra.mxu0 %v2210
        %4570 = vmatprep.subr.bf16.mxu0 %v2215
        %4571 = vmatpush1.bf16.msra.mxu0 %v2214
        %4572 = vmatprep.subr.bf16.mxu0 %v2219
        %4573 = vmatpush1.bf16.msra.mxu0 %v2218
        %4574 = vmatprep.subr.bf16.mxu0 %v2223
        %4575 = vmatpush1.bf16.msra.mxu0 %v2222
        %4576 = vmatprep.subr.bf16.mxu0 %v2227
        %4577 = vmatpush1.bf16.msra.mxu0 %v2226
        %4578 = vmatprep.subr.bf16.mxu0 %v2231
        %4579 = vmatpush1.bf16.msra.mxu0 %v2230
        %4580 = vmatprep.mubr.bf16.mxu0 %v2724
        %4581 = vmatmul.mubr.bf16.gmra.mrb[0].mxu0 %v2723
        %v4582 = vpop.f32.mrb[0].mxu0
        %v4583 = vadd.f32 %v4542, %v4582
        %v4584 = vpop.f32.mrb[0].mxu0
        %v4585 = vadd.f32 %v4544, %v4584
        %v4586 = vpop.f32.mrb[0].mxu0
        %v4587 = vpop.f32.mrb[0].mxu0
        %4588 = vdwg.mxu0
        %4589 = vmatprep.subr.bf16.mxu0 %v2235
        %4590 = vmatpush1.bf16.msra.mxu0 %v2234
        %4591 = vmatprep.subr.bf16.mxu0 %v2239
        %4592 = vmatpush1.bf16.msra.mxu0 %v2238
        %4593 = vmatprep.subr.bf16.mxu0 %v2243
        %4594 = vmatpush1.bf16.msra.mxu0 %v2242
        %4595 = vmatprep.subr.bf16.mxu0 %v2247
        %4596 = vmatpush1.bf16.msra.mxu0 %v2246
        %4597 = vmatprep.subr.bf16.mxu0 %v2251
        %4598 = vmatpush1.bf16.msra.mxu0 %v2250
        %4599 = vmatprep.subr.bf16.mxu0 %v2255
        %4600 = vmatpush1.bf16.msra.mxu0 %v2254
        %4601 = vmatprep.subr.bf16.mxu0 %v2259
        %4602 = vmatpush1.bf16.msra.mxu0 %v2258
        %4603 = vmatprep.subr.bf16.mxu0 %v2263
        %4604 = vmatpush1.bf16.msra.mxu0 %v2262
        %4605 = vmatprep.subr.bf16.mxu0 %v2267
        %4606 = vmatpush1.bf16.msra.mxu0 %v2266
        %4607 = vmatprep.subr.bf16.mxu0 %v2271
        %4608 = vmatpush1.bf16.msra.mxu0 %v2270
        %4609 = vmatprep.subr.bf16.mxu0 %v2275
        %4610 = vmatpush1.bf16.msra.mxu0 %v2274
        %4611 = vmatprep.subr.bf16.mxu0 %v2279
        %4612 = vmatpush1.bf16.msra.mxu0 %v2278
        %4613 = vmatprep.subr.bf16.mxu0 %v2283
        %4614 = vmatpush1.bf16.msra.mxu0 %v2282
        %4615 = vmatprep.subr.bf16.mxu0 %v2287
        %4616 = vmatpush1.bf16.msra.mxu0 %v2286
        %4617 = vmatprep.subr.bf16.mxu0 %v2291
        %4618 = vmatpush1.bf16.msra.mxu0 %v2290
        %4619 = vmatprep.subr.bf16.mxu0 %v2295
        %4620 = vmatpush1.bf16.msra.mxu0 %v2294
        %4621 = vmatprep.mubr.bf16.mxu0 %v2726
        %4622 = vmatmul.mubr.bf16.gmra.mrb[0].mxu0 %v2725
        %v4623 = vpop.f32.mrb[0].mxu0
        %v4624 = vadd.f32 %v4583, %v4623
        %v4625 = vpop.f32.mrb[0].mxu0
        %v4626 = vadd.f32 %v4585, %v4625
        %v4627 = vpop.f32.mrb[0].mxu0
        %v4628 = vpop.f32.mrb[0].mxu0
        %4629 = vdwg.mxu0
        %4630 = vmatprep.subr.bf16.mxu0 %v2299
        %4631 = vmatpush1.bf16.msra.mxu0 %v2298
        %4632 = vmatprep.subr.bf16.mxu0 %v2303
        %4633 = vmatpush1.bf16.msra.mxu0 %v2302
        %4634 = vmatprep.subr.bf16.mxu0 %v2307
        %4635 = vmatpush1.bf16.msra.mxu0 %v2306
        %4636 = vmatprep.subr.bf16.mxu0 %v2311
        %4637 = vmatpush1.bf16.msra.mxu0 %v2310
        %4638 = vmatprep.subr.bf16.mxu0 %v2315
        %4639 = vmatpush1.bf16.msra.mxu0 %v2314
        %4640 = vmatprep.subr.bf16.mxu0 %v2319
        %4641 = vmatpush1.bf16.msra.mxu0 %v2318
        %4642 = vmatprep.subr.bf16.mxu0 %v2323
        %4643 = vmatpush1.bf16.msra.mxu0 %v2322
        %4644 = vmatprep.subr.bf16.mxu0 %v2327
        %4645 = vmatpush1.bf16.msra.mxu0 %v2326
        %4646 = vmatprep.subr.bf16.mxu0 %v2331
        %4647 = vmatpush1.bf16.msra.mxu0 %v2330
        %4648 = vmatprep.subr.bf16.mxu0 %v2335
        %4649 = vmatpush1.bf16.msra.mxu0 %v2334
        %4650 = vmatprep.subr.bf16.mxu0 %v2339
        %4651 = vmatpush1.bf16.msra.mxu0 %v2338
        %4652 = vmatprep.subr.bf16.mxu0 %v2343
        %4653 = vmatpush1.bf16.msra.mxu0 %v2342
        %4654 = vmatprep.subr.bf16.mxu0 %v2347
        %4655 = vmatpush1.bf16.msra.mxu0 %v2346
        %4656 = vmatprep.subr.bf16.mxu0 %v2351
        %4657 = vmatpush1.bf16.msra.mxu0 %v2350
        %4658 = vmatprep.subr.bf16.mxu0 %v2355
        %4659 = vmatpush1.bf16.msra.mxu0 %v2354
        %4660 = vmatprep.subr.bf16.mxu0 %v2359
        %4661 = vmatpush1.bf16.msra.mxu0 %v2358
        %4662 = vmatprep.mubr.bf16.mxu0 %v2728
        %4663 = vmatmul.mubr.bf16.gmra.mrb[0].mxu0 %v2727
        %v4664 = vpop.f32.mrb[0].mxu0
        %v4665 = vadd.f32 %v4624, %v4664
        %v4666 = vpop.f32.mrb[0].mxu0
        %v4667 = vadd.f32 %v4626, %v4666
        %v4668 = vpop.f32.mrb[0].mxu0
        %v4669 = vpop.f32.mrb[0].mxu0
        %4670 = vdwg.mxu0
        %4671 = vmatprep.subr.bf16.mxu0 %v2363
        %4672 = vmatpush1.bf16.msra.mxu0 %v2362
        %4673 = vmatprep.subr.bf16.mxu0 %v2367
        %4674 = vmatpush1.bf16.msra.mxu0 %v2366
        %4675 = vmatprep.subr.bf16.mxu0 %v2371
        %4676 = vmatpush1.bf16.msra.mxu0 %v2370
        %4677 = vmatprep.subr.bf16.mxu0 %v2375
        %4678 = vmatpush1.bf16.msra.mxu0 %v2374
        %4679 = vmatprep.subr.bf16.mxu0 %v2379
        %4680 = vmatpush1.bf16.msra.mxu0 %v2378
        %4681 = vmatprep.subr.bf16.mxu0 %v2383
        %4682 = vmatpush1.bf16.msra.mxu0 %v2382
        %4683 = vmatprep.subr.bf16.mxu0 %v2387
        %4684 = vmatpush1.bf16.msra.mxu0 %v2386
        %4685 = vmatprep.subr.bf16.mxu0 %v2391
        %4686 = vmatpush1.bf16.msra.mxu0 %v2390
        %4687 = vmatprep.subr.bf16.mxu0 %v2395
        %4688 = vmatpush1.bf16.msra.mxu0 %v2394
        %4689 = vmatprep.subr.bf16.mxu0 %v2399
        %4690 = vmatpush1.bf16.msra.mxu0 %v2398
        %4691 = vmatprep.subr.bf16.mxu0 %v2403
        %4692 = vmatpush1.bf16.msra.mxu0 %v2402
        %4693 = vmatprep.subr.bf16.mxu0 %v2407
        %4694 = vmatpush1.bf16.msra.mxu0 %v2406
        %4695 = vmatprep.subr.bf16.mxu0 %v2411
        %4696 = vmatpush1.bf16.msra.mxu0 %v2410
        %4697 = vmatprep.subr.bf16.mxu0 %v2415
        %4698 = vmatpush1.bf16.msra.mxu0 %v2414
        %4699 = vmatprep.subr.bf16.mxu0 %v2419
        %4700 = vmatpush1.bf16.msra.mxu0 %v2418
        %4701 = vmatprep.subr.bf16.mxu0 %v2423
        %4702 = vmatpush1.bf16.msra.mxu0 %v2422
        %4703 = vmatprep.mubr.bf16.mxu0 %v2730
        %4704 = vmatmul.mubr.bf16.gmra.mrb[0].mxu0 %v2729
        %v4705 = vpop.f32.mrb[0].mxu0
        %v4706 = vadd.f32 %v4665, %v4705
        %v4707 = vpop.f32.mrb[0].mxu0
        %v4708 = vadd.f32 %v4667, %v4707
        %v4709 = vpop.f32.mrb[0].mxu0
        %v4710 = vpop.f32.mrb[0].mxu0
        %4711 = vdwg.mxu0
        %4712 = vmatprep.subr.bf16.mxu0 %v2427
        %4713 = vmatpush1.bf16.msra.mxu0 %v2426
        %4714 = vmatprep.subr.bf16.mxu0 %v2431
        %4715 = vmatpush1.bf16.msra.mxu0 %v2430
        %4716 = vmatprep.subr.bf16.mxu0 %v2435
        %4717 = vmatpush1.bf16.msra.mxu0 %v2434
        %4718 = vmatprep.subr.bf16.mxu0 %v2439
        %4719 = vmatpush1.bf16.msra.mxu0 %v2438
        %4720 = vmatprep.subr.bf16.mxu0 %v2443
        %4721 = vmatpush1.bf16.msra.mxu0 %v2442
        %4722 = vmatprep.subr.bf16.mxu0 %v2447
        %4723 = vmatpush1.bf16.msra.mxu0 %v2446
        %4724 = vmatprep.subr.bf16.mxu0 %v2451
        %4725 = vmatpush1.bf16.msra.mxu0 %v2450
        %4726 = vmatprep.subr.bf16.mxu0 %v2455
        %4727 = vmatpush1.bf16.msra.mxu0 %v2454
        %4728 = vmatprep.subr.bf16.mxu0 %v2459
        %4729 = vmatpush1.bf16.msra.mxu0 %v2458
        %4730 = vmatprep.subr.bf16.mxu0 %v2463
        %4731 = vmatpush1.bf16.msra.mxu0 %v2462
        %4732 = vmatprep.subr.bf16.mxu0 %v2467
        %4733 = vmatpush1.bf16.msra.mxu0 %v2466
        %4734 = vmatprep.subr.bf16.mxu0 %v2471
        %4735 = vmatpush1.bf16.msra.mxu0 %v2470
        %4736 = vmatprep.subr.bf16.mxu0 %v2475
        %4737 = vmatpush1.bf16.msra.mxu0 %v2474
        %4738 = vmatprep.subr.bf16.mxu0 %v2479
        %4739 = vmatpush1.bf16.msra.mxu0 %v2478
        %4740 = vmatprep.subr.bf16.mxu0 %v2483
        %4741 = vmatpush1.bf16.msra.mxu0 %v2482
        %4742 = vmatprep.subr.bf16.mxu0 %v2487
        %4743 = vmatpush1.bf16.msra.mxu0 %v2486
        %4744 = vmatprep.mubr.bf16.mxu0 %v2732
        %4745 = vmatmul.mubr.bf16.gmra.mrb[0].mxu0 %v2731
        %v4746 = vpop.f32.mrb[0].mxu0
        %v4747 = vadd.f32 %v4706, %v4746
        %v4748 = vpop.f32.mrb[0].mxu0
        %v4749 = vadd.f32 %v4708, %v4748
        %v4750 = vpop.f32.mrb[0].mxu0
        %v4751 = vpop.f32.mrb[0].mxu0
        %4752 = vdwg.mxu0
        %4753 = vmatprep.subr.bf16.mxu0 %v2491
        %4754 = vmatpush1.bf16.msra.mxu0 %v2490
        %4755 = vmatprep.subr.bf16.mxu0 %v2495
        %4756 = vmatpush1.bf16.msra.mxu0 %v2494
        %4757 = vmatprep.subr.bf16.mxu0 %v2499
        %4758 = vmatpush1.bf16.msra.mxu0 %v2498
        %4759 = vmatprep.subr.bf16.mxu0 %v2503
        %4760 = vmatpush1.bf16.msra.mxu0 %v2502
        %4761 = vmatprep.subr.bf16.mxu0 %v2507
        %4762 = vmatpush1.bf16.msra.mxu0 %v2506
        %4763 = vmatprep.subr.bf16.mxu0 %v2511
        %4764 = vmatpush1.bf16.msra.mxu0 %v2510
        %4765 = vmatprep.subr.bf16.mxu0 %v2515
        %4766 = vmatpush1.bf16.msra.mxu0 %v2514
        %4767 = vmatprep.subr.bf16.mxu0 %v2519
        %4768 = vmatpush1.bf16.msra.mxu0 %v2518
        %4769 = vmatprep.subr.bf16.mxu0 %v2523
        %4770 = vmatpush1.bf16.msra.mxu0 %v2522
        %4771 = vmatprep.subr.bf16.mxu0 %v2527
        %4772 = vmatpush1.bf16.msra.mxu0 %v2526
        %4773 = vmatprep.subr.bf16.mxu0 %v2531
        %4774 = vmatpush1.bf16.msra.mxu0 %v2530
        %4775 = vmatprep.subr.bf16.mxu0 %v2535
        %4776 = vmatpush1.bf16.msra.mxu0 %v2534
        %4777 = vmatprep.subr.bf16.mxu0 %v2539
        %4778 = vmatpush1.bf16.msra.mxu0 %v2538
        %4779 = vmatprep.subr.bf16.mxu0 %v2543
        %4780 = vmatpush1.bf16.msra.mxu0 %v2542
        %4781 = vmatprep.subr.bf16.mxu0 %v2547
        %4782 = vmatpush1.bf16.msra.mxu0 %v2546
        %4783 = vmatprep.subr.bf16.mxu0 %v2551
        %4784 = vmatpush1.bf16.msra.mxu0 %v2550
        %4785 = vmatprep.mubr.bf16.mxu0 %v2734
        %4786 = vmatmul.mubr.bf16.gmra.mrb[0].mxu0 %v2733
        %v4787 = vpop.f32.mrb[0].mxu0
        %v4788 = vadd.f32 %v4747, %v4787
        %v4789 = vpop.f32.mrb[0].mxu0
        %v4790 = vadd.f32 %v4749, %v4789
        %v4791 = vpop.f32.mrb[0].mxu0
        %v4792 = vpop.f32.mrb[0].mxu0
        %4793 = vdwg.mxu0
        %4794 = vmatprep.subr.bf16.mxu0 %v2555
        %4795 = vmatpush1.bf16.msra.mxu0 %v2554
        %4796 = vmatprep.subr.bf16.mxu0 %v2559
        %4797 = vmatpush1.bf16.msra.mxu0 %v2558
        %4798 = vmatprep.subr.bf16.mxu0 %v2563
        %4799 = vmatpush1.bf16.msra.mxu0 %v2562
        %4800 = vmatprep.subr.bf16.mxu0 %v2567
        %4801 = vmatpush1.bf16.msra.mxu0 %v2566
        %4802 = vmatprep.subr.bf16.mxu0 %v2571
        %4803 = vmatpush1.bf16.msra.mxu0 %v2570
        %4804 = vmatprep.subr.bf16.mxu0 %v2575
        %4805 = vmatpush1.bf16.msra.mxu0 %v2574
        %4806 = vmatprep.subr.bf16.mxu0 %v2579
        %4807 = vmatpush1.bf16.msra.mxu0 %v2578
        %4808 = vmatprep.subr.bf16.mxu0 %v2583
        %4809 = vmatpush1.bf16.msra.mxu0 %v2582
        %4810 = vmatprep.subr.bf16.mxu0 0
        %4811 = vmatpush1.bf16.msra.mxu0 0
        %4812 = vmatprep.subr.bf16.mxu0 0
        %4813 = vmatpush1.bf16.msra.mxu0 0
        %4814 = vmatprep.subr.bf16.mxu0 0
        %4815 = vmatpush1.bf16.msra.mxu0 0
        %4816 = vmatprep.subr.bf16.mxu0 0
        %4817 = vmatpush1.bf16.msra.mxu0 0
        %4818 = vmatprep.subr.bf16.mxu0 0
        %4819 = vmatpush1.bf16.msra.mxu0 0
        %4820 = vmatprep.subr.bf16.mxu0 0
        %4821 = vmatpush1.bf16.msra.mxu0 0
        %4822 = vmatprep.subr.bf16.mxu0 0
        %4823 = vmatpush1.bf16.msra.mxu0 0
        %4824 = vmatprep.subr.bf16.mxu0 0
        %4825 = vmatpush1.bf16.msra.mxu0 0
        %4826 = vmatprep.mubr.bf16.mxu0 0
        %4827 = vmatmul.mubr.bf16.gmra.mrb[0].mxu0 %v2735
        %v4828 = vpop.f32.mrb[0].mxu0
        %v4829 = vadd.f32 %v4788, %v4828
        %v4830 = vpop.f32.mrb[0].mxu0
        %v4831 = vadd.f32 %v4790, %v4830
        %v4832 = vpop.f32.mrb[0].mxu0
        %v4833 = vpop.f32.mrb[0].mxu0
        %4834 = vdwg.mxu0
        %v4835 = vadd.f32 %v2584, %v3804
        %v4836 = vadd.f32 %v2585, %v3806
        %v4837 = vadd.f32 %v2586, %v4829
        %v4838 = vadd.f32 %v2587, %v4831
        %4839 = vst [vmem:[%s221] sm:$0xff] %v4835
        %4840 = vst [vmem:[%s221 + $0x8] sm:$0xff] %v4836
        %4841 = vst [vmem:[%s221 + $0x10] sm:$0xff] %v4837
        %4842 = vst [vmem:[%s221 + $0x18] sm:$0xff] %v4838
        %s4843 = smul.u32 4, %s20
        %p4844 = scmp.lt.s32.totalorder %s4843, 7
        %s4845 = scalar_select %p4844, %s4843, 7
        %s4846 = smul.addr %s4845, 8
        %s4847 = scalar_lea.vmem %s2, %s4846
        // Predicated region
        $region37: #{net_forward.2} parent=27 // pred_check
          %p4848 = pneg %p106
        $region38: #{net_forward.2} parent=27 // pred_check_branch
          %4850 = sbr.rel (%p4848) target = $region40
        $region39: #{net_forward.2} parent=27 // pred_region
          %s4851 = smul.u32 4, %s20
        $region40: #{net_forward.2} parent=27 // pred_fallthru
          _
      $region28: #{net_forward.2} parent=5 // pred_fallthru
        _
      %p4852 = scmp.le.s32.totalorder 2, %s11
      // Predicated region
      $region41: #{net_forward.2} parent=5 // pred_check
        %p4853 = pneg %p4852
      $region42: #{net_forward.2} parent=5 // pred_check_branch
        %4855 = sbr.rel (%p4853) target = $region44
      $region43: #{net_forward.2} parent=5 // pred_region
        %s4856 = ssub.s32 %s11, 2
        // Predicated region
        $region45: #{net_forward.2} parent=43 // pred_check
          %p4857 = pneg %p112
        $region46: #{net_forward.2} parent=43 // pred_check_branch
          %4859 = sbr.rel (%p4857) target = $region48
        $region47: #{net_forward.2} parent=43 // pred_region
          %s4860 = smul.u32 4, %s22
          %p4861 = scmp.lt.s32.totalorder %s4860, 7
          %s4862 = scalar_select %p4861, %s4860, 7
          %s4863 = smul.addr %s4862, 8
          %s4864 = scalar_lea.vmem %s2, %s4863
        $region48: #{net_forward.2} parent=43 // pred_fallthru
          _
      $region44: #{net_forward.2} parent=5 // pred_fallthru
        _
    $region6: #{net_forward.2} parent=1 // loop_footer
      %s15 = sadd.s32 1, %s11
    $region7: #{net_forward.2} parent=1 // loop_footer_branch
      %10 = sbr.rel target = $region3
    $region8: #{net_forward.2} parent=1 // loop_exit
      _
    %4865 = vsyncpa [#allocation3], 1
    %s4866 = scalar_lea.sflag [#allocation3], 1
    %4867 = vsyncpa %s4866, 1

</llo_original>
